<compile_context>
chip_gen: v6e
topology: v6e:2x2x1
jax: 0.10.0
libtpu: 0.0.40
codegen_flags: <defaults>
</compile_context>

<pallas_src>
import functools

import jax
import jax.numpy as jnp
from jax.experimental import pallas as pl
from jax.experimental.pallas import tpu as pltpu

NUM_MODES = 6
HIDDEN = 256           # hidden width hard-coded in the torch module
H2 = 2 * HIDDEN        # loc/pi branch layer-1 fused -> 512 lanes


def _round_up(a, b):
    return (a + b - 1) // b * b


def _decoder_kernel(x_ref, w1_ref, b1_ref, w2_ref, b2_ref, w3_ref, b3_ref,
                    out_ref, a1_ref):
    """One batch tile: x (TN, D) -> out (6, WIDTH, TN); lanes = TN (dense)."""
    tn = x_ref.shape[0]
    width = out_ref.shape[1]                               # 2F + 1

    x = x_ref[...].astype(jnp.bfloat16)                    # (TN, D) bf16

    # ---- Layer 1 (multimodal projection folded in), per mode ---------------
    # f32 accumulate + bias + ReLU in f32, cast to bf16 into the stacked scratch.
    for k in range(NUM_MODES):
        a = jnp.dot(x, w1_ref[k], preferred_element_type=jnp.float32) + b1_ref[k]
        a1_ref[pl.ds(k * tn, tn), :] = jnp.maximum(a, 0.0).astype(jnp.bfloat16)

    # ---- Layers 2 + 3 per mode (small live set, lane-dense stores) ---------
    w2 = w2_ref[...]
    b2 = b2_ref[...]
    w3 = w3_ref[...]
    b3 = b3_ref[...]
    for k in range(NUM_MODES):
        a1k = a1_ref[pl.ds(k * tn, tn), :]                              # (TN, 512) bf16
        a2 = jnp.dot(a1k, w2, preferred_element_type=jnp.float32) + b2  # (TN, 2D) f32
        a2 = jnp.maximum(a2, 0.0).astype(jnp.bfloat16)
        o = jnp.dot(a2, w3, preferred_element_type=jnp.float32) + b3    # (TN, WPAD) f32
        # Aligned (TN, WPAD=128k)->(WPAD, TN) transpose on the XLU, keep only
        # the real output rows; the store's lane axis is TN (multiple of 128).
        out_ref[k, :, :] = o.T[:width, :]


def _choose_block(n, block_rows):
    """Batch tile: multiple of 128, <= block_rows, >=2 grid steps for moderate N."""
    block_rows = max(128, _round_up(block_rows, 128))
    half = _round_up(max((n + 1) // 2, 1), 128)
    return min(block_rows, half)


@functools.partial(jax.jit, static_argnames=("future_steps", "block_rows"))
def multimodal_decoder(x, params, *, future_steps, block_rows=512):
    (wmm, bmm, wl1, bl1, wl2, bl2, wl3, bl3,
     wp1, bp1, wp2, bp2, wp3, bp3) = params
    n, d = x.shape
    f2 = 2 * future_steps
    width = f2 + 1                        # loc lanes + one pi lane
    wpad = _round_up(width, 128)          # padded layer-3 fan-out (MXU / XLU lanes)

    # ---------------- parameter packing (tiny, wrapper side) ----------------
    wmm_m = jnp.transpose(wmm.reshape(d, NUM_MODES, d), (1, 0, 2))     # (6, D, D)
    bmm_m = bmm.reshape(NUM_MODES, d)                                  # (6, D)

    # loc/pi branch layer 1 fused on the output axis, projection folded in.
    w1cat = jnp.concatenate([wl1, wp1], axis=1)                        # (D, 512)
    b1cat = jnp.concatenate([bl1, bp1], axis=1)                        # (1, 512)
    w1m = jnp.einsum("kde,eh->kdh", wmm_m, w1cat)                      # (6, D, 512)
    b1m = (bmm_m @ w1cat + b1cat).reshape(NUM_MODES, 1, H2)            # (6, 1, 512)

    # Layers 2/3 block-diagonalized over {loc, pi}.
    zl = jnp.zeros((HIDDEN, d), jnp.float32)
    w2bd = jnp.concatenate(
        [jnp.concatenate([wl2, zl], axis=1),
         jnp.concatenate([zl, wp2], axis=1)], axis=0)                  # (512, 2D)
    b2bd = jnp.concatenate([bl2, bp2], axis=1)                         # (1, 2D)

    w3bd = jnp.concatenate(
        [jnp.concatenate([wl3, jnp.zeros((d, 1), jnp.float32)], axis=1),
         jnp.concatenate([jnp.zeros((d, f2), jnp.float32), wp3], axis=1)],
        axis=0)                                                        # (2D, width)
    b3bd = jnp.concatenate([bl3, bp3], axis=1)                         # (1, width)
    # Pad layer-3 fan-out to a lane multiple (kept zero); dropped before store.
    w3p = jnp.pad(w3bd, ((0, 0), (0, wpad - width)))
    b3p = jnp.pad(b3bd, ((0, 0), (0, wpad - width)))

    # bf16 matmul operands; biases and accumulation stay f32.
    w1m = w1m.astype(jnp.bfloat16)
    w2bd_b = w2bd.astype(jnp.bfloat16)
    w3p = w3p.astype(jnp.bfloat16)

    # ---------------- batch tiling ------------------------------------------
    bn = _choose_block(n, block_rows)
    n_pad = _round_up(n, bn)
    xp = x if n_pad == n else jnp.pad(x, ((0, n_pad - n), (0, 0)))

    def const_spec(arr):
        nd = arr.ndim
        return pl.BlockSpec(arr.shape, lambda i, _nd=nd: (0,) * _nd)

    out = pl.pallas_call(
        _decoder_kernel,
        out_shape=jax.ShapeDtypeStruct((NUM_MODES, width, n_pad), jnp.float32),
        grid=(n_pad // bn,),
        in_specs=[pl.BlockSpec((bn, d), lambda i: (i, 0)),
                  const_spec(w1m), const_spec(b1m),
                  const_spec(w2bd_b), const_spec(b2bd),
                  const_spec(w3p), const_spec(b3p)],
        out_specs=pl.BlockSpec((NUM_MODES, width, bn), lambda i: (0, 0, i)),
        scratch_shapes=[pltpu.VMEM((NUM_MODES * bn, H2), jnp.bfloat16)],
        compiler_params=pltpu.CompilerParams(
            dimension_semantics=("parallel",),
            vmem_limit_bytes=32 * 1024 * 1024),
    )(xp, w1m, b1m, w2bd_b, b2bd, w3p, b3p)

    out = jnp.transpose(out[:, :, :n], (2, 0, 1))           # (N, 6, width)
    loc = out[..., :f2].reshape(n, NUM_MODES, future_steps, 2)
    pi = out[..., f2]                                       # (N, 6)
    return loc, pi


# ---------------------------- test harness ----------------------------------
def init_params(key, embed_dim, future_steps):
    d, f2 = embed_dim, 2 * future_steps
    keys = iter(jax.random.split(key, 16))

    def lin(fin, fout):
        kw, kb = jax.random.split(next(keys))
        w = jax.random.normal(kw, (fin, fout), jnp.float32) * 0.05
        b = jax.random.normal(kb, (1, fout), jnp.float32) * 0.05
        return w, b

    wmm, bmm = lin(d, NUM_MODES * d)
    wl1, bl1 = lin(d, HIDDEN)
    wl2, bl2 = lin(HIDDEN, d)
    wl3, bl3 = lin(d, f2)
    wp1, bp1 = lin(d, HIDDEN)
    wp2, bp2 = lin(HIDDEN, d)
    wp3, bp3 = lin(d, 1)
    return (wmm, bmm, wl1, bl1, wl2, bl2, wl3, bl3,
            wp1, bp1, wp2, bp2, wp3, bp3)


def reference(x, params, future_steps):
    """Pure-JAX mirror of MultimodalDecoder.forward (f32 throughout)."""
    (wmm, bmm, wl1, bl1, wl2, bl2, wl3, bl3,
     wp1, bp1, wp2, bp2, wp3, bp3) = params
    n, d = x.shape
    h = (x @ wmm + bmm).reshape(n, NUM_MODES, d)
    a = jnp.maximum(h @ wl1 + bl1, 0.0)
    a = jnp.maximum(a @ wl2 + bl2, 0.0)
    loc = (a @ wl3 + bl3).reshape(n, NUM_MODES, future_steps, 2)
    p = jnp.maximum(h @ wp1 + bp1, 0.0)
    p = jnp.maximum(p @ wp2 + bp2, 0.0)
    pi = (p @ wp3 + bp3)[..., 0]
    return loc, pi


if __name__ == "__main__":
    embed_dim, future_steps = 32, 8

    key = jax.random.PRNGKey(0)
    kp, kx1, kx2 = jax.random.split(key, 3)
    params = init_params(kp, embed_dim, future_steps)

    # Small batch (single tile) and a larger one (padding + >=2 grid steps).
    for batch, kx in ((16, kx1), (500, kx2)):
        x = jax.random.normal(kx, (batch, embed_dim), jnp.float32)
        loc, pi = multimodal_decoder(x, params, future_steps=future_steps)
        jax.block_until_ready((loc, pi))

        ref_loc, ref_pi = reference(x, params, future_steps)

        assert loc.shape == (batch, NUM_MODES, future_steps, 2), loc.shape
        assert pi.shape == (batch, NUM_MODES), pi.shape
        # bf16 matmul operands (f32 accumulate) -> compare at bf16 tolerance.
        assert jnp.allclose(loc, ref_loc, atol=1e-2, rtol=1e-2), \
            float(jnp.max(jnp.abs(loc - ref_loc)))
        assert jnp.allclose(pi, ref_pi, atol=1e-2, rtol=1e-2), \
            float(jnp.max(jnp.abs(pi - ref_pi)))

    print("KERNEL_OK")
</pallas_src>

<mosaic_0001>
module attributes {stable_mosaic.version = 11 : i64} {
  func.func @_decoder_kernel(%arg0: i32, %arg1: memref<128x32xf32, #tpu.memory_space<vmem>>, %arg2: memref<6x32x512xbf16, #tpu.memory_space<vmem>>, %arg3: memref<6x1x512xf32, #tpu.memory_space<vmem>>, %arg4: memref<512x64xbf16, #tpu.memory_space<vmem>>, %arg5: memref<1x64xf32, #tpu.memory_space<vmem>>, %arg6: memref<64x128xbf16, #tpu.memory_space<vmem>>, %arg7: memref<1x128xf32, #tpu.memory_space<vmem>>, %arg8: memref<6x17x128xf32, #tpu.memory_space<vmem>>, %arg9: memref<768x512xbf16, #tpu.memory_space<vmem>>) attributes {dimension_semantics = [#tpu.dimension_semantics<parallel>], iteration_bounds = array<i64: 1>, scalar_prefetch = 0 : i64, scratch_operands = 1 : i64, tpu.core_type = #tpu.core_type<tc>, window_params = [{transform_indices = @transform_0, window_bounds = array<i64: 128, 32>}, {pipeline_mode = #tpu.pipeline_mode<synchronous>, transform_indices = @transform_1, window_bounds = array<i64: 6, 32, 512>}, {pipeline_mode = #tpu.pipeline_mode<synchronous>, transform_indices = @transform_2, window_bounds = array<i64: 6, 1, 512>}, {pipeline_mode = #tpu.pipeline_mode<synchronous>, transform_indices = @transform_3, window_bounds = array<i64: 512, 64>}, {pipeline_mode = #tpu.pipeline_mode<synchronous>, transform_indices = @transform_4, window_bounds = array<i64: 1, 64>}, {pipeline_mode = #tpu.pipeline_mode<synchronous>, transform_indices = @transform_5, window_bounds = array<i64: 64, 128>}, {pipeline_mode = #tpu.pipeline_mode<synchronous>, transform_indices = @transform_6, window_bounds = array<i64: 1, 128>}, {transform_indices = @transform_7, window_bounds = array<i64: 6, 17, 128>}]} {
    %c0 = arith.constant 0 : index
    %c0_0 = arith.constant 0 : index
    %0 = vector.load %arg1[%c0, %c0_0] : memref<128x32xf32, #tpu.memory_space<vmem>>, vector<128x32xf32>
    %1 = arith.truncf %0 : vector<128x32xf32> to vector<128x32xbf16>
    %c0_1 = arith.constant 0 : index
    %c0_2 = arith.constant 0 : index
    %c0_3 = arith.constant 0 : index
    %2 = vector.load %arg2[%c0_1, %c0_2, %c0_3] : memref<6x32x512xbf16, #tpu.memory_space<vmem>>, vector<1x32x512xbf16>
    %3 = vector.shape_cast %2 : vector<1x32x512xbf16> to vector<32x512xbf16>
    %cst = arith.constant dense<0.000000e+00> : vector<128x512xf32>
    %4 = tpu.matmul %1, %3, %cst {dimension_numbers = #tpu.dot_dimension_numbers<[1], [0], [0], [1], [0, 0, 1, 1], [], []>} : vector<128x32xbf16>, vector<32x512xbf16>, vector<128x512xf32> -> vector<128x512xf32>
    %c0_4 = arith.constant 0 : index
    %c0_5 = arith.constant 0 : index
    %c0_6 = arith.constant 0 : index
    %5 = vector.load %arg3[%c0_4, %c0_5, %c0_6] : memref<6x1x512xf32, #tpu.memory_space<vmem>>, vector<1x1x512xf32>
    %6 = vector.shape_cast %5 : vector<1x1x512xf32> to vector<1x512xf32>
    %7 = vector.broadcast %6 : vector<1x512xf32> to vector<128x512xf32>
    %8 = arith.addf %4, %7 : vector<128x512xf32>
    %cst_7 = arith.constant 0.000000e+00 : f32
    %9 = vector.broadcast %cst_7 : f32 to vector<128x512xf32>
    %10 = arith.maximumf %8, %9 : vector<128x512xf32>
    %11 = arith.truncf %10 : vector<128x512xf32> to vector<128x512xbf16>
    %c0_8 = arith.constant 0 : index
    %c0_9 = arith.constant 0 : index
    %12 = vector.load %arg9[%c0_8, %c0_9] : memref<768x512xbf16, #tpu.memory_space<vmem>>, vector<128x512xbf16>
    tpu.vector_store %arg9[%c0_8, %c0_9], %11 {strides = array<i32>} : memref<768x512xbf16, #tpu.memory_space<vmem>>, vector<128x512xbf16>,
    %c1 = arith.constant 1 : index
    %c0_10 = arith.constant 0 : index
    %c0_11 = arith.constant 0 : index
    %13 = vector.load %arg2[%c1, %c0_10, %c0_11] : memref<6x32x512xbf16, #tpu.memory_space<vmem>>, vector<1x32x512xbf16>
    %14 = vector.shape_cast %13 : vector<1x32x512xbf16> to vector<32x512xbf16>
    %cst_12 = arith.constant dense<0.000000e+00> : vector<128x512xf32>
    %15 = tpu.matmul %1, %14, %cst_12 {dimension_numbers = #tpu.dot_dimension_numbers<[1], [0], [0], [1], [0, 0, 1, 1], [], []>} : vector<128x32xbf16>, vector<32x512xbf16>, vector<128x512xf32> -> vector<128x512xf32>
    %c1_13 = arith.constant 1 : index
    %c0_14 = arith.constant 0 : index
    %c0_15 = arith.constant 0 : index
    %16 = vector.load %arg3[%c1_13, %c0_14, %c0_15] : memref<6x1x512xf32, #tpu.memory_space<vmem>>, vector<1x1x512xf32>
    %17 = vector.shape_cast %16 : vector<1x1x512xf32> to vector<1x512xf32>
    %18 = vector.broadcast %17 : vector<1x512xf32> to vector<128x512xf32>
    %19 = arith.addf %15, %18 : vector<128x512xf32>
    %cst_16 = arith.constant 0.000000e+00 : f32
    %20 = vector.broadcast %cst_16 : f32 to vector<128x512xf32>
    %21 = arith.maximumf %19, %20 : vector<128x512xf32>
    %22 = arith.truncf %21 : vector<128x512xf32> to vector<128x512xbf16>
    %c128 = arith.constant 128 : index
    %c0_17 = arith.constant 0 : index
    %23 = vector.load %arg9[%c128, %c0_17] : memref<768x512xbf16, #tpu.memory_space<vmem>>, vector<128x512xbf16>
    tpu.vector_store %arg9[%c128, %c0_17], %22 {strides = array<i32>} : memref<768x512xbf16, #tpu.memory_space<vmem>>, vector<128x512xbf16>,
    %c2 = arith.constant 2 : index
    %c0_18 = arith.constant 0 : index
    %c0_19 = arith.constant 0 : index
    %24 = vector.load %arg2[%c2, %c0_18, %c0_19] : memref<6x32x512xbf16, #tpu.memory_space<vmem>>, vector<1x32x512xbf16>
    %25 = vector.shape_cast %24 : vector<1x32x512xbf16> to vector<32x512xbf16>
    %cst_20 = arith.constant dense<0.000000e+00> : vector<128x512xf32>
    %26 = tpu.matmul %1, %25, %cst_20 {dimension_numbers = #tpu.dot_dimension_numbers<[1], [0], [0], [1], [0, 0, 1, 1], [], []>} : vector<128x32xbf16>, vector<32x512xbf16>, vector<128x512xf32> -> vector<128x512xf32>
    %c2_21 = arith.constant 2 : index
    %c0_22 = arith.constant 0 : index
    %c0_23 = arith.constant 0 : index
    %27 = vector.load %arg3[%c2_21, %c0_22, %c0_23] : memref<6x1x512xf32, #tpu.memory_space<vmem>>, vector<1x1x512xf32>
    %28 = vector.shape_cast %27 : vector<1x1x512xf32> to vector<1x512xf32>
    %29 = vector.broadcast %28 : vector<1x512xf32> to vector<128x512xf32>
    %30 = arith.addf %26, %29 : vector<128x512xf32>
    %cst_24 = arith.constant 0.000000e+00 : f32
    %31 = vector.broadcast %cst_24 : f32 to vector<128x512xf32>
    %32 = arith.maximumf %30, %31 : vector<128x512xf32>
    %33 = arith.truncf %32 : vector<128x512xf32> to vector<128x512xbf16>
    %c256 = arith.constant 256 : index
    %c0_25 = arith.constant 0 : index
    %34 = vector.load %arg9[%c256, %c0_25] : memref<768x512xbf16, #tpu.memory_space<vmem>>, vector<128x512xbf16>
    tpu.vector_store %arg9[%c256, %c0_25], %33 {strides = array<i32>} : memref<768x512xbf16, #tpu.memory_space<vmem>>, vector<128x512xbf16>,
    %c3 = arith.constant 3 : index
    %c0_26 = arith.constant 0 : index
    %c0_27 = arith.constant 0 : index
    %35 = vector.load %arg2[%c3, %c0_26, %c0_27] : memref<6x32x512xbf16, #tpu.memory_space<vmem>>, vector<1x32x512xbf16>
    %36 = vector.shape_cast %35 : vector<1x32x512xbf16> to vector<32x512xbf16>
    %cst_28 = arith.constant dense<0.000000e+00> : vector<128x512xf32>
    %37 = tpu.matmul %1, %36, %cst_28 {dimension_numbers = #tpu.dot_dimension_numbers<[1], [0], [0], [1], [0, 0, 1, 1], [], []>} : vector<128x32xbf16>, vector<32x512xbf16>, vector<128x512xf32> -> vector<128x512xf32>
    %c3_29 = arith.constant 3 : index
    %c0_30 = arith.constant 0 : index
    %c0_31 = arith.constant 0 : index
    %38 = vector.load %arg3[%c3_29, %c0_30, %c0_31] : memref<6x1x512xf32, #tpu.memory_space<vmem>>, vector<1x1x512xf32>
    %39 = vector.shape_cast %38 : vector<1x1x512xf32> to vector<1x512xf32>
    %40 = vector.broadcast %39 : vector<1x512xf32> to vector<128x512xf32>
    %41 = arith.addf %37, %40 : vector<128x512xf32>
    %cst_32 = arith.constant 0.000000e+00 : f32
    %42 = vector.broadcast %cst_32 : f32 to vector<128x512xf32>
    %43 = arith.maximumf %41, %42 : vector<128x512xf32>
    %44 = arith.truncf %43 : vector<128x512xf32> to vector<128x512xbf16>
    %c384 = arith.constant 384 : index
    %c0_33 = arith.constant 0 : index
    %45 = vector.load %arg9[%c384, %c0_33] : memref<768x512xbf16, #tpu.memory_space<vmem>>, vector<128x512xbf16>
    tpu.vector_store %arg9[%c384, %c0_33], %44 {strides = array<i32>} : memref<768x512xbf16, #tpu.memory_space<vmem>>, vector<128x512xbf16>,
    %c4 = arith.constant 4 : index
    %c0_34 = arith.constant 0 : index
    %c0_35 = arith.constant 0 : index
    %46 = vector.load %arg2[%c4, %c0_34, %c0_35] : memref<6x32x512xbf16, #tpu.memory_space<vmem>>, vector<1x32x512xbf16>
    %47 = vector.shape_cast %46 : vector<1x32x512xbf16> to vector<32x512xbf16>
    %cst_36 = arith.constant dense<0.000000e+00> : vector<128x512xf32>
    %48 = tpu.matmul %1, %47, %cst_36 {dimension_numbers = #tpu.dot_dimension_numbers<[1], [0], [0], [1], [0, 0, 1, 1], [], []>} : vector<128x32xbf16>, vector<32x512xbf16>, vector<128x512xf32> -> vector<128x512xf32>
    %c4_37 = arith.constant 4 : index
    %c0_38 = arith.constant 0 : index
    %c0_39 = arith.constant 0 : index
    %49 = vector.load %arg3[%c4_37, %c0_38, %c0_39] : memref<6x1x512xf32, #tpu.memory_space<vmem>>, vector<1x1x512xf32>
    %50 = vector.shape_cast %49 : vector<1x1x512xf32> to vector<1x512xf32>
    %51 = vector.broadcast %50 : vector<1x512xf32> to vector<128x512xf32>
    %52 = arith.addf %48, %51 : vector<128x512xf32>
    %cst_40 = arith.constant 0.000000e+00 : f32
    %53 = vector.broadcast %cst_40 : f32 to vector<128x512xf32>
    %54 = arith.maximumf %52, %53 : vector<128x512xf32>
    %55 = arith.truncf %54 : vector<128x512xf32> to vector<128x512xbf16>
    %c512 = arith.constant 512 : index
    %c0_41 = arith.constant 0 : index
    %56 = vector.load %arg9[%c512, %c0_41] : memref<768x512xbf16, #tpu.memory_space<vmem>>, vector<128x512xbf16>
    tpu.vector_store %arg9[%c512, %c0_41], %55 {strides = array<i32>} : memref<768x512xbf16, #tpu.memory_space<vmem>>, vector<128x512xbf16>,
    %c5 = arith.constant 5 : index
    %c0_42 = arith.constant 0 : index
    %c0_43 = arith.constant 0 : index
    %57 = vector.load %arg2[%c5, %c0_42, %c0_43] : memref<6x32x512xbf16, #tpu.memory_space<vmem>>, vector<1x32x512xbf16>
    %58 = vector.shape_cast %57 : vector<1x32x512xbf16> to vector<32x512xbf16>
    %cst_44 = arith.constant dense<0.000000e+00> : vector<128x512xf32>
    %59 = tpu.matmul %1, %58, %cst_44 {dimension_numbers = #tpu.dot_dimension_numbers<[1], [0], [0], [1], [0, 0, 1, 1], [], []>} : vector<128x32xbf16>, vector<32x512xbf16>, vector<128x512xf32> -> vector<128x512xf32>
    %c5_45 = arith.constant 5 : index
    %c0_46 = arith.constant 0 : index
    %c0_47 = arith.constant 0 : index
    %60 = vector.load %arg3[%c5_45, %c0_46, %c0_47] : memref<6x1x512xf32, #tpu.memory_space<vmem>>, vector<1x1x512xf32>
    %61 = vector.shape_cast %60 : vector<1x1x512xf32> to vector<1x512xf32>
    %62 = vector.broadcast %61 : vector<1x512xf32> to vector<128x512xf32>
    %63 = arith.addf %59, %62 : vector<128x512xf32>
    %cst_48 = arith.constant 0.000000e+00 : f32
    %64 = vector.broadcast %cst_48 : f32 to vector<128x512xf32>
    %65 = arith.maximumf %63, %64 : vector<128x512xf32>
    %66 = arith.truncf %65 : vector<128x512xf32> to vector<128x512xbf16>
    %c640 = arith.constant 640 : index
    %c0_49 = arith.constant 0 : index
    %67 = vector.load %arg9[%c640, %c0_49] : memref<768x512xbf16, #tpu.memory_space<vmem>>, vector<128x512xbf16>
    tpu.vector_store %arg9[%c640, %c0_49], %66 {strides = array<i32>} : memref<768x512xbf16, #tpu.memory_space<vmem>>, vector<128x512xbf16>,
    %c0_50 = arith.constant 0 : index
    %c0_51 = arith.constant 0 : index
    %68 = vector.load %arg4[%c0_50, %c0_51] : memref<512x64xbf16, #tpu.memory_space<vmem>>, vector<512x64xbf16>
    %c0_52 = arith.constant 0 : index
    %c0_53 = arith.constant 0 : index
    %69 = vector.load %arg5[%c0_52, %c0_53] : memref<1x64xf32, #tpu.memory_space<vmem>>, vector<1x64xf32>
    %c0_54 = arith.constant 0 : index
    %c0_55 = arith.constant 0 : index
    %70 = vector.load %arg6[%c0_54, %c0_55] : memref<64x128xbf16, #tpu.memory_space<vmem>>, vector<64x128xbf16>
    %c0_56 = arith.constant 0 : index
    %c0_57 = arith.constant 0 : index
    %71 = vector.load %arg7[%c0_56, %c0_57] : memref<1x128xf32, #tpu.memory_space<vmem>>, vector<1x128xf32>
    %c0_58 = arith.constant 0 : index
    %c0_59 = arith.constant 0 : index
    %72 = vector.load %arg9[%c0_58, %c0_59] : memref<768x512xbf16, #tpu.memory_space<vmem>>, vector<128x512xbf16>
    %cst_60 = arith.constant dense<0.000000e+00> : vector<128x64xf32>
    %73 = tpu.matmul %72, %68, %cst_60 {dimension_numbers = #tpu.dot_dimension_numbers<[1], [0], [0], [1], [0, 0, 1, 1], [], []>} : vector<128x512xbf16>, vector<512x64xbf16>, vector<128x64xf32> -> vector<128x64xf32>
    %74 = vector.broadcast %69 : vector<1x64xf32> to vector<128x64xf32>
    %75 = arith.addf %73, %74 : vector<128x64xf32>
    %cst_61 = arith.constant 0.000000e+00 : f32
    %76 = vector.broadcast %cst_61 : f32 to vector<128x64xf32>
    %77 = arith.maximumf %75, %76 : vector<128x64xf32>
    %78 = arith.truncf %77 : vector<128x64xf32> to vector<128x64xbf16>
    %cst_62 = arith.constant dense<0.000000e+00> : vector<128x128xf32>
    %79 = tpu.matmul %78, %70, %cst_62 {dimension_numbers = #tpu.dot_dimension_numbers<[1], [0], [0], [1], [0, 0, 1, 1], [], []>} : vector<128x64xbf16>, vector<64x128xbf16>, vector<128x128xf32> -> vector<128x128xf32>
    %80 = vector.broadcast %71 : vector<1x128xf32> to vector<128x128xf32>
    %81 = arith.addf %79, %80 : vector<128x128xf32>
    %82 = tpu.transpose %81, [1, 0] : vector<128x128xf32> -> vector<128x128xf32>
    %83 = vector.extract_strided_slice %82 {offsets = [0, 0], sizes = [17, 128], strides = [1, 1]} : vector<128x128xf32> to vector<17x128xf32>
    %c0_63 = arith.constant 0 : index
    %c0_64 = arith.constant 0 : index
    %c0_65 = arith.constant 0 : index
    %84 = vector.load %arg8[%c0_63, %c0_64, %c0_65] : memref<6x17x128xf32, #tpu.memory_space<vmem>>, vector<1x17x128xf32>
    %85 = vector.shape_cast %84 : vector<1x17x128xf32> to vector<17x128xf32>
    %86 = vector.shape_cast %83 : vector<17x128xf32> to vector<1x17x128xf32>
    tpu.vector_store %arg8[%c0_63, %c0_64, %c0_65], %86 {strides = array<i32>} : memref<6x17x128xf32, #tpu.memory_space<vmem>>, vector<1x17x128xf32>,
    %c128_66 = arith.constant 128 : index
    %c0_67 = arith.constant 0 : index
    %87 = vector.load %arg9[%c128_66, %c0_67] : memref<768x512xbf16, #tpu.memory_space<vmem>>, vector<128x512xbf16>
    %cst_68 = arith.constant dense<0.000000e+00> : vector<128x64xf32>
    %88 = tpu.matmul %87, %68, %cst_68 {dimension_numbers = #tpu.dot_dimension_numbers<[1], [0], [0], [1], [0, 0, 1, 1], [], []>} : vector<128x512xbf16>, vector<512x64xbf16>, vector<128x64xf32> -> vector<128x64xf32>
    %89 = vector.broadcast %69 : vector<1x64xf32> to vector<128x64xf32>
    %90 = arith.addf %88, %89 : vector<128x64xf32>
    %cst_69 = arith.constant 0.000000e+00 : f32
    %91 = vector.broadcast %cst_69 : f32 to vector<128x64xf32>
    %92 = arith.maximumf %90, %91 : vector<128x64xf32>
    %93 = arith.truncf %92 : vector<128x64xf32> to vector<128x64xbf16>
    %cst_70 = arith.constant dense<0.000000e+00> : vector<128x128xf32>
    %94 = tpu.matmul %93, %70, %cst_70 {dimension_numbers = #tpu.dot_dimension_numbers<[1], [0], [0], [1], [0, 0, 1, 1], [], []>} : vector<128x64xbf16>, vector<64x128xbf16>, vector<128x128xf32> -> vector<128x128xf32>
    %95 = vector.broadcast %71 : vector<1x128xf32> to vector<128x128xf32>
    %96 = arith.addf %94, %95 : vector<128x128xf32>
    %97 = tpu.transpose %96, [1, 0] : vector<128x128xf32> -> vector<128x128xf32>
    %98 = vector.extract_strided_slice %97 {offsets = [0, 0], sizes = [17, 128], strides = [1, 1]} : vector<128x128xf32> to vector<17x128xf32>
    %c1_71 = arith.constant 1 : index
    %c0_72 = arith.constant 0 : index
    %c0_73 = arith.constant 0 : index
    %99 = vector.load %arg8[%c1_71, %c0_72, %c0_73] : memref<6x17x128xf32, #tpu.memory_space<vmem>>, vector<1x17x128xf32>
    %100 = vector.shape_cast %99 : vector<1x17x128xf32> to vector<17x128xf32>
    %101 = vector.shape_cast %98 : vector<17x128xf32> to vector<1x17x128xf32>
    tpu.vector_store %arg8[%c1_71, %c0_72, %c0_73], %101 {strides = array<i32>} : memref<6x17x128xf32, #tpu.memory_space<vmem>>, vector<1x17x128xf32>,
    %c256_74 = arith.constant 256 : index
    %c0_75 = arith.constant 0 : index
    %102 = vector.load %arg9[%c256_74, %c0_75] : memref<768x512xbf16, #tpu.memory_space<vmem>>, vector<128x512xbf16>
    %cst_76 = arith.constant dense<0.000000e+00> : vector<128x64xf32>
    %103 = tpu.matmul %102, %68, %cst_76 {dimension_numbers = #tpu.dot_dimension_numbers<[1], [0], [0], [1], [0, 0, 1, 1], [], []>} : vector<128x512xbf16>, vector<512x64xbf16>, vector<128x64xf32> -> vector<128x64xf32>
    %104 = vector.broadcast %69 : vector<1x64xf32> to vector<128x64xf32>
    %105 = arith.addf %103, %104 : vector<128x64xf32>
    %cst_77 = arith.constant 0.000000e+00 : f32
    %106 = vector.broadcast %cst_77 : f32 to vector<128x64xf32>
    %107 = arith.maximumf %105, %106 : vector<128x64xf32>
    %108 = arith.truncf %107 : vector<128x64xf32> to vector<128x64xbf16>
    %cst_78 = arith.constant dense<0.000000e+00> : vector<128x128xf32>
    %109 = tpu.matmul %108, %70, %cst_78 {dimension_numbers = #tpu.dot_dimension_numbers<[1], [0], [0], [1], [0, 0, 1, 1], [], []>} : vector<128x64xbf16>, vector<64x128xbf16>, vector<128x128xf32> -> vector<128x128xf32>
    %110 = vector.broadcast %71 : vector<1x128xf32> to vector<128x128xf32>
    %111 = arith.addf %109, %110 : vector<128x128xf32>
    %112 = tpu.transpose %111, [1, 0] : vector<128x128xf32> -> vector<128x128xf32>
    %113 = vector.extract_strided_slice %112 {offsets = [0, 0], sizes = [17, 128], strides = [1, 1]} : vector<128x128xf32> to vector<17x128xf32>
    %c2_79 = arith.constant 2 : index
    %c0_80 = arith.constant 0 : index
    %c0_81 = arith.constant 0 : index
    %114 = vector.load %arg8[%c2_79, %c0_80, %c0_81] : memref<6x17x128xf32, #tpu.memory_space<vmem>>, vector<1x17x128xf32>
    %115 = vector.shape_cast %114 : vector<1x17x128xf32> to vector<17x128xf32>
    %116 = vector.shape_cast %113 : vector<17x128xf32> to vector<1x17x128xf32>
    tpu.vector_store %arg8[%c2_79, %c0_80, %c0_81], %116 {strides = array<i32>} : memref<6x17x128xf32, #tpu.memory_space<vmem>>, vector<1x17x128xf32>,
    %c384_82 = arith.constant 384 : index
    %c0_83 = arith.constant 0 : index
    %117 = vector.load %arg9[%c384_82, %c0_83] : memref<768x512xbf16, #tpu.memory_space<vmem>>, vector<128x512xbf16>
    %cst_84 = arith.constant dense<0.000000e+00> : vector<128x64xf32>
    %118 = tpu.matmul %117, %68, %cst_84 {dimension_numbers = #tpu.dot_dimension_numbers<[1], [0], [0], [1], [0, 0, 1, 1], [], []>} : vector<128x512xbf16>, vector<512x64xbf16>, vector<128x64xf32> -> vector<128x64xf32>
    %119 = vector.broadcast %69 : vector<1x64xf32> to vector<128x64xf32>
    %120 = arith.addf %118, %119 : vector<128x64xf32>
    %cst_85 = arith.constant 0.000000e+00 : f32
    %121 = vector.broadcast %cst_85 : f32 to vector<128x64xf32>
    %122 = arith.maximumf %120, %121 : vector<128x64xf32>
    %123 = arith.truncf %122 : vector<128x64xf32> to vector<128x64xbf16>
    %cst_86 = arith.constant dense<0.000000e+00> : vector<128x128xf32>
    %124 = tpu.matmul %123, %70, %cst_86 {dimension_numbers = #tpu.dot_dimension_numbers<[1], [0], [0], [1], [0, 0, 1, 1], [], []>} : vector<128x64xbf16>, vector<64x128xbf16>, vector<128x128xf32> -> vector<128x128xf32>
    %125 = vector.broadcast %71 : vector<1x128xf32> to vector<128x128xf32>
    %126 = arith.addf %124, %125 : vector<128x128xf32>
    %127 = tpu.transpose %126, [1, 0] : vector<128x128xf32> -> vector<128x128xf32>
    %128 = vector.extract_strided_slice %127 {offsets = [0, 0], sizes = [17, 128], strides = [1, 1]} : vector<128x128xf32> to vector<17x128xf32>
    %c3_87 = arith.constant 3 : index
    %c0_88 = arith.constant 0 : index
    %c0_89 = arith.constant 0 : index
    %129 = vector.load %arg8[%c3_87, %c0_88, %c0_89] : memref<6x17x128xf32, #tpu.memory_space<vmem>>, vector<1x17x128xf32>
    %130 = vector.shape_cast %129 : vector<1x17x128xf32> to vector<17x128xf32>
    %131 = vector.shape_cast %128 : vector<17x128xf32> to vector<1x17x128xf32>
    tpu.vector_store %arg8[%c3_87, %c0_88, %c0_89], %131 {strides = array<i32>} : memref<6x17x128xf32, #tpu.memory_space<vmem>>, vector<1x17x128xf32>,
    %c512_90 = arith.constant 512 : index
    %c0_91 = arith.constant 0 : index
    %132 = vector.load %arg9[%c512_90, %c0_91] : memref<768x512xbf16, #tpu.memory_space<vmem>>, vector<128x512xbf16>
    %cst_92 = arith.constant dense<0.000000e+00> : vector<128x64xf32>
    %133 = tpu.matmul %132, %68, %cst_92 {dimension_numbers = #tpu.dot_dimension_numbers<[1], [0], [0], [1], [0, 0, 1, 1], [], []>} : vector<128x512xbf16>, vector<512x64xbf16>, vector<128x64xf32> -> vector<128x64xf32>
    %134 = vector.broadcast %69 : vector<1x64xf32> to vector<128x64xf32>
    %135 = arith.addf %133, %134 : vector<128x64xf32>
    %cst_93 = arith.constant 0.000000e+00 : f32
    %136 = vector.broadcast %cst_93 : f32 to vector<128x64xf32>
    %137 = arith.maximumf %135, %136 : vector<128x64xf32>
    %138 = arith.truncf %137 : vector<128x64xf32> to vector<128x64xbf16>
    %cst_94 = arith.constant dense<0.000000e+00> : vector<128x128xf32>
    %139 = tpu.matmul %138, %70, %cst_94 {dimension_numbers = #tpu.dot_dimension_numbers<[1], [0], [0], [1], [0, 0, 1, 1], [], []>} : vector<128x64xbf16>, vector<64x128xbf16>, vector<128x128xf32> -> vector<128x128xf32>
    %140 = vector.broadcast %71 : vector<1x128xf32> to vector<128x128xf32>
    %141 = arith.addf %139, %140 : vector<128x128xf32>
    %142 = tpu.transpose %141, [1, 0] : vector<128x128xf32> -> vector<128x128xf32>
    %143 = vector.extract_strided_slice %142 {offsets = [0, 0], sizes = [17, 128], strides = [1, 1]} : vector<128x128xf32> to vector<17x128xf32>
    %c4_95 = arith.constant 4 : index
    %c0_96 = arith.constant 0 : index
    %c0_97 = arith.constant 0 : index
    %144 = vector.load %arg8[%c4_95, %c0_96, %c0_97] : memref<6x17x128xf32, #tpu.memory_space<vmem>>, vector<1x17x128xf32>
    %145 = vector.shape_cast %144 : vector<1x17x128xf32> to vector<17x128xf32>
    %146 = vector.shape_cast %143 : vector<17x128xf32> to vector<1x17x128xf32>
    tpu.vector_store %arg8[%c4_95, %c0_96, %c0_97], %146 {strides = array<i32>} : memref<6x17x128xf32, #tpu.memory_space<vmem>>, vector<1x17x128xf32>,
    %c640_98 = arith.constant 640 : index
    %c0_99 = arith.constant 0 : index
    %147 = vector.load %arg9[%c640_98, %c0_99] : memref<768x512xbf16, #tpu.memory_space<vmem>>, vector<128x512xbf16>
    %cst_100 = arith.constant dense<0.000000e+00> : vector<128x64xf32>
    %148 = tpu.matmul %147, %68, %cst_100 {dimension_numbers = #tpu.dot_dimension_numbers<[1], [0], [0], [1], [0, 0, 1, 1], [], []>} : vector<128x512xbf16>, vector<512x64xbf16>, vector<128x64xf32> -> vector<128x64xf32>
    %149 = vector.broadcast %69 : vector<1x64xf32> to vector<128x64xf32>
    %150 = arith.addf %148, %149 : vector<128x64xf32>
    %cst_101 = arith.constant 0.000000e+00 : f32
    %151 = vector.broadcast %cst_101 : f32 to vector<128x64xf32>
    %152 = arith.maximumf %150, %151 : vector<128x64xf32>
    %153 = arith.truncf %152 : vector<128x64xf32> to vector<128x64xbf16>
    %cst_102 = arith.constant dense<0.000000e+00> : vector<128x128xf32>
    %154 = tpu.matmul %153, %70, %cst_102 {dimension_numbers = #tpu.dot_dimension_numbers<[1], [0], [0], [1], [0, 0, 1, 1], [], []>} : vector<128x64xbf16>, vector<64x128xbf16>, vector<128x128xf32> -> vector<128x128xf32>
    %155 = vector.broadcast %71 : vector<1x128xf32> to vector<128x128xf32>
    %156 = arith.addf %154, %155 : vector<128x128xf32>
    %157 = tpu.transpose %156, [1, 0] : vector<128x128xf32> -> vector<128x128xf32>
    %158 = vector.extract_strided_slice %157 {offsets = [0, 0], sizes = [17, 128], strides = [1, 1]} : vector<128x128xf32> to vector<17x128xf32>
    %c5_103 = arith.constant 5 : index
    %c0_104 = arith.constant 0 : index
    %c0_105 = arith.constant 0 : index
    %159 = vector.load %arg8[%c5_103, %c0_104, %c0_105] : memref<6x17x128xf32, #tpu.memory_space<vmem>>, vector<1x17x128xf32>
    %160 = vector.shape_cast %159 : vector<1x17x128xf32> to vector<17x128xf32>
    %161 = vector.shape_cast %158 : vector<17x128xf32> to vector<1x17x128xf32>
    tpu.vector_store %arg8[%c5_103, %c0_104, %c0_105], %161 {strides = array<i32>} : memref<6x17x128xf32, #tpu.memory_space<vmem>>, vector<1x17x128xf32>,
    return
  }
  func.func @transform_0(%arg0: i32) -> (i32, i32) {
    %c0_i32 = arith.constant 0 : i32
    %c0_i32_0 = arith.constant 0 : i32
    return %arg0, %c0_i32 : i32, i32
  }
  func.func @transform_1(%arg0: i32) -> (i32, i32, i32) {
    %c0_i32 = arith.constant 0 : i32
    %c0_i32_0 = arith.constant 0 : i32
    %c0_i32_1 = arith.constant 0 : i32
    %c0_i32_2 = arith.constant 0 : i32
    return %c0_i32, %c0_i32_0, %c0_i32_1 : i32, i32, i32
  }
  func.func @transform_2(%arg0: i32) -> (i32, i32, i32) {
    %c0_i32 = arith.constant 0 : i32
    %c0_i32_0 = arith.constant 0 : i32
    %c0_i32_1 = arith.constant 0 : i32
    %c0_i32_2 = arith.constant 0 : i32
    return %c0_i32, %c0_i32_0, %c0_i32_1 : i32, i32, i32
  }
  func.func @transform_3(%arg0: i32) -> (i32, i32) {
    %c0_i32 = arith.constant 0 : i32
    %c0_i32_0 = arith.constant 0 : i32
    %c0_i32_1 = arith.constant 0 : i32
    return %c0_i32, %c0_i32_0 : i32, i32
  }
  func.func @transform_4(%arg0: i32) -> (i32, i32) {
    %c0_i32 = arith.constant 0 : i32
    %c0_i32_0 = arith.constant 0 : i32
    %c0_i32_1 = arith.constant 0 : i32
    return %c0_i32, %c0_i32_0 : i32, i32
  }
  func.func @transform_5(%arg0: i32) -> (i32, i32) {
    %c0_i32 = arith.constant 0 : i32
    %c0_i32_0 = arith.constant 0 : i32
    %c0_i32_1 = arith.constant 0 : i32
    return %c0_i32, %c0_i32_0 : i32, i32
  }
  func.func @transform_6(%arg0: i32) -> (i32, i32) {
    %c0_i32 = arith.constant 0 : i32
    %c0_i32_0 = arith.constant 0 : i32
    %c0_i32_1 = arith.constant 0 : i32
    return %c0_i32, %c0_i32_0 : i32, i32
  }
  func.func @transform_7(%arg0: i32) -> (i32, i32, i32) {
    %c0_i32 = arith.constant 0 : i32
    %c0_i32_0 = arith.constant 0 : i32
    %c0_i32_1 = arith.constant 0 : i32
    return %c0_i32, %c0_i32_0, %arg0 : i32, i32, i32
  }
}

</mosaic_0001>

<llo_original>
// kernel: multimodal_decoder.1
$region0: #{multimodal_decoder.1}
  #allocation0 [shape = 'u32[]', space=smem, size = 0x4, offset = 0x4, fixed_abs, tag = 'smem constant byte address 0x4 - core index']
  #allocation1 [shape = 'u32[144,128]{1,0:T(1,128)}', space=vmem, size = 0x12000, scoped, tag = 'internal scratch']
  #allocation2 [shape = 'bf16[768,512]{1,0:T(8,128)(2,1)}', space=vmem, size = 0xc0000, scoped, tag = 'scratch operand']
  %s0 = inlined_call_operand.vmem [shape: f32[128,32], index: 0, kind: input, shape index: {}]
  %s1 = inlined_call_operand.vmem [shape: bf16[6,32,512], index: 1, kind: input, shape index: {}]
  %s2 = inlined_call_operand.vmem [shape: f32[6,1,512], index: 2, kind: input, shape index: {}]
  %s3 = inlined_call_operand.vmem [shape: bf16[512,64], index: 3, kind: input, shape index: {}]
  %s4 = inlined_call_operand.vmem [shape: f32[1,64], index: 4, kind: input, shape index: {}]
  %s5 = inlined_call_operand.vmem [shape: bf16[64,128], index: 5, kind: input, shape index: {}]
  %s6 = inlined_call_operand.vmem [shape: f32[1,128], index: 6, kind: input, shape index: {}]
  %s7 = inlined_call_operand.vmem [shape: f32[6,17,128], index: 7, kind: output, shape index: {}]
  %s8 = sld [smem:[#allocation0]]
  $region38: #{multimodal_decoder.1} parent=0
    _
  %s10 = ssub.s32 1, %s8
  %s11 = scalar_select 0, %s10, %s8
  // Predicated region
  $region2: #{multimodal_decoder.1} parent=0 // pred_check
    _
  $region3: #{multimodal_decoder.1} parent=0 // pred_check_branch
    %13 = sbr.rel (0) target = $region5
  $region4: #{multimodal_decoder.1} parent=0 // pred_region
    _
  $region5: #{multimodal_decoder.1} parent=0 // pred_fallthru
    _
  // Predicated region
  $region6: #{multimodal_decoder.1} parent=0 // pred_check
    _
  $region7: #{multimodal_decoder.1} parent=0 // pred_check_branch
    %15 = sbr.rel (0) target = $region9
  $region8: #{multimodal_decoder.1} parent=0 // pred_region
    _
  $region9: #{multimodal_decoder.1} parent=0 // pred_fallthru
    _
  // Predicated region
  $region10: #{multimodal_decoder.1} parent=0 // pred_check
    _
  $region11: #{multimodal_decoder.1} parent=0 // pred_check_branch
    %17 = sbr.rel (0) target = $region13
  $region12: #{multimodal_decoder.1} parent=0 // pred_region
    _
  $region13: #{multimodal_decoder.1} parent=0 // pred_fallthru
    _
  // Predicated region
  $region14: #{multimodal_decoder.1} parent=0 // pred_check
    _
  $region15: #{multimodal_decoder.1} parent=0 // pred_check_branch
    %19 = sbr.rel (0) target = $region17
  $region16: #{multimodal_decoder.1} parent=0 // pred_region
    _
  $region17: #{multimodal_decoder.1} parent=0 // pred_fallthru
    _
  // Predicated region
  $region18: #{multimodal_decoder.1} parent=0 // pred_check
    _
  $region19: #{multimodal_decoder.1} parent=0 // pred_check_branch
    %21 = sbr.rel (0) target = $region21
  $region20: #{multimodal_decoder.1} parent=0 // pred_region
    _
  $region21: #{multimodal_decoder.1} parent=0 // pred_fallthru
    _
  // Predicated region
  $region22: #{multimodal_decoder.1} parent=0 // pred_check
    _
  $region23: #{multimodal_decoder.1} parent=0 // pred_check_branch
    %23 = sbr.rel (0) target = $region25
  $region24: #{multimodal_decoder.1} parent=0 // pred_region
    _
  $region25: #{multimodal_decoder.1} parent=0 // pred_fallthru
    _
  // Predicated region
  $region26: #{multimodal_decoder.1} parent=0 // pred_check
    _
  $region27: #{multimodal_decoder.1} parent=0 // pred_check_branch
    %25 = sbr.rel (0) target = $region29
  $region28: #{multimodal_decoder.1} parent=0 // pred_region
    _
  $region29: #{multimodal_decoder.1} parent=0 // pred_fallthru
    _
  %v27 = vld [vmem:[%s0] sm:$0xff]
  %v28 = vld [vmem:[%s0 + $0x8] sm:$0xff]
  %v29 = vld [vmem:[%s0 + $0x10] sm:$0xff]
  %v30 = vld [vmem:[%s0 + $0x18] sm:$0xff]
  %v31 = vld [vmem:[%s0 + $0x20] sm:$0xff]
  %v32 = vld [vmem:[%s0 + $0x28] sm:$0xff]
  %v33 = vld [vmem:[%s0 + $0x30] sm:$0xff]
  %v34 = vld [vmem:[%s0 + $0x38] sm:$0xff]
  %v35 = vld [vmem:[%s0 + $0x40] sm:$0xff]
  %v36 = vld [vmem:[%s0 + $0x48] sm:$0xff]
  %v37 = vld [vmem:[%s0 + $0x50] sm:$0xff]
  %v38 = vld [vmem:[%s0 + $0x58] sm:$0xff]
  %v39 = vld [vmem:[%s0 + $0x60] sm:$0xff]
  %v40 = vld [vmem:[%s0 + $0x68] sm:$0xff]
  %v41 = vld [vmem:[%s0 + $0x70] sm:$0xff]
  %v42 = vld [vmem:[%s0 + $0x78] sm:$0xff]
  %v43 = vpack.c.bf16 %v28, %v27
  %v44 = vpack.c.bf16 %v30, %v29
  %v45 = vpack.c.bf16 %v32, %v31
  %v46 = vpack.c.bf16 %v34, %v33
  %v47 = vpack.c.bf16 %v36, %v35
  %v48 = vpack.c.bf16 %v38, %v37
  %v49 = vpack.c.bf16 %v40, %v39
  %v50 = vpack.c.bf16 %v42, %v41
  %v51 = vld [vmem:[%s1] sm:$0xff]
  %v52 = vld [vmem:[%s1 + $0x8] sm:$0xff]
  %v53 = vld [vmem:[%s1 + $0x10] sm:$0xff]
  %v54 = vld [vmem:[%s1 + $0x18] sm:$0xff]
  %v55 = vld [vmem:[%s1 + $0x20] sm:$0xff]
  %v56 = vld [vmem:[%s1 + $0x28] sm:$0xff]
  %v57 = vld [vmem:[%s1 + $0x30] sm:$0xff]
  %v58 = vld [vmem:[%s1 + $0x38] sm:$0xff]
  %v59 = vld [vmem:[%s2] sm:$0xf]
  %v61 = vlaneseq
  %v62 = vshrl.u32 %v61, 7
  %v63 = vsub.s32 0, %v62
  %v64 = vrot.slane %v59, %v63
  %v65 = vlaneseq
  %v66 = vshrl.u32 %v65, 7
  %v67 = vsub.s32 1, %v66
  %v68 = vrot.slane %v59, %v67
  %v69 = vlaneseq
  %v70 = vshrl.u32 %v69, 7
  %v71 = vsub.s32 2, %v70
  %v72 = vrot.slane %v59, %v71
  %v73 = vlaneseq
  %v74 = vshrl.u32 %v73, 7
  %v75 = vsub.s32 3, %v74
  %v76 = vrot.slane %v59, %v75
  %v89 = vunpack.c.l.b16 %v51
  %v90 = vunpack.c.h.b16 %v51
  %v91 = vunpack.c.l.b16 %v52
  %v92 = vunpack.c.h.b16 %v52
  %v93 = vunpack.c.l.b16 %v53
  %v94 = vunpack.c.h.b16 %v53
  %v95 = vunpack.c.l.b16 %v54
  %v96 = vunpack.c.h.b16 %v54
  %v97 = vunpack.c.l.b16 %v55
  %v98 = vunpack.c.h.b16 %v55
  %v99 = vunpack.c.l.b16 %v56
  %v100 = vunpack.c.h.b16 %v56
  %v101 = vunpack.c.l.b16 %v57
  %v102 = vunpack.c.h.b16 %v57
  %v103 = vunpack.c.l.b16 %v58
  %v104 = vunpack.c.h.b16 %v58
  %v105 = vpack.c.b16 %v93, %v89
  %v106 = vpack.c.b16 %v94, %v90
  %v107 = vpack.c.b16 %v95, %v91
  %v108 = vpack.c.b16 %v96, %v92
  %v109 = vpack.c.b16 %v101, %v97
  %v110 = vpack.c.b16 %v102, %v98
  %v111 = vpack.c.b16 %v103, %v99
  %v112 = vpack.c.b16 %v104, %v100
  %vm121 = vcmask 261120
  %v123 = vsel %vm121, %v43, 0
  %v126 = vsel %vm121, %v44, 0
  %v129 = vsel %vm121, %v45, 0
  %v132 = vsel %vm121, %v46, 0
  %v135 = vsel %vm121, %v47, 0
  %v138 = vsel %vm121, %v48, 0
  %v141 = vsel %vm121, %v49, 0
  %v144 = vsel %vm121, %v50, 0
  %146 = vmatprep.subr.bf16.mxu0 0
  %147 = vmatpush1.bf16.msra.mxu0 0
  %148 = vmatprep.subr.bf16.mxu0 0
  %149 = vmatpush1.bf16.msra.mxu0 0
  %150 = vmatprep.subr.bf16.mxu0 0
  %151 = vmatpush1.bf16.msra.mxu0 0
  %152 = vmatprep.subr.bf16.mxu0 0
  %153 = vmatpush1.bf16.msra.mxu0 0
  %154 = vmatprep.subr.bf16.mxu0 0
  %155 = vmatpush1.bf16.msra.mxu0 0
  %156 = vmatprep.subr.bf16.mxu0 0
  %157 = vmatpush1.bf16.msra.mxu0 0
  %158 = vmatprep.subr.bf16.mxu0 %v110
  %159 = vmatpush1.bf16.msra.mxu0 %v109
  %160 = vmatprep.subr.bf16.mxu0 %v106
  %161 = vmatpush1.bf16.msra.mxu0 %v105
  %162 = vmatprep.subr.bf16.mxu0 0
  %163 = vmatpush2.bf16.msra.mxu0 0
  %164 = vmatprep.subr.bf16.mxu0 0
  %165 = vmatpush2.bf16.msra.mxu0 0
  %166 = vmatprep.subr.bf16.mxu0 0
  %167 = vmatpush2.bf16.msra.mxu0 0
  %168 = vmatprep.subr.bf16.mxu0 0
  %169 = vmatpush2.bf16.msra.mxu0 0
  %170 = vmatprep.subr.bf16.mxu0 0
  %171 = vmatpush2.bf16.msra.mxu0 0
  %172 = vmatprep.subr.bf16.mxu0 0
  %173 = vmatpush2.bf16.msra.mxu0 0
  %174 = vmatprep.subr.bf16.mxu0 0
  %175 = vmatpush2.bf16.msra.mxu0 0
  %176 = vmatprep.subr.bf16.mxu0 0
  %177 = vmatpush2.bf16.msra.mxu0 0
  %178 = vmatprep.mubr.bf16.mxu0 0
  %179 = vmatmul.mubr.bf16.gmra.mxu0 %v123
  %v180 = vpop.f32.mrf.mxu0
  %v181 = vadd.f32 %v64, %v180
  %v182 = vpop.f32.mrf.mxu0
  %v183 = vadd.f32 %v68, %v182
  %v184 = vpop.f32.mrf.mxu0
  %v185 = vadd.f32 %v64, %v184
  %v186 = vpop.f32.mrf.mxu0
  %v187 = vadd.f32 %v68, %v186
  %188 = vmatprep.mubr.bf16.mxu0 0
  %189 = vmatmul.mubr.bf16.gmra.mxu0 %v126
  %v190 = vpop.f32.mrf.mxu0
  %v191 = vadd.f32 %v64, %v190
  %v192 = vpop.f32.mrf.mxu0
  %v193 = vadd.f32 %v68, %v192
  %v194 = vpop.f32.mrf.mxu0
  %v195 = vadd.f32 %v64, %v194
  %v196 = vpop.f32.mrf.mxu0
  %v197 = vadd.f32 %v68, %v196
  %198 = vmatprep.mubr.bf16.mxu0 0
  %199 = vmatmul.mubr.bf16.gmra.mxu0 %v129
  %v200 = vpop.f32.mrf.mxu0
  %v201 = vadd.f32 %v64, %v200
  %v202 = vpop.f32.mrf.mxu0
  %v203 = vadd.f32 %v68, %v202
  %v204 = vpop.f32.mrf.mxu0
  %v205 = vadd.f32 %v64, %v204
  %v206 = vpop.f32.mrf.mxu0
  %v207 = vadd.f32 %v68, %v206
  %208 = vmatprep.mubr.bf16.mxu0 0
  %209 = vmatmul.mubr.bf16.gmra.mxu0 %v132
  %v210 = vpop.f32.mrf.mxu0
  %v211 = vadd.f32 %v64, %v210
  %v212 = vpop.f32.mrf.mxu0
  %v213 = vadd.f32 %v68, %v212
  %v214 = vpop.f32.mrf.mxu0
  %v215 = vadd.f32 %v64, %v214
  %v216 = vpop.f32.mrf.mxu0
  %v217 = vadd.f32 %v68, %v216
  %218 = vmatprep.mubr.bf16.mxu0 0
  %219 = vmatmul.mubr.bf16.gmra.mxu0 %v135
  %v220 = vpop.f32.mrf.mxu0
  %v221 = vadd.f32 %v64, %v220
  %v222 = vpop.f32.mrf.mxu0
  %v223 = vadd.f32 %v68, %v222
  %v224 = vpop.f32.mrf.mxu0
  %v225 = vadd.f32 %v64, %v224
  %v226 = vpop.f32.mrf.mxu0
  %v227 = vadd.f32 %v68, %v226
  %228 = vmatprep.mubr.bf16.mxu0 0
  %229 = vmatmul.mubr.bf16.gmra.mxu0 %v138
  %v230 = vpop.f32.mrf.mxu0
  %v231 = vadd.f32 %v64, %v230
  %v232 = vpop.f32.mrf.mxu0
  %v233 = vadd.f32 %v68, %v232
  %v234 = vpop.f32.mrf.mxu0
  %v235 = vadd.f32 %v64, %v234
  %v236 = vpop.f32.mrf.mxu0
  %v237 = vadd.f32 %v68, %v236
  %238 = vmatprep.mubr.bf16.mxu0 0
  %239 = vmatmul.mubr.bf16.gmra.mxu0 %v141
  %v240 = vpop.f32.mrf.mxu0
  %v241 = vadd.f32 %v64, %v240
  %v242 = vpop.f32.mrf.mxu0
  %v243 = vadd.f32 %v68, %v242
  %v244 = vpop.f32.mrf.mxu0
  %v245 = vadd.f32 %v64, %v244
  %v246 = vpop.f32.mrf.mxu0
  %v247 = vadd.f32 %v68, %v246
  %248 = vmatprep.mubr.bf16.mxu0 0
  %249 = vmatmul.mubr.bf16.gmra.mxu0 %v144
  %v250 = vpop.f32.mrf.mxu0
  %v251 = vadd.f32 %v64, %v250
  %v252 = vpop.f32.mrf.mxu0
  %v253 = vadd.f32 %v68, %v252
  %v254 = vpop.f32.mrf.mxu0
  %v255 = vadd.f32 %v64, %v254
  %v256 = vpop.f32.mrf.mxu0
  %v257 = vadd.f32 %v68, %v256
  %258 = vdwg.mxu0
  %259 = vmatprep.subr.bf16.mxu0 0
  %260 = vmatpush1.bf16.msra.mxu0 0
  %261 = vmatprep.subr.bf16.mxu0 0
  %262 = vmatpush1.bf16.msra.mxu0 0
  %263 = vmatprep.subr.bf16.mxu0 0
  %264 = vmatpush1.bf16.msra.mxu0 0
  %265 = vmatprep.subr.bf16.mxu0 0
  %266 = vmatpush1.bf16.msra.mxu0 0
  %267 = vmatprep.subr.bf16.mxu0 0
  %268 = vmatpush1.bf16.msra.mxu0 0
  %269 = vmatprep.subr.bf16.mxu0 0
  %270 = vmatpush1.bf16.msra.mxu0 0
  %271 = vmatprep.subr.bf16.mxu0 %v112
  %272 = vmatpush1.bf16.msra.mxu0 %v111
  %273 = vmatprep.subr.bf16.mxu0 %v108
  %274 = vmatpush1.bf16.msra.mxu0 %v107
  %275 = vmatprep.subr.bf16.mxu0 0
  %276 = vmatpush2.bf16.msra.mxu0 0
  %277 = vmatprep.subr.bf16.mxu0 0
  %278 = vmatpush2.bf16.msra.mxu0 0
  %279 = vmatprep.subr.bf16.mxu0 0
  %280 = vmatpush2.bf16.msra.mxu0 0
  %281 = vmatprep.subr.bf16.mxu0 0
  %282 = vmatpush2.bf16.msra.mxu0 0
  %283 = vmatprep.subr.bf16.mxu0 0
  %284 = vmatpush2.bf16.msra.mxu0 0
  %285 = vmatprep.subr.bf16.mxu0 0
  %286 = vmatpush2.bf16.msra.mxu0 0
  %287 = vmatprep.subr.bf16.mxu0 0
  %288 = vmatpush2.bf16.msra.mxu0 0
  %289 = vmatprep.subr.bf16.mxu0 0
  %290 = vmatpush2.bf16.msra.mxu0 0
  %291 = vmatprep.mubr.bf16.mxu0 0
  %292 = vmatmul.mubr.bf16.gmra.mxu0 %v123
  %v293 = vpop.f32.mrf.mxu0
  %v294 = vadd.f32 %v72, %v293
  %v295 = vpop.f32.mrf.mxu0
  %v296 = vadd.f32 %v76, %v295
  %v297 = vpop.f32.mrf.mxu0
  %v298 = vadd.f32 %v72, %v297
  %v299 = vpop.f32.mrf.mxu0
  %v300 = vadd.f32 %v76, %v299
  %301 = vmatprep.mubr.bf16.mxu0 0
  %302 = vmatmul.mubr.bf16.gmra.mxu0 %v126
  %v303 = vpop.f32.mrf.mxu0
  %v304 = vadd.f32 %v72, %v303
  %v305 = vpop.f32.mrf.mxu0
  %v306 = vadd.f32 %v76, %v305
  %v307 = vpop.f32.mrf.mxu0
  %v308 = vadd.f32 %v72, %v307
  %v309 = vpop.f32.mrf.mxu0
  %v310 = vadd.f32 %v76, %v309
  %311 = vmatprep.mubr.bf16.mxu0 0
  %312 = vmatmul.mubr.bf16.gmra.mxu0 %v129
  %v313 = vpop.f32.mrf.mxu0
  %v314 = vadd.f32 %v72, %v313
  %v315 = vpop.f32.mrf.mxu0
  %v316 = vadd.f32 %v76, %v315
  %v317 = vpop.f32.mrf.mxu0
  %v318 = vadd.f32 %v72, %v317
  %v319 = vpop.f32.mrf.mxu0
  %v320 = vadd.f32 %v76, %v319
  %321 = vmatprep.mubr.bf16.mxu0 0
  %322 = vmatmul.mubr.bf16.gmra.mxu0 %v132
  %v323 = vpop.f32.mrf.mxu0
  %v324 = vadd.f32 %v72, %v323
  %v325 = vpop.f32.mrf.mxu0
  %v326 = vadd.f32 %v76, %v325
  %v327 = vpop.f32.mrf.mxu0
  %v328 = vadd.f32 %v72, %v327
  %v329 = vpop.f32.mrf.mxu0
  %v330 = vadd.f32 %v76, %v329
  %331 = vmatprep.mubr.bf16.mxu0 0
  %332 = vmatmul.mubr.bf16.gmra.mxu0 %v135
  %v333 = vpop.f32.mrf.mxu0
  %v334 = vadd.f32 %v72, %v333
  %v335 = vpop.f32.mrf.mxu0
  %v336 = vadd.f32 %v76, %v335
  %v337 = vpop.f32.mrf.mxu0
  %v338 = vadd.f32 %v72, %v337
  %v339 = vpop.f32.mrf.mxu0
  %v340 = vadd.f32 %v76, %v339
  %341 = vmatprep.mubr.bf16.mxu0 0
  %342 = vmatmul.mubr.bf16.gmra.mxu0 %v138
  %v343 = vpop.f32.mrf.mxu0
  %v344 = vadd.f32 %v72, %v343
  %v345 = vpop.f32.mrf.mxu0
  %v346 = vadd.f32 %v76, %v345
  %v347 = vpop.f32.mrf.mxu0
  %v348 = vadd.f32 %v72, %v347
  %v349 = vpop.f32.mrf.mxu0
  %v350 = vadd.f32 %v76, %v349
  %351 = vmatprep.mubr.bf16.mxu0 0
  %352 = vmatmul.mubr.bf16.gmra.mxu0 %v141
  %v353 = vpop.f32.mrf.mxu0
  %v354 = vadd.f32 %v72, %v353
  %v355 = vpop.f32.mrf.mxu0
  %v356 = vadd.f32 %v76, %v355
  %v357 = vpop.f32.mrf.mxu0
  %v358 = vadd.f32 %v72, %v357
  %v359 = vpop.f32.mrf.mxu0
  %v360 = vadd.f32 %v76, %v359
  %361 = vmatprep.mubr.bf16.mxu0 0
  %362 = vmatmul.mubr.bf16.gmra.mxu0 %v144
  %v363 = vpop.f32.mrf.mxu0
  %v364 = vadd.f32 %v72, %v363
  %v365 = vpop.f32.mrf.mxu0
  %v366 = vadd.f32 %v76, %v365
  %v367 = vpop.f32.mrf.mxu0
  %v368 = vadd.f32 %v72, %v367
  %v369 = vpop.f32.mrf.mxu0
  %v370 = vadd.f32 %v76, %v369
  %371 = vdwg.mxu0
  %v372 = vmax.f32 %v181, 0.0
  %v373 = vmax.f32 %v183, 0.0
  %v374 = vmax.f32 %v294, 0.0
  %v375 = vmax.f32 %v296, 0.0
  %v376 = vmax.f32 %v185, 0.0
  %v377 = vmax.f32 %v187, 0.0
  %v378 = vmax.f32 %v298, 0.0
  %v379 = vmax.f32 %v300, 0.0
  %v380 = vmax.f32 %v191, 0.0
  %v381 = vmax.f32 %v193, 0.0
  %v382 = vmax.f32 %v304, 0.0
  %v383 = vmax.f32 %v306, 0.0
  %v384 = vmax.f32 %v195, 0.0
  %v385 = vmax.f32 %v197, 0.0
  %v386 = vmax.f32 %v308, 0.0
  %v387 = vmax.f32 %v310, 0.0
  %v388 = vmax.f32 %v201, 0.0
  %v389 = vmax.f32 %v203, 0.0
  %v390 = vmax.f32 %v314, 0.0
  %v391 = vmax.f32 %v316, 0.0
  %v392 = vmax.f32 %v205, 0.0
  %v393 = vmax.f32 %v207, 0.0
  %v394 = vmax.f32 %v318, 0.0
  %v395 = vmax.f32 %v320, 0.0
  %v396 = vmax.f32 %v211, 0.0
  %v397 = vmax.f32 %v213, 0.0
  %v398 = vmax.f32 %v324, 0.0
  %v399 = vmax.f32 %v326, 0.0
  %v400 = vmax.f32 %v215, 0.0
  %v401 = vmax.f32 %v217, 0.0
  %v402 = vmax.f32 %v328, 0.0
  %v403 = vmax.f32 %v330, 0.0
  %v404 = vmax.f32 %v221, 0.0
  %v405 = vmax.f32 %v223, 0.0
  %v406 = vmax.f32 %v334, 0.0
  %v407 = vmax.f32 %v336, 0.0
  %v408 = vmax.f32 %v225, 0.0
  %v409 = vmax.f32 %v227, 0.0
  %v410 = vmax.f32 %v338, 0.0
  %v411 = vmax.f32 %v340, 0.0
  %v412 = vmax.f32 %v231, 0.0
  %v413 = vmax.f32 %v233, 0.0
  %v414 = vmax.f32 %v344, 0.0
  %v415 = vmax.f32 %v346, 0.0
  %v416 = vmax.f32 %v235, 0.0
  %v417 = vmax.f32 %v237, 0.0
  %v418 = vmax.f32 %v348, 0.0
  %v419 = vmax.f32 %v350, 0.0
  %v420 = vmax.f32 %v241, 0.0
  %v421 = vmax.f32 %v243, 0.0
  %v422 = vmax.f32 %v354, 0.0
  %v423 = vmax.f32 %v356, 0.0
  %v424 = vmax.f32 %v245, 0.0
  %v425 = vmax.f32 %v247, 0.0
  %v426 = vmax.f32 %v358, 0.0
  %v427 = vmax.f32 %v360, 0.0
  %v428 = vmax.f32 %v251, 0.0
  %v429 = vmax.f32 %v253, 0.0
  %v430 = vmax.f32 %v364, 0.0
  %v431 = vmax.f32 %v366, 0.0
  %v432 = vmax.f32 %v255, 0.0
  %v433 = vmax.f32 %v257, 0.0
  %v434 = vmax.f32 %v368, 0.0
  %v435 = vmax.f32 %v370, 0.0
  %v436 = vpack.c.bf16 %v376, %v372
  %v437 = vpack.c.bf16 %v377, %v373
  %v438 = vpack.c.bf16 %v378, %v374
  %v439 = vpack.c.bf16 %v379, %v375
  %v440 = vpack.c.bf16 %v384, %v380
  %v441 = vpack.c.bf16 %v385, %v381
  %v442 = vpack.c.bf16 %v386, %v382
  %v443 = vpack.c.bf16 %v387, %v383
  %v444 = vpack.c.bf16 %v392, %v388
  %v445 = vpack.c.bf16 %v393, %v389
  %v446 = vpack.c.bf16 %v394, %v390
  %v447 = vpack.c.bf16 %v395, %v391
  %v448 = vpack.c.bf16 %v400, %v396
  %v449 = vpack.c.bf16 %v401, %v397
  %v450 = vpack.c.bf16 %v402, %v398
  %v451 = vpack.c.bf16 %v403, %v399
  %v452 = vpack.c.bf16 %v408, %v404
  %v453 = vpack.c.bf16 %v409, %v405
  %v454 = vpack.c.bf16 %v410, %v406
  %v455 = vpack.c.bf16 %v411, %v407
  %v456 = vpack.c.bf16 %v416, %v412
  %v457 = vpack.c.bf16 %v417, %v413
  %v458 = vpack.c.bf16 %v418, %v414
  %v459 = vpack.c.bf16 %v419, %v415
  %v460 = vpack.c.bf16 %v424, %v420
  %v461 = vpack.c.bf16 %v425, %v421
  %v462 = vpack.c.bf16 %v426, %v422
  %v463 = vpack.c.bf16 %v427, %v423
  %v464 = vpack.c.bf16 %v432, %v428
  %v465 = vpack.c.bf16 %v433, %v429
  %v466 = vpack.c.bf16 %v434, %v430
  %v467 = vpack.c.bf16 %v435, %v431
  %v500 = vunpack.c.l.b16 %v436
  %v501 = vunpack.c.l.b16 %v437
  %v502 = vunpack.c.l.b16 %v438
  %v503 = vunpack.c.l.b16 %v439
  %v504 = vunpack.c.h.b16 %v436
  %v505 = vunpack.c.h.b16 %v437
  %v506 = vunpack.c.h.b16 %v438
  %v507 = vunpack.c.h.b16 %v439
  %v508 = vunpack.c.l.b16 %v440
  %v509 = vunpack.c.l.b16 %v441
  %v510 = vunpack.c.l.b16 %v442
  %v511 = vunpack.c.l.b16 %v443
  %v512 = vunpack.c.h.b16 %v440
  %v513 = vunpack.c.h.b16 %v441
  %v514 = vunpack.c.h.b16 %v442
  %v515 = vunpack.c.h.b16 %v443
  %v516 = vunpack.c.l.b16 %v444
  %v517 = vunpack.c.l.b16 %v445
  %v518 = vunpack.c.l.b16 %v446
  %v519 = vunpack.c.l.b16 %v447
  %v520 = vunpack.c.h.b16 %v444
  %v521 = vunpack.c.h.b16 %v445
  %v522 = vunpack.c.h.b16 %v446
  %v523 = vunpack.c.h.b16 %v447
  %v524 = vunpack.c.l.b16 %v448
  %v525 = vunpack.c.l.b16 %v449
  %v526 = vunpack.c.l.b16 %v450
  %v527 = vunpack.c.l.b16 %v451
  %v528 = vunpack.c.h.b16 %v448
  %v529 = vunpack.c.h.b16 %v449
  %v530 = vunpack.c.h.b16 %v450
  %v531 = vunpack.c.h.b16 %v451
  %v532 = vunpack.c.l.b16 %v452
  %v533 = vunpack.c.l.b16 %v453
  %v534 = vunpack.c.l.b16 %v454
  %v535 = vunpack.c.l.b16 %v455
  %v536 = vunpack.c.h.b16 %v452
  %v537 = vunpack.c.h.b16 %v453
  %v538 = vunpack.c.h.b16 %v454
  %v539 = vunpack.c.h.b16 %v455
  %v540 = vunpack.c.l.b16 %v456
  %v541 = vunpack.c.l.b16 %v457
  %v542 = vunpack.c.l.b16 %v458
  %v543 = vunpack.c.l.b16 %v459
  %v544 = vunpack.c.h.b16 %v456
  %v545 = vunpack.c.h.b16 %v457
  %v546 = vunpack.c.h.b16 %v458
  %v547 = vunpack.c.h.b16 %v459
  %v548 = vunpack.c.l.b16 %v460
  %v549 = vunpack.c.l.b16 %v461
  %v550 = vunpack.c.l.b16 %v462
  %v551 = vunpack.c.l.b16 %v463
  %v552 = vunpack.c.h.b16 %v460
  %v553 = vunpack.c.h.b16 %v461
  %v554 = vunpack.c.h.b16 %v462
  %v555 = vunpack.c.h.b16 %v463
  %v556 = vunpack.c.l.b16 %v464
  %v557 = vunpack.c.l.b16 %v465
  %v558 = vunpack.c.l.b16 %v466
  %v559 = vunpack.c.l.b16 %v467
  %v560 = vunpack.c.h.b16 %v464
  %v561 = vunpack.c.h.b16 %v465
  %v562 = vunpack.c.h.b16 %v466
  %v563 = vunpack.c.h.b16 %v467
  %v564 = vpack.c.b16 %v501, %v500
  %v565 = vpack.c.b16 %v503, %v502
  %v566 = vpack.c.b16 %v505, %v504
  %v567 = vpack.c.b16 %v507, %v506
  %v568 = vpack.c.b16 %v509, %v508
  %v569 = vpack.c.b16 %v511, %v510
  %v570 = vpack.c.b16 %v513, %v512
  %v571 = vpack.c.b16 %v515, %v514
  %v572 = vpack.c.b16 %v517, %v516
  %v573 = vpack.c.b16 %v519, %v518
  %v574 = vpack.c.b16 %v521, %v520
  %v575 = vpack.c.b16 %v523, %v522
  %v576 = vpack.c.b16 %v525, %v524
  %v577 = vpack.c.b16 %v527, %v526
  %v578 = vpack.c.b16 %v529, %v528
  %v579 = vpack.c.b16 %v531, %v530
  %v580 = vpack.c.b16 %v533, %v532
  %v581 = vpack.c.b16 %v535, %v534
  %v582 = vpack.c.b16 %v537, %v536
  %v583 = vpack.c.b16 %v539, %v538
  %v584 = vpack.c.b16 %v541, %v540
  %v585 = vpack.c.b16 %v543, %v542
  %v586 = vpack.c.b16 %v545, %v544
  %v587 = vpack.c.b16 %v547, %v546
  %v588 = vpack.c.b16 %v549, %v548
  %v589 = vpack.c.b16 %v551, %v550
  %v590 = vpack.c.b16 %v553, %v552
  %v591 = vpack.c.b16 %v555, %v554
  %v592 = vpack.c.b16 %v557, %v556
  %v593 = vpack.c.b16 %v559, %v558
  %v594 = vpack.c.b16 %v561, %v560
  %v595 = vpack.c.b16 %v563, %v562
  %628 = vst [vmem:[#allocation2] sm:$0xff] %v564
  %629 = vst [vmem:[#allocation2 + $0x8] sm:$0xff] %v565
  %630 = vst [vmem:[#allocation2 + $0x10] sm:$0xff] %v566
  %631 = vst [vmem:[#allocation2 + $0x18] sm:$0xff] %v567
  %632 = vst [vmem:[#allocation2 + $0x20] sm:$0xff] %v568
  %633 = vst [vmem:[#allocation2 + $0x28] sm:$0xff] %v569
  %634 = vst [vmem:[#allocation2 + $0x30] sm:$0xff] %v570
  %635 = vst [vmem:[#allocation2 + $0x38] sm:$0xff] %v571
  %636 = vst [vmem:[#allocation2 + $0x40] sm:$0xff] %v572
  %637 = vst [vmem:[#allocation2 + $0x48] sm:$0xff] %v573
  %638 = vst [vmem:[#allocation2 + $0x50] sm:$0xff] %v574
  %639 = vst [vmem:[#allocation2 + $0x58] sm:$0xff] %v575
  %640 = vst [vmem:[#allocation2 + $0x60] sm:$0xff] %v576
  %641 = vst [vmem:[#allocation2 + $0x68] sm:$0xff] %v577
  %642 = vst [vmem:[#allocation2 + $0x70] sm:$0xff] %v578
  %643 = vst [vmem:[#allocation2 + $0x78] sm:$0xff] %v579
  %644 = vst [vmem:[#allocation2 + $0x80] sm:$0xff] %v580
  %645 = vst [vmem:[#allocation2 + $0x88] sm:$0xff] %v581
  %646 = vst [vmem:[#allocation2 + $0x90] sm:$0xff] %v582
  %647 = vst [vmem:[#allocation2 + $0x98] sm:$0xff] %v583
  %648 = vst [vmem:[#allocation2 + $0xa0] sm:$0xff] %v584
  %649 = vst [vmem:[#allocation2 + $0xa8] sm:$0xff] %v585
  %650 = vst [vmem:[#allocation2 + $0xb0] sm:$0xff] %v586
  %651 = vst [vmem:[#allocation2 + $0xb8] sm:$0xff] %v587
  %652 = vst [vmem:[#allocation2 + $0xc0] sm:$0xff] %v588
  %653 = vst [vmem:[#allocation2 + $0xc8] sm:$0xff] %v589
  %654 = vst [vmem:[#allocation2 + $0xd0] sm:$0xff] %v590
  %655 = vst [vmem:[#allocation2 + $0xd8] sm:$0xff] %v591
  %656 = vst [vmem:[#allocation2 + $0xe0] sm:$0xff] %v592
  %657 = vst [vmem:[#allocation2 + $0xe8] sm:$0xff] %v593
  %658 = vst [vmem:[#allocation2 + $0xf0] sm:$0xff] %v594
  %659 = vst [vmem:[#allocation2 + $0xf8] sm:$0xff] %v595
  %s660 = scalar_lea.vmem %s1, 64
  %v661 = vld [vmem:[%s660] sm:$0xff]
  %v662 = vld [vmem:[%s660 + $0x8] sm:$0xff]
  %v663 = vld [vmem:[%s660 + $0x10] sm:$0xff]
  %v664 = vld [vmem:[%s660 + $0x18] sm:$0xff]
  %v665 = vld [vmem:[%s660 + $0x20] sm:$0xff]
  %v666 = vld [vmem:[%s660 + $0x28] sm:$0xff]
  %v667 = vld [vmem:[%s660 + $0x30] sm:$0xff]
  %v668 = vld [vmem:[%s660 + $0x38] sm:$0xff]
  %s669 = scalar_lea.vmem %s2, 4
  %v670 = vld [vmem:[%s669] sm:$0xf]
  %v672 = vlaneseq
  %v673 = vshrl.u32 %v672, 7
  %v674 = vsub.s32 0, %v673
  %v675 = vrot.slane %v670, %v674
  %v676 = vlaneseq
  %v677 = vshrl.u32 %v676, 7
  %v678 = vsub.s32 1, %v677
  %v679 = vrot.slane %v670, %v678
  %v680 = vlaneseq
  %v681 = vshrl.u32 %v680, 7
  %v682 = vsub.s32 2, %v681
  %v683 = vrot.slane %v670, %v682
  %v684 = vlaneseq
  %v685 = vshrl.u32 %v684, 7
  %v686 = vsub.s32 3, %v685
  %v687 = vrot.slane %v670, %v686
  %v700 = vunpack.c.l.b16 %v661
  %v701 = vunpack.c.h.b16 %v661
  %v702 = vunpack.c.l.b16 %v662
  %v703 = vunpack.c.h.b16 %v662
  %v704 = vunpack.c.l.b16 %v663
  %v705 = vunpack.c.h.b16 %v663
  %v706 = vunpack.c.l.b16 %v664
  %v707 = vunpack.c.h.b16 %v664
  %v708 = vunpack.c.l.b16 %v665
  %v709 = vunpack.c.h.b16 %v665
  %v710 = vunpack.c.l.b16 %v666
  %v711 = vunpack.c.h.b16 %v666
  %v712 = vunpack.c.l.b16 %v667
  %v713 = vunpack.c.h.b16 %v667
  %v714 = vunpack.c.l.b16 %v668
  %v715 = vunpack.c.h.b16 %v668
  %v716 = vpack.c.b16 %v704, %v700
  %v717 = vpack.c.b16 %v705, %v701
  %v718 = vpack.c.b16 %v706, %v702
  %v719 = vpack.c.b16 %v707, %v703
  %v720 = vpack.c.b16 %v712, %v708
  %v721 = vpack.c.b16 %v713, %v709
  %v722 = vpack.c.b16 %v714, %v710
  %v723 = vpack.c.b16 %v715, %v711
  %732 = vmatprep.subr.bf16.mxu0 0
  %733 = vmatpush1.bf16.msra.mxu0 0
  %734 = vmatprep.subr.bf16.mxu0 0
  %735 = vmatpush1.bf16.msra.mxu0 0
  %736 = vmatprep.subr.bf16.mxu0 0
  %737 = vmatpush1.bf16.msra.mxu0 0
  %738 = vmatprep.subr.bf16.mxu0 0
  %739 = vmatpush1.bf16.msra.mxu0 0
  %740 = vmatprep.subr.bf16.mxu0 0
  %741 = vmatpush1.bf16.msra.mxu0 0
  %742 = vmatprep.subr.bf16.mxu0 0
  %743 = vmatpush1.bf16.msra.mxu0 0
  %744 = vmatprep.subr.bf16.mxu0 %v721
  %745 = vmatpush1.bf16.msra.mxu0 %v720
  %746 = vmatprep.subr.bf16.mxu0 %v717
  %747 = vmatpush1.bf16.msra.mxu0 %v716
  %748 = vmatprep.subr.bf16.mxu0 0
  %749 = vmatpush2.bf16.msra.mxu0 0
  %750 = vmatprep.subr.bf16.mxu0 0
  %751 = vmatpush2.bf16.msra.mxu0 0
  %752 = vmatprep.subr.bf16.mxu0 0
  %753 = vmatpush2.bf16.msra.mxu0 0
  %754 = vmatprep.subr.bf16.mxu0 0
  %755 = vmatpush2.bf16.msra.mxu0 0
  %756 = vmatprep.subr.bf16.mxu0 0
  %757 = vmatpush2.bf16.msra.mxu0 0
  %758 = vmatprep.subr.bf16.mxu0 0
  %759 = vmatpush2.bf16.msra.mxu0 0
  %760 = vmatprep.subr.bf16.mxu0 0
  %761 = vmatpush2.bf16.msra.mxu0 0
  %762 = vmatprep.subr.bf16.mxu0 0
  %763 = vmatpush2.bf16.msra.mxu0 0
  %764 = vmatprep.mubr.bf16.mxu0 0
  %765 = vmatmul.mubr.bf16.gmra.mxu0 %v123
  %v766 = vpop.f32.mrf.mxu0
  %v767 = vadd.f32 %v675, %v766
  %v768 = vpop.f32.mrf.mxu0
  %v769 = vadd.f32 %v679, %v768
  %v770 = vpop.f32.mrf.mxu0
  %v771 = vadd.f32 %v675, %v770
  %v772 = vpop.f32.mrf.mxu0
  %v773 = vadd.f32 %v679, %v772
  %774 = vmatprep.mubr.bf16.mxu0 0
  %775 = vmatmul.mubr.bf16.gmra.mxu0 %v126
  %v776 = vpop.f32.mrf.mxu0
  %v777 = vadd.f32 %v675, %v776
  %v778 = vpop.f32.mrf.mxu0
  %v779 = vadd.f32 %v679, %v778
  %v780 = vpop.f32.mrf.mxu0
  %v781 = vadd.f32 %v675, %v780
  %v782 = vpop.f32.mrf.mxu0
  %v783 = vadd.f32 %v679, %v782
  %784 = vmatprep.mubr.bf16.mxu0 0
  %785 = vmatmul.mubr.bf16.gmra.mxu0 %v129
  %v786 = vpop.f32.mrf.mxu0
  %v787 = vadd.f32 %v675, %v786
  %v788 = vpop.f32.mrf.mxu0
  %v789 = vadd.f32 %v679, %v788
  %v790 = vpop.f32.mrf.mxu0
  %v791 = vadd.f32 %v675, %v790
  %v792 = vpop.f32.mrf.mxu0
  %v793 = vadd.f32 %v679, %v792
  %794 = vmatprep.mubr.bf16.mxu0 0
  %795 = vmatmul.mubr.bf16.gmra.mxu0 %v132
  %v796 = vpop.f32.mrf.mxu0
  %v797 = vadd.f32 %v675, %v796
  %v798 = vpop.f32.mrf.mxu0
  %v799 = vadd.f32 %v679, %v798
  %v800 = vpop.f32.mrf.mxu0
  %v801 = vadd.f32 %v675, %v800
  %v802 = vpop.f32.mrf.mxu0
  %v803 = vadd.f32 %v679, %v802
  %804 = vmatprep.mubr.bf16.mxu0 0
  %805 = vmatmul.mubr.bf16.gmra.mxu0 %v135
  %v806 = vpop.f32.mrf.mxu0
  %v807 = vadd.f32 %v675, %v806
  %v808 = vpop.f32.mrf.mxu0
  %v809 = vadd.f32 %v679, %v808
  %v810 = vpop.f32.mrf.mxu0
  %v811 = vadd.f32 %v675, %v810
  %v812 = vpop.f32.mrf.mxu0
  %v813 = vadd.f32 %v679, %v812
  %814 = vmatprep.mubr.bf16.mxu0 0
  %815 = vmatmul.mubr.bf16.gmra.mxu0 %v138
  %v816 = vpop.f32.mrf.mxu0
  %v817 = vadd.f32 %v675, %v816
  %v818 = vpop.f32.mrf.mxu0
  %v819 = vadd.f32 %v679, %v818
  %v820 = vpop.f32.mrf.mxu0
  %v821 = vadd.f32 %v675, %v820
  %v822 = vpop.f32.mrf.mxu0
  %v823 = vadd.f32 %v679, %v822
  %824 = vmatprep.mubr.bf16.mxu0 0
  %825 = vmatmul.mubr.bf16.gmra.mxu0 %v141
  %v826 = vpop.f32.mrf.mxu0
  %v827 = vadd.f32 %v675, %v826
  %v828 = vpop.f32.mrf.mxu0
  %v829 = vadd.f32 %v679, %v828
  %v830 = vpop.f32.mrf.mxu0
  %v831 = vadd.f32 %v675, %v830
  %v832 = vpop.f32.mrf.mxu0
  %v833 = vadd.f32 %v679, %v832
  %834 = vmatprep.mubr.bf16.mxu0 0
  %835 = vmatmul.mubr.bf16.gmra.mxu0 %v144
  %v836 = vpop.f32.mrf.mxu0
  %v837 = vadd.f32 %v675, %v836
  %v838 = vpop.f32.mrf.mxu0
  %v839 = vadd.f32 %v679, %v838
  %v840 = vpop.f32.mrf.mxu0
  %v841 = vadd.f32 %v675, %v840
  %v842 = vpop.f32.mrf.mxu0
  %v843 = vadd.f32 %v679, %v842
  %844 = vdwg.mxu0
  %845 = vmatprep.subr.bf16.mxu0 0
  %846 = vmatpush1.bf16.msra.mxu0 0
  %847 = vmatprep.subr.bf16.mxu0 0
  %848 = vmatpush1.bf16.msra.mxu0 0
  %849 = vmatprep.subr.bf16.mxu0 0
  %850 = vmatpush1.bf16.msra.mxu0 0
  %851 = vmatprep.subr.bf16.mxu0 0
  %852 = vmatpush1.bf16.msra.mxu0 0
  %853 = vmatprep.subr.bf16.mxu0 0
  %854 = vmatpush1.bf16.msra.mxu0 0
  %855 = vmatprep.subr.bf16.mxu0 0
  %856 = vmatpush1.bf16.msra.mxu0 0
  %857 = vmatprep.subr.bf16.mxu0 %v723
  %858 = vmatpush1.bf16.msra.mxu0 %v722
  %859 = vmatprep.subr.bf16.mxu0 %v719
  %860 = vmatpush1.bf16.msra.mxu0 %v718
  %861 = vmatprep.subr.bf16.mxu0 0
  %862 = vmatpush2.bf16.msra.mxu0 0
  %863 = vmatprep.subr.bf16.mxu0 0
  %864 = vmatpush2.bf16.msra.mxu0 0
  %865 = vmatprep.subr.bf16.mxu0 0
  %866 = vmatpush2.bf16.msra.mxu0 0
  %867 = vmatprep.subr.bf16.mxu0 0
  %868 = vmatpush2.bf16.msra.mxu0 0
  %869 = vmatprep.subr.bf16.mxu0 0
  %870 = vmatpush2.bf16.msra.mxu0 0
  %871 = vmatprep.subr.bf16.mxu0 0
  %872 = vmatpush2.bf16.msra.mxu0 0
  %873 = vmatprep.subr.bf16.mxu0 0
  %874 = vmatpush2.bf16.msra.mxu0 0
  %875 = vmatprep.subr.bf16.mxu0 0
  %876 = vmatpush2.bf16.msra.mxu0 0
  %877 = vmatprep.mubr.bf16.mxu0 0
  %878 = vmatmul.mubr.bf16.gmra.mxu0 %v123
  %v879 = vpop.f32.mrf.mxu0
  %v880 = vadd.f32 %v683, %v879
  %v881 = vpop.f32.mrf.mxu0
  %v882 = vadd.f32 %v687, %v881
  %v883 = vpop.f32.mrf.mxu0
  %v884 = vadd.f32 %v683, %v883
  %v885 = vpop.f32.mrf.mxu0
  %v886 = vadd.f32 %v687, %v885
  %887 = vmatprep.mubr.bf16.mxu0 0
  %888 = vmatmul.mubr.bf16.gmra.mxu0 %v126
  %v889 = vpop.f32.mrf.mxu0
  %v890 = vadd.f32 %v683, %v889
  %v891 = vpop.f32.mrf.mxu0
  %v892 = vadd.f32 %v687, %v891
  %v893 = vpop.f32.mrf.mxu0
  %v894 = vadd.f32 %v683, %v893
  %v895 = vpop.f32.mrf.mxu0
  %v896 = vadd.f32 %v687, %v895
  %897 = vmatprep.mubr.bf16.mxu0 0
  %898 = vmatmul.mubr.bf16.gmra.mxu0 %v129
  %v899 = vpop.f32.mrf.mxu0
  %v900 = vadd.f32 %v683, %v899
  %v901 = vpop.f32.mrf.mxu0
  %v902 = vadd.f32 %v687, %v901
  %v903 = vpop.f32.mrf.mxu0
  %v904 = vadd.f32 %v683, %v903
  %v905 = vpop.f32.mrf.mxu0
  %v906 = vadd.f32 %v687, %v905
  %907 = vmatprep.mubr.bf16.mxu0 0
  %908 = vmatmul.mubr.bf16.gmra.mxu0 %v132
  %v909 = vpop.f32.mrf.mxu0
  %v910 = vadd.f32 %v683, %v909
  %v911 = vpop.f32.mrf.mxu0
  %v912 = vadd.f32 %v687, %v911
  %v913 = vpop.f32.mrf.mxu0
  %v914 = vadd.f32 %v683, %v913
  %v915 = vpop.f32.mrf.mxu0
  %v916 = vadd.f32 %v687, %v915
  %917 = vmatprep.mubr.bf16.mxu0 0
  %918 = vmatmul.mubr.bf16.gmra.mxu0 %v135
  %v919 = vpop.f32.mrf.mxu0
  %v920 = vadd.f32 %v683, %v919
  %v921 = vpop.f32.mrf.mxu0
  %v922 = vadd.f32 %v687, %v921
  %v923 = vpop.f32.mrf.mxu0
  %v924 = vadd.f32 %v683, %v923
  %v925 = vpop.f32.mrf.mxu0
  %v926 = vadd.f32 %v687, %v925
  %927 = vmatprep.mubr.bf16.mxu0 0
  %928 = vmatmul.mubr.bf16.gmra.mxu0 %v138
  %v929 = vpop.f32.mrf.mxu0
  %v930 = vadd.f32 %v683, %v929
  %v931 = vpop.f32.mrf.mxu0
  %v932 = vadd.f32 %v687, %v931
  %v933 = vpop.f32.mrf.mxu0
  %v934 = vadd.f32 %v683, %v933
  %v935 = vpop.f32.mrf.mxu0
  %v936 = vadd.f32 %v687, %v935
  %937 = vmatprep.mubr.bf16.mxu0 0
  %938 = vmatmul.mubr.bf16.gmra.mxu0 %v141
  %v939 = vpop.f32.mrf.mxu0
  %v940 = vadd.f32 %v683, %v939
  %v941 = vpop.f32.mrf.mxu0
  %v942 = vadd.f32 %v687, %v941
  %v943 = vpop.f32.mrf.mxu0
  %v944 = vadd.f32 %v683, %v943
  %v945 = vpop.f32.mrf.mxu0
  %v946 = vadd.f32 %v687, %v945
  %947 = vmatprep.mubr.bf16.mxu0 0
  %948 = vmatmul.mubr.bf16.gmra.mxu0 %v144
  %v949 = vpop.f32.mrf.mxu0
  %v950 = vadd.f32 %v683, %v949
  %v951 = vpop.f32.mrf.mxu0
  %v952 = vadd.f32 %v687, %v951
  %v953 = vpop.f32.mrf.mxu0
  %v954 = vadd.f32 %v683, %v953
  %v955 = vpop.f32.mrf.mxu0
  %v956 = vadd.f32 %v687, %v955
  %957 = vdwg.mxu0
  %v958 = vmax.f32 %v767, 0.0
  %v959 = vmax.f32 %v769, 0.0
  %v960 = vmax.f32 %v880, 0.0
  %v961 = vmax.f32 %v882, 0.0
  %v962 = vmax.f32 %v771, 0.0
  %v963 = vmax.f32 %v773, 0.0
  %v964 = vmax.f32 %v884, 0.0
  %v965 = vmax.f32 %v886, 0.0
  %v966 = vmax.f32 %v777, 0.0
  %v967 = vmax.f32 %v779, 0.0
  %v968 = vmax.f32 %v890, 0.0
  %v969 = vmax.f32 %v892, 0.0
  %v970 = vmax.f32 %v781, 0.0
  %v971 = vmax.f32 %v783, 0.0
  %v972 = vmax.f32 %v894, 0.0
  %v973 = vmax.f32 %v896, 0.0
  %v974 = vmax.f32 %v787, 0.0
  %v975 = vmax.f32 %v789, 0.0
  %v976 = vmax.f32 %v900, 0.0
  %v977 = vmax.f32 %v902, 0.0
  %v978 = vmax.f32 %v791, 0.0
  %v979 = vmax.f32 %v793, 0.0
  %v980 = vmax.f32 %v904, 0.0
  %v981 = vmax.f32 %v906, 0.0
  %v982 = vmax.f32 %v797, 0.0
  %v983 = vmax.f32 %v799, 0.0
  %v984 = vmax.f32 %v910, 0.0
  %v985 = vmax.f32 %v912, 0.0
  %v986 = vmax.f32 %v801, 0.0
  %v987 = vmax.f32 %v803, 0.0
  %v988 = vmax.f32 %v914, 0.0
  %v989 = vmax.f32 %v916, 0.0
  %v990 = vmax.f32 %v807, 0.0
  %v991 = vmax.f32 %v809, 0.0
  %v992 = vmax.f32 %v920, 0.0
  %v993 = vmax.f32 %v922, 0.0
  %v994 = vmax.f32 %v811, 0.0
  %v995 = vmax.f32 %v813, 0.0
  %v996 = vmax.f32 %v924, 0.0
  %v997 = vmax.f32 %v926, 0.0
  %v998 = vmax.f32 %v817, 0.0
  %v999 = vmax.f32 %v819, 0.0
  %v1000 = vmax.f32 %v930, 0.0
  %v1001 = vmax.f32 %v932, 0.0
  %v1002 = vmax.f32 %v821, 0.0
  %v1003 = vmax.f32 %v823, 0.0
  %v1004 = vmax.f32 %v934, 0.0
  %v1005 = vmax.f32 %v936, 0.0
  %v1006 = vmax.f32 %v827, 0.0
  %v1007 = vmax.f32 %v829, 0.0
  %v1008 = vmax.f32 %v940, 0.0
  %v1009 = vmax.f32 %v942, 0.0
  %v1010 = vmax.f32 %v831, 0.0
  %v1011 = vmax.f32 %v833, 0.0
  %v1012 = vmax.f32 %v944, 0.0
  %v1013 = vmax.f32 %v946, 0.0
  %v1014 = vmax.f32 %v837, 0.0
  %v1015 = vmax.f32 %v839, 0.0
  %v1016 = vmax.f32 %v950, 0.0
  %v1017 = vmax.f32 %v952, 0.0
  %v1018 = vmax.f32 %v841, 0.0
  %v1019 = vmax.f32 %v843, 0.0
  %v1020 = vmax.f32 %v954, 0.0
  %v1021 = vmax.f32 %v956, 0.0
  %v1022 = vpack.c.bf16 %v962, %v958
  %v1023 = vpack.c.bf16 %v963, %v959
  %v1024 = vpack.c.bf16 %v964, %v960
  %v1025 = vpack.c.bf16 %v965, %v961
  %v1026 = vpack.c.bf16 %v970, %v966
  %v1027 = vpack.c.bf16 %v971, %v967
  %v1028 = vpack.c.bf16 %v972, %v968
  %v1029 = vpack.c.bf16 %v973, %v969
  %v1030 = vpack.c.bf16 %v978, %v974
  %v1031 = vpack.c.bf16 %v979, %v975
  %v1032 = vpack.c.bf16 %v980, %v976
  %v1033 = vpack.c.bf16 %v981, %v977
  %v1034 = vpack.c.bf16 %v986, %v982
  %v1035 = vpack.c.bf16 %v987, %v983
  %v1036 = vpack.c.bf16 %v988, %v984
  %v1037 = vpack.c.bf16 %v989, %v985
  %v1038 = vpack.c.bf16 %v994, %v990
  %v1039 = vpack.c.bf16 %v995, %v991
  %v1040 = vpack.c.bf16 %v996, %v992
  %v1041 = vpack.c.bf16 %v997, %v993
  %v1042 = vpack.c.bf16 %v1002, %v998
  %v1043 = vpack.c.bf16 %v1003, %v999
  %v1044 = vpack.c.bf16 %v1004, %v1000
  %v1045 = vpack.c.bf16 %v1005, %v1001
  %v1046 = vpack.c.bf16 %v1010, %v1006
  %v1047 = vpack.c.bf16 %v1011, %v1007
  %v1048 = vpack.c.bf16 %v1012, %v1008
  %v1049 = vpack.c.bf16 %v1013, %v1009
  %v1050 = vpack.c.bf16 %v1018, %v1014
  %v1051 = vpack.c.bf16 %v1019, %v1015
  %v1052 = vpack.c.bf16 %v1020, %v1016
  %v1053 = vpack.c.bf16 %v1021, %v1017
  %v1086 = vunpack.c.l.b16 %v1022
  %v1087 = vunpack.c.l.b16 %v1023
  %v1088 = vunpack.c.l.b16 %v1024
  %v1089 = vunpack.c.l.b16 %v1025
  %v1090 = vunpack.c.h.b16 %v1022
  %v1091 = vunpack.c.h.b16 %v1023
  %v1092 = vunpack.c.h.b16 %v1024
  %v1093 = vunpack.c.h.b16 %v1025
  %v1094 = vunpack.c.l.b16 %v1026
  %v1095 = vunpack.c.l.b16 %v1027
  %v1096 = vunpack.c.l.b16 %v1028
  %v1097 = vunpack.c.l.b16 %v1029
  %v1098 = vunpack.c.h.b16 %v1026
  %v1099 = vunpack.c.h.b16 %v1027
  %v1100 = vunpack.c.h.b16 %v1028
  %v1101 = vunpack.c.h.b16 %v1029
  %v1102 = vunpack.c.l.b16 %v1030
  %v1103 = vunpack.c.l.b16 %v1031
  %v1104 = vunpack.c.l.b16 %v1032
  %v1105 = vunpack.c.l.b16 %v1033
  %v1106 = vunpack.c.h.b16 %v1030
  %v1107 = vunpack.c.h.b16 %v1031
  %v1108 = vunpack.c.h.b16 %v1032
  %v1109 = vunpack.c.h.b16 %v1033
  %v1110 = vunpack.c.l.b16 %v1034
  %v1111 = vunpack.c.l.b16 %v1035
  %v1112 = vunpack.c.l.b16 %v1036
  %v1113 = vunpack.c.l.b16 %v1037
  %v1114 = vunpack.c.h.b16 %v1034
  %v1115 = vunpack.c.h.b16 %v1035
  %v1116 = vunpack.c.h.b16 %v1036
  %v1117 = vunpack.c.h.b16 %v1037
  %v1118 = vunpack.c.l.b16 %v1038
  %v1119 = vunpack.c.l.b16 %v1039
  %v1120 = vunpack.c.l.b16 %v1040
  %v1121 = vunpack.c.l.b16 %v1041
  %v1122 = vunpack.c.h.b16 %v1038
  %v1123 = vunpack.c.h.b16 %v1039
  %v1124 = vunpack.c.h.b16 %v1040
  %v1125 = vunpack.c.h.b16 %v1041
  %v1126 = vunpack.c.l.b16 %v1042
  %v1127 = vunpack.c.l.b16 %v1043
  %v1128 = vunpack.c.l.b16 %v1044
  %v1129 = vunpack.c.l.b16 %v1045
  %v1130 = vunpack.c.h.b16 %v1042
  %v1131 = vunpack.c.h.b16 %v1043
  %v1132 = vunpack.c.h.b16 %v1044
  %v1133 = vunpack.c.h.b16 %v1045
  %v1134 = vunpack.c.l.b16 %v1046
  %v1135 = vunpack.c.l.b16 %v1047
  %v1136 = vunpack.c.l.b16 %v1048
  %v1137 = vunpack.c.l.b16 %v1049
  %v1138 = vunpack.c.h.b16 %v1046
  %v1139 = vunpack.c.h.b16 %v1047
  %v1140 = vunpack.c.h.b16 %v1048
  %v1141 = vunpack.c.h.b16 %v1049
  %v1142 = vunpack.c.l.b16 %v1050
  %v1143 = vunpack.c.l.b16 %v1051
  %v1144 = vunpack.c.l.b16 %v1052
  %v1145 = vunpack.c.l.b16 %v1053
  %v1146 = vunpack.c.h.b16 %v1050
  %v1147 = vunpack.c.h.b16 %v1051
  %v1148 = vunpack.c.h.b16 %v1052
  %v1149 = vunpack.c.h.b16 %v1053
  %v1150 = vpack.c.b16 %v1087, %v1086
  %v1151 = vpack.c.b16 %v1089, %v1088
  %v1152 = vpack.c.b16 %v1091, %v1090
  %v1153 = vpack.c.b16 %v1093, %v1092
  %v1154 = vpack.c.b16 %v1095, %v1094
  %v1155 = vpack.c.b16 %v1097, %v1096
  %v1156 = vpack.c.b16 %v1099, %v1098
  %v1157 = vpack.c.b16 %v1101, %v1100
  %v1158 = vpack.c.b16 %v1103, %v1102
  %v1159 = vpack.c.b16 %v1105, %v1104
  %v1160 = vpack.c.b16 %v1107, %v1106
  %v1161 = vpack.c.b16 %v1109, %v1108
  %v1162 = vpack.c.b16 %v1111, %v1110
  %v1163 = vpack.c.b16 %v1113, %v1112
  %v1164 = vpack.c.b16 %v1115, %v1114
  %v1165 = vpack.c.b16 %v1117, %v1116
  %v1166 = vpack.c.b16 %v1119, %v1118
  %v1167 = vpack.c.b16 %v1121, %v1120
  %v1168 = vpack.c.b16 %v1123, %v1122
  %v1169 = vpack.c.b16 %v1125, %v1124
  %v1170 = vpack.c.b16 %v1127, %v1126
  %v1171 = vpack.c.b16 %v1129, %v1128
  %v1172 = vpack.c.b16 %v1131, %v1130
  %v1173 = vpack.c.b16 %v1133, %v1132
  %v1174 = vpack.c.b16 %v1135, %v1134
  %v1175 = vpack.c.b16 %v1137, %v1136
  %v1176 = vpack.c.b16 %v1139, %v1138
  %v1177 = vpack.c.b16 %v1141, %v1140
  %v1178 = vpack.c.b16 %v1143, %v1142
  %v1179 = vpack.c.b16 %v1145, %v1144
  %v1180 = vpack.c.b16 %v1147, %v1146
  %v1181 = vpack.c.b16 %v1149, %v1148
  %1214 = vst [vmem:[#allocation2 + $0x100] sm:$0xff] %v1150
  %1215 = vst [vmem:[#allocation2 + $0x108] sm:$0xff] %v1151
  %1216 = vst [vmem:[#allocation2 + $0x110] sm:$0xff] %v1152
  %1217 = vst [vmem:[#allocation2 + $0x118] sm:$0xff] %v1153
  %1218 = vst [vmem:[#allocation2 + $0x120] sm:$0xff] %v1154
  %1219 = vst [vmem:[#allocation2 + $0x128] sm:$0xff] %v1155
  %1220 = vst [vmem:[#allocation2 + $0x130] sm:$0xff] %v1156
  %1221 = vst [vmem:[#allocation2 + $0x138] sm:$0xff] %v1157
  %1222 = vst [vmem:[#allocation2 + $0x140] sm:$0xff] %v1158
  %1223 = vst [vmem:[#allocation2 + $0x148] sm:$0xff] %v1159
  %1224 = vst [vmem:[#allocation2 + $0x150] sm:$0xff] %v1160
  %1225 = vst [vmem:[#allocation2 + $0x158] sm:$0xff] %v1161
  %1226 = vst [vmem:[#allocation2 + $0x160] sm:$0xff] %v1162
  %1227 = vst [vmem:[#allocation2 + $0x168] sm:$0xff] %v1163
  %1228 = vst [vmem:[#allocation2 + $0x170] sm:$0xff] %v1164
  %1229 = vst [vmem:[#allocation2 + $0x178] sm:$0xff] %v1165
  %1230 = vst [vmem:[#allocation2 + $0x180] sm:$0xff] %v1166
  %1231 = vst [vmem:[#allocation2 + $0x188] sm:$0xff] %v1167
  %1232 = vst [vmem:[#allocation2 + $0x190] sm:$0xff] %v1168
  %1233 = vst [vmem:[#allocation2 + $0x198] sm:$0xff] %v1169
  %1234 = vst [vmem:[#allocation2 + $0x1a0] sm:$0xff] %v1170
  %1235 = vst [vmem:[#allocation2 + $0x1a8] sm:$0xff] %v1171
  %1236 = vst [vmem:[#allocation2 + $0x1b0] sm:$0xff] %v1172
  %1237 = vst [vmem:[#allocation2 + $0x1b8] sm:$0xff] %v1173
  %1238 = vst [vmem:[#allocation2 + $0x1c0] sm:$0xff] %v1174
  %1239 = vst [vmem:[#allocation2 + $0x1c8] sm:$0xff] %v1175
  %1240 = vst [vmem:[#allocation2 + $0x1d0] sm:$0xff] %v1176
  %1241 = vst [vmem:[#allocation2 + $0x1d8] sm:$0xff] %v1177
  %1242 = vst [vmem:[#allocation2 + $0x1e0] sm:$0xff] %v1178
  %1243 = vst [vmem:[#allocation2 + $0x1e8] sm:$0xff] %v1179
  %1244 = vst [vmem:[#allocation2 + $0x1f0] sm:$0xff] %v1180
  %1245 = vst [vmem:[#allocation2 + $0x1f8] sm:$0xff] %v1181
  %s1246 = scalar_lea.vmem %s1, 128
  %v1247 = vld [vmem:[%s1246] sm:$0xff]
  %v1248 = vld [vmem:[%s1246 + $0x8] sm:$0xff]
  %v1249 = vld [vmem:[%s1246 + $0x10] sm:$0xff]
  %v1250 = vld [vmem:[%s1246 + $0x18] sm:$0xff]
  %v1251 = vld [vmem:[%s1246 + $0x20] sm:$0xff]
  %v1252 = vld [vmem:[%s1246 + $0x28] sm:$0xff]
  %v1253 = vld [vmem:[%s1246 + $0x30] sm:$0xff]
  %v1254 = vld [vmem:[%s1246 + $0x38] sm:$0xff]
  %s1255 = scalar_lea.vmem %s2, 8
  %v1256 = vld [vmem:[%s1255] sm:$0xf]
  %v1258 = vlaneseq
  %v1259 = vshrl.u32 %v1258, 7
  %v1260 = vsub.s32 0, %v1259
  %v1261 = vrot.slane %v1256, %v1260
  %v1262 = vlaneseq
  %v1263 = vshrl.u32 %v1262, 7
  %v1264 = vsub.s32 1, %v1263
  %v1265 = vrot.slane %v1256, %v1264
  %v1266 = vlaneseq
  %v1267 = vshrl.u32 %v1266, 7
  %v1268 = vsub.s32 2, %v1267
  %v1269 = vrot.slane %v1256, %v1268
  %v1270 = vlaneseq
  %v1271 = vshrl.u32 %v1270, 7
  %v1272 = vsub.s32 3, %v1271
  %v1273 = vrot.slane %v1256, %v1272
  %v1286 = vunpack.c.l.b16 %v1247
  %v1287 = vunpack.c.h.b16 %v1247
  %v1288 = vunpack.c.l.b16 %v1248
  %v1289 = vunpack.c.h.b16 %v1248
  %v1290 = vunpack.c.l.b16 %v1249
  %v1291 = vunpack.c.h.b16 %v1249
  %v1292 = vunpack.c.l.b16 %v1250
  %v1293 = vunpack.c.h.b16 %v1250
  %v1294 = vunpack.c.l.b16 %v1251
  %v1295 = vunpack.c.h.b16 %v1251
  %v1296 = vunpack.c.l.b16 %v1252
  %v1297 = vunpack.c.h.b16 %v1252
  %v1298 = vunpack.c.l.b16 %v1253
  %v1299 = vunpack.c.h.b16 %v1253
  %v1300 = vunpack.c.l.b16 %v1254
  %v1301 = vunpack.c.h.b16 %v1254
  %v1302 = vpack.c.b16 %v1290, %v1286
  %v1303 = vpack.c.b16 %v1291, %v1287
  %v1304 = vpack.c.b16 %v1292, %v1288
  %v1305 = vpack.c.b16 %v1293, %v1289
  %v1306 = vpack.c.b16 %v1298, %v1294
  %v1307 = vpack.c.b16 %v1299, %v1295
  %v1308 = vpack.c.b16 %v1300, %v1296
  %v1309 = vpack.c.b16 %v1301, %v1297
  %1318 = vmatprep.subr.bf16.mxu0 0
  %1319 = vmatpush1.bf16.msra.mxu0 0
  %1320 = vmatprep.subr.bf16.mxu0 0
  %1321 = vmatpush1.bf16.msra.mxu0 0
  %1322 = vmatprep.subr.bf16.mxu0 0
  %1323 = vmatpush1.bf16.msra.mxu0 0
  %1324 = vmatprep.subr.bf16.mxu0 0
  %1325 = vmatpush1.bf16.msra.mxu0 0
  %1326 = vmatprep.subr.bf16.mxu0 0
  %1327 = vmatpush1.bf16.msra.mxu0 0
  %1328 = vmatprep.subr.bf16.mxu0 0
  %1329 = vmatpush1.bf16.msra.mxu0 0
  %1330 = vmatprep.subr.bf16.mxu0 %v1307
  %1331 = vmatpush1.bf16.msra.mxu0 %v1306
  %1332 = vmatprep.subr.bf16.mxu0 %v1303
  %1333 = vmatpush1.bf16.msra.mxu0 %v1302
  %1334 = vmatprep.subr.bf16.mxu0 0
  %1335 = vmatpush2.bf16.msra.mxu0 0
  %1336 = vmatprep.subr.bf16.mxu0 0
  %1337 = vmatpush2.bf16.msra.mxu0 0
  %1338 = vmatprep.subr.bf16.mxu0 0
  %1339 = vmatpush2.bf16.msra.mxu0 0
  %1340 = vmatprep.subr.bf16.mxu0 0
  %1341 = vmatpush2.bf16.msra.mxu0 0
  %1342 = vmatprep.subr.bf16.mxu0 0
  %1343 = vmatpush2.bf16.msra.mxu0 0
  %1344 = vmatprep.subr.bf16.mxu0 0
  %1345 = vmatpush2.bf16.msra.mxu0 0
  %1346 = vmatprep.subr.bf16.mxu0 0
  %1347 = vmatpush2.bf16.msra.mxu0 0
  %1348 = vmatprep.subr.bf16.mxu0 0
  %1349 = vmatpush2.bf16.msra.mxu0 0
  %1350 = vmatprep.mubr.bf16.mxu0 0
  %1351 = vmatmul.mubr.bf16.gmra.mxu0 %v123
  %v1352 = vpop.f32.mrf.mxu0
  %v1353 = vadd.f32 %v1261, %v1352
  %v1354 = vpop.f32.mrf.mxu0
  %v1355 = vadd.f32 %v1265, %v1354
  %v1356 = vpop.f32.mrf.mxu0
  %v1357 = vadd.f32 %v1261, %v1356
  %v1358 = vpop.f32.mrf.mxu0
  %v1359 = vadd.f32 %v1265, %v1358
  %1360 = vmatprep.mubr.bf16.mxu0 0
  %1361 = vmatmul.mubr.bf16.gmra.mxu0 %v126
  %v1362 = vpop.f32.mrf.mxu0
  %v1363 = vadd.f32 %v1261, %v1362
  %v1364 = vpop.f32.mrf.mxu0
  %v1365 = vadd.f32 %v1265, %v1364
  %v1366 = vpop.f32.mrf.mxu0
  %v1367 = vadd.f32 %v1261, %v1366
  %v1368 = vpop.f32.mrf.mxu0
  %v1369 = vadd.f32 %v1265, %v1368
  %1370 = vmatprep.mubr.bf16.mxu0 0
  %1371 = vmatmul.mubr.bf16.gmra.mxu0 %v129
  %v1372 = vpop.f32.mrf.mxu0
  %v1373 = vadd.f32 %v1261, %v1372
  %v1374 = vpop.f32.mrf.mxu0
  %v1375 = vadd.f32 %v1265, %v1374
  %v1376 = vpop.f32.mrf.mxu0
  %v1377 = vadd.f32 %v1261, %v1376
  %v1378 = vpop.f32.mrf.mxu0
  %v1379 = vadd.f32 %v1265, %v1378
  %1380 = vmatprep.mubr.bf16.mxu0 0
  %1381 = vmatmul.mubr.bf16.gmra.mxu0 %v132
  %v1382 = vpop.f32.mrf.mxu0
  %v1383 = vadd.f32 %v1261, %v1382
  %v1384 = vpop.f32.mrf.mxu0
  %v1385 = vadd.f32 %v1265, %v1384
  %v1386 = vpop.f32.mrf.mxu0
  %v1387 = vadd.f32 %v1261, %v1386
  %v1388 = vpop.f32.mrf.mxu0
  %v1389 = vadd.f32 %v1265, %v1388
  %1390 = vmatprep.mubr.bf16.mxu0 0
  %1391 = vmatmul.mubr.bf16.gmra.mxu0 %v135
  %v1392 = vpop.f32.mrf.mxu0
  %v1393 = vadd.f32 %v1261, %v1392
  %v1394 = vpop.f32.mrf.mxu0
  %v1395 = vadd.f32 %v1265, %v1394
  %v1396 = vpop.f32.mrf.mxu0
  %v1397 = vadd.f32 %v1261, %v1396
  %v1398 = vpop.f32.mrf.mxu0
  %v1399 = vadd.f32 %v1265, %v1398
  %1400 = vmatprep.mubr.bf16.mxu0 0
  %1401 = vmatmul.mubr.bf16.gmra.mxu0 %v138
  %v1402 = vpop.f32.mrf.mxu0
  %v1403 = vadd.f32 %v1261, %v1402
  %v1404 = vpop.f32.mrf.mxu0
  %v1405 = vadd.f32 %v1265, %v1404
  %v1406 = vpop.f32.mrf.mxu0
  %v1407 = vadd.f32 %v1261, %v1406
  %v1408 = vpop.f32.mrf.mxu0
  %v1409 = vadd.f32 %v1265, %v1408
  %1410 = vmatprep.mubr.bf16.mxu0 0
  %1411 = vmatmul.mubr.bf16.gmra.mxu0 %v141
  %v1412 = vpop.f32.mrf.mxu0
  %v1413 = vadd.f32 %v1261, %v1412
  %v1414 = vpop.f32.mrf.mxu0
  %v1415 = vadd.f32 %v1265, %v1414
  %v1416 = vpop.f32.mrf.mxu0
  %v1417 = vadd.f32 %v1261, %v1416
  %v1418 = vpop.f32.mrf.mxu0
  %v1419 = vadd.f32 %v1265, %v1418
  %1420 = vmatprep.mubr.bf16.mxu0 0
  %1421 = vmatmul.mubr.bf16.gmra.mxu0 %v144
  %v1422 = vpop.f32.mrf.mxu0
  %v1423 = vadd.f32 %v1261, %v1422
  %v1424 = vpop.f32.mrf.mxu0
  %v1425 = vadd.f32 %v1265, %v1424
  %v1426 = vpop.f32.mrf.mxu0
  %v1427 = vadd.f32 %v1261, %v1426
  %v1428 = vpop.f32.mrf.mxu0
  %v1429 = vadd.f32 %v1265, %v1428
  %1430 = vdwg.mxu0
  %1431 = vmatprep.subr.bf16.mxu0 0
  %1432 = vmatpush1.bf16.msra.mxu0 0
  %1433 = vmatprep.subr.bf16.mxu0 0
  %1434 = vmatpush1.bf16.msra.mxu0 0
  %1435 = vmatprep.subr.bf16.mxu0 0
  %1436 = vmatpush1.bf16.msra.mxu0 0
  %1437 = vmatprep.subr.bf16.mxu0 0
  %1438 = vmatpush1.bf16.msra.mxu0 0
  %1439 = vmatprep.subr.bf16.mxu0 0
  %1440 = vmatpush1.bf16.msra.mxu0 0
  %1441 = vmatprep.subr.bf16.mxu0 0
  %1442 = vmatpush1.bf16.msra.mxu0 0
  %1443 = vmatprep.subr.bf16.mxu0 %v1309
  %1444 = vmatpush1.bf16.msra.mxu0 %v1308
  %1445 = vmatprep.subr.bf16.mxu0 %v1305
  %1446 = vmatpush1.bf16.msra.mxu0 %v1304
  %1447 = vmatprep.subr.bf16.mxu0 0
  %1448 = vmatpush2.bf16.msra.mxu0 0
  %1449 = vmatprep.subr.bf16.mxu0 0
  %1450 = vmatpush2.bf16.msra.mxu0 0
  %1451 = vmatprep.subr.bf16.mxu0 0
  %1452 = vmatpush2.bf16.msra.mxu0 0
  %1453 = vmatprep.subr.bf16.mxu0 0
  %1454 = vmatpush2.bf16.msra.mxu0 0
  %1455 = vmatprep.subr.bf16.mxu0 0
  %1456 = vmatpush2.bf16.msra.mxu0 0
  %1457 = vmatprep.subr.bf16.mxu0 0
  %1458 = vmatpush2.bf16.msra.mxu0 0
  %1459 = vmatprep.subr.bf16.mxu0 0
  %1460 = vmatpush2.bf16.msra.mxu0 0
  %1461 = vmatprep.subr.bf16.mxu0 0
  %1462 = vmatpush2.bf16.msra.mxu0 0
  %1463 = vmatprep.mubr.bf16.mxu0 0
  %1464 = vmatmul.mubr.bf16.gmra.mxu0 %v123
  %v1465 = vpop.f32.mrf.mxu0
  %v1466 = vadd.f32 %v1269, %v1465
  %v1467 = vpop.f32.mrf.mxu0
  %v1468 = vadd.f32 %v1273, %v1467
  %v1469 = vpop.f32.mrf.mxu0
  %v1470 = vadd.f32 %v1269, %v1469
  %v1471 = vpop.f32.mrf.mxu0
  %v1472 = vadd.f32 %v1273, %v1471
  %1473 = vmatprep.mubr.bf16.mxu0 0
  %1474 = vmatmul.mubr.bf16.gmra.mxu0 %v126
  %v1475 = vpop.f32.mrf.mxu0
  %v1476 = vadd.f32 %v1269, %v1475
  %v1477 = vpop.f32.mrf.mxu0
  %v1478 = vadd.f32 %v1273, %v1477
  %v1479 = vpop.f32.mrf.mxu0
  %v1480 = vadd.f32 %v1269, %v1479
  %v1481 = vpop.f32.mrf.mxu0
  %v1482 = vadd.f32 %v1273, %v1481
  %1483 = vmatprep.mubr.bf16.mxu0 0
  %1484 = vmatmul.mubr.bf16.gmra.mxu0 %v129
  %v1485 = vpop.f32.mrf.mxu0
  %v1486 = vadd.f32 %v1269, %v1485
  %v1487 = vpop.f32.mrf.mxu0
  %v1488 = vadd.f32 %v1273, %v1487
  %v1489 = vpop.f32.mrf.mxu0
  %v1490 = vadd.f32 %v1269, %v1489
  %v1491 = vpop.f32.mrf.mxu0
  %v1492 = vadd.f32 %v1273, %v1491
  %1493 = vmatprep.mubr.bf16.mxu0 0
  %1494 = vmatmul.mubr.bf16.gmra.mxu0 %v132
  %v1495 = vpop.f32.mrf.mxu0
  %v1496 = vadd.f32 %v1269, %v1495
  %v1497 = vpop.f32.mrf.mxu0
  %v1498 = vadd.f32 %v1273, %v1497
  %v1499 = vpop.f32.mrf.mxu0
  %v1500 = vadd.f32 %v1269, %v1499
  %v1501 = vpop.f32.mrf.mxu0
  %v1502 = vadd.f32 %v1273, %v1501
  %1503 = vmatprep.mubr.bf16.mxu0 0
  %1504 = vmatmul.mubr.bf16.gmra.mxu0 %v135
  %v1505 = vpop.f32.mrf.mxu0
  %v1506 = vadd.f32 %v1269, %v1505
  %v1507 = vpop.f32.mrf.mxu0
  %v1508 = vadd.f32 %v1273, %v1507
  %v1509 = vpop.f32.mrf.mxu0
  %v1510 = vadd.f32 %v1269, %v1509
  %v1511 = vpop.f32.mrf.mxu0
  %v1512 = vadd.f32 %v1273, %v1511
  %1513 = vmatprep.mubr.bf16.mxu0 0
  %1514 = vmatmul.mubr.bf16.gmra.mxu0 %v138
  %v1515 = vpop.f32.mrf.mxu0
  %v1516 = vadd.f32 %v1269, %v1515
  %v1517 = vpop.f32.mrf.mxu0
  %v1518 = vadd.f32 %v1273, %v1517
  %v1519 = vpop.f32.mrf.mxu0
  %v1520 = vadd.f32 %v1269, %v1519
  %v1521 = vpop.f32.mrf.mxu0
  %v1522 = vadd.f32 %v1273, %v1521
  %1523 = vmatprep.mubr.bf16.mxu0 0
  %1524 = vmatmul.mubr.bf16.gmra.mxu0 %v141
  %v1525 = vpop.f32.mrf.mxu0
  %v1526 = vadd.f32 %v1269, %v1525
  %v1527 = vpop.f32.mrf.mxu0
  %v1528 = vadd.f32 %v1273, %v1527
  %v1529 = vpop.f32.mrf.mxu0
  %v1530 = vadd.f32 %v1269, %v1529
  %v1531 = vpop.f32.mrf.mxu0
  %v1532 = vadd.f32 %v1273, %v1531
  %1533 = vmatprep.mubr.bf16.mxu0 0
  %1534 = vmatmul.mubr.bf16.gmra.mxu0 %v144
  %v1535 = vpop.f32.mrf.mxu0
  %v1536 = vadd.f32 %v1269, %v1535
  %v1537 = vpop.f32.mrf.mxu0
  %v1538 = vadd.f32 %v1273, %v1537
  %v1539 = vpop.f32.mrf.mxu0
  %v1540 = vadd.f32 %v1269, %v1539
  %v1541 = vpop.f32.mrf.mxu0
  %v1542 = vadd.f32 %v1273, %v1541
  %1543 = vdwg.mxu0
  %v1544 = vmax.f32 %v1353, 0.0
  %v1545 = vmax.f32 %v1355, 0.0
  %v1546 = vmax.f32 %v1466, 0.0
  %v1547 = vmax.f32 %v1468, 0.0
  %v1548 = vmax.f32 %v1357, 0.0
  %v1549 = vmax.f32 %v1359, 0.0
  %v1550 = vmax.f32 %v1470, 0.0
  %v1551 = vmax.f32 %v1472, 0.0
  %v1552 = vmax.f32 %v1363, 0.0
  %v1553 = vmax.f32 %v1365, 0.0
  %v1554 = vmax.f32 %v1476, 0.0
  %v1555 = vmax.f32 %v1478, 0.0
  %v1556 = vmax.f32 %v1367, 0.0
  %v1557 = vmax.f32 %v1369, 0.0
  %v1558 = vmax.f32 %v1480, 0.0
  %v1559 = vmax.f32 %v1482, 0.0
  %v1560 = vmax.f32 %v1373, 0.0
  %v1561 = vmax.f32 %v1375, 0.0
  %v1562 = vmax.f32 %v1486, 0.0
  %v1563 = vmax.f32 %v1488, 0.0
  %v1564 = vmax.f32 %v1377, 0.0
  %v1565 = vmax.f32 %v1379, 0.0
  %v1566 = vmax.f32 %v1490, 0.0
  %v1567 = vmax.f32 %v1492, 0.0
  %v1568 = vmax.f32 %v1383, 0.0
  %v1569 = vmax.f32 %v1385, 0.0
  %v1570 = vmax.f32 %v1496, 0.0
  %v1571 = vmax.f32 %v1498, 0.0
  %v1572 = vmax.f32 %v1387, 0.0
  %v1573 = vmax.f32 %v1389, 0.0
  %v1574 = vmax.f32 %v1500, 0.0
  %v1575 = vmax.f32 %v1502, 0.0
  %v1576 = vmax.f32 %v1393, 0.0
  %v1577 = vmax.f32 %v1395, 0.0
  %v1578 = vmax.f32 %v1506, 0.0
  %v1579 = vmax.f32 %v1508, 0.0
  %v1580 = vmax.f32 %v1397, 0.0
  %v1581 = vmax.f32 %v1399, 0.0
  %v1582 = vmax.f32 %v1510, 0.0
  %v1583 = vmax.f32 %v1512, 0.0
  %v1584 = vmax.f32 %v1403, 0.0
  %v1585 = vmax.f32 %v1405, 0.0
  %v1586 = vmax.f32 %v1516, 0.0
  %v1587 = vmax.f32 %v1518, 0.0
  %v1588 = vmax.f32 %v1407, 0.0
  %v1589 = vmax.f32 %v1409, 0.0
  %v1590 = vmax.f32 %v1520, 0.0
  %v1591 = vmax.f32 %v1522, 0.0
  %v1592 = vmax.f32 %v1413, 0.0
  %v1593 = vmax.f32 %v1415, 0.0
  %v1594 = vmax.f32 %v1526, 0.0
  %v1595 = vmax.f32 %v1528, 0.0
  %v1596 = vmax.f32 %v1417, 0.0
  %v1597 = vmax.f32 %v1419, 0.0
  %v1598 = vmax.f32 %v1530, 0.0
  %v1599 = vmax.f32 %v1532, 0.0
  %v1600 = vmax.f32 %v1423, 0.0
  %v1601 = vmax.f32 %v1425, 0.0
  %v1602 = vmax.f32 %v1536, 0.0
  %v1603 = vmax.f32 %v1538, 0.0
  %v1604 = vmax.f32 %v1427, 0.0
  %v1605 = vmax.f32 %v1429, 0.0
  %v1606 = vmax.f32 %v1540, 0.0
  %v1607 = vmax.f32 %v1542, 0.0
  %v1608 = vpack.c.bf16 %v1548, %v1544
  %v1609 = vpack.c.bf16 %v1549, %v1545
  %v1610 = vpack.c.bf16 %v1550, %v1546
  %v1611 = vpack.c.bf16 %v1551, %v1547
  %v1612 = vpack.c.bf16 %v1556, %v1552
  %v1613 = vpack.c.bf16 %v1557, %v1553
  %v1614 = vpack.c.bf16 %v1558, %v1554
  %v1615 = vpack.c.bf16 %v1559, %v1555
  %v1616 = vpack.c.bf16 %v1564, %v1560
  %v1617 = vpack.c.bf16 %v1565, %v1561
  %v1618 = vpack.c.bf16 %v1566, %v1562
  %v1619 = vpack.c.bf16 %v1567, %v1563
  %v1620 = vpack.c.bf16 %v1572, %v1568
  %v1621 = vpack.c.bf16 %v1573, %v1569
  %v1622 = vpack.c.bf16 %v1574, %v1570
  %v1623 = vpack.c.bf16 %v1575, %v1571
  %v1624 = vpack.c.bf16 %v1580, %v1576
  %v1625 = vpack.c.bf16 %v1581, %v1577
  %v1626 = vpack.c.bf16 %v1582, %v1578
  %v1627 = vpack.c.bf16 %v1583, %v1579
  %v1628 = vpack.c.bf16 %v1588, %v1584
  %v1629 = vpack.c.bf16 %v1589, %v1585
  %v1630 = vpack.c.bf16 %v1590, %v1586
  %v1631 = vpack.c.bf16 %v1591, %v1587
  %v1632 = vpack.c.bf16 %v1596, %v1592
  %v1633 = vpack.c.bf16 %v1597, %v1593
  %v1634 = vpack.c.bf16 %v1598, %v1594
  %v1635 = vpack.c.bf16 %v1599, %v1595
  %v1636 = vpack.c.bf16 %v1604, %v1600
  %v1637 = vpack.c.bf16 %v1605, %v1601
  %v1638 = vpack.c.bf16 %v1606, %v1602
  %v1639 = vpack.c.bf16 %v1607, %v1603
  %v1672 = vunpack.c.l.b16 %v1608
  %v1673 = vunpack.c.l.b16 %v1609
  %v1674 = vunpack.c.l.b16 %v1610
  %v1675 = vunpack.c.l.b16 %v1611
  %v1676 = vunpack.c.h.b16 %v1608
  %v1677 = vunpack.c.h.b16 %v1609
  %v1678 = vunpack.c.h.b16 %v1610
  %v1679 = vunpack.c.h.b16 %v1611
  %v1680 = vunpack.c.l.b16 %v1612
  %v1681 = vunpack.c.l.b16 %v1613
  %v1682 = vunpack.c.l.b16 %v1614
  %v1683 = vunpack.c.l.b16 %v1615
  %v1684 = vunpack.c.h.b16 %v1612
  %v1685 = vunpack.c.h.b16 %v1613
  %v1686 = vunpack.c.h.b16 %v1614
  %v1687 = vunpack.c.h.b16 %v1615
  %v1688 = vunpack.c.l.b16 %v1616
  %v1689 = vunpack.c.l.b16 %v1617
  %v1690 = vunpack.c.l.b16 %v1618
  %v1691 = vunpack.c.l.b16 %v1619
  %v1692 = vunpack.c.h.b16 %v1616
  %v1693 = vunpack.c.h.b16 %v1617
  %v1694 = vunpack.c.h.b16 %v1618
  %v1695 = vunpack.c.h.b16 %v1619
  %v1696 = vunpack.c.l.b16 %v1620
  %v1697 = vunpack.c.l.b16 %v1621
  %v1698 = vunpack.c.l.b16 %v1622
  %v1699 = vunpack.c.l.b16 %v1623
  %v1700 = vunpack.c.h.b16 %v1620
  %v1701 = vunpack.c.h.b16 %v1621
  %v1702 = vunpack.c.h.b16 %v1622
  %v1703 = vunpack.c.h.b16 %v1623
  %v1704 = vunpack.c.l.b16 %v1624
  %v1705 = vunpack.c.l.b16 %v1625
  %v1706 = vunpack.c.l.b16 %v1626
  %v1707 = vunpack.c.l.b16 %v1627
  %v1708 = vunpack.c.h.b16 %v1624
  %v1709 = vunpack.c.h.b16 %v1625
  %v1710 = vunpack.c.h.b16 %v1626
  %v1711 = vunpack.c.h.b16 %v1627
  %v1712 = vunpack.c.l.b16 %v1628
  %v1713 = vunpack.c.l.b16 %v1629
  %v1714 = vunpack.c.l.b16 %v1630
  %v1715 = vunpack.c.l.b16 %v1631
  %v1716 = vunpack.c.h.b16 %v1628
  %v1717 = vunpack.c.h.b16 %v1629
  %v1718 = vunpack.c.h.b16 %v1630
  %v1719 = vunpack.c.h.b16 %v1631
  %v1720 = vunpack.c.l.b16 %v1632
  %v1721 = vunpack.c.l.b16 %v1633
  %v1722 = vunpack.c.l.b16 %v1634
  %v1723 = vunpack.c.l.b16 %v1635
  %v1724 = vunpack.c.h.b16 %v1632
  %v1725 = vunpack.c.h.b16 %v1633
  %v1726 = vunpack.c.h.b16 %v1634
  %v1727 = vunpack.c.h.b16 %v1635
  %v1728 = vunpack.c.l.b16 %v1636
  %v1729 = vunpack.c.l.b16 %v1637
  %v1730 = vunpack.c.l.b16 %v1638
  %v1731 = vunpack.c.l.b16 %v1639
  %v1732 = vunpack.c.h.b16 %v1636
  %v1733 = vunpack.c.h.b16 %v1637
  %v1734 = vunpack.c.h.b16 %v1638
  %v1735 = vunpack.c.h.b16 %v1639
  %v1736 = vpack.c.b16 %v1673, %v1672
  %v1737 = vpack.c.b16 %v1675, %v1674
  %v1738 = vpack.c.b16 %v1677, %v1676
  %v1739 = vpack.c.b16 %v1679, %v1678
  %v1740 = vpack.c.b16 %v1681, %v1680
  %v1741 = vpack.c.b16 %v1683, %v1682
  %v1742 = vpack.c.b16 %v1685, %v1684
  %v1743 = vpack.c.b16 %v1687, %v1686
  %v1744 = vpack.c.b16 %v1689, %v1688
  %v1745 = vpack.c.b16 %v1691, %v1690
  %v1746 = vpack.c.b16 %v1693, %v1692
  %v1747 = vpack.c.b16 %v1695, %v1694
  %v1748 = vpack.c.b16 %v1697, %v1696
  %v1749 = vpack.c.b16 %v1699, %v1698
  %v1750 = vpack.c.b16 %v1701, %v1700
  %v1751 = vpack.c.b16 %v1703, %v1702
  %v1752 = vpack.c.b16 %v1705, %v1704
  %v1753 = vpack.c.b16 %v1707, %v1706
  %v1754 = vpack.c.b16 %v1709, %v1708
  %v1755 = vpack.c.b16 %v1711, %v1710
  %v1756 = vpack.c.b16 %v1713, %v1712
  %v1757 = vpack.c.b16 %v1715, %v1714
  %v1758 = vpack.c.b16 %v1717, %v1716
  %v1759 = vpack.c.b16 %v1719, %v1718
  %v1760 = vpack.c.b16 %v1721, %v1720
  %v1761 = vpack.c.b16 %v1723, %v1722
  %v1762 = vpack.c.b16 %v1725, %v1724
  %v1763 = vpack.c.b16 %v1727, %v1726
  %v1764 = vpack.c.b16 %v1729, %v1728
  %v1765 = vpack.c.b16 %v1731, %v1730
  %v1766 = vpack.c.b16 %v1733, %v1732
  %v1767 = vpack.c.b16 %v1735, %v1734
  %1800 = vst [vmem:[#allocation2 + $0x200] sm:$0xff] %v1736
  %1801 = vst [vmem:[#allocation2 + $0x208] sm:$0xff] %v1737
  %1802 = vst [vmem:[#allocation2 + $0x210] sm:$0xff] %v1738
  %1803 = vst [vmem:[#allocation2 + $0x218] sm:$0xff] %v1739
  %1804 = vst [vmem:[#allocation2 + $0x220] sm:$0xff] %v1740
  %1805 = vst [vmem:[#allocation2 + $0x228] sm:$0xff] %v1741
  %1806 = vst [vmem:[#allocation2 + $0x230] sm:$0xff] %v1742
  %1807 = vst [vmem:[#allocation2 + $0x238] sm:$0xff] %v1743
  %1808 = vst [vmem:[#allocation2 + $0x240] sm:$0xff] %v1744
  %1809 = vst [vmem:[#allocation2 + $0x248] sm:$0xff] %v1745
  %1810 = vst [vmem:[#allocation2 + $0x250] sm:$0xff] %v1746
  %1811 = vst [vmem:[#allocation2 + $0x258] sm:$0xff] %v1747
  %1812 = vst [vmem:[#allocation2 + $0x260] sm:$0xff] %v1748
  %1813 = vst [vmem:[#allocation2 + $0x268] sm:$0xff] %v1749
  %1814 = vst [vmem:[#allocation2 + $0x270] sm:$0xff] %v1750
  %1815 = vst [vmem:[#allocation2 + $0x278] sm:$0xff] %v1751
  %1816 = vst [vmem:[#allocation2 + $0x280] sm:$0xff] %v1752
  %1817 = vst [vmem:[#allocation2 + $0x288] sm:$0xff] %v1753
  %1818 = vst [vmem:[#allocation2 + $0x290] sm:$0xff] %v1754
  %1819 = vst [vmem:[#allocation2 + $0x298] sm:$0xff] %v1755
  %1820 = vst [vmem:[#allocation2 + $0x2a0] sm:$0xff] %v1756
  %1821 = vst [vmem:[#allocation2 + $0x2a8] sm:$0xff] %v1757
  %1822 = vst [vmem:[#allocation2 + $0x2b0] sm:$0xff] %v1758
  %1823 = vst [vmem:[#allocation2 + $0x2b8] sm:$0xff] %v1759
  %1824 = vst [vmem:[#allocation2 + $0x2c0] sm:$0xff] %v1760
  %1825 = vst [vmem:[#allocation2 + $0x2c8] sm:$0xff] %v1761
  %1826 = vst [vmem:[#allocation2 + $0x2d0] sm:$0xff] %v1762
  %1827 = vst [vmem:[#allocation2 + $0x2d8] sm:$0xff] %v1763
  %1828 = vst [vmem:[#allocation2 + $0x2e0] sm:$0xff] %v1764
  %1829 = vst [vmem:[#allocation2 + $0x2e8] sm:$0xff] %v1765
  %1830 = vst [vmem:[#allocation2 + $0x2f0] sm:$0xff] %v1766
  %1831 = vst [vmem:[#allocation2 + $0x2f8] sm:$0xff] %v1767
  %s1832 = scalar_lea.vmem %s1, 192
  %v1833 = vld [vmem:[%s1832] sm:$0xff]
  %v1834 = vld [vmem:[%s1832 + $0x8] sm:$0xff]
  %v1835 = vld [vmem:[%s1832 + $0x10] sm:$0xff]
  %v1836 = vld [vmem:[%s1832 + $0x18] sm:$0xff]
  %v1837 = vld [vmem:[%s1832 + $0x20] sm:$0xff]
  %v1838 = vld [vmem:[%s1832 + $0x28] sm:$0xff]
  %v1839 = vld [vmem:[%s1832 + $0x30] sm:$0xff]
  %v1840 = vld [vmem:[%s1832 + $0x38] sm:$0xff]
  %s1841 = scalar_lea.vmem %s2, 12
  %v1842 = vld [vmem:[%s1841] sm:$0xf]
  %v1844 = vlaneseq
  %v1845 = vshrl.u32 %v1844, 7
  %v1846 = vsub.s32 0, %v1845
  %v1847 = vrot.slane %v1842, %v1846
  %v1848 = vlaneseq
  %v1849 = vshrl.u32 %v1848, 7
  %v1850 = vsub.s32 1, %v1849
  %v1851 = vrot.slane %v1842, %v1850
  %v1852 = vlaneseq
  %v1853 = vshrl.u32 %v1852, 7
  %v1854 = vsub.s32 2, %v1853
  %v1855 = vrot.slane %v1842, %v1854
  %v1856 = vlaneseq
  %v1857 = vshrl.u32 %v1856, 7
  %v1858 = vsub.s32 3, %v1857
  %v1859 = vrot.slane %v1842, %v1858
  %v1872 = vunpack.c.l.b16 %v1833
  %v1873 = vunpack.c.h.b16 %v1833
  %v1874 = vunpack.c.l.b16 %v1834
  %v1875 = vunpack.c.h.b16 %v1834
  %v1876 = vunpack.c.l.b16 %v1835
  %v1877 = vunpack.c.h.b16 %v1835
  %v1878 = vunpack.c.l.b16 %v1836
  %v1879 = vunpack.c.h.b16 %v1836
  %v1880 = vunpack.c.l.b16 %v1837
  %v1881 = vunpack.c.h.b16 %v1837
  %v1882 = vunpack.c.l.b16 %v1838
  %v1883 = vunpack.c.h.b16 %v1838
  %v1884 = vunpack.c.l.b16 %v1839
  %v1885 = vunpack.c.h.b16 %v1839
  %v1886 = vunpack.c.l.b16 %v1840
  %v1887 = vunpack.c.h.b16 %v1840
  %v1888 = vpack.c.b16 %v1876, %v1872
  %v1889 = vpack.c.b16 %v1877, %v1873
  %v1890 = vpack.c.b16 %v1878, %v1874
  %v1891 = vpack.c.b16 %v1879, %v1875
  %v1892 = vpack.c.b16 %v1884, %v1880
  %v1893 = vpack.c.b16 %v1885, %v1881
  %v1894 = vpack.c.b16 %v1886, %v1882
  %v1895 = vpack.c.b16 %v1887, %v1883
  %1904 = vmatprep.subr.bf16.mxu0 0
  %1905 = vmatpush1.bf16.msra.mxu0 0
  %1906 = vmatprep.subr.bf16.mxu0 0
  %1907 = vmatpush1.bf16.msra.mxu0 0
  %1908 = vmatprep.subr.bf16.mxu0 0
  %1909 = vmatpush1.bf16.msra.mxu0 0
  %1910 = vmatprep.subr.bf16.mxu0 0
  %1911 = vmatpush1.bf16.msra.mxu0 0
  %1912 = vmatprep.subr.bf16.mxu0 0
  %1913 = vmatpush1.bf16.msra.mxu0 0
  %1914 = vmatprep.subr.bf16.mxu0 0
  %1915 = vmatpush1.bf16.msra.mxu0 0
  %1916 = vmatprep.subr.bf16.mxu0 %v1893
  %1917 = vmatpush1.bf16.msra.mxu0 %v1892
  %1918 = vmatprep.subr.bf16.mxu0 %v1889
  %1919 = vmatpush1.bf16.msra.mxu0 %v1888
  %1920 = vmatprep.subr.bf16.mxu0 0
  %1921 = vmatpush2.bf16.msra.mxu0 0
  %1922 = vmatprep.subr.bf16.mxu0 0
  %1923 = vmatpush2.bf16.msra.mxu0 0
  %1924 = vmatprep.subr.bf16.mxu0 0
  %1925 = vmatpush2.bf16.msra.mxu0 0
  %1926 = vmatprep.subr.bf16.mxu0 0
  %1927 = vmatpush2.bf16.msra.mxu0 0
  %1928 = vmatprep.subr.bf16.mxu0 0
  %1929 = vmatpush2.bf16.msra.mxu0 0
  %1930 = vmatprep.subr.bf16.mxu0 0
  %1931 = vmatpush2.bf16.msra.mxu0 0
  %1932 = vmatprep.subr.bf16.mxu0 0
  %1933 = vmatpush2.bf16.msra.mxu0 0
  %1934 = vmatprep.subr.bf16.mxu0 0
  %1935 = vmatpush2.bf16.msra.mxu0 0
  %1936 = vmatprep.mubr.bf16.mxu0 0
  %1937 = vmatmul.mubr.bf16.gmra.mxu0 %v123
  %v1938 = vpop.f32.mrf.mxu0
  %v1939 = vadd.f32 %v1847, %v1938
  %v1940 = vpop.f32.mrf.mxu0
  %v1941 = vadd.f32 %v1851, %v1940
  %v1942 = vpop.f32.mrf.mxu0
  %v1943 = vadd.f32 %v1847, %v1942
  %v1944 = vpop.f32.mrf.mxu0
  %v1945 = vadd.f32 %v1851, %v1944
  %1946 = vmatprep.mubr.bf16.mxu0 0
  %1947 = vmatmul.mubr.bf16.gmra.mxu0 %v126
  %v1948 = vpop.f32.mrf.mxu0
  %v1949 = vadd.f32 %v1847, %v1948
  %v1950 = vpop.f32.mrf.mxu0
  %v1951 = vadd.f32 %v1851, %v1950
  %v1952 = vpop.f32.mrf.mxu0
  %v1953 = vadd.f32 %v1847, %v1952
  %v1954 = vpop.f32.mrf.mxu0
  %v1955 = vadd.f32 %v1851, %v1954
  %1956 = vmatprep.mubr.bf16.mxu0 0
  %1957 = vmatmul.mubr.bf16.gmra.mxu0 %v129
  %v1958 = vpop.f32.mrf.mxu0
  %v1959 = vadd.f32 %v1847, %v1958
  %v1960 = vpop.f32.mrf.mxu0
  %v1961 = vadd.f32 %v1851, %v1960
  %v1962 = vpop.f32.mrf.mxu0
  %v1963 = vadd.f32 %v1847, %v1962
  %v1964 = vpop.f32.mrf.mxu0
  %v1965 = vadd.f32 %v1851, %v1964
  %1966 = vmatprep.mubr.bf16.mxu0 0
  %1967 = vmatmul.mubr.bf16.gmra.mxu0 %v132
  %v1968 = vpop.f32.mrf.mxu0
  %v1969 = vadd.f32 %v1847, %v1968
  %v1970 = vpop.f32.mrf.mxu0
  %v1971 = vadd.f32 %v1851, %v1970
  %v1972 = vpop.f32.mrf.mxu0
  %v1973 = vadd.f32 %v1847, %v1972
  %v1974 = vpop.f32.mrf.mxu0
  %v1975 = vadd.f32 %v1851, %v1974
  %1976 = vmatprep.mubr.bf16.mxu0 0
  %1977 = vmatmul.mubr.bf16.gmra.mxu0 %v135
  %v1978 = vpop.f32.mrf.mxu0
  %v1979 = vadd.f32 %v1847, %v1978
  %v1980 = vpop.f32.mrf.mxu0
  %v1981 = vadd.f32 %v1851, %v1980
  %v1982 = vpop.f32.mrf.mxu0
  %v1983 = vadd.f32 %v1847, %v1982
  %v1984 = vpop.f32.mrf.mxu0
  %v1985 = vadd.f32 %v1851, %v1984
  %1986 = vmatprep.mubr.bf16.mxu0 0
  %1987 = vmatmul.mubr.bf16.gmra.mxu0 %v138
  %v1988 = vpop.f32.mrf.mxu0
  %v1989 = vadd.f32 %v1847, %v1988
  %v1990 = vpop.f32.mrf.mxu0
  %v1991 = vadd.f32 %v1851, %v1990
  %v1992 = vpop.f32.mrf.mxu0
  %v1993 = vadd.f32 %v1847, %v1992
  %v1994 = vpop.f32.mrf.mxu0
  %v1995 = vadd.f32 %v1851, %v1994
  %1996 = vmatprep.mubr.bf16.mxu0 0
  %1997 = vmatmul.mubr.bf16.gmra.mxu0 %v141
  %v1998 = vpop.f32.mrf.mxu0
  %v1999 = vadd.f32 %v1847, %v1998
  %v2000 = vpop.f32.mrf.mxu0
  %v2001 = vadd.f32 %v1851, %v2000
  %v2002 = vpop.f32.mrf.mxu0
  %v2003 = vadd.f32 %v1847, %v2002
  %v2004 = vpop.f32.mrf.mxu0
  %v2005 = vadd.f32 %v1851, %v2004
  %2006 = vmatprep.mubr.bf16.mxu0 0
  %2007 = vmatmul.mubr.bf16.gmra.mxu0 %v144
  %v2008 = vpop.f32.mrf.mxu0
  %v2009 = vadd.f32 %v1847, %v2008
  %v2010 = vpop.f32.mrf.mxu0
  %v2011 = vadd.f32 %v1851, %v2010
  %v2012 = vpop.f32.mrf.mxu0
  %v2013 = vadd.f32 %v1847, %v2012
  %v2014 = vpop.f32.mrf.mxu0
  %v2015 = vadd.f32 %v1851, %v2014
  %2016 = vdwg.mxu0
  %2017 = vmatprep.subr.bf16.mxu0 0
  %2018 = vmatpush1.bf16.msra.mxu0 0
  %2019 = vmatprep.subr.bf16.mxu0 0
  %2020 = vmatpush1.bf16.msra.mxu0 0
  %2021 = vmatprep.subr.bf16.mxu0 0
  %2022 = vmatpush1.bf16.msra.mxu0 0
  %2023 = vmatprep.subr.bf16.mxu0 0
  %2024 = vmatpush1.bf16.msra.mxu0 0
  %2025 = vmatprep.subr.bf16.mxu0 0
  %2026 = vmatpush1.bf16.msra.mxu0 0
  %2027 = vmatprep.subr.bf16.mxu0 0
  %2028 = vmatpush1.bf16.msra.mxu0 0
  %2029 = vmatprep.subr.bf16.mxu0 %v1895
  %2030 = vmatpush1.bf16.msra.mxu0 %v1894
  %2031 = vmatprep.subr.bf16.mxu0 %v1891
  %2032 = vmatpush1.bf16.msra.mxu0 %v1890
  %2033 = vmatprep.subr.bf16.mxu0 0
  %2034 = vmatpush2.bf16.msra.mxu0 0
  %2035 = vmatprep.subr.bf16.mxu0 0
  %2036 = vmatpush2.bf16.msra.mxu0 0
  %2037 = vmatprep.subr.bf16.mxu0 0
  %2038 = vmatpush2.bf16.msra.mxu0 0
  %2039 = vmatprep.subr.bf16.mxu0 0
  %2040 = vmatpush2.bf16.msra.mxu0 0
  %2041 = vmatprep.subr.bf16.mxu0 0
  %2042 = vmatpush2.bf16.msra.mxu0 0
  %2043 = vmatprep.subr.bf16.mxu0 0
  %2044 = vmatpush2.bf16.msra.mxu0 0
  %2045 = vmatprep.subr.bf16.mxu0 0
  %2046 = vmatpush2.bf16.msra.mxu0 0
  %2047 = vmatprep.subr.bf16.mxu0 0
  %2048 = vmatpush2.bf16.msra.mxu0 0
  %2049 = vmatprep.mubr.bf16.mxu0 0
  %2050 = vmatmul.mubr.bf16.gmra.mxu0 %v123
  %v2051 = vpop.f32.mrf.mxu0
  %v2052 = vadd.f32 %v1855, %v2051
  %v2053 = vpop.f32.mrf.mxu0
  %v2054 = vadd.f32 %v1859, %v2053
  %v2055 = vpop.f32.mrf.mxu0
  %v2056 = vadd.f32 %v1855, %v2055
  %v2057 = vpop.f32.mrf.mxu0
  %v2058 = vadd.f32 %v1859, %v2057
  %2059 = vmatprep.mubr.bf16.mxu0 0
  %2060 = vmatmul.mubr.bf16.gmra.mxu0 %v126
  %v2061 = vpop.f32.mrf.mxu0
  %v2062 = vadd.f32 %v1855, %v2061
  %v2063 = vpop.f32.mrf.mxu0
  %v2064 = vadd.f32 %v1859, %v2063
  %v2065 = vpop.f32.mrf.mxu0
  %v2066 = vadd.f32 %v1855, %v2065
  %v2067 = vpop.f32.mrf.mxu0
  %v2068 = vadd.f32 %v1859, %v2067
  %2069 = vmatprep.mubr.bf16.mxu0 0
  %2070 = vmatmul.mubr.bf16.gmra.mxu0 %v129
  %v2071 = vpop.f32.mrf.mxu0
  %v2072 = vadd.f32 %v1855, %v2071
  %v2073 = vpop.f32.mrf.mxu0
  %v2074 = vadd.f32 %v1859, %v2073
  %v2075 = vpop.f32.mrf.mxu0
  %v2076 = vadd.f32 %v1855, %v2075
  %v2077 = vpop.f32.mrf.mxu0
  %v2078 = vadd.f32 %v1859, %v2077
  %2079 = vmatprep.mubr.bf16.mxu0 0
  %2080 = vmatmul.mubr.bf16.gmra.mxu0 %v132
  %v2081 = vpop.f32.mrf.mxu0
  %v2082 = vadd.f32 %v1855, %v2081
  %v2083 = vpop.f32.mrf.mxu0
  %v2084 = vadd.f32 %v1859, %v2083
  %v2085 = vpop.f32.mrf.mxu0
  %v2086 = vadd.f32 %v1855, %v2085
  %v2087 = vpop.f32.mrf.mxu0
  %v2088 = vadd.f32 %v1859, %v2087
  %2089 = vmatprep.mubr.bf16.mxu0 0
  %2090 = vmatmul.mubr.bf16.gmra.mxu0 %v135
  %v2091 = vpop.f32.mrf.mxu0
  %v2092 = vadd.f32 %v1855, %v2091
  %v2093 = vpop.f32.mrf.mxu0
  %v2094 = vadd.f32 %v1859, %v2093
  %v2095 = vpop.f32.mrf.mxu0
  %v2096 = vadd.f32 %v1855, %v2095
  %v2097 = vpop.f32.mrf.mxu0
  %v2098 = vadd.f32 %v1859, %v2097
  %2099 = vmatprep.mubr.bf16.mxu0 0
  %2100 = vmatmul.mubr.bf16.gmra.mxu0 %v138
  %v2101 = vpop.f32.mrf.mxu0
  %v2102 = vadd.f32 %v1855, %v2101
  %v2103 = vpop.f32.mrf.mxu0
  %v2104 = vadd.f32 %v1859, %v2103
  %v2105 = vpop.f32.mrf.mxu0
  %v2106 = vadd.f32 %v1855, %v2105
  %v2107 = vpop.f32.mrf.mxu0
  %v2108 = vadd.f32 %v1859, %v2107
  %2109 = vmatprep.mubr.bf16.mxu0 0
  %2110 = vmatmul.mubr.bf16.gmra.mxu0 %v141
  %v2111 = vpop.f32.mrf.mxu0
  %v2112 = vadd.f32 %v1855, %v2111
  %v2113 = vpop.f32.mrf.mxu0
  %v2114 = vadd.f32 %v1859, %v2113
  %v2115 = vpop.f32.mrf.mxu0
  %v2116 = vadd.f32 %v1855, %v2115
  %v2117 = vpop.f32.mrf.mxu0
  %v2118 = vadd.f32 %v1859, %v2117
  %2119 = vmatprep.mubr.bf16.mxu0 0
  %2120 = vmatmul.mubr.bf16.gmra.mxu0 %v144
  %v2121 = vpop.f32.mrf.mxu0
  %v2122 = vadd.f32 %v1855, %v2121
  %v2123 = vpop.f32.mrf.mxu0
  %v2124 = vadd.f32 %v1859, %v2123
  %v2125 = vpop.f32.mrf.mxu0
  %v2126 = vadd.f32 %v1855, %v2125
  %v2127 = vpop.f32.mrf.mxu0
  %v2128 = vadd.f32 %v1859, %v2127
  %2129 = vdwg.mxu0
  %v2130 = vmax.f32 %v1939, 0.0
  %v2131 = vmax.f32 %v1941, 0.0
  %v2132 = vmax.f32 %v2052, 0.0
  %v2133 = vmax.f32 %v2054, 0.0
  %v2134 = vmax.f32 %v1943, 0.0
  %v2135 = vmax.f32 %v1945, 0.0
  %v2136 = vmax.f32 %v2056, 0.0
  %v2137 = vmax.f32 %v2058, 0.0
  %v2138 = vmax.f32 %v1949, 0.0
  %v2139 = vmax.f32 %v1951, 0.0
  %v2140 = vmax.f32 %v2062, 0.0
  %v2141 = vmax.f32 %v2064, 0.0
  %v2142 = vmax.f32 %v1953, 0.0
  %v2143 = vmax.f32 %v1955, 0.0
  %v2144 = vmax.f32 %v2066, 0.0
  %v2145 = vmax.f32 %v2068, 0.0
  %v2146 = vmax.f32 %v1959, 0.0
  %v2147 = vmax.f32 %v1961, 0.0
  %v2148 = vmax.f32 %v2072, 0.0
  %v2149 = vmax.f32 %v2074, 0.0
  %v2150 = vmax.f32 %v1963, 0.0
  %v2151 = vmax.f32 %v1965, 0.0
  %v2152 = vmax.f32 %v2076, 0.0
  %v2153 = vmax.f32 %v2078, 0.0
  %v2154 = vmax.f32 %v1969, 0.0
  %v2155 = vmax.f32 %v1971, 0.0
  %v2156 = vmax.f32 %v2082, 0.0
  %v2157 = vmax.f32 %v2084, 0.0
  %v2158 = vmax.f32 %v1973, 0.0
  %v2159 = vmax.f32 %v1975, 0.0
  %v2160 = vmax.f32 %v2086, 0.0
  %v2161 = vmax.f32 %v2088, 0.0
  %v2162 = vmax.f32 %v1979, 0.0
  %v2163 = vmax.f32 %v1981, 0.0
  %v2164 = vmax.f32 %v2092, 0.0
  %v2165 = vmax.f32 %v2094, 0.0
  %v2166 = vmax.f32 %v1983, 0.0
  %v2167 = vmax.f32 %v1985, 0.0
  %v2168 = vmax.f32 %v2096, 0.0
  %v2169 = vmax.f32 %v2098, 0.0
  %v2170 = vmax.f32 %v1989, 0.0
  %v2171 = vmax.f32 %v1991, 0.0
  %v2172 = vmax.f32 %v2102, 0.0
  %v2173 = vmax.f32 %v2104, 0.0
  %v2174 = vmax.f32 %v1993, 0.0
  %v2175 = vmax.f32 %v1995, 0.0
  %v2176 = vmax.f32 %v2106, 0.0
  %v2177 = vmax.f32 %v2108, 0.0
  %v2178 = vmax.f32 %v1999, 0.0
  %v2179 = vmax.f32 %v2001, 0.0
  %v2180 = vmax.f32 %v2112, 0.0
  %v2181 = vmax.f32 %v2114, 0.0
  %v2182 = vmax.f32 %v2003, 0.0
  %v2183 = vmax.f32 %v2005, 0.0
  %v2184 = vmax.f32 %v2116, 0.0
  %v2185 = vmax.f32 %v2118, 0.0
  %v2186 = vmax.f32 %v2009, 0.0
  %v2187 = vmax.f32 %v2011, 0.0
  %v2188 = vmax.f32 %v2122, 0.0
  %v2189 = vmax.f32 %v2124, 0.0
  %v2190 = vmax.f32 %v2013, 0.0
  %v2191 = vmax.f32 %v2015, 0.0
  %v2192 = vmax.f32 %v2126, 0.0
  %v2193 = vmax.f32 %v2128, 0.0
  %v2194 = vpack.c.bf16 %v2134, %v2130
  %v2195 = vpack.c.bf16 %v2135, %v2131
  %v2196 = vpack.c.bf16 %v2136, %v2132
  %v2197 = vpack.c.bf16 %v2137, %v2133
  %v2198 = vpack.c.bf16 %v2142, %v2138
  %v2199 = vpack.c.bf16 %v2143, %v2139
  %v2200 = vpack.c.bf16 %v2144, %v2140
  %v2201 = vpack.c.bf16 %v2145, %v2141
  %v2202 = vpack.c.bf16 %v2150, %v2146
  %v2203 = vpack.c.bf16 %v2151, %v2147
  %v2204 = vpack.c.bf16 %v2152, %v2148
  %v2205 = vpack.c.bf16 %v2153, %v2149
  %v2206 = vpack.c.bf16 %v2158, %v2154
  %v2207 = vpack.c.bf16 %v2159, %v2155
  %v2208 = vpack.c.bf16 %v2160, %v2156
  %v2209 = vpack.c.bf16 %v2161, %v2157
  %v2210 = vpack.c.bf16 %v2166, %v2162
  %v2211 = vpack.c.bf16 %v2167, %v2163
  %v2212 = vpack.c.bf16 %v2168, %v2164
  %v2213 = vpack.c.bf16 %v2169, %v2165
  %v2214 = vpack.c.bf16 %v2174, %v2170
  %v2215 = vpack.c.bf16 %v2175, %v2171
  %v2216 = vpack.c.bf16 %v2176, %v2172
  %v2217 = vpack.c.bf16 %v2177, %v2173
  %v2218 = vpack.c.bf16 %v2182, %v2178
  %v2219 = vpack.c.bf16 %v2183, %v2179
  %v2220 = vpack.c.bf16 %v2184, %v2180
  %v2221 = vpack.c.bf16 %v2185, %v2181
  %v2222 = vpack.c.bf16 %v2190, %v2186
  %v2223 = vpack.c.bf16 %v2191, %v2187
  %v2224 = vpack.c.bf16 %v2192, %v2188
  %v2225 = vpack.c.bf16 %v2193, %v2189
  %v2258 = vunpack.c.l.b16 %v2194
  %v2259 = vunpack.c.l.b16 %v2195
  %v2260 = vunpack.c.l.b16 %v2196
  %v2261 = vunpack.c.l.b16 %v2197
  %v2262 = vunpack.c.h.b16 %v2194
  %v2263 = vunpack.c.h.b16 %v2195
  %v2264 = vunpack.c.h.b16 %v2196
  %v2265 = vunpack.c.h.b16 %v2197
  %v2266 = vunpack.c.l.b16 %v2198
  %v2267 = vunpack.c.l.b16 %v2199
  %v2268 = vunpack.c.l.b16 %v2200
  %v2269 = vunpack.c.l.b16 %v2201
  %v2270 = vunpack.c.h.b16 %v2198
  %v2271 = vunpack.c.h.b16 %v2199
  %v2272 = vunpack.c.h.b16 %v2200
  %v2273 = vunpack.c.h.b16 %v2201
  %v2274 = vunpack.c.l.b16 %v2202
  %v2275 = vunpack.c.l.b16 %v2203
  %v2276 = vunpack.c.l.b16 %v2204
  %v2277 = vunpack.c.l.b16 %v2205
  %v2278 = vunpack.c.h.b16 %v2202
  %v2279 = vunpack.c.h.b16 %v2203
  %v2280 = vunpack.c.h.b16 %v2204
  %v2281 = vunpack.c.h.b16 %v2205
  %v2282 = vunpack.c.l.b16 %v2206
  %v2283 = vunpack.c.l.b16 %v2207
  %v2284 = vunpack.c.l.b16 %v2208
  %v2285 = vunpack.c.l.b16 %v2209
  %v2286 = vunpack.c.h.b16 %v2206
  %v2287 = vunpack.c.h.b16 %v2207
  %v2288 = vunpack.c.h.b16 %v2208
  %v2289 = vunpack.c.h.b16 %v2209
  %v2290 = vunpack.c.l.b16 %v2210
  %v2291 = vunpack.c.l.b16 %v2211
  %v2292 = vunpack.c.l.b16 %v2212
  %v2293 = vunpack.c.l.b16 %v2213
  %v2294 = vunpack.c.h.b16 %v2210
  %v2295 = vunpack.c.h.b16 %v2211
  %v2296 = vunpack.c.h.b16 %v2212
  %v2297 = vunpack.c.h.b16 %v2213
  %v2298 = vunpack.c.l.b16 %v2214
  %v2299 = vunpack.c.l.b16 %v2215
  %v2300 = vunpack.c.l.b16 %v2216
  %v2301 = vunpack.c.l.b16 %v2217
  %v2302 = vunpack.c.h.b16 %v2214
  %v2303 = vunpack.c.h.b16 %v2215
  %v2304 = vunpack.c.h.b16 %v2216
  %v2305 = vunpack.c.h.b16 %v2217
  %v2306 = vunpack.c.l.b16 %v2218
  %v2307 = vunpack.c.l.b16 %v2219
  %v2308 = vunpack.c.l.b16 %v2220
  %v2309 = vunpack.c.l.b16 %v2221
  %v2310 = vunpack.c.h.b16 %v2218
  %v2311 = vunpack.c.h.b16 %v2219
  %v2312 = vunpack.c.h.b16 %v2220
  %v2313 = vunpack.c.h.b16 %v2221
  %v2314 = vunpack.c.l.b16 %v2222
  %v2315 = vunpack.c.l.b16 %v2223
  %v2316 = vunpack.c.l.b16 %v2224
  %v2317 = vunpack.c.l.b16 %v2225
  %v2318 = vunpack.c.h.b16 %v2222
  %v2319 = vunpack.c.h.b16 %v2223
  %v2320 = vunpack.c.h.b16 %v2224
  %v2321 = vunpack.c.h.b16 %v2225
  %v2322 = vpack.c.b16 %v2259, %v2258
  %v2323 = vpack.c.b16 %v2261, %v2260
  %v2324 = vpack.c.b16 %v2263, %v2262
  %v2325 = vpack.c.b16 %v2265, %v2264
  %v2326 = vpack.c.b16 %v2267, %v2266
  %v2327 = vpack.c.b16 %v2269, %v2268
  %v2328 = vpack.c.b16 %v2271, %v2270
  %v2329 = vpack.c.b16 %v2273, %v2272
  %v2330 = vpack.c.b16 %v2275, %v2274
  %v2331 = vpack.c.b16 %v2277, %v2276
  %v2332 = vpack.c.b16 %v2279, %v2278
  %v2333 = vpack.c.b16 %v2281, %v2280
  %v2334 = vpack.c.b16 %v2283, %v2282
  %v2335 = vpack.c.b16 %v2285, %v2284
  %v2336 = vpack.c.b16 %v2287, %v2286
  %v2337 = vpack.c.b16 %v2289, %v2288
  %v2338 = vpack.c.b16 %v2291, %v2290
  %v2339 = vpack.c.b16 %v2293, %v2292
  %v2340 = vpack.c.b16 %v2295, %v2294
  %v2341 = vpack.c.b16 %v2297, %v2296
  %v2342 = vpack.c.b16 %v2299, %v2298
  %v2343 = vpack.c.b16 %v2301, %v2300
  %v2344 = vpack.c.b16 %v2303, %v2302
  %v2345 = vpack.c.b16 %v2305, %v2304
  %v2346 = vpack.c.b16 %v2307, %v2306
  %v2347 = vpack.c.b16 %v2309, %v2308
  %v2348 = vpack.c.b16 %v2311, %v2310
  %v2349 = vpack.c.b16 %v2313, %v2312
  %v2350 = vpack.c.b16 %v2315, %v2314
  %v2351 = vpack.c.b16 %v2317, %v2316
  %v2352 = vpack.c.b16 %v2319, %v2318
  %v2353 = vpack.c.b16 %v2321, %v2320
  %2386 = vst [vmem:[#allocation2 + $0x300] sm:$0xff] %v2322
  %2387 = vst [vmem:[#allocation2 + $0x308] sm:$0xff] %v2323
  %2388 = vst [vmem:[#allocation2 + $0x310] sm:$0xff] %v2324
  %2389 = vst [vmem:[#allocation2 + $0x318] sm:$0xff] %v2325
  %2390 = vst [vmem:[#allocation2 + $0x320] sm:$0xff] %v2326
  %2391 = vst [vmem:[#allocation2 + $0x328] sm:$0xff] %v2327
  %2392 = vst [vmem:[#allocation2 + $0x330] sm:$0xff] %v2328
  %2393 = vst [vmem:[#allocation2 + $0x338] sm:$0xff] %v2329
  %2394 = vst [vmem:[#allocation2 + $0x340] sm:$0xff] %v2330
  %2395 = vst [vmem:[#allocation2 + $0x348] sm:$0xff] %v2331
  %2396 = vst [vmem:[#allocation2 + $0x350] sm:$0xff] %v2332
  %2397 = vst [vmem:[#allocation2 + $0x358] sm:$0xff] %v2333
  %2398 = vst [vmem:[#allocation2 + $0x360] sm:$0xff] %v2334
  %2399 = vst [vmem:[#allocation2 + $0x368] sm:$0xff] %v2335
  %2400 = vst [vmem:[#allocation2 + $0x370] sm:$0xff] %v2336
  %2401 = vst [vmem:[#allocation2 + $0x378] sm:$0xff] %v2337
  %2402 = vst [vmem:[#allocation2 + $0x380] sm:$0xff] %v2338
  %2403 = vst [vmem:[#allocation2 + $0x388] sm:$0xff] %v2339
  %2404 = vst [vmem:[#allocation2 + $0x390] sm:$0xff] %v2340
  %2405 = vst [vmem:[#allocation2 + $0x398] sm:$0xff] %v2341
  %2406 = vst [vmem:[#allocation2 + $0x3a0] sm:$0xff] %v2342
  %2407 = vst [vmem:[#allocation2 + $0x3a8] sm:$0xff] %v2343
  %2408 = vst [vmem:[#allocation2 + $0x3b0] sm:$0xff] %v2344
  %2409 = vst [vmem:[#allocation2 + $0x3b8] sm:$0xff] %v2345
  %2410 = vst [vmem:[#allocation2 + $0x3c0] sm:$0xff] %v2346
  %2411 = vst [vmem:[#allocation2 + $0x3c8] sm:$0xff] %v2347
  %2412 = vst [vmem:[#allocation2 + $0x3d0] sm:$0xff] %v2348
  %2413 = vst [vmem:[#allocation2 + $0x3d8] sm:$0xff] %v2349
  %2414 = vst [vmem:[#allocation2 + $0x3e0] sm:$0xff] %v2350
  %2415 = vst [vmem:[#allocation2 + $0x3e8] sm:$0xff] %v2351
  %2416 = vst [vmem:[#allocation2 + $0x3f0] sm:$0xff] %v2352
  %2417 = vst [vmem:[#allocation2 + $0x3f8] sm:$0xff] %v2353
  %s2418 = scalar_lea.vmem %s1, 256
  %v2419 = vld [vmem:[%s2418] sm:$0xff]
  %v2420 = vld [vmem:[%s2418 + $0x8] sm:$0xff]
  %v2421 = vld [vmem:[%s2418 + $0x10] sm:$0xff]
  %v2422 = vld [vmem:[%s2418 + $0x18] sm:$0xff]
  %v2423 = vld [vmem:[%s2418 + $0x20] sm:$0xff]
  %v2424 = vld [vmem:[%s2418 + $0x28] sm:$0xff]
  %v2425 = vld [vmem:[%s2418 + $0x30] sm:$0xff]
  %v2426 = vld [vmem:[%s2418 + $0x38] sm:$0xff]
  %s2427 = scalar_lea.vmem %s2, 16
  %v2428 = vld [vmem:[%s2427] sm:$0xf]
  %v2430 = vlaneseq
  %v2431 = vshrl.u32 %v2430, 7
  %v2432 = vsub.s32 0, %v2431
  %v2433 = vrot.slane %v2428, %v2432
  %v2434 = vlaneseq
  %v2435 = vshrl.u32 %v2434, 7
  %v2436 = vsub.s32 1, %v2435
  %v2437 = vrot.slane %v2428, %v2436
  %v2438 = vlaneseq
  %v2439 = vshrl.u32 %v2438, 7
  %v2440 = vsub.s32 2, %v2439
  %v2441 = vrot.slane %v2428, %v2440
  %v2442 = vlaneseq
  %v2443 = vshrl.u32 %v2442, 7
  %v2444 = vsub.s32 3, %v2443
  %v2445 = vrot.slane %v2428, %v2444
  %v2458 = vunpack.c.l.b16 %v2419
  %v2459 = vunpack.c.h.b16 %v2419
  %v2460 = vunpack.c.l.b16 %v2420
  %v2461 = vunpack.c.h.b16 %v2420
  %v2462 = vunpack.c.l.b16 %v2421
  %v2463 = vunpack.c.h.b16 %v2421
  %v2464 = vunpack.c.l.b16 %v2422
  %v2465 = vunpack.c.h.b16 %v2422
  %v2466 = vunpack.c.l.b16 %v2423
  %v2467 = vunpack.c.h.b16 %v2423
  %v2468 = vunpack.c.l.b16 %v2424
  %v2469 = vunpack.c.h.b16 %v2424
  %v2470 = vunpack.c.l.b16 %v2425
  %v2471 = vunpack.c.h.b16 %v2425
  %v2472 = vunpack.c.l.b16 %v2426
  %v2473 = vunpack.c.h.b16 %v2426
  %v2474 = vpack.c.b16 %v2462, %v2458
  %v2475 = vpack.c.b16 %v2463, %v2459
  %v2476 = vpack.c.b16 %v2464, %v2460
  %v2477 = vpack.c.b16 %v2465, %v2461
  %v2478 = vpack.c.b16 %v2470, %v2466
  %v2479 = vpack.c.b16 %v2471, %v2467
  %v2480 = vpack.c.b16 %v2472, %v2468
  %v2481 = vpack.c.b16 %v2473, %v2469
  %2490 = vmatprep.subr.bf16.mxu0 0
  %2491 = vmatpush1.bf16.msra.mxu0 0
  %2492 = vmatprep.subr.bf16.mxu0 0
  %2493 = vmatpush1.bf16.msra.mxu0 0
  %2494 = vmatprep.subr.bf16.mxu0 0
  %2495 = vmatpush1.bf16.msra.mxu0 0
  %2496 = vmatprep.subr.bf16.mxu0 0
  %2497 = vmatpush1.bf16.msra.mxu0 0
  %2498 = vmatprep.subr.bf16.mxu0 0
  %2499 = vmatpush1.bf16.msra.mxu0 0
  %2500 = vmatprep.subr.bf16.mxu0 0
  %2501 = vmatpush1.bf16.msra.mxu0 0
  %2502 = vmatprep.subr.bf16.mxu0 %v2479
  %2503 = vmatpush1.bf16.msra.mxu0 %v2478
  %2504 = vmatprep.subr.bf16.mxu0 %v2475
  %2505 = vmatpush1.bf16.msra.mxu0 %v2474
  %2506 = vmatprep.subr.bf16.mxu0 0
  %2507 = vmatpush2.bf16.msra.mxu0 0
  %2508 = vmatprep.subr.bf16.mxu0 0
  %2509 = vmatpush2.bf16.msra.mxu0 0
  %2510 = vmatprep.subr.bf16.mxu0 0
  %2511 = vmatpush2.bf16.msra.mxu0 0
  %2512 = vmatprep.subr.bf16.mxu0 0
  %2513 = vmatpush2.bf16.msra.mxu0 0
  %2514 = vmatprep.subr.bf16.mxu0 0
  %2515 = vmatpush2.bf16.msra.mxu0 0
  %2516 = vmatprep.subr.bf16.mxu0 0
  %2517 = vmatpush2.bf16.msra.mxu0 0
  %2518 = vmatprep.subr.bf16.mxu0 0
  %2519 = vmatpush2.bf16.msra.mxu0 0
  %2520 = vmatprep.subr.bf16.mxu0 0
  %2521 = vmatpush2.bf16.msra.mxu0 0
  %2522 = vmatprep.mubr.bf16.mxu0 0
  %2523 = vmatmul.mubr.bf16.gmra.mxu0 %v123
  %v2524 = vpop.f32.mrf.mxu0
  %v2525 = vadd.f32 %v2433, %v2524
  %v2526 = vpop.f32.mrf.mxu0
  %v2527 = vadd.f32 %v2437, %v2526
  %v2528 = vpop.f32.mrf.mxu0
  %v2529 = vadd.f32 %v2433, %v2528
  %v2530 = vpop.f32.mrf.mxu0
  %v2531 = vadd.f32 %v2437, %v2530
  %2532 = vmatprep.mubr.bf16.mxu0 0
  %2533 = vmatmul.mubr.bf16.gmra.mxu0 %v126
  %v2534 = vpop.f32.mrf.mxu0
  %v2535 = vadd.f32 %v2433, %v2534
  %v2536 = vpop.f32.mrf.mxu0
  %v2537 = vadd.f32 %v2437, %v2536
  %v2538 = vpop.f32.mrf.mxu0
  %v2539 = vadd.f32 %v2433, %v2538
  %v2540 = vpop.f32.mrf.mxu0
  %v2541 = vadd.f32 %v2437, %v2540
  %2542 = vmatprep.mubr.bf16.mxu0 0
  %2543 = vmatmul.mubr.bf16.gmra.mxu0 %v129
  %v2544 = vpop.f32.mrf.mxu0
  %v2545 = vadd.f32 %v2433, %v2544
  %v2546 = vpop.f32.mrf.mxu0
  %v2547 = vadd.f32 %v2437, %v2546
  %v2548 = vpop.f32.mrf.mxu0
  %v2549 = vadd.f32 %v2433, %v2548
  %v2550 = vpop.f32.mrf.mxu0
  %v2551 = vadd.f32 %v2437, %v2550
  %2552 = vmatprep.mubr.bf16.mxu0 0
  %2553 = vmatmul.mubr.bf16.gmra.mxu0 %v132
  %v2554 = vpop.f32.mrf.mxu0
  %v2555 = vadd.f32 %v2433, %v2554
  %v2556 = vpop.f32.mrf.mxu0
  %v2557 = vadd.f32 %v2437, %v2556
  %v2558 = vpop.f32.mrf.mxu0
  %v2559 = vadd.f32 %v2433, %v2558
  %v2560 = vpop.f32.mrf.mxu0
  %v2561 = vadd.f32 %v2437, %v2560
  %2562 = vmatprep.mubr.bf16.mxu0 0
  %2563 = vmatmul.mubr.bf16.gmra.mxu0 %v135
  %v2564 = vpop.f32.mrf.mxu0
  %v2565 = vadd.f32 %v2433, %v2564
  %v2566 = vpop.f32.mrf.mxu0
  %v2567 = vadd.f32 %v2437, %v2566
  %v2568 = vpop.f32.mrf.mxu0
  %v2569 = vadd.f32 %v2433, %v2568
  %v2570 = vpop.f32.mrf.mxu0
  %v2571 = vadd.f32 %v2437, %v2570
  %2572 = vmatprep.mubr.bf16.mxu0 0
  %2573 = vmatmul.mubr.bf16.gmra.mxu0 %v138
  %v2574 = vpop.f32.mrf.mxu0
  %v2575 = vadd.f32 %v2433, %v2574
  %v2576 = vpop.f32.mrf.mxu0
  %v2577 = vadd.f32 %v2437, %v2576
  %v2578 = vpop.f32.mrf.mxu0
  %v2579 = vadd.f32 %v2433, %v2578
  %v2580 = vpop.f32.mrf.mxu0
  %v2581 = vadd.f32 %v2437, %v2580
  %2582 = vmatprep.mubr.bf16.mxu0 0
  %2583 = vmatmul.mubr.bf16.gmra.mxu0 %v141
  %v2584 = vpop.f32.mrf.mxu0
  %v2585 = vadd.f32 %v2433, %v2584
  %v2586 = vpop.f32.mrf.mxu0
  %v2587 = vadd.f32 %v2437, %v2586
  %v2588 = vpop.f32.mrf.mxu0
  %v2589 = vadd.f32 %v2433, %v2588
  %v2590 = vpop.f32.mrf.mxu0
  %v2591 = vadd.f32 %v2437, %v2590
  %2592 = vmatprep.mubr.bf16.mxu0 0
  %2593 = vmatmul.mubr.bf16.gmra.mxu0 %v144
  %v2594 = vpop.f32.mrf.mxu0
  %v2595 = vadd.f32 %v2433, %v2594
  %v2596 = vpop.f32.mrf.mxu0
  %v2597 = vadd.f32 %v2437, %v2596
  %v2598 = vpop.f32.mrf.mxu0
  %v2599 = vadd.f32 %v2433, %v2598
  %v2600 = vpop.f32.mrf.mxu0
  %v2601 = vadd.f32 %v2437, %v2600
  %2602 = vdwg.mxu0
  %2603 = vmatprep.subr.bf16.mxu0 0
  %2604 = vmatpush1.bf16.msra.mxu0 0
  %2605 = vmatprep.subr.bf16.mxu0 0
  %2606 = vmatpush1.bf16.msra.mxu0 0
  %2607 = vmatprep.subr.bf16.mxu0 0
  %2608 = vmatpush1.bf16.msra.mxu0 0
  %2609 = vmatprep.subr.bf16.mxu0 0
  %2610 = vmatpush1.bf16.msra.mxu0 0
  %2611 = vmatprep.subr.bf16.mxu0 0
  %2612 = vmatpush1.bf16.msra.mxu0 0
  %2613 = vmatprep.subr.bf16.mxu0 0
  %2614 = vmatpush1.bf16.msra.mxu0 0
  %2615 = vmatprep.subr.bf16.mxu0 %v2481
  %2616 = vmatpush1.bf16.msra.mxu0 %v2480
  %2617 = vmatprep.subr.bf16.mxu0 %v2477
  %2618 = vmatpush1.bf16.msra.mxu0 %v2476
  %2619 = vmatprep.subr.bf16.mxu0 0
  %2620 = vmatpush2.bf16.msra.mxu0 0
  %2621 = vmatprep.subr.bf16.mxu0 0
  %2622 = vmatpush2.bf16.msra.mxu0 0
  %2623 = vmatprep.subr.bf16.mxu0 0
  %2624 = vmatpush2.bf16.msra.mxu0 0
  %2625 = vmatprep.subr.bf16.mxu0 0
  %2626 = vmatpush2.bf16.msra.mxu0 0
  %2627 = vmatprep.subr.bf16.mxu0 0
  %2628 = vmatpush2.bf16.msra.mxu0 0
  %2629 = vmatprep.subr.bf16.mxu0 0
  %2630 = vmatpush2.bf16.msra.mxu0 0
  %2631 = vmatprep.subr.bf16.mxu0 0
  %2632 = vmatpush2.bf16.msra.mxu0 0
  %2633 = vmatprep.subr.bf16.mxu0 0
  %2634 = vmatpush2.bf16.msra.mxu0 0
  %2635 = vmatprep.mubr.bf16.mxu0 0
  %2636 = vmatmul.mubr.bf16.gmra.mxu0 %v123
  %v2637 = vpop.f32.mrf.mxu0
  %v2638 = vadd.f32 %v2441, %v2637
  %v2639 = vpop.f32.mrf.mxu0
  %v2640 = vadd.f32 %v2445, %v2639
  %v2641 = vpop.f32.mrf.mxu0
  %v2642 = vadd.f32 %v2441, %v2641
  %v2643 = vpop.f32.mrf.mxu0
  %v2644 = vadd.f32 %v2445, %v2643
  %2645 = vmatprep.mubr.bf16.mxu0 0
  %2646 = vmatmul.mubr.bf16.gmra.mxu0 %v126
  %v2647 = vpop.f32.mrf.mxu0
  %v2648 = vadd.f32 %v2441, %v2647
  %v2649 = vpop.f32.mrf.mxu0
  %v2650 = vadd.f32 %v2445, %v2649
  %v2651 = vpop.f32.mrf.mxu0
  %v2652 = vadd.f32 %v2441, %v2651
  %v2653 = vpop.f32.mrf.mxu0
  %v2654 = vadd.f32 %v2445, %v2653
  %2655 = vmatprep.mubr.bf16.mxu0 0
  %2656 = vmatmul.mubr.bf16.gmra.mxu0 %v129
  %v2657 = vpop.f32.mrf.mxu0
  %v2658 = vadd.f32 %v2441, %v2657
  %v2659 = vpop.f32.mrf.mxu0
  %v2660 = vadd.f32 %v2445, %v2659
  %v2661 = vpop.f32.mrf.mxu0
  %v2662 = vadd.f32 %v2441, %v2661
  %v2663 = vpop.f32.mrf.mxu0
  %v2664 = vadd.f32 %v2445, %v2663
  %2665 = vmatprep.mubr.bf16.mxu0 0
  %2666 = vmatmul.mubr.bf16.gmra.mxu0 %v132
  %v2667 = vpop.f32.mrf.mxu0
  %v2668 = vadd.f32 %v2441, %v2667
  %v2669 = vpop.f32.mrf.mxu0
  %v2670 = vadd.f32 %v2445, %v2669
  %v2671 = vpop.f32.mrf.mxu0
  %v2672 = vadd.f32 %v2441, %v2671
  %v2673 = vpop.f32.mrf.mxu0
  %v2674 = vadd.f32 %v2445, %v2673
  %2675 = vmatprep.mubr.bf16.mxu0 0
  %2676 = vmatmul.mubr.bf16.gmra.mxu0 %v135
  %v2677 = vpop.f32.mrf.mxu0
  %v2678 = vadd.f32 %v2441, %v2677
  %v2679 = vpop.f32.mrf.mxu0
  %v2680 = vadd.f32 %v2445, %v2679
  %v2681 = vpop.f32.mrf.mxu0
  %v2682 = vadd.f32 %v2441, %v2681
  %v2683 = vpop.f32.mrf.mxu0
  %v2684 = vadd.f32 %v2445, %v2683
  %2685 = vmatprep.mubr.bf16.mxu0 0
  %2686 = vmatmul.mubr.bf16.gmra.mxu0 %v138
  %v2687 = vpop.f32.mrf.mxu0
  %v2688 = vadd.f32 %v2441, %v2687
  %v2689 = vpop.f32.mrf.mxu0
  %v2690 = vadd.f32 %v2445, %v2689
  %v2691 = vpop.f32.mrf.mxu0
  %v2692 = vadd.f32 %v2441, %v2691
  %v2693 = vpop.f32.mrf.mxu0
  %v2694 = vadd.f32 %v2445, %v2693
  %2695 = vmatprep.mubr.bf16.mxu0 0
  %2696 = vmatmul.mubr.bf16.gmra.mxu0 %v141
  %v2697 = vpop.f32.mrf.mxu0
  %v2698 = vadd.f32 %v2441, %v2697
  %v2699 = vpop.f32.mrf.mxu0
  %v2700 = vadd.f32 %v2445, %v2699
  %v2701 = vpop.f32.mrf.mxu0
  %v2702 = vadd.f32 %v2441, %v2701
  %v2703 = vpop.f32.mrf.mxu0
  %v2704 = vadd.f32 %v2445, %v2703
  %2705 = vmatprep.mubr.bf16.mxu0 0
  %2706 = vmatmul.mubr.bf16.gmra.mxu0 %v144
  %v2707 = vpop.f32.mrf.mxu0
  %v2708 = vadd.f32 %v2441, %v2707
  %v2709 = vpop.f32.mrf.mxu0
  %v2710 = vadd.f32 %v2445, %v2709
  %v2711 = vpop.f32.mrf.mxu0
  %v2712 = vadd.f32 %v2441, %v2711
  %v2713 = vpop.f32.mrf.mxu0
  %v2714 = vadd.f32 %v2445, %v2713
  %2715 = vdwg.mxu0
  %v2716 = vmax.f32 %v2525, 0.0
  %v2717 = vmax.f32 %v2527, 0.0
  %v2718 = vmax.f32 %v2638, 0.0
  %v2719 = vmax.f32 %v2640, 0.0
  %v2720 = vmax.f32 %v2529, 0.0
  %v2721 = vmax.f32 %v2531, 0.0
  %v2722 = vmax.f32 %v2642, 0.0
  %v2723 = vmax.f32 %v2644, 0.0
  %v2724 = vmax.f32 %v2535, 0.0
  %v2725 = vmax.f32 %v2537, 0.0
  %v2726 = vmax.f32 %v2648, 0.0
  %v2727 = vmax.f32 %v2650, 0.0
  %v2728 = vmax.f32 %v2539, 0.0
  %v2729 = vmax.f32 %v2541, 0.0
  %v2730 = vmax.f32 %v2652, 0.0
  %v2731 = vmax.f32 %v2654, 0.0
  %v2732 = vmax.f32 %v2545, 0.0
  %v2733 = vmax.f32 %v2547, 0.0
  %v2734 = vmax.f32 %v2658, 0.0
  %v2735 = vmax.f32 %v2660, 0.0
  %v2736 = vmax.f32 %v2549, 0.0
  %v2737 = vmax.f32 %v2551, 0.0
  %v2738 = vmax.f32 %v2662, 0.0
  %v2739 = vmax.f32 %v2664, 0.0
  %v2740 = vmax.f32 %v2555, 0.0
  %v2741 = vmax.f32 %v2557, 0.0
  %v2742 = vmax.f32 %v2668, 0.0
  %v2743 = vmax.f32 %v2670, 0.0
  %v2744 = vmax.f32 %v2559, 0.0
  %v2745 = vmax.f32 %v2561, 0.0
  %v2746 = vmax.f32 %v2672, 0.0
  %v2747 = vmax.f32 %v2674, 0.0
  %v2748 = vmax.f32 %v2565, 0.0
  %v2749 = vmax.f32 %v2567, 0.0
  %v2750 = vmax.f32 %v2678, 0.0
  %v2751 = vmax.f32 %v2680, 0.0
  %v2752 = vmax.f32 %v2569, 0.0
  %v2753 = vmax.f32 %v2571, 0.0
  %v2754 = vmax.f32 %v2682, 0.0
  %v2755 = vmax.f32 %v2684, 0.0
  %v2756 = vmax.f32 %v2575, 0.0
  %v2757 = vmax.f32 %v2577, 0.0
  %v2758 = vmax.f32 %v2688, 0.0
  %v2759 = vmax.f32 %v2690, 0.0
  %v2760 = vmax.f32 %v2579, 0.0
  %v2761 = vmax.f32 %v2581, 0.0
  %v2762 = vmax.f32 %v2692, 0.0
  %v2763 = vmax.f32 %v2694, 0.0
  %v2764 = vmax.f32 %v2585, 0.0
  %v2765 = vmax.f32 %v2587, 0.0
  %v2766 = vmax.f32 %v2698, 0.0
  %v2767 = vmax.f32 %v2700, 0.0
  %v2768 = vmax.f32 %v2589, 0.0
  %v2769 = vmax.f32 %v2591, 0.0
  %v2770 = vmax.f32 %v2702, 0.0
  %v2771 = vmax.f32 %v2704, 0.0
  %v2772 = vmax.f32 %v2595, 0.0
  %v2773 = vmax.f32 %v2597, 0.0
  %v2774 = vmax.f32 %v2708, 0.0
  %v2775 = vmax.f32 %v2710, 0.0
  %v2776 = vmax.f32 %v2599, 0.0
  %v2777 = vmax.f32 %v2601, 0.0
  %v2778 = vmax.f32 %v2712, 0.0
  %v2779 = vmax.f32 %v2714, 0.0
  %v2780 = vpack.c.bf16 %v2720, %v2716
  %v2781 = vpack.c.bf16 %v2721, %v2717
  %v2782 = vpack.c.bf16 %v2722, %v2718
  %v2783 = vpack.c.bf16 %v2723, %v2719
  %v2784 = vpack.c.bf16 %v2728, %v2724
  %v2785 = vpack.c.bf16 %v2729, %v2725
  %v2786 = vpack.c.bf16 %v2730, %v2726
  %v2787 = vpack.c.bf16 %v2731, %v2727
  %v2788 = vpack.c.bf16 %v2736, %v2732
  %v2789 = vpack.c.bf16 %v2737, %v2733
  %v2790 = vpack.c.bf16 %v2738, %v2734
  %v2791 = vpack.c.bf16 %v2739, %v2735
  %v2792 = vpack.c.bf16 %v2744, %v2740
  %v2793 = vpack.c.bf16 %v2745, %v2741
  %v2794 = vpack.c.bf16 %v2746, %v2742
  %v2795 = vpack.c.bf16 %v2747, %v2743
  %v2796 = vpack.c.bf16 %v2752, %v2748
  %v2797 = vpack.c.bf16 %v2753, %v2749
  %v2798 = vpack.c.bf16 %v2754, %v2750
  %v2799 = vpack.c.bf16 %v2755, %v2751
  %v2800 = vpack.c.bf16 %v2760, %v2756
  %v2801 = vpack.c.bf16 %v2761, %v2757
  %v2802 = vpack.c.bf16 %v2762, %v2758
  %v2803 = vpack.c.bf16 %v2763, %v2759
  %v2804 = vpack.c.bf16 %v2768, %v2764
  %v2805 = vpack.c.bf16 %v2769, %v2765
  %v2806 = vpack.c.bf16 %v2770, %v2766
  %v2807 = vpack.c.bf16 %v2771, %v2767
  %v2808 = vpack.c.bf16 %v2776, %v2772
  %v2809 = vpack.c.bf16 %v2777, %v2773
  %v2810 = vpack.c.bf16 %v2778, %v2774
  %v2811 = vpack.c.bf16 %v2779, %v2775
  %v2844 = vunpack.c.l.b16 %v2780
  %v2845 = vunpack.c.l.b16 %v2781
  %v2846 = vunpack.c.l.b16 %v2782
  %v2847 = vunpack.c.l.b16 %v2783
  %v2848 = vunpack.c.h.b16 %v2780
  %v2849 = vunpack.c.h.b16 %v2781
  %v2850 = vunpack.c.h.b16 %v2782
  %v2851 = vunpack.c.h.b16 %v2783
  %v2852 = vunpack.c.l.b16 %v2784
  %v2853 = vunpack.c.l.b16 %v2785
  %v2854 = vunpack.c.l.b16 %v2786
  %v2855 = vunpack.c.l.b16 %v2787
  %v2856 = vunpack.c.h.b16 %v2784
  %v2857 = vunpack.c.h.b16 %v2785
  %v2858 = vunpack.c.h.b16 %v2786
  %v2859 = vunpack.c.h.b16 %v2787
  %v2860 = vunpack.c.l.b16 %v2788
  %v2861 = vunpack.c.l.b16 %v2789
  %v2862 = vunpack.c.l.b16 %v2790
  %v2863 = vunpack.c.l.b16 %v2791
  %v2864 = vunpack.c.h.b16 %v2788
  %v2865 = vunpack.c.h.b16 %v2789
  %v2866 = vunpack.c.h.b16 %v2790
  %v2867 = vunpack.c.h.b16 %v2791
  %v2868 = vunpack.c.l.b16 %v2792
  %v2869 = vunpack.c.l.b16 %v2793
  %v2870 = vunpack.c.l.b16 %v2794
  %v2871 = vunpack.c.l.b16 %v2795
  %v2872 = vunpack.c.h.b16 %v2792
  %v2873 = vunpack.c.h.b16 %v2793
  %v2874 = vunpack.c.h.b16 %v2794
  %v2875 = vunpack.c.h.b16 %v2795
  %v2876 = vunpack.c.l.b16 %v2796
  %v2877 = vunpack.c.l.b16 %v2797
  %v2878 = vunpack.c.l.b16 %v2798
  %v2879 = vunpack.c.l.b16 %v2799
  %v2880 = vunpack.c.h.b16 %v2796
  %v2881 = vunpack.c.h.b16 %v2797
  %v2882 = vunpack.c.h.b16 %v2798
  %v2883 = vunpack.c.h.b16 %v2799
  %v2884 = vunpack.c.l.b16 %v2800
  %v2885 = vunpack.c.l.b16 %v2801
  %v2886 = vunpack.c.l.b16 %v2802
  %v2887 = vunpack.c.l.b16 %v2803
  %v2888 = vunpack.c.h.b16 %v2800
  %v2889 = vunpack.c.h.b16 %v2801
  %v2890 = vunpack.c.h.b16 %v2802
  %v2891 = vunpack.c.h.b16 %v2803
  %v2892 = vunpack.c.l.b16 %v2804
  %v2893 = vunpack.c.l.b16 %v2805
  %v2894 = vunpack.c.l.b16 %v2806
  %v2895 = vunpack.c.l.b16 %v2807
  %v2896 = vunpack.c.h.b16 %v2804
  %v2897 = vunpack.c.h.b16 %v2805
  %v2898 = vunpack.c.h.b16 %v2806
  %v2899 = vunpack.c.h.b16 %v2807
  %v2900 = vunpack.c.l.b16 %v2808
  %v2901 = vunpack.c.l.b16 %v2809
  %v2902 = vunpack.c.l.b16 %v2810
  %v2903 = vunpack.c.l.b16 %v2811
  %v2904 = vunpack.c.h.b16 %v2808
  %v2905 = vunpack.c.h.b16 %v2809
  %v2906 = vunpack.c.h.b16 %v2810
  %v2907 = vunpack.c.h.b16 %v2811
  %v2908 = vpack.c.b16 %v2845, %v2844
  %v2909 = vpack.c.b16 %v2847, %v2846
  %v2910 = vpack.c.b16 %v2849, %v2848
  %v2911 = vpack.c.b16 %v2851, %v2850
  %v2912 = vpack.c.b16 %v2853, %v2852
  %v2913 = vpack.c.b16 %v2855, %v2854
  %v2914 = vpack.c.b16 %v2857, %v2856
  %v2915 = vpack.c.b16 %v2859, %v2858
  %v2916 = vpack.c.b16 %v2861, %v2860
  %v2917 = vpack.c.b16 %v2863, %v2862
  %v2918 = vpack.c.b16 %v2865, %v2864
  %v2919 = vpack.c.b16 %v2867, %v2866
  %v2920 = vpack.c.b16 %v2869, %v2868
  %v2921 = vpack.c.b16 %v2871, %v2870
  %v2922 = vpack.c.b16 %v2873, %v2872
  %v2923 = vpack.c.b16 %v2875, %v2874
  %v2924 = vpack.c.b16 %v2877, %v2876
  %v2925 = vpack.c.b16 %v2879, %v2878
  %v2926 = vpack.c.b16 %v2881, %v2880
  %v2927 = vpack.c.b16 %v2883, %v2882
  %v2928 = vpack.c.b16 %v2885, %v2884
  %v2929 = vpack.c.b16 %v2887, %v2886
  %v2930 = vpack.c.b16 %v2889, %v2888
  %v2931 = vpack.c.b16 %v2891, %v2890
  %v2932 = vpack.c.b16 %v2893, %v2892
  %v2933 = vpack.c.b16 %v2895, %v2894
  %v2934 = vpack.c.b16 %v2897, %v2896
  %v2935 = vpack.c.b16 %v2899, %v2898
  %v2936 = vpack.c.b16 %v2901, %v2900
  %v2937 = vpack.c.b16 %v2903, %v2902
  %v2938 = vpack.c.b16 %v2905, %v2904
  %v2939 = vpack.c.b16 %v2907, %v2906
  %2972 = vst [vmem:[#allocation2 + $0x400] sm:$0xff] %v2908
  %2973 = vst [vmem:[#allocation2 + $0x408] sm:$0xff] %v2909
  %2974 = vst [vmem:[#allocation2 + $0x410] sm:$0xff] %v2910
  %2975 = vst [vmem:[#allocation2 + $0x418] sm:$0xff] %v2911
  %2976 = vst [vmem:[#allocation2 + $0x420] sm:$0xff] %v2912
  %2977 = vst [vmem:[#allocation2 + $0x428] sm:$0xff] %v2913
  %2978 = vst [vmem:[#allocation2 + $0x430] sm:$0xff] %v2914
  %2979 = vst [vmem:[#allocation2 + $0x438] sm:$0xff] %v2915
  %2980 = vst [vmem:[#allocation2 + $0x440] sm:$0xff] %v2916
  %2981 = vst [vmem:[#allocation2 + $0x448] sm:$0xff] %v2917
  %2982 = vst [vmem:[#allocation2 + $0x450] sm:$0xff] %v2918
  %2983 = vst [vmem:[#allocation2 + $0x458] sm:$0xff] %v2919
  %2984 = vst [vmem:[#allocation2 + $0x460] sm:$0xff] %v2920
  %2985 = vst [vmem:[#allocation2 + $0x468] sm:$0xff] %v2921
  %2986 = vst [vmem:[#allocation2 + $0x470] sm:$0xff] %v2922
  %2987 = vst [vmem:[#allocation2 + $0x478] sm:$0xff] %v2923
  %2988 = vst [vmem:[#allocation2 + $0x480] sm:$0xff] %v2924
  %2989 = vst [vmem:[#allocation2 + $0x488] sm:$0xff] %v2925
  %2990 = vst [vmem:[#allocation2 + $0x490] sm:$0xff] %v2926
  %2991 = vst [vmem:[#allocation2 + $0x498] sm:$0xff] %v2927
  %2992 = vst [vmem:[#allocation2 + $0x4a0] sm:$0xff] %v2928
  %2993 = vst [vmem:[#allocation2 + $0x4a8] sm:$0xff] %v2929
  %2994 = vst [vmem:[#allocation2 + $0x4b0] sm:$0xff] %v2930
  %2995 = vst [vmem:[#allocation2 + $0x4b8] sm:$0xff] %v2931
  %2996 = vst [vmem:[#allocation2 + $0x4c0] sm:$0xff] %v2932
  %2997 = vst [vmem:[#allocation2 + $0x4c8] sm:$0xff] %v2933
  %2998 = vst [vmem:[#allocation2 + $0x4d0] sm:$0xff] %v2934
  %2999 = vst [vmem:[#allocation2 + $0x4d8] sm:$0xff] %v2935
  %3000 = vst [vmem:[#allocation2 + $0x4e0] sm:$0xff] %v2936
  %3001 = vst [vmem:[#allocation2 + $0x4e8] sm:$0xff] %v2937
  %3002 = vst [vmem:[#allocation2 + $0x4f0] sm:$0xff] %v2938
  %3003 = vst [vmem:[#allocation2 + $0x4f8] sm:$0xff] %v2939
  %s3004 = scalar_lea.vmem %s1, 320
  %v3005 = vld [vmem:[%s3004] sm:$0xff]
  %v3006 = vld [vmem:[%s3004 + $0x8] sm:$0xff]
  %v3007 = vld [vmem:[%s3004 + $0x10] sm:$0xff]
  %v3008 = vld [vmem:[%s3004 + $0x18] sm:$0xff]
  %v3009 = vld [vmem:[%s3004 + $0x20] sm:$0xff]
  %v3010 = vld [vmem:[%s3004 + $0x28] sm:$0xff]
  %v3011 = vld [vmem:[%s3004 + $0x30] sm:$0xff]
  %v3012 = vld [vmem:[%s3004 + $0x38] sm:$0xff]
  %s3013 = scalar_lea.vmem %s2, 20
  %v3014 = vld [vmem:[%s3013] sm:$0xf]
  %v3016 = vlaneseq
  %v3017 = vshrl.u32 %v3016, 7
  %v3018 = vsub.s32 0, %v3017
  %v3019 = vrot.slane %v3014, %v3018
  %v3020 = vlaneseq
  %v3021 = vshrl.u32 %v3020, 7
  %v3022 = vsub.s32 1, %v3021
  %v3023 = vrot.slane %v3014, %v3022
  %v3024 = vlaneseq
  %v3025 = vshrl.u32 %v3024, 7
  %v3026 = vsub.s32 2, %v3025
  %v3027 = vrot.slane %v3014, %v3026
  %v3028 = vlaneseq
  %v3029 = vshrl.u32 %v3028, 7
  %v3030 = vsub.s32 3, %v3029
  %v3031 = vrot.slane %v3014, %v3030
  %v3044 = vunpack.c.l.b16 %v3005
  %v3045 = vunpack.c.h.b16 %v3005
  %v3046 = vunpack.c.l.b16 %v3006
  %v3047 = vunpack.c.h.b16 %v3006
  %v3048 = vunpack.c.l.b16 %v3007
  %v3049 = vunpack.c.h.b16 %v3007
  %v3050 = vunpack.c.l.b16 %v3008
  %v3051 = vunpack.c.h.b16 %v3008
  %v3052 = vunpack.c.l.b16 %v3009
  %v3053 = vunpack.c.h.b16 %v3009
  %v3054 = vunpack.c.l.b16 %v3010
  %v3055 = vunpack.c.h.b16 %v3010
  %v3056 = vunpack.c.l.b16 %v3011
  %v3057 = vunpack.c.h.b16 %v3011
  %v3058 = vunpack.c.l.b16 %v3012
  %v3059 = vunpack.c.h.b16 %v3012
  %v3060 = vpack.c.b16 %v3048, %v3044
  %v3061 = vpack.c.b16 %v3049, %v3045
  %v3062 = vpack.c.b16 %v3050, %v3046
  %v3063 = vpack.c.b16 %v3051, %v3047
  %v3064 = vpack.c.b16 %v3056, %v3052
  %v3065 = vpack.c.b16 %v3057, %v3053
  %v3066 = vpack.c.b16 %v3058, %v3054
  %v3067 = vpack.c.b16 %v3059, %v3055
  %3076 = vmatprep.subr.bf16.mxu0 0
  %3077 = vmatpush1.bf16.msra.mxu0 0
  %3078 = vmatprep.subr.bf16.mxu0 0
  %3079 = vmatpush1.bf16.msra.mxu0 0
  %3080 = vmatprep.subr.bf16.mxu0 0
  %3081 = vmatpush1.bf16.msra.mxu0 0
  %3082 = vmatprep.subr.bf16.mxu0 0
  %3083 = vmatpush1.bf16.msra.mxu0 0
  %3084 = vmatprep.subr.bf16.mxu0 0
  %3085 = vmatpush1.bf16.msra.mxu0 0
  %3086 = vmatprep.subr.bf16.mxu0 0
  %3087 = vmatpush1.bf16.msra.mxu0 0
  %3088 = vmatprep.subr.bf16.mxu0 %v3065
  %3089 = vmatpush1.bf16.msra.mxu0 %v3064
  %3090 = vmatprep.subr.bf16.mxu0 %v3061
  %3091 = vmatpush1.bf16.msra.mxu0 %v3060
  %3092 = vmatprep.subr.bf16.mxu0 0
  %3093 = vmatpush2.bf16.msra.mxu0 0
  %3094 = vmatprep.subr.bf16.mxu0 0
  %3095 = vmatpush2.bf16.msra.mxu0 0
  %3096 = vmatprep.subr.bf16.mxu0 0
  %3097 = vmatpush2.bf16.msra.mxu0 0
  %3098 = vmatprep.subr.bf16.mxu0 0
  %3099 = vmatpush2.bf16.msra.mxu0 0
  %3100 = vmatprep.subr.bf16.mxu0 0
  %3101 = vmatpush2.bf16.msra.mxu0 0
  %3102 = vmatprep.subr.bf16.mxu0 0
  %3103 = vmatpush2.bf16.msra.mxu0 0
  %3104 = vmatprep.subr.bf16.mxu0 0
  %3105 = vmatpush2.bf16.msra.mxu0 0
  %3106 = vmatprep.subr.bf16.mxu0 0
  %3107 = vmatpush2.bf16.msra.mxu0 0
  %3108 = vmatprep.mubr.bf16.mxu0 0
  %3109 = vmatmul.mubr.bf16.gmra.mxu0 %v123
  %v3110 = vpop.f32.mrf.mxu0
  %v3111 = vadd.f32 %v3019, %v3110
  %v3112 = vpop.f32.mrf.mxu0
  %v3113 = vadd.f32 %v3023, %v3112
  %v3114 = vpop.f32.mrf.mxu0
  %v3115 = vadd.f32 %v3019, %v3114
  %v3116 = vpop.f32.mrf.mxu0
  %v3117 = vadd.f32 %v3023, %v3116
  %3118 = vmatprep.mubr.bf16.mxu0 0
  %3119 = vmatmul.mubr.bf16.gmra.mxu0 %v126
  %v3120 = vpop.f32.mrf.mxu0
  %v3121 = vadd.f32 %v3019, %v3120
  %v3122 = vpop.f32.mrf.mxu0
  %v3123 = vadd.f32 %v3023, %v3122
  %v3124 = vpop.f32.mrf.mxu0
  %v3125 = vadd.f32 %v3019, %v3124
  %v3126 = vpop.f32.mrf.mxu0
  %v3127 = vadd.f32 %v3023, %v3126
  %3128 = vmatprep.mubr.bf16.mxu0 0
  %3129 = vmatmul.mubr.bf16.gmra.mxu0 %v129
  %v3130 = vpop.f32.mrf.mxu0
  %v3131 = vadd.f32 %v3019, %v3130
  %v3132 = vpop.f32.mrf.mxu0
  %v3133 = vadd.f32 %v3023, %v3132
  %v3134 = vpop.f32.mrf.mxu0
  %v3135 = vadd.f32 %v3019, %v3134
  %v3136 = vpop.f32.mrf.mxu0
  %v3137 = vadd.f32 %v3023, %v3136
  %3138 = vmatprep.mubr.bf16.mxu0 0
  %3139 = vmatmul.mubr.bf16.gmra.mxu0 %v132
  %v3140 = vpop.f32.mrf.mxu0
  %v3141 = vadd.f32 %v3019, %v3140
  %v3142 = vpop.f32.mrf.mxu0
  %v3143 = vadd.f32 %v3023, %v3142
  %v3144 = vpop.f32.mrf.mxu0
  %v3145 = vadd.f32 %v3019, %v3144
  %v3146 = vpop.f32.mrf.mxu0
  %v3147 = vadd.f32 %v3023, %v3146
  %3148 = vmatprep.mubr.bf16.mxu0 0
  %3149 = vmatmul.mubr.bf16.gmra.mxu0 %v135
  %v3150 = vpop.f32.mrf.mxu0
  %v3151 = vadd.f32 %v3019, %v3150
  %v3152 = vpop.f32.mrf.mxu0
  %v3153 = vadd.f32 %v3023, %v3152
  %v3154 = vpop.f32.mrf.mxu0
  %v3155 = vadd.f32 %v3019, %v3154
  %v3156 = vpop.f32.mrf.mxu0
  %v3157 = vadd.f32 %v3023, %v3156
  %3158 = vmatprep.mubr.bf16.mxu0 0
  %3159 = vmatmul.mubr.bf16.gmra.mxu0 %v138
  %v3160 = vpop.f32.mrf.mxu0
  %v3161 = vadd.f32 %v3019, %v3160
  %v3162 = vpop.f32.mrf.mxu0
  %v3163 = vadd.f32 %v3023, %v3162
  %v3164 = vpop.f32.mrf.mxu0
  %v3165 = vadd.f32 %v3019, %v3164
  %v3166 = vpop.f32.mrf.mxu0
  %v3167 = vadd.f32 %v3023, %v3166
  %3168 = vmatprep.mubr.bf16.mxu0 0
  %3169 = vmatmul.mubr.bf16.gmra.mxu0 %v141
  %v3170 = vpop.f32.mrf.mxu0
  %v3171 = vadd.f32 %v3019, %v3170
  %v3172 = vpop.f32.mrf.mxu0
  %v3173 = vadd.f32 %v3023, %v3172
  %v3174 = vpop.f32.mrf.mxu0
  %v3175 = vadd.f32 %v3019, %v3174
  %v3176 = vpop.f32.mrf.mxu0
  %v3177 = vadd.f32 %v3023, %v3176
  %3178 = vmatprep.mubr.bf16.mxu0 0
  %3179 = vmatmul.mubr.bf16.gmra.mxu0 %v144
  %v3180 = vpop.f32.mrf.mxu0
  %v3181 = vadd.f32 %v3019, %v3180
  %v3182 = vpop.f32.mrf.mxu0
  %v3183 = vadd.f32 %v3023, %v3182
  %v3184 = vpop.f32.mrf.mxu0
  %v3185 = vadd.f32 %v3019, %v3184
  %v3186 = vpop.f32.mrf.mxu0
  %v3187 = vadd.f32 %v3023, %v3186
  %3188 = vdwg.mxu0
  %3189 = vmatprep.subr.bf16.mxu0 0
  %3190 = vmatpush1.bf16.msra.mxu0 0
  %3191 = vmatprep.subr.bf16.mxu0 0
  %3192 = vmatpush1.bf16.msra.mxu0 0
  %3193 = vmatprep.subr.bf16.mxu0 0
  %3194 = vmatpush1.bf16.msra.mxu0 0
  %3195 = vmatprep.subr.bf16.mxu0 0
  %3196 = vmatpush1.bf16.msra.mxu0 0
  %3197 = vmatprep.subr.bf16.mxu0 0
  %3198 = vmatpush1.bf16.msra.mxu0 0
  %3199 = vmatprep.subr.bf16.mxu0 0
  %3200 = vmatpush1.bf16.msra.mxu0 0
  %3201 = vmatprep.subr.bf16.mxu0 %v3067
  %3202 = vmatpush1.bf16.msra.mxu0 %v3066
  %3203 = vmatprep.subr.bf16.mxu0 %v3063
  %3204 = vmatpush1.bf16.msra.mxu0 %v3062
  %3205 = vmatprep.subr.bf16.mxu0 0
  %3206 = vmatpush2.bf16.msra.mxu0 0
  %3207 = vmatprep.subr.bf16.mxu0 0
  %3208 = vmatpush2.bf16.msra.mxu0 0
  %3209 = vmatprep.subr.bf16.mxu0 0
  %3210 = vmatpush2.bf16.msra.mxu0 0
  %3211 = vmatprep.subr.bf16.mxu0 0
  %3212 = vmatpush2.bf16.msra.mxu0 0
  %3213 = vmatprep.subr.bf16.mxu0 0
  %3214 = vmatpush2.bf16.msra.mxu0 0
  %3215 = vmatprep.subr.bf16.mxu0 0
  %3216 = vmatpush2.bf16.msra.mxu0 0
  %3217 = vmatprep.subr.bf16.mxu0 0
  %3218 = vmatpush2.bf16.msra.mxu0 0
  %3219 = vmatprep.subr.bf16.mxu0 0
  %3220 = vmatpush2.bf16.msra.mxu0 0
  %3221 = vmatprep.mubr.bf16.mxu0 0
  %3222 = vmatmul.mubr.bf16.gmra.mxu0 %v123
  %v3223 = vpop.f32.mrf.mxu0
  %v3224 = vadd.f32 %v3027, %v3223
  %v3225 = vpop.f32.mrf.mxu0
  %v3226 = vadd.f32 %v3031, %v3225
  %v3227 = vpop.f32.mrf.mxu0
  %v3228 = vadd.f32 %v3027, %v3227
  %v3229 = vpop.f32.mrf.mxu0
  %v3230 = vadd.f32 %v3031, %v3229
  %3231 = vmatprep.mubr.bf16.mxu0 0
  %3232 = vmatmul.mubr.bf16.gmra.mxu0 %v126
  %v3233 = vpop.f32.mrf.mxu0
  %v3234 = vadd.f32 %v3027, %v3233
  %v3235 = vpop.f32.mrf.mxu0
  %v3236 = vadd.f32 %v3031, %v3235
  %v3237 = vpop.f32.mrf.mxu0
  %v3238 = vadd.f32 %v3027, %v3237
  %v3239 = vpop.f32.mrf.mxu0
  %v3240 = vadd.f32 %v3031, %v3239
  %3241 = vmatprep.mubr.bf16.mxu0 0
  %3242 = vmatmul.mubr.bf16.gmra.mxu0 %v129
  %v3243 = vpop.f32.mrf.mxu0
  %v3244 = vadd.f32 %v3027, %v3243
  %v3245 = vpop.f32.mrf.mxu0
  %v3246 = vadd.f32 %v3031, %v3245
  %v3247 = vpop.f32.mrf.mxu0
  %v3248 = vadd.f32 %v3027, %v3247
  %v3249 = vpop.f32.mrf.mxu0
  %v3250 = vadd.f32 %v3031, %v3249
  %3251 = vmatprep.mubr.bf16.mxu0 0
  %3252 = vmatmul.mubr.bf16.gmra.mxu0 %v132
  %v3253 = vpop.f32.mrf.mxu0
  %v3254 = vadd.f32 %v3027, %v3253
  %v3255 = vpop.f32.mrf.mxu0
  %v3256 = vadd.f32 %v3031, %v3255
  %v3257 = vpop.f32.mrf.mxu0
  %v3258 = vadd.f32 %v3027, %v3257
  %v3259 = vpop.f32.mrf.mxu0
  %v3260 = vadd.f32 %v3031, %v3259
  %3261 = vmatprep.mubr.bf16.mxu0 0
  %3262 = vmatmul.mubr.bf16.gmra.mxu0 %v135
  %v3263 = vpop.f32.mrf.mxu0
  %v3264 = vadd.f32 %v3027, %v3263
  %v3265 = vpop.f32.mrf.mxu0
  %v3266 = vadd.f32 %v3031, %v3265
  %v3267 = vpop.f32.mrf.mxu0
  %v3268 = vadd.f32 %v3027, %v3267
  %v3269 = vpop.f32.mrf.mxu0
  %v3270 = vadd.f32 %v3031, %v3269
  %3271 = vmatprep.mubr.bf16.mxu0 0
  %3272 = vmatmul.mubr.bf16.gmra.mxu0 %v138
  %v3273 = vpop.f32.mrf.mxu0
  %v3274 = vadd.f32 %v3027, %v3273
  %v3275 = vpop.f32.mrf.mxu0
  %v3276 = vadd.f32 %v3031, %v3275
  %v3277 = vpop.f32.mrf.mxu0
  %v3278 = vadd.f32 %v3027, %v3277
  %v3279 = vpop.f32.mrf.mxu0
  %v3280 = vadd.f32 %v3031, %v3279
  %3281 = vmatprep.mubr.bf16.mxu0 0
  %3282 = vmatmul.mubr.bf16.gmra.mxu0 %v141
  %v3283 = vpop.f32.mrf.mxu0
  %v3284 = vadd.f32 %v3027, %v3283
  %v3285 = vpop.f32.mrf.mxu0
  %v3286 = vadd.f32 %v3031, %v3285
  %v3287 = vpop.f32.mrf.mxu0
  %v3288 = vadd.f32 %v3027, %v3287
  %v3289 = vpop.f32.mrf.mxu0
  %v3290 = vadd.f32 %v3031, %v3289
  %3291 = vmatprep.mubr.bf16.mxu0 0
  %3292 = vmatmul.mubr.bf16.gmra.mxu0 %v144
  %v3293 = vpop.f32.mrf.mxu0
  %v3294 = vadd.f32 %v3027, %v3293
  %v3295 = vpop.f32.mrf.mxu0
  %v3296 = vadd.f32 %v3031, %v3295
  %v3297 = vpop.f32.mrf.mxu0
  %v3298 = vadd.f32 %v3027, %v3297
  %v3299 = vpop.f32.mrf.mxu0
  %v3300 = vadd.f32 %v3031, %v3299
  %3301 = vdwg.mxu0
  %v3302 = vmax.f32 %v3111, 0.0
  %v3303 = vmax.f32 %v3113, 0.0
  %v3304 = vmax.f32 %v3224, 0.0
  %v3305 = vmax.f32 %v3226, 0.0
  %v3306 = vmax.f32 %v3115, 0.0
  %v3307 = vmax.f32 %v3117, 0.0
  %v3308 = vmax.f32 %v3228, 0.0
  %v3309 = vmax.f32 %v3230, 0.0
  %v3310 = vmax.f32 %v3121, 0.0
  %v3311 = vmax.f32 %v3123, 0.0
  %v3312 = vmax.f32 %v3234, 0.0
  %v3313 = vmax.f32 %v3236, 0.0
  %v3314 = vmax.f32 %v3125, 0.0
  %v3315 = vmax.f32 %v3127, 0.0
  %v3316 = vmax.f32 %v3238, 0.0
  %v3317 = vmax.f32 %v3240, 0.0
  %v3318 = vmax.f32 %v3131, 0.0
  %v3319 = vmax.f32 %v3133, 0.0
  %v3320 = vmax.f32 %v3244, 0.0
  %v3321 = vmax.f32 %v3246, 0.0
  %v3322 = vmax.f32 %v3135, 0.0
  %v3323 = vmax.f32 %v3137, 0.0
  %v3324 = vmax.f32 %v3248, 0.0
  %v3325 = vmax.f32 %v3250, 0.0
  %v3326 = vmax.f32 %v3141, 0.0
  %v3327 = vmax.f32 %v3143, 0.0
  %v3328 = vmax.f32 %v3254, 0.0
  %v3329 = vmax.f32 %v3256, 0.0
  %v3330 = vmax.f32 %v3145, 0.0
  %v3331 = vmax.f32 %v3147, 0.0
  %v3332 = vmax.f32 %v3258, 0.0
  %v3333 = vmax.f32 %v3260, 0.0
  %v3334 = vmax.f32 %v3151, 0.0
  %v3335 = vmax.f32 %v3153, 0.0
  %v3336 = vmax.f32 %v3264, 0.0
  %v3337 = vmax.f32 %v3266, 0.0
  %v3338 = vmax.f32 %v3155, 0.0
  %v3339 = vmax.f32 %v3157, 0.0
  %v3340 = vmax.f32 %v3268, 0.0
  %v3341 = vmax.f32 %v3270, 0.0
  %v3342 = vmax.f32 %v3161, 0.0
  %v3343 = vmax.f32 %v3163, 0.0
  %v3344 = vmax.f32 %v3274, 0.0
  %v3345 = vmax.f32 %v3276, 0.0
  %v3346 = vmax.f32 %v3165, 0.0
  %v3347 = vmax.f32 %v3167, 0.0
  %v3348 = vmax.f32 %v3278, 0.0
  %v3349 = vmax.f32 %v3280, 0.0
  %v3350 = vmax.f32 %v3171, 0.0
  %v3351 = vmax.f32 %v3173, 0.0
  %v3352 = vmax.f32 %v3284, 0.0
  %v3353 = vmax.f32 %v3286, 0.0
  %v3354 = vmax.f32 %v3175, 0.0
  %v3355 = vmax.f32 %v3177, 0.0
  %v3356 = vmax.f32 %v3288, 0.0
  %v3357 = vmax.f32 %v3290, 0.0
  %v3358 = vmax.f32 %v3181, 0.0
  %v3359 = vmax.f32 %v3183, 0.0
  %v3360 = vmax.f32 %v3294, 0.0
  %v3361 = vmax.f32 %v3296, 0.0
  %v3362 = vmax.f32 %v3185, 0.0
  %v3363 = vmax.f32 %v3187, 0.0
  %v3364 = vmax.f32 %v3298, 0.0
  %v3365 = vmax.f32 %v3300, 0.0
  %v3366 = vpack.c.bf16 %v3306, %v3302
  %v3367 = vpack.c.bf16 %v3307, %v3303
  %v3368 = vpack.c.bf16 %v3308, %v3304
  %v3369 = vpack.c.bf16 %v3309, %v3305
  %v3370 = vpack.c.bf16 %v3314, %v3310
  %v3371 = vpack.c.bf16 %v3315, %v3311
  %v3372 = vpack.c.bf16 %v3316, %v3312
  %v3373 = vpack.c.bf16 %v3317, %v3313
  %v3374 = vpack.c.bf16 %v3322, %v3318
  %v3375 = vpack.c.bf16 %v3323, %v3319
  %v3376 = vpack.c.bf16 %v3324, %v3320
  %v3377 = vpack.c.bf16 %v3325, %v3321
  %v3378 = vpack.c.bf16 %v3330, %v3326
  %v3379 = vpack.c.bf16 %v3331, %v3327
  %v3380 = vpack.c.bf16 %v3332, %v3328
  %v3381 = vpack.c.bf16 %v3333, %v3329
  %v3382 = vpack.c.bf16 %v3338, %v3334
  %v3383 = vpack.c.bf16 %v3339, %v3335
  %v3384 = vpack.c.bf16 %v3340, %v3336
  %v3385 = vpack.c.bf16 %v3341, %v3337
  %v3386 = vpack.c.bf16 %v3346, %v3342
  %v3387 = vpack.c.bf16 %v3347, %v3343
  %v3388 = vpack.c.bf16 %v3348, %v3344
  %v3389 = vpack.c.bf16 %v3349, %v3345
  %v3390 = vpack.c.bf16 %v3354, %v3350
  %v3391 = vpack.c.bf16 %v3355, %v3351
  %v3392 = vpack.c.bf16 %v3356, %v3352
  %v3393 = vpack.c.bf16 %v3357, %v3353
  %v3394 = vpack.c.bf16 %v3362, %v3358
  %v3395 = vpack.c.bf16 %v3363, %v3359
  %v3396 = vpack.c.bf16 %v3364, %v3360
  %v3397 = vpack.c.bf16 %v3365, %v3361
  %v3430 = vunpack.c.l.b16 %v3366
  %v3431 = vunpack.c.l.b16 %v3367
  %v3432 = vunpack.c.l.b16 %v3368
  %v3433 = vunpack.c.l.b16 %v3369
  %v3434 = vunpack.c.h.b16 %v3366
  %v3435 = vunpack.c.h.b16 %v3367
  %v3436 = vunpack.c.h.b16 %v3368
  %v3437 = vunpack.c.h.b16 %v3369
  %v3438 = vunpack.c.l.b16 %v3370
  %v3439 = vunpack.c.l.b16 %v3371
  %v3440 = vunpack.c.l.b16 %v3372
  %v3441 = vunpack.c.l.b16 %v3373
  %v3442 = vunpack.c.h.b16 %v3370
  %v3443 = vunpack.c.h.b16 %v3371
  %v3444 = vunpack.c.h.b16 %v3372
  %v3445 = vunpack.c.h.b16 %v3373
  %v3446 = vunpack.c.l.b16 %v3374
  %v3447 = vunpack.c.l.b16 %v3375
  %v3448 = vunpack.c.l.b16 %v3376
  %v3449 = vunpack.c.l.b16 %v3377
  %v3450 = vunpack.c.h.b16 %v3374
  %v3451 = vunpack.c.h.b16 %v3375
  %v3452 = vunpack.c.h.b16 %v3376
  %v3453 = vunpack.c.h.b16 %v3377
  %v3454 = vunpack.c.l.b16 %v3378
  %v3455 = vunpack.c.l.b16 %v3379
  %v3456 = vunpack.c.l.b16 %v3380
  %v3457 = vunpack.c.l.b16 %v3381
  %v3458 = vunpack.c.h.b16 %v3378
  %v3459 = vunpack.c.h.b16 %v3379
  %v3460 = vunpack.c.h.b16 %v3380
  %v3461 = vunpack.c.h.b16 %v3381
  %v3462 = vunpack.c.l.b16 %v3382
  %v3463 = vunpack.c.l.b16 %v3383
  %v3464 = vunpack.c.l.b16 %v3384
  %v3465 = vunpack.c.l.b16 %v3385
  %v3466 = vunpack.c.h.b16 %v3382
  %v3467 = vunpack.c.h.b16 %v3383
  %v3468 = vunpack.c.h.b16 %v3384
  %v3469 = vunpack.c.h.b16 %v3385
  %v3470 = vunpack.c.l.b16 %v3386
  %v3471 = vunpack.c.l.b16 %v3387
  %v3472 = vunpack.c.l.b16 %v3388
  %v3473 = vunpack.c.l.b16 %v3389
  %v3474 = vunpack.c.h.b16 %v3386
  %v3475 = vunpack.c.h.b16 %v3387
  %v3476 = vunpack.c.h.b16 %v3388
  %v3477 = vunpack.c.h.b16 %v3389
  %v3478 = vunpack.c.l.b16 %v3390
  %v3479 = vunpack.c.l.b16 %v3391
  %v3480 = vunpack.c.l.b16 %v3392
  %v3481 = vunpack.c.l.b16 %v3393
  %v3482 = vunpack.c.h.b16 %v3390
  %v3483 = vunpack.c.h.b16 %v3391
  %v3484 = vunpack.c.h.b16 %v3392
  %v3485 = vunpack.c.h.b16 %v3393
  %v3486 = vunpack.c.l.b16 %v3394
  %v3487 = vunpack.c.l.b16 %v3395
  %v3488 = vunpack.c.l.b16 %v3396
  %v3489 = vunpack.c.l.b16 %v3397
  %v3490 = vunpack.c.h.b16 %v3394
  %v3491 = vunpack.c.h.b16 %v3395
  %v3492 = vunpack.c.h.b16 %v3396
  %v3493 = vunpack.c.h.b16 %v3397
  %v3494 = vpack.c.b16 %v3431, %v3430
  %v3495 = vpack.c.b16 %v3433, %v3432
  %v3496 = vpack.c.b16 %v3435, %v3434
  %v3497 = vpack.c.b16 %v3437, %v3436
  %v3498 = vpack.c.b16 %v3439, %v3438
  %v3499 = vpack.c.b16 %v3441, %v3440
  %v3500 = vpack.c.b16 %v3443, %v3442
  %v3501 = vpack.c.b16 %v3445, %v3444
  %v3502 = vpack.c.b16 %v3447, %v3446
  %v3503 = vpack.c.b16 %v3449, %v3448
  %v3504 = vpack.c.b16 %v3451, %v3450
  %v3505 = vpack.c.b16 %v3453, %v3452
  %v3506 = vpack.c.b16 %v3455, %v3454
  %v3507 = vpack.c.b16 %v3457, %v3456
  %v3508 = vpack.c.b16 %v3459, %v3458
  %v3509 = vpack.c.b16 %v3461, %v3460
  %v3510 = vpack.c.b16 %v3463, %v3462
  %v3511 = vpack.c.b16 %v3465, %v3464
  %v3512 = vpack.c.b16 %v3467, %v3466
  %v3513 = vpack.c.b16 %v3469, %v3468
  %v3514 = vpack.c.b16 %v3471, %v3470
  %v3515 = vpack.c.b16 %v3473, %v3472
  %v3516 = vpack.c.b16 %v3475, %v3474
  %v3517 = vpack.c.b16 %v3477, %v3476
  %v3518 = vpack.c.b16 %v3479, %v3478
  %v3519 = vpack.c.b16 %v3481, %v3480
  %v3520 = vpack.c.b16 %v3483, %v3482
  %v3521 = vpack.c.b16 %v3485, %v3484
  %v3522 = vpack.c.b16 %v3487, %v3486
  %v3523 = vpack.c.b16 %v3489, %v3488
  %v3524 = vpack.c.b16 %v3491, %v3490
  %v3525 = vpack.c.b16 %v3493, %v3492
  %3558 = vst [vmem:[#allocation2 + $0x500] sm:$0xff] %v3494
  %3559 = vst [vmem:[#allocation2 + $0x508] sm:$0xff] %v3495
  %3560 = vst [vmem:[#allocation2 + $0x510] sm:$0xff] %v3496
  %3561 = vst [vmem:[#allocation2 + $0x518] sm:$0xff] %v3497
  %3562 = vst [vmem:[#allocation2 + $0x520] sm:$0xff] %v3498
  %3563 = vst [vmem:[#allocation2 + $0x528] sm:$0xff] %v3499
  %3564 = vst [vmem:[#allocation2 + $0x530] sm:$0xff] %v3500
  %3565 = vst [vmem:[#allocation2 + $0x538] sm:$0xff] %v3501
  %3566 = vst [vmem:[#allocation2 + $0x540] sm:$0xff] %v3502
  %3567 = vst [vmem:[#allocation2 + $0x548] sm:$0xff] %v3503
  %3568 = vst [vmem:[#allocation2 + $0x550] sm:$0xff] %v3504
  %3569 = vst [vmem:[#allocation2 + $0x558] sm:$0xff] %v3505
  %3570 = vst [vmem:[#allocation2 + $0x560] sm:$0xff] %v3506
  %3571 = vst [vmem:[#allocation2 + $0x568] sm:$0xff] %v3507
  %3572 = vst [vmem:[#allocation2 + $0x570] sm:$0xff] %v3508
  %3573 = vst [vmem:[#allocation2 + $0x578] sm:$0xff] %v3509
  %3574 = vst [vmem:[#allocation2 + $0x580] sm:$0xff] %v3510
  %3575 = vst [vmem:[#allocation2 + $0x588] sm:$0xff] %v3511
  %3576 = vst [vmem:[#allocation2 + $0x590] sm:$0xff] %v3512
  %3577 = vst [vmem:[#allocation2 + $0x598] sm:$0xff] %v3513
  %3578 = vst [vmem:[#allocation2 + $0x5a0] sm:$0xff] %v3514
  %3579 = vst [vmem:[#allocation2 + $0x5a8] sm:$0xff] %v3515
  %3580 = vst [vmem:[#allocation2 + $0x5b0] sm:$0xff] %v3516
  %3581 = vst [vmem:[#allocation2 + $0x5b8] sm:$0xff] %v3517
  %3582 = vst [vmem:[#allocation2 + $0x5c0] sm:$0xff] %v3518
  %3583 = vst [vmem:[#allocation2 + $0x5c8] sm:$0xff] %v3519
  %3584 = vst [vmem:[#allocation2 + $0x5d0] sm:$0xff] %v3520
  %3585 = vst [vmem:[#allocation2 + $0x5d8] sm:$0xff] %v3521
  %3586 = vst [vmem:[#allocation2 + $0x5e0] sm:$0xff] %v3522
  %3587 = vst [vmem:[#allocation2 + $0x5e8] sm:$0xff] %v3523
  %3588 = vst [vmem:[#allocation2 + $0x5f0] sm:$0xff] %v3524
  %3589 = vst [vmem:[#allocation2 + $0x5f8] sm:$0xff] %v3525
  %v3590 = vld [vmem:[%s3] sm:$0xf]
  %v3591 = vld [vmem:[%s3 + $0x4] sm:$0xf]
  %v3592 = vld [vmem:[%s3 + $0x8] sm:$0xf]
  %v3593 = vld [vmem:[%s3 + $0xc] sm:$0xf]
  %v3594 = vld [vmem:[%s3 + $0x10] sm:$0xf]
  %v3595 = vld [vmem:[%s3 + $0x14] sm:$0xf]
  %v3596 = vld [vmem:[%s3 + $0x18] sm:$0xf]
  %v3597 = vld [vmem:[%s3 + $0x1c] sm:$0xf]
  %v3598 = vld [vmem:[%s3 + $0x20] sm:$0xf]
  %v3599 = vld [vmem:[%s3 + $0x24] sm:$0xf]
  %v3600 = vld [vmem:[%s3 + $0x28] sm:$0xf]
  %v3601 = vld [vmem:[%s3 + $0x2c] sm:$0xf]
  %v3602 = vld [vmem:[%s3 + $0x30] sm:$0xf]
  %v3603 = vld [vmem:[%s3 + $0x34] sm:$0xf]
  %v3604 = vld [vmem:[%s3 + $0x38] sm:$0xf]
  %v3605 = vld [vmem:[%s3 + $0x3c] sm:$0xf]
  %v3606 = vld [vmem:[%s3 + $0x40] sm:$0xf]
  %v3607 = vld [vmem:[%s3 + $0x44] sm:$0xf]
  %v3608 = vld [vmem:[%s3 + $0x48] sm:$0xf]
  %v3609 = vld [vmem:[%s3 + $0x4c] sm:$0xf]
  %v3610 = vld [vmem:[%s3 + $0x50] sm:$0xf]
  %v3611 = vld [vmem:[%s3 + $0x54] sm:$0xf]
  %v3612 = vld [vmem:[%s3 + $0x58] sm:$0xf]
  %v3613 = vld [vmem:[%s3 + $0x5c] sm:$0xf]
  %v3614 = vld [vmem:[%s3 + $0x60] sm:$0xf]
  %v3615 = vld [vmem:[%s3 + $0x64] sm:$0xf]
  %v3616 = vld [vmem:[%s3 + $0x68] sm:$0xf]
  %v3617 = vld [vmem:[%s3 + $0x6c] sm:$0xf]
  %v3618 = vld [vmem:[%s3 + $0x70] sm:$0xf]
  %v3619 = vld [vmem:[%s3 + $0x74] sm:$0xf]
  %v3620 = vld [vmem:[%s3 + $0x78] sm:$0xf]
  %v3621 = vld [vmem:[%s3 + $0x7c] sm:$0xf]
  %v3622 = vld [vmem:[%s3 + $0x80] sm:$0xf]
  %v3623 = vld [vmem:[%s3 + $0x84] sm:$0xf]
  %v3624 = vld [vmem:[%s3 + $0x88] sm:$0xf]
  %v3625 = vld [vmem:[%s3 + $0x8c] sm:$0xf]
  %v3626 = vld [vmem:[%s3 + $0x90] sm:$0xf]
  %v3627 = vld [vmem:[%s3 + $0x94] sm:$0xf]
  %v3628 = vld [vmem:[%s3 + $0x98] sm:$0xf]
  %v3629 = vld [vmem:[%s3 + $0x9c] sm:$0xf]
  %v3630 = vld [vmem:[%s3 + $0xa0] sm:$0xf]
  %v3631 = vld [vmem:[%s3 + $0xa4] sm:$0xf]
  %v3632 = vld [vmem:[%s3 + $0xa8] sm:$0xf]
  %v3633 = vld [vmem:[%s3 + $0xac] sm:$0xf]
  %v3634 = vld [vmem:[%s3 + $0xb0] sm:$0xf]
  %v3635 = vld [vmem:[%s3 + $0xb4] sm:$0xf]
  %v3636 = vld [vmem:[%s3 + $0xb8] sm:$0xf]
  %v3637 = vld [vmem:[%s3 + $0xbc] sm:$0xf]
  %v3638 = vld [vmem:[%s3 + $0xc0] sm:$0xf]
  %v3639 = vld [vmem:[%s3 + $0xc4] sm:$0xf]
  %v3640 = vld [vmem:[%s3 + $0xc8] sm:$0xf]
  %v3641 = vld [vmem:[%s3 + $0xcc] sm:$0xf]
  %v3642 = vld [vmem:[%s3 + $0xd0] sm:$0xf]
  %v3643 = vld [vmem:[%s3 + $0xd4] sm:$0xf]
  %v3644 = vld [vmem:[%s3 + $0xd8] sm:$0xf]
  %v3645 = vld [vmem:[%s3 + $0xdc] sm:$0xf]
  %v3646 = vld [vmem:[%s3 + $0xe0] sm:$0xf]
  %v3647 = vld [vmem:[%s3 + $0xe4] sm:$0xf]
  %v3648 = vld [vmem:[%s3 + $0xe8] sm:$0xf]
  %v3649 = vld [vmem:[%s3 + $0xec] sm:$0xf]
  %v3650 = vld [vmem:[%s3 + $0xf0] sm:$0xf]
  %v3651 = vld [vmem:[%s3 + $0xf4] sm:$0xf]
  %v3652 = vld [vmem:[%s3 + $0xf8] sm:$0xf]
  %v3653 = vld [vmem:[%s3 + $0xfc] sm:$0xf]
  %v3654 = vld [vmem:[%s4] sm:$0x1]
  %v3655 = vld [vmem:[%s5] sm:$0xf]
  %v3656 = vld [vmem:[%s5 + $0x4] sm:$0xf]
  %v3657 = vld [vmem:[%s5 + $0x8] sm:$0xf]
  %v3658 = vld [vmem:[%s5 + $0xc] sm:$0xf]
  %v3659 = vld [vmem:[%s5 + $0x10] sm:$0xf]
  %v3660 = vld [vmem:[%s5 + $0x14] sm:$0xf]
  %v3661 = vld [vmem:[%s5 + $0x18] sm:$0xf]
  %v3662 = vld [vmem:[%s5 + $0x1c] sm:$0xf]
  %v3663 = vld [vmem:[%s6] sm:$0x1]
  %v3664 = vld [vmem:[#allocation2] sm:$0xff]
  %v3665 = vld [vmem:[#allocation2 + $0x8] sm:$0xff]
  %v3666 = vld [vmem:[#allocation2 + $0x10] sm:$0xff]
  %v3667 = vld [vmem:[#allocation2 + $0x18] sm:$0xff]
  %v3668 = vld [vmem:[#allocation2 + $0x20] sm:$0xff]
  %v3669 = vld [vmem:[#allocation2 + $0x28] sm:$0xff]
  %v3670 = vld [vmem:[#allocation2 + $0x30] sm:$0xff]
  %v3671 = vld [vmem:[#allocation2 + $0x38] sm:$0xff]
  %v3672 = vld [vmem:[#allocation2 + $0x40] sm:$0xff]
  %v3673 = vld [vmem:[#allocation2 + $0x48] sm:$0xff]
  %v3674 = vld [vmem:[#allocation2 + $0x50] sm:$0xff]
  %v3675 = vld [vmem:[#allocation2 + $0x58] sm:$0xff]
  %v3676 = vld [vmem:[#allocation2 + $0x60] sm:$0xff]
  %v3677 = vld [vmem:[#allocation2 + $0x68] sm:$0xff]
  %v3678 = vld [vmem:[#allocation2 + $0x70] sm:$0xff]
  %v3679 = vld [vmem:[#allocation2 + $0x78] sm:$0xff]
  %v3680 = vld [vmem:[#allocation2 + $0x80] sm:$0xff]
  %v3681 = vld [vmem:[#allocation2 + $0x88] sm:$0xff]
  %v3682 = vld [vmem:[#allocation2 + $0x90] sm:$0xff]
  %v3683 = vld [vmem:[#allocation2 + $0x98] sm:$0xff]
  %v3684 = vld [vmem:[#allocation2 + $0xa0] sm:$0xff]
  %v3685 = vld [vmem:[#allocation2 + $0xa8] sm:$0xff]
  %v3686 = vld [vmem:[#allocation2 + $0xb0] sm:$0xff]
  %v3687 = vld [vmem:[#allocation2 + $0xb8] sm:$0xff]
  %v3688 = vld [vmem:[#allocation2 + $0xc0] sm:$0xff]
  %v3689 = vld [vmem:[#allocation2 + $0xc8] sm:$0xff]
  %v3690 = vld [vmem:[#allocation2 + $0xd0] sm:$0xff]
  %v3691 = vld [vmem:[#allocation2 + $0xd8] sm:$0xff]
  %v3692 = vld [vmem:[#allocation2 + $0xe0] sm:$0xff]
  %v3693 = vld [vmem:[#allocation2 + $0xe8] sm:$0xff]
  %v3694 = vld [vmem:[#allocation2 + $0xf0] sm:$0xff]
  %v3695 = vld [vmem:[#allocation2 + $0xf8] sm:$0xff]
  %v3697 = vlaneseq
  %v3698 = vshrl.u32 %v3697, 7
  %v3699 = vsub.s32 0, %v3698
  %v3700 = vrot.slane %v3654, %v3699
  %v3734 = vunpack.c.l.b16 %v3664
  %v3735 = vunpack.c.h.b16 %v3664
  %v3736 = vunpack.c.l.b16 %v3665
  %v3737 = vunpack.c.h.b16 %v3665
  %v3738 = vunpack.c.l.b16 %v3666
  %v3739 = vunpack.c.h.b16 %v3666
  %v3740 = vunpack.c.l.b16 %v3667
  %v3741 = vunpack.c.h.b16 %v3667
  %v3742 = vunpack.c.l.b16 %v3668
  %v3743 = vunpack.c.h.b16 %v3668
  %v3744 = vunpack.c.l.b16 %v3669
  %v3745 = vunpack.c.h.b16 %v3669
  %v3746 = vunpack.c.l.b16 %v3670
  %v3747 = vunpack.c.h.b16 %v3670
  %v3748 = vunpack.c.l.b16 %v3671
  %v3749 = vunpack.c.h.b16 %v3671
  %v3750 = vunpack.c.l.b16 %v3672
  %v3751 = vunpack.c.h.b16 %v3672
  %v3752 = vunpack.c.l.b16 %v3673
  %v3753 = vunpack.c.h.b16 %v3673
  %v3754 = vunpack.c.l.b16 %v3674
  %v3755 = vunpack.c.h.b16 %v3674
  %v3756 = vunpack.c.l.b16 %v3675
  %v3757 = vunpack.c.h.b16 %v3675
  %v3758 = vunpack.c.l.b16 %v3676
  %v3759 = vunpack.c.h.b16 %v3676
  %v3760 = vunpack.c.l.b16 %v3677
  %v3761 = vunpack.c.h.b16 %v3677
  %v3762 = vunpack.c.l.b16 %v3678
  %v3763 = vunpack.c.h.b16 %v3678
  %v3764 = vunpack.c.l.b16 %v3679
  %v3765 = vunpack.c.h.b16 %v3679
  %v3766 = vunpack.c.l.b16 %v3680
  %v3767 = vunpack.c.h.b16 %v3680
  %v3768 = vunpack.c.l.b16 %v3681
  %v3769 = vunpack.c.h.b16 %v3681
  %v3770 = vunpack.c.l.b16 %v3682
  %v3771 = vunpack.c.h.b16 %v3682
  %v3772 = vunpack.c.l.b16 %v3683
  %v3773 = vunpack.c.h.b16 %v3683
  %v3774 = vunpack.c.l.b16 %v3684
  %v3775 = vunpack.c.h.b16 %v3684
  %v3776 = vunpack.c.l.b16 %v3685
  %v3777 = vunpack.c.h.b16 %v3685
  %v3778 = vunpack.c.l.b16 %v3686
  %v3779 = vunpack.c.h.b16 %v3686
  %v3780 = vunpack.c.l.b16 %v3687
  %v3781 = vunpack.c.h.b16 %v3687
  %v3782 = vunpack.c.l.b16 %v3688
  %v3783 = vunpack.c.h.b16 %v3688
  %v3784 = vunpack.c.l.b16 %v3689
  %v3785 = vunpack.c.h.b16 %v3689
  %v3786 = vunpack.c.l.b16 %v3690
  %v3787 = vunpack.c.h.b16 %v3690
  %v3788 = vunpack.c.l.b16 %v3691
  %v3789 = vunpack.c.h.b16 %v3691
  %v3790 = vunpack.c.l.b16 %v3692
  %v3791 = vunpack.c.h.b16 %v3692
  %v3792 = vunpack.c.l.b16 %v3693
  %v3793 = vunpack.c.h.b16 %v3693
  %v3794 = vunpack.c.l.b16 %v3694
  %v3795 = vunpack.c.h.b16 %v3694
  %v3796 = vunpack.c.l.b16 %v3695
  %v3797 = vunpack.c.h.b16 %v3695
  %v3798 = vpack.c.b16 %v3738, %v3734
  %v3799 = vpack.c.b16 %v3739, %v3735
  %v3800 = vpack.c.b16 %v3740, %v3736
  %v3801 = vpack.c.b16 %v3741, %v3737
  %v3802 = vpack.c.b16 %v3746, %v3742
  %v3803 = vpack.c.b16 %v3747, %v3743
  %v3804 = vpack.c.b16 %v3748, %v3744
  %v3805 = vpack.c.b16 %v3749, %v3745
  %v3806 = vpack.c.b16 %v3754, %v3750
  %v3807 = vpack.c.b16 %v3755, %v3751
  %v3808 = vpack.c.b16 %v3756, %v3752
  %v3809 = vpack.c.b16 %v3757, %v3753
  %v3810 = vpack.c.b16 %v3762, %v3758
  %v3811 = vpack.c.b16 %v3763, %v3759
  %v3812 = vpack.c.b16 %v3764, %v3760
  %v3813 = vpack.c.b16 %v3765, %v3761
  %v3814 = vpack.c.b16 %v3770, %v3766
  %v3815 = vpack.c.b16 %v3771, %v3767
  %v3816 = vpack.c.b16 %v3772, %v3768
  %v3817 = vpack.c.b16 %v3773, %v3769
  %v3818 = vpack.c.b16 %v3778, %v3774
  %v3819 = vpack.c.b16 %v3779, %v3775
  %v3820 = vpack.c.b16 %v3780, %v3776
  %v3821 = vpack.c.b16 %v3781, %v3777
  %v3822 = vpack.c.b16 %v3786, %v3782
  %v3823 = vpack.c.b16 %v3787, %v3783
  %v3824 = vpack.c.b16 %v3788, %v3784
  %v3825 = vpack.c.b16 %v3789, %v3785
  %v3826 = vpack.c.b16 %v3794, %v3790
  %v3827 = vpack.c.b16 %v3795, %v3791
  %v3828 = vpack.c.b16 %v3796, %v3792
  %v3829 = vpack.c.b16 %v3797, %v3793
  %v3926 = vunpack.c.l.b16 %v3590
  %v3927 = vunpack.c.l.b16 %v3591
  %v3928 = vunpack.c.l.b16 %v3592
  %v3929 = vunpack.c.l.b16 %v3593
  %v3930 = vunpack.c.l.b16 %v3594
  %v3931 = vunpack.c.l.b16 %v3595
  %v3932 = vunpack.c.l.b16 %v3596
  %v3933 = vunpack.c.l.b16 %v3597
  %v3934 = vunpack.c.l.b16 %v3598
  %v3935 = vunpack.c.l.b16 %v3599
  %v3936 = vunpack.c.l.b16 %v3600
  %v3937 = vunpack.c.l.b16 %v3601
  %v3938 = vunpack.c.l.b16 %v3602
  %v3939 = vunpack.c.l.b16 %v3603
  %v3940 = vunpack.c.l.b16 %v3604
  %v3941 = vunpack.c.l.b16 %v3605
  %v3942 = vunpack.c.l.b16 %v3606
  %v3943 = vunpack.c.l.b16 %v3607
  %v3944 = vunpack.c.l.b16 %v3608
  %v3945 = vunpack.c.l.b16 %v3609
  %v3946 = vunpack.c.l.b16 %v3610
  %v3947 = vunpack.c.l.b16 %v3611
  %v3948 = vunpack.c.l.b16 %v3612
  %v3949 = vunpack.c.l.b16 %v3613
  %v3950 = vunpack.c.l.b16 %v3614
  %v3951 = vunpack.c.l.b16 %v3615
  %v3952 = vunpack.c.l.b16 %v3616
  %v3953 = vunpack.c.l.b16 %v3617
  %v3954 = vunpack.c.l.b16 %v3618
  %v3955 = vunpack.c.l.b16 %v3619
  %v3956 = vunpack.c.l.b16 %v3620
  %v3957 = vunpack.c.l.b16 %v3621
  %v3958 = vunpack.c.l.b16 %v3622
  %v3959 = vunpack.c.l.b16 %v3623
  %v3960 = vunpack.c.l.b16 %v3624
  %v3961 = vunpack.c.l.b16 %v3625
  %v3962 = vunpack.c.l.b16 %v3626
  %v3963 = vunpack.c.l.b16 %v3627
  %v3964 = vunpack.c.l.b16 %v3628
  %v3965 = vunpack.c.l.b16 %v3629
  %v3966 = vunpack.c.l.b16 %v3630
  %v3967 = vunpack.c.l.b16 %v3631
  %v3968 = vunpack.c.l.b16 %v3632
  %v3969 = vunpack.c.l.b16 %v3633
  %v3970 = vunpack.c.l.b16 %v3634
  %v3971 = vunpack.c.l.b16 %v3635
  %v3972 = vunpack.c.l.b16 %v3636
  %v3973 = vunpack.c.l.b16 %v3637
  %v3974 = vunpack.c.l.b16 %v3638
  %v3975 = vunpack.c.l.b16 %v3639
  %v3976 = vunpack.c.l.b16 %v3640
  %v3977 = vunpack.c.l.b16 %v3641
  %v3978 = vunpack.c.l.b16 %v3642
  %v3979 = vunpack.c.l.b16 %v3643
  %v3980 = vunpack.c.l.b16 %v3644
  %v3981 = vunpack.c.l.b16 %v3645
  %v3982 = vunpack.c.l.b16 %v3646
  %v3983 = vunpack.c.l.b16 %v3647
  %v3984 = vunpack.c.l.b16 %v3648
  %v3985 = vunpack.c.l.b16 %v3649
  %v3986 = vunpack.c.l.b16 %v3650
  %v3987 = vunpack.c.l.b16 %v3651
  %v3988 = vunpack.c.l.b16 %v3652
  %v3989 = vunpack.c.l.b16 %v3653
  %v3990 = vpack.c.b16 %v3927, %v3926
  %v3991 = vpack.c.b16 %v3929, %v3928
  %v3992 = vpack.c.b16 %v3931, %v3930
  %v3993 = vpack.c.b16 %v3933, %v3932
  %v3994 = vpack.c.b16 %v3935, %v3934
  %v3995 = vpack.c.b16 %v3937, %v3936
  %v3996 = vpack.c.b16 %v3939, %v3938
  %v3997 = vpack.c.b16 %v3941, %v3940
  %v3998 = vpack.c.b16 %v3943, %v3942
  %v3999 = vpack.c.b16 %v3945, %v3944
  %v4000 = vpack.c.b16 %v3947, %v3946
  %v4001 = vpack.c.b16 %v3949, %v3948
  %v4002 = vpack.c.b16 %v3951, %v3950
  %v4003 = vpack.c.b16 %v3953, %v3952
  %v4004 = vpack.c.b16 %v3955, %v3954
  %v4005 = vpack.c.b16 %v3957, %v3956
  %v4006 = vpack.c.b16 %v3959, %v3958
  %v4007 = vpack.c.b16 %v3961, %v3960
  %v4008 = vpack.c.b16 %v3963, %v3962
  %v4009 = vpack.c.b16 %v3965, %v3964
  %v4010 = vpack.c.b16 %v3967, %v3966
  %v4011 = vpack.c.b16 %v3969, %v3968
  %v4012 = vpack.c.b16 %v3971, %v3970
  %v4013 = vpack.c.b16 %v3973, %v3972
  %v4014 = vpack.c.b16 %v3975, %v3974
  %v4015 = vpack.c.b16 %v3977, %v3976
  %v4016 = vpack.c.b16 %v3979, %v3978
  %v4017 = vpack.c.b16 %v3981, %v3980
  %v4018 = vpack.c.b16 %v3983, %v3982
  %v4019 = vpack.c.b16 %v3985, %v3984
  %v4020 = vpack.c.b16 %v3987, %v3986
  %v4021 = vpack.c.b16 %v3989, %v3988
  %4054 = vmatprep.subr.bf16.mxu0 0
  %4055 = vmatpush1.bf16.msra.mxu0 %v3997
  %4056 = vmatprep.subr.bf16.mxu0 0
  %4057 = vmatpush1.bf16.msra.mxu0 %v3996
  %4058 = vmatprep.subr.bf16.mxu0 0
  %4059 = vmatpush1.bf16.msra.mxu0 %v3995
  %4060 = vmatprep.subr.bf16.mxu0 0
  %4061 = vmatpush1.bf16.msra.mxu0 %v3994
  %4062 = vmatprep.subr.bf16.mxu0 0
  %4063 = vmatpush1.bf16.msra.mxu0 %v3993
  %4064 = vmatprep.subr.bf16.mxu0 0
  %4065 = vmatpush1.bf16.msra.mxu0 %v3992
  %4066 = vmatprep.subr.bf16.mxu0 0
  %4067 = vmatpush1.bf16.msra.mxu0 %v3991
  %4068 = vmatprep.subr.bf16.mxu0 0
  %4069 = vmatpush1.bf16.msra.mxu0 %v3990
  %4070 = vmatprep.subr.bf16.mxu0 0
  %4071 = vmatpush2.bf16.msra.mxu0 %v4005
  %4072 = vmatprep.subr.bf16.mxu0 0
  %4073 = vmatpush2.bf16.msra.mxu0 %v4004
  %4074 = vmatprep.subr.bf16.mxu0 0
  %4075 = vmatpush2.bf16.msra.mxu0 %v4003
  %4076 = vmatprep.subr.bf16.mxu0 0
  %4077 = vmatpush2.bf16.msra.mxu0 %v4002
  %4078 = vmatprep.subr.bf16.mxu0 0
  %4079 = vmatpush2.bf16.msra.mxu0 %v4001
  %4080 = vmatprep.subr.bf16.mxu0 0
  %4081 = vmatpush2.bf16.msra.mxu0 %v4000
  %4082 = vmatprep.subr.bf16.mxu0 0
  %4083 = vmatpush2.bf16.msra.mxu0 %v3999
  %4084 = vmatprep.subr.bf16.mxu0 0
  %4085 = vmatpush2.bf16.msra.mxu0 %v3998
  %4086 = vmatprep.mubr.bf16.mxu0 %v3799
  %4087 = vmatmul.mubr.bf16.gmra.mxu0 %v3798
  %v4088 = vpop.f32.mrf.mxu0
  %v4089 = vadd.f32 %v3700, %v4088
  %v4090 = vpop.f32.mrf.mxu0
  %v4091 = vpop.f32.mrf.mxu0
  %v4092 = vadd.f32 %v3700, %v4091
  %v4093 = vpop.f32.mrf.mxu0
  %4094 = vmatprep.mubr.bf16.mxu0 %v3803
  %4095 = vmatmul.mubr.bf16.gmra.mxu0 %v3802
  %v4096 = vpop.f32.mrf.mxu0
  %v4097 = vadd.f32 %v3700, %v4096
  %v4098 = vpop.f32.mrf.mxu0
  %v4099 = vpop.f32.mrf.mxu0
  %v4100 = vadd.f32 %v3700, %v4099
  %v4101 = vpop.f32.mrf.mxu0
  %4102 = vmatprep.mubr.bf16.mxu0 %v3807
  %4103 = vmatmul.mubr.bf16.gmra.mxu0 %v3806
  %v4104 = vpop.f32.mrf.mxu0
  %v4105 = vadd.f32 %v3700, %v4104
  %v4106 = vpop.f32.mrf.mxu0
  %v4107 = vpop.f32.mrf.mxu0
  %v4108 = vadd.f32 %v3700, %v4107
  %v4109 = vpop.f32.mrf.mxu0
  %4110 = vmatprep.mubr.bf16.mxu0 %v3811
  %4111 = vmatmul.mubr.bf16.gmra.mxu0 %v3810
  %v4112 = vpop.f32.mrf.mxu0
  %v4113 = vadd.f32 %v3700, %v4112
  %v4114 = vpop.f32.mrf.mxu0
  %v4115 = vpop.f32.mrf.mxu0
  %v4116 = vadd.f32 %v3700, %v4115
  %v4117 = vpop.f32.mrf.mxu0
  %4118 = vmatprep.mubr.bf16.mxu0 %v3815
  %4119 = vmatmul.mubr.bf16.gmra.mxu0 %v3814
  %v4120 = vpop.f32.mrf.mxu0
  %v4121 = vadd.f32 %v3700, %v4120
  %v4122 = vpop.f32.mrf.mxu0
  %v4123 = vpop.f32.mrf.mxu0
  %v4124 = vadd.f32 %v3700, %v4123
  %v4125 = vpop.f32.mrf.mxu0
  %4126 = vmatprep.mubr.bf16.mxu0 %v3819
  %4127 = vmatmul.mubr.bf16.gmra.mxu0 %v3818
  %v4128 = vpop.f32.mrf.mxu0
  %v4129 = vadd.f32 %v3700, %v4128
  %v4130 = vpop.f32.mrf.mxu0
  %v4131 = vpop.f32.mrf.mxu0
  %v4132 = vadd.f32 %v3700, %v4131
  %v4133 = vpop.f32.mrf.mxu0
  %4134 = vmatprep.mubr.bf16.mxu0 %v3823
  %4135 = vmatmul.mubr.bf16.gmra.mxu0 %v3822
  %v4136 = vpop.f32.mrf.mxu0
  %v4137 = vadd.f32 %v3700, %v4136
  %v4138 = vpop.f32.mrf.mxu0
  %v4139 = vpop.f32.mrf.mxu0
  %v4140 = vadd.f32 %v3700, %v4139
  %v4141 = vpop.f32.mrf.mxu0
  %4142 = vmatprep.mubr.bf16.mxu0 %v3827
  %4143 = vmatmul.mubr.bf16.gmra.mxu0 %v3826
  %v4144 = vpop.f32.mrf.mxu0
  %v4145 = vadd.f32 %v3700, %v4144
  %v4146 = vpop.f32.mrf.mxu0
  %v4147 = vpop.f32.mrf.mxu0
  %v4148 = vadd.f32 %v3700, %v4147
  %v4149 = vpop.f32.mrf.mxu0
  %4150 = vdwg.mxu0
  %4151 = vmatprep.subr.bf16.mxu0 0
  %4152 = vmatpush1.bf16.msra.mxu0 %v4013
  %4153 = vmatprep.subr.bf16.mxu0 0
  %4154 = vmatpush1.bf16.msra.mxu0 %v4012
  %4155 = vmatprep.subr.bf16.mxu0 0
  %4156 = vmatpush1.bf16.msra.mxu0 %v4011
  %4157 = vmatprep.subr.bf16.mxu0 0
  %4158 = vmatpush1.bf16.msra.mxu0 %v4010
  %4159 = vmatprep.subr.bf16.mxu0 0
  %4160 = vmatpush1.bf16.msra.mxu0 %v4009
  %4161 = vmatprep.subr.bf16.mxu0 0
  %4162 = vmatpush1.bf16.msra.mxu0 %v4008
  %4163 = vmatprep.subr.bf16.mxu0 0
  %4164 = vmatpush1.bf16.msra.mxu0 %v4007
  %4165 = vmatprep.subr.bf16.mxu0 0
  %4166 = vmatpush1.bf16.msra.mxu0 %v4006
  %4167 = vmatprep.subr.bf16.mxu0 0
  %4168 = vmatpush2.bf16.msra.mxu0 %v4021
  %4169 = vmatprep.subr.bf16.mxu0 0
  %4170 = vmatpush2.bf16.msra.mxu0 %v4020
  %4171 = vmatprep.subr.bf16.mxu0 0
  %4172 = vmatpush2.bf16.msra.mxu0 %v4019
  %4173 = vmatprep.subr.bf16.mxu0 0
  %4174 = vmatpush2.bf16.msra.mxu0 %v4018
  %4175 = vmatprep.subr.bf16.mxu0 0
  %4176 = vmatpush2.bf16.msra.mxu0 %v4017
  %4177 = vmatprep.subr.bf16.mxu0 0
  %4178 = vmatpush2.bf16.msra.mxu0 %v4016
  %4179 = vmatprep.subr.bf16.mxu0 0
  %4180 = vmatpush2.bf16.msra.mxu0 %v4015
  %4181 = vmatprep.subr.bf16.mxu0 0
  %4182 = vmatpush2.bf16.msra.mxu0 %v4014
  %4183 = vmatprep.mubr.bf16.mxu0 %v3801
  %4184 = vmatmul.mubr.bf16.gmra.mxu0 %v3800
  %v4185 = vpop.f32.mrf.mxu0
  %v4186 = vadd.f32 %v4089, %v4185
  %v4187 = vpop.f32.mrf.mxu0
  %v4188 = vpop.f32.mrf.mxu0
  %v4189 = vadd.f32 %v4092, %v4188
  %v4190 = vpop.f32.mrf.mxu0
  %4191 = vmatprep.mubr.bf16.mxu0 %v3805
  %4192 = vmatmul.mubr.bf16.gmra.mxu0 %v3804
  %v4193 = vpop.f32.mrf.mxu0
  %v4194 = vadd.f32 %v4097, %v4193
  %v4195 = vpop.f32.mrf.mxu0
  %v4196 = vpop.f32.mrf.mxu0
  %v4197 = vadd.f32 %v4100, %v4196
  %v4198 = vpop.f32.mrf.mxu0
  %4199 = vmatprep.mubr.bf16.mxu0 %v3809
  %4200 = vmatmul.mubr.bf16.gmra.mxu0 %v3808
  %v4201 = vpop.f32.mrf.mxu0
  %v4202 = vadd.f32 %v4105, %v4201
  %v4203 = vpop.f32.mrf.mxu0
  %v4204 = vpop.f32.mrf.mxu0
  %v4205 = vadd.f32 %v4108, %v4204
  %v4206 = vpop.f32.mrf.mxu0
  %4207 = vmatprep.mubr.bf16.mxu0 %v3813
  %4208 = vmatmul.mubr.bf16.gmra.mxu0 %v3812
  %v4209 = vpop.f32.mrf.mxu0
  %v4210 = vadd.f32 %v4113, %v4209
  %v4211 = vpop.f32.mrf.mxu0
  %v4212 = vpop.f32.mrf.mxu0
  %v4213 = vadd.f32 %v4116, %v4212
  %v4214 = vpop.f32.mrf.mxu0
  %4215 = vmatprep.mubr.bf16.mxu0 %v3817
  %4216 = vmatmul.mubr.bf16.gmra.mxu0 %v3816
  %v4217 = vpop.f32.mrf.mxu0
  %v4218 = vadd.f32 %v4121, %v4217
  %v4219 = vpop.f32.mrf.mxu0
  %v4220 = vpop.f32.mrf.mxu0
  %v4221 = vadd.f32 %v4124, %v4220
  %v4222 = vpop.f32.mrf.mxu0
  %4223 = vmatprep.mubr.bf16.mxu0 %v3821
  %4224 = vmatmul.mubr.bf16.gmra.mxu0 %v3820
  %v4225 = vpop.f32.mrf.mxu0
  %v4226 = vadd.f32 %v4129, %v4225
  %v4227 = vpop.f32.mrf.mxu0
  %v4228 = vpop.f32.mrf.mxu0
  %v4229 = vadd.f32 %v4132, %v4228
  %v4230 = vpop.f32.mrf.mxu0
  %4231 = vmatprep.mubr.bf16.mxu0 %v3825
  %4232 = vmatmul.mubr.bf16.gmra.mxu0 %v3824
  %v4233 = vpop.f32.mrf.mxu0
  %v4234 = vadd.f32 %v4137, %v4233
  %v4235 = vpop.f32.mrf.mxu0
  %v4236 = vpop.f32.mrf.mxu0
  %v4237 = vadd.f32 %v4140, %v4236
  %v4238 = vpop.f32.mrf.mxu0
  %4239 = vmatprep.mubr.bf16.mxu0 %v3829
  %4240 = vmatmul.mubr.bf16.gmra.mxu0 %v3828
  %v4241 = vpop.f32.mrf.mxu0
  %v4242 = vadd.f32 %v4145, %v4241
  %v4243 = vpop.f32.mrf.mxu0
  %v4244 = vpop.f32.mrf.mxu0
  %v4245 = vadd.f32 %v4148, %v4244
  %v4246 = vpop.f32.mrf.mxu0
  %4247 = vdwg.mxu0
  %v4248 = vmax.f32 %v4186, 0.0
  %v4249 = vmax.f32 %v4189, 0.0
  %v4250 = vmax.f32 %v4194, 0.0
  %v4251 = vmax.f32 %v4197, 0.0
  %v4252 = vmax.f32 %v4202, 0.0
  %v4253 = vmax.f32 %v4205, 0.0
  %v4254 = vmax.f32 %v4210, 0.0
  %v4255 = vmax.f32 %v4213, 0.0
  %v4256 = vmax.f32 %v4218, 0.0
  %v4257 = vmax.f32 %v4221, 0.0
  %v4258 = vmax.f32 %v4226, 0.0
  %v4259 = vmax.f32 %v4229, 0.0
  %v4260 = vmax.f32 %v4234, 0.0
  %v4261 = vmax.f32 %v4237, 0.0
  %v4262 = vmax.f32 %v4242, 0.0
  %v4263 = vmax.f32 %v4245, 0.0
  %v4264 = vpack.c.bf16 %v4249, %v4248
  %v4265 = vpack.c.bf16 %v4251, %v4250
  %v4266 = vpack.c.bf16 %v4253, %v4252
  %v4267 = vpack.c.bf16 %v4255, %v4254
  %v4268 = vpack.c.bf16 %v4257, %v4256
  %v4269 = vpack.c.bf16 %v4259, %v4258
  %v4270 = vpack.c.bf16 %v4261, %v4260
  %v4271 = vpack.c.bf16 %v4263, %v4262
  %v4273 = vlaneseq
  %v4274 = vshrl.u32 %v4273, 7
  %v4275 = vsub.s32 0, %v4274
  %v4276 = vrot.slane %v3663, %v4275
  %v4286 = vunpack.c.l.b16 %v3655
  %v4287 = vunpack.c.l.b16 %v3656
  %v4288 = vunpack.c.l.b16 %v3657
  %v4289 = vunpack.c.l.b16 %v3658
  %v4290 = vunpack.c.l.b16 %v3659
  %v4291 = vunpack.c.l.b16 %v3660
  %v4292 = vunpack.c.l.b16 %v3661
  %v4293 = vunpack.c.l.b16 %v3662
  %v4294 = vpack.c.b16 %v4287, %v4286
  %v4295 = vpack.c.b16 %v4289, %v4288
  %v4296 = vpack.c.b16 %v4291, %v4290
  %v4297 = vpack.c.b16 %v4293, %v4292
  %vm4302 = vcmask 523264
  %v4304 = vsel %vm4302, %v4264, 0
  %v4307 = vsel %vm4302, %v4265, 0
  %v4310 = vsel %vm4302, %v4266, 0
  %v4313 = vsel %vm4302, %v4267, 0
  %v4316 = vsel %vm4302, %v4268, 0
  %v4319 = vsel %vm4302, %v4269, 0
  %v4322 = vsel %vm4302, %v4270, 0
  %v4325 = vsel %vm4302, %v4271, 0
  %4327 = vmatprep.subr.bf16.mxu0 0
  %4328 = vmatpush1.bf16.msra.mxu0 0
  %4329 = vmatprep.subr.bf16.mxu0 0
  %4330 = vmatpush1.bf16.msra.mxu0 0
  %4331 = vmatprep.subr.bf16.mxu0 0
  %4332 = vmatpush1.bf16.msra.mxu0 0
  %4333 = vmatprep.subr.bf16.mxu0 0
  %4334 = vmatpush1.bf16.msra.mxu0 0
  %4335 = vmatprep.subr.bf16.mxu0 0
  %4336 = vmatpush1.bf16.msra.mxu0 %v4297
  %4337 = vmatprep.subr.bf16.mxu0 0
  %4338 = vmatpush1.bf16.msra.mxu0 %v4296
  %4339 = vmatprep.subr.bf16.mxu0 0
  %4340 = vmatpush1.bf16.msra.mxu0 %v4295
  %4341 = vmatprep.subr.bf16.mxu0 0
  %4342 = vmatpush1.bf16.msra.mxu0 %v4294
  %4343 = vmatprep.subr.bf16.mxu0 0
  %4344 = vmatpush2.bf16.msra.mxu0 0
  %4345 = vmatprep.subr.bf16.mxu0 0
  %4346 = vmatpush2.bf16.msra.mxu0 0
  %4347 = vmatprep.subr.bf16.mxu0 0
  %4348 = vmatpush2.bf16.msra.mxu0 0
  %4349 = vmatprep.subr.bf16.mxu0 0
  %4350 = vmatpush2.bf16.msra.mxu0 0
  %4351 = vmatprep.subr.bf16.mxu0 0
  %4352 = vmatpush2.bf16.msra.mxu0 0
  %4353 = vmatprep.subr.bf16.mxu0 0
  %4354 = vmatpush2.bf16.msra.mxu0 0
  %4355 = vmatprep.subr.bf16.mxu0 0
  %4356 = vmatpush2.bf16.msra.mxu0 0
  %4357 = vmatprep.subr.bf16.mxu0 0
  %4358 = vmatpush2.bf16.msra.mxu0 0
  %4359 = vmatprep.mubr.bf16.mxu0 0
  %4360 = vmatmul.mubr.bf16.gmra.mxu0 %v4304
  %v4361 = vpop.f32.mrf.mxu0
  %v4362 = vadd.f32 %v4276, %v4361
  %v4363 = vpop.f32.mrf.mxu0
  %v4364 = vpop.f32.mrf.mxu0
  %v4365 = vadd.f32 %v4276, %v4364
  %v4366 = vpop.f32.mrf.mxu0
  %4367 = vmatprep.mubr.bf16.mxu0 0
  %4368 = vmatmul.mubr.bf16.gmra.mxu0 %v4307
  %v4369 = vpop.f32.mrf.mxu0
  %v4370 = vadd.f32 %v4276, %v4369
  %v4371 = vpop.f32.mrf.mxu0
  %v4372 = vpop.f32.mrf.mxu0
  %v4373 = vadd.f32 %v4276, %v4372
  %v4374 = vpop.f32.mrf.mxu0
  %4375 = vmatprep.mubr.bf16.mxu0 0
  %4376 = vmatmul.mubr.bf16.gmra.mxu0 %v4310
  %v4377 = vpop.f32.mrf.mxu0
  %v4378 = vadd.f32 %v4276, %v4377
  %v4379 = vpop.f32.mrf.mxu0
  %v4380 = vpop.f32.mrf.mxu0
  %v4381 = vadd.f32 %v4276, %v4380
  %v4382 = vpop.f32.mrf.mxu0
  %4383 = vmatprep.mubr.bf16.mxu0 0
  %4384 = vmatmul.mubr.bf16.gmra.mxu0 %v4313
  %v4385 = vpop.f32.mrf.mxu0
  %v4386 = vadd.f32 %v4276, %v4385
  %v4387 = vpop.f32.mrf.mxu0
  %v4388 = vpop.f32.mrf.mxu0
  %v4389 = vadd.f32 %v4276, %v4388
  %v4390 = vpop.f32.mrf.mxu0
  %4391 = vmatprep.mubr.bf16.mxu0 0
  %4392 = vmatmul.mubr.bf16.gmra.mxu0 %v4316
  %v4393 = vpop.f32.mrf.mxu0
  %v4394 = vadd.f32 %v4276, %v4393
  %v4395 = vpop.f32.mrf.mxu0
  %v4396 = vpop.f32.mrf.mxu0
  %v4397 = vadd.f32 %v4276, %v4396
  %v4398 = vpop.f32.mrf.mxu0
  %4399 = vmatprep.mubr.bf16.mxu0 0
  %4400 = vmatmul.mubr.bf16.gmra.mxu0 %v4319
  %v4401 = vpop.f32.mrf.mxu0
  %v4402 = vadd.f32 %v4276, %v4401
  %v4403 = vpop.f32.mrf.mxu0
  %v4404 = vpop.f32.mrf.mxu0
  %v4405 = vadd.f32 %v4276, %v4404
  %v4406 = vpop.f32.mrf.mxu0
  %4407 = vmatprep.mubr.bf16.mxu0 0
  %4408 = vmatmul.mubr.bf16.gmra.mxu0 %v4322
  %v4409 = vpop.f32.mrf.mxu0
  %v4410 = vadd.f32 %v4276, %v4409
  %v4411 = vpop.f32.mrf.mxu0
  %v4412 = vpop.f32.mrf.mxu0
  %v4413 = vadd.f32 %v4276, %v4412
  %v4414 = vpop.f32.mrf.mxu0
  %4415 = vmatprep.mubr.bf16.mxu0 0
  %4416 = vmatmul.mubr.bf16.gmra.mxu0 %v4325
  %v4417 = vpop.f32.mrf.mxu0
  %v4418 = vadd.f32 %v4276, %v4417
  %v4419 = vpop.f32.mrf.mxu0
  %v4420 = vpop.f32.mrf.mxu0
  %v4421 = vadd.f32 %v4276, %v4420
  %v4422 = vpop.f32.mrf.mxu0
  %4423 = vdwg.mxu0
  %4424 = vxpose.xlu0.b32.start [1/16] %v4362, 128
  %4425 = vxpose.xlu0.b32.cont [2/16] %v4365, 128
  %4426 = vxpose.xlu0.b32.cont [3/16] %v4370, 128
  %4427 = vxpose.xlu0.b32.cont [4/16] %v4373, 128
  %4428 = vxpose.xlu0.b32.cont [5/16] %v4378, 128
  %4429 = vxpose.xlu0.b32.cont [6/16] %v4381, 128
  %4430 = vxpose.xlu0.b32.cont [7/16] %v4386, 128
  %4431 = vxpose.xlu0.b32.cont [8/16] %v4389, 128
  %4432 = vxpose.xlu0.b32.cont [9/16] %v4394, 128
  %4433 = vxpose.xlu0.b32.cont [10/16] %v4397, 128
  %4434 = vxpose.xlu0.b32.cont [11/16] %v4402, 128
  %4435 = vxpose.xlu0.b32.cont [12/16] %v4405, 128
  %4436 = vxpose.xlu0.b32.cont [13/16] %v4410, 128
  %4437 = vxpose.xlu0.b32.cont [14/16] %v4413, 128
  %4438 = vxpose.xlu0.b32.cont [15/16] %v4418, 128
  %4439 = vxpose.xlu0.b32.end [16/16] %v4421, 128
  %v4440 = vpop.trf.xlu0
  %v4441 = vpop.trf.xlu0
  %v4442 = vpop.trf.xlu0
  %v4443 = vpop.trf.xlu0
  %v4444 = vpop.trf.xlu0
  %v4445 = vpop.trf.xlu0
  %v4446 = vpop.trf.xlu0
  %v4447 = vpop.trf.xlu0
  %v4448 = vpop.trf.xlu0
  %v4449 = vpop.trf.xlu0
  %v4450 = vpop.trf.xlu0
  %v4451 = vpop.trf.xlu0
  %v4452 = vpop.trf.xlu0
  %v4453 = vpop.trf.xlu0
  %v4454 = vpop.trf.xlu0
  %v4455 = vpop.trf.xlu0
  %4456 = vst [vmem:[%s7] sm:$0xff] %v4440
  %4457 = vst [vmem:[%s7 + $0x8] sm:$0xff] %v4441
  %4458 = vst [vmem:[%s7 + $0x10] sm:$0x1] %v4442
  %v4459 = vld [vmem:[#allocation2 + $0x100] sm:$0xff]
  %v4460 = vld [vmem:[#allocation2 + $0x108] sm:$0xff]
  %v4461 = vld [vmem:[#allocation2 + $0x110] sm:$0xff]
  %v4462 = vld [vmem:[#allocation2 + $0x118] sm:$0xff]
  %v4463 = vld [vmem:[#allocation2 + $0x120] sm:$0xff]
  %v4464 = vld [vmem:[#allocation2 + $0x128] sm:$0xff]
  %v4465 = vld [vmem:[#allocation2 + $0x130] sm:$0xff]
  %v4466 = vld [vmem:[#allocation2 + $0x138] sm:$0xff]
  %v4467 = vld [vmem:[#allocation2 + $0x140] sm:$0xff]
  %v4468 = vld [vmem:[#allocation2 + $0x148] sm:$0xff]
  %v4469 = vld [vmem:[#allocation2 + $0x150] sm:$0xff]
  %v4470 = vld [vmem:[#allocation2 + $0x158] sm:$0xff]
  %v4471 = vld [vmem:[#allocation2 + $0x160] sm:$0xff]
  %v4472 = vld [vmem:[#allocation2 + $0x168] sm:$0xff]
  %v4473 = vld [vmem:[#allocation2 + $0x170] sm:$0xff]
  %v4474 = vld [vmem:[#allocation2 + $0x178] sm:$0xff]
  %v4475 = vld [vmem:[#allocation2 + $0x180] sm:$0xff]
  %v4476 = vld [vmem:[#allocation2 + $0x188] sm:$0xff]
  %v4477 = vld [vmem:[#allocation2 + $0x190] sm:$0xff]
  %v4478 = vld [vmem:[#allocation2 + $0x198] sm:$0xff]
  %v4479 = vld [vmem:[#allocation2 + $0x1a0] sm:$0xff]
  %v4480 = vld [vmem:[#allocation2 + $0x1a8] sm:$0xff]
  %v4481 = vld [vmem:[#allocation2 + $0x1b0] sm:$0xff]
  %v4482 = vld [vmem:[#allocation2 + $0x1b8] sm:$0xff]
  %v4483 = vld [vmem:[#allocation2 + $0x1c0] sm:$0xff]
  %v4484 = vld [vmem:[#allocation2 + $0x1c8] sm:$0xff]
  %v4485 = vld [vmem:[#allocation2 + $0x1d0] sm:$0xff]
  %v4486 = vld [vmem:[#allocation2 + $0x1d8] sm:$0xff]
  %v4487 = vld [vmem:[#allocation2 + $0x1e0] sm:$0xff]
  %v4488 = vld [vmem:[#allocation2 + $0x1e8] sm:$0xff]
  %v4489 = vld [vmem:[#allocation2 + $0x1f0] sm:$0xff]
  %v4490 = vld [vmem:[#allocation2 + $0x1f8] sm:$0xff]
  %v4523 = vunpack.c.l.b16 %v4459
  %v4524 = vunpack.c.h.b16 %v4459
  %v4525 = vunpack.c.l.b16 %v4460
  %v4526 = vunpack.c.h.b16 %v4460
  %v4527 = vunpack.c.l.b16 %v4461
  %v4528 = vunpack.c.h.b16 %v4461
  %v4529 = vunpack.c.l.b16 %v4462
  %v4530 = vunpack.c.h.b16 %v4462
  %v4531 = vunpack.c.l.b16 %v4463
  %v4532 = vunpack.c.h.b16 %v4463
  %v4533 = vunpack.c.l.b16 %v4464
  %v4534 = vunpack.c.h.b16 %v4464
  %v4535 = vunpack.c.l.b16 %v4465
  %v4536 = vunpack.c.h.b16 %v4465
  %v4537 = vunpack.c.l.b16 %v4466
  %v4538 = vunpack.c.h.b16 %v4466
  %v4539 = vunpack.c.l.b16 %v4467
  %v4540 = vunpack.c.h.b16 %v4467
  %v4541 = vunpack.c.l.b16 %v4468
  %v4542 = vunpack.c.h.b16 %v4468
  %v4543 = vunpack.c.l.b16 %v4469
  %v4544 = vunpack.c.h.b16 %v4469
  %v4545 = vunpack.c.l.b16 %v4470
  %v4546 = vunpack.c.h.b16 %v4470
  %v4547 = vunpack.c.l.b16 %v4471
  %v4548 = vunpack.c.h.b16 %v4471
  %v4549 = vunpack.c.l.b16 %v4472
  %v4550 = vunpack.c.h.b16 %v4472
  %v4551 = vunpack.c.l.b16 %v4473
  %v4552 = vunpack.c.h.b16 %v4473
  %v4553 = vunpack.c.l.b16 %v4474
  %v4554 = vunpack.c.h.b16 %v4474
  %v4555 = vunpack.c.l.b16 %v4475
  %v4556 = vunpack.c.h.b16 %v4475
  %v4557 = vunpack.c.l.b16 %v4476
  %v4558 = vunpack.c.h.b16 %v4476
  %v4559 = vunpack.c.l.b16 %v4477
  %v4560 = vunpack.c.h.b16 %v4477
  %v4561 = vunpack.c.l.b16 %v4478
  %v4562 = vunpack.c.h.b16 %v4478
  %v4563 = vunpack.c.l.b16 %v4479
  %v4564 = vunpack.c.h.b16 %v4479
  %v4565 = vunpack.c.l.b16 %v4480
  %v4566 = vunpack.c.h.b16 %v4480
  %v4567 = vunpack.c.l.b16 %v4481
  %v4568 = vunpack.c.h.b16 %v4481
  %v4569 = vunpack.c.l.b16 %v4482
  %v4570 = vunpack.c.h.b16 %v4482
  %v4571 = vunpack.c.l.b16 %v4483
  %v4572 = vunpack.c.h.b16 %v4483
  %v4573 = vunpack.c.l.b16 %v4484
  %v4574 = vunpack.c.h.b16 %v4484
  %v4575 = vunpack.c.l.b16 %v4485
  %v4576 = vunpack.c.h.b16 %v4485
  %v4577 = vunpack.c.l.b16 %v4486
  %v4578 = vunpack.c.h.b16 %v4486
  %v4579 = vunpack.c.l.b16 %v4487
  %v4580 = vunpack.c.h.b16 %v4487
  %v4581 = vunpack.c.l.b16 %v4488
  %v4582 = vunpack.c.h.b16 %v4488
  %v4583 = vunpack.c.l.b16 %v4489
  %v4584 = vunpack.c.h.b16 %v4489
  %v4585 = vunpack.c.l.b16 %v4490
  %v4586 = vunpack.c.h.b16 %v4490
  %v4587 = vpack.c.b16 %v4527, %v4523
  %v4588 = vpack.c.b16 %v4528, %v4524
  %v4589 = vpack.c.b16 %v4529, %v4525
  %v4590 = vpack.c.b16 %v4530, %v4526
  %v4591 = vpack.c.b16 %v4535, %v4531
  %v4592 = vpack.c.b16 %v4536, %v4532
  %v4593 = vpack.c.b16 %v4537, %v4533
  %v4594 = vpack.c.b16 %v4538, %v4534
  %v4595 = vpack.c.b16 %v4543, %v4539
  %v4596 = vpack.c.b16 %v4544, %v4540
  %v4597 = vpack.c.b16 %v4545, %v4541
  %v4598 = vpack.c.b16 %v4546, %v4542
  %v4599 = vpack.c.b16 %v4551, %v4547
  %v4600 = vpack.c.b16 %v4552, %v4548
  %v4601 = vpack.c.b16 %v4553, %v4549
  %v4602 = vpack.c.b16 %v4554, %v4550
  %v4603 = vpack.c.b16 %v4559, %v4555
  %v4604 = vpack.c.b16 %v4560, %v4556
  %v4605 = vpack.c.b16 %v4561, %v4557
  %v4606 = vpack.c.b16 %v4562, %v4558
  %v4607 = vpack.c.b16 %v4567, %v4563
  %v4608 = vpack.c.b16 %v4568, %v4564
  %v4609 = vpack.c.b16 %v4569, %v4565
  %v4610 = vpack.c.b16 %v4570, %v4566
  %v4611 = vpack.c.b16 %v4575, %v4571
  %v4612 = vpack.c.b16 %v4576, %v4572
  %v4613 = vpack.c.b16 %v4577, %v4573
  %v4614 = vpack.c.b16 %v4578, %v4574
  %v4615 = vpack.c.b16 %v4583, %v4579
  %v4616 = vpack.c.b16 %v4584, %v4580
  %v4617 = vpack.c.b16 %v4585, %v4581
  %v4618 = vpack.c.b16 %v4586, %v4582
  %4651 = vmatprep.subr.bf16.mxu0 0
  %4652 = vmatpush1.bf16.msra.mxu0 %v3997
  %4653 = vmatprep.subr.bf16.mxu0 0
  %4654 = vmatpush1.bf16.msra.mxu0 %v3996
  %4655 = vmatprep.subr.bf16.mxu0 0
  %4656 = vmatpush1.bf16.msra.mxu0 %v3995
  %4657 = vmatprep.subr.bf16.mxu0 0
  %4658 = vmatpush1.bf16.msra.mxu0 %v3994
  %4659 = vmatprep.subr.bf16.mxu0 0
  %4660 = vmatpush1.bf16.msra.mxu0 %v3993
  %4661 = vmatprep.subr.bf16.mxu0 0
  %4662 = vmatpush1.bf16.msra.mxu0 %v3992
  %4663 = vmatprep.subr.bf16.mxu0 0
  %4664 = vmatpush1.bf16.msra.mxu0 %v3991
  %4665 = vmatprep.subr.bf16.mxu0 0
  %4666 = vmatpush1.bf16.msra.mxu0 %v3990
  %4667 = vmatprep.subr.bf16.mxu0 0
  %4668 = vmatpush2.bf16.msra.mxu0 %v4005
  %4669 = vmatprep.subr.bf16.mxu0 0
  %4670 = vmatpush2.bf16.msra.mxu0 %v4004
  %4671 = vmatprep.subr.bf16.mxu0 0
  %4672 = vmatpush2.bf16.msra.mxu0 %v4003
  %4673 = vmatprep.subr.bf16.mxu0 0
  %4674 = vmatpush2.bf16.msra.mxu0 %v4002
  %4675 = vmatprep.subr.bf16.mxu0 0
  %4676 = vmatpush2.bf16.msra.mxu0 %v4001
  %4677 = vmatprep.subr.bf16.mxu0 0
  %4678 = vmatpush2.bf16.msra.mxu0 %v4000
  %4679 = vmatprep.subr.bf16.mxu0 0
  %4680 = vmatpush2.bf16.msra.mxu0 %v3999
  %4681 = vmatprep.subr.bf16.mxu0 0
  %4682 = vmatpush2.bf16.msra.mxu0 %v3998
  %4683 = vmatprep.mubr.bf16.mxu0 %v4588
  %4684 = vmatmul.mubr.bf16.gmra.mxu0 %v4587
  %v4685 = vpop.f32.mrf.mxu0
  %v4686 = vadd.f32 %v3700, %v4685
  %v4687 = vpop.f32.mrf.mxu0
  %v4688 = vpop.f32.mrf.mxu0
  %v4689 = vadd.f32 %v3700, %v4688
  %v4690 = vpop.f32.mrf.mxu0
  %4691 = vmatprep.mubr.bf16.mxu0 %v4592
  %4692 = vmatmul.mubr.bf16.gmra.mxu0 %v4591
  %v4693 = vpop.f32.mrf.mxu0
  %v4694 = vadd.f32 %v3700, %v4693
  %v4695 = vpop.f32.mrf.mxu0
  %v4696 = vpop.f32.mrf.mxu0
  %v4697 = vadd.f32 %v3700, %v4696
  %v4698 = vpop.f32.mrf.mxu0
  %4699 = vmatprep.mubr.bf16.mxu0 %v4596
  %4700 = vmatmul.mubr.bf16.gmra.mxu0 %v4595
  %v4701 = vpop.f32.mrf.mxu0
  %v4702 = vadd.f32 %v3700, %v4701
  %v4703 = vpop.f32.mrf.mxu0
  %v4704 = vpop.f32.mrf.mxu0
  %v4705 = vadd.f32 %v3700, %v4704
  %v4706 = vpop.f32.mrf.mxu0
  %4707 = vmatprep.mubr.bf16.mxu0 %v4600
  %4708 = vmatmul.mubr.bf16.gmra.mxu0 %v4599
  %v4709 = vpop.f32.mrf.mxu0
  %v4710 = vadd.f32 %v3700, %v4709
  %v4711 = vpop.f32.mrf.mxu0
  %v4712 = vpop.f32.mrf.mxu0
  %v4713 = vadd.f32 %v3700, %v4712
  %v4714 = vpop.f32.mrf.mxu0
  %4715 = vmatprep.mubr.bf16.mxu0 %v4604
  %4716 = vmatmul.mubr.bf16.gmra.mxu0 %v4603
  %v4717 = vpop.f32.mrf.mxu0
  %v4718 = vadd.f32 %v3700, %v4717
  %v4719 = vpop.f32.mrf.mxu0
  %v4720 = vpop.f32.mrf.mxu0
  %v4721 = vadd.f32 %v3700, %v4720
  %v4722 = vpop.f32.mrf.mxu0
  %4723 = vmatprep.mubr.bf16.mxu0 %v4608
  %4724 = vmatmul.mubr.bf16.gmra.mxu0 %v4607
  %v4725 = vpop.f32.mrf.mxu0
  %v4726 = vadd.f32 %v3700, %v4725
  %v4727 = vpop.f32.mrf.mxu0
  %v4728 = vpop.f32.mrf.mxu0
  %v4729 = vadd.f32 %v3700, %v4728
  %v4730 = vpop.f32.mrf.mxu0
  %4731 = vmatprep.mubr.bf16.mxu0 %v4612
  %4732 = vmatmul.mubr.bf16.gmra.mxu0 %v4611
  %v4733 = vpop.f32.mrf.mxu0
  %v4734 = vadd.f32 %v3700, %v4733
  %v4735 = vpop.f32.mrf.mxu0
  %v4736 = vpop.f32.mrf.mxu0
  %v4737 = vadd.f32 %v3700, %v4736
  %v4738 = vpop.f32.mrf.mxu0
  %4739 = vmatprep.mubr.bf16.mxu0 %v4616
  %4740 = vmatmul.mubr.bf16.gmra.mxu0 %v4615
  %v4741 = vpop.f32.mrf.mxu0
  %v4742 = vadd.f32 %v3700, %v4741
  %v4743 = vpop.f32.mrf.mxu0
  %v4744 = vpop.f32.mrf.mxu0
  %v4745 = vadd.f32 %v3700, %v4744
  %v4746 = vpop.f32.mrf.mxu0
  %4747 = vdwg.mxu0
  %4748 = vmatprep.subr.bf16.mxu0 0
  %4749 = vmatpush1.bf16.msra.mxu0 %v4013
  %4750 = vmatprep.subr.bf16.mxu0 0
  %4751 = vmatpush1.bf16.msra.mxu0 %v4012
  %4752 = vmatprep.subr.bf16.mxu0 0
  %4753 = vmatpush1.bf16.msra.mxu0 %v4011
  %4754 = vmatprep.subr.bf16.mxu0 0
  %4755 = vmatpush1.bf16.msra.mxu0 %v4010
  %4756 = vmatprep.subr.bf16.mxu0 0
  %4757 = vmatpush1.bf16.msra.mxu0 %v4009
  %4758 = vmatprep.subr.bf16.mxu0 0
  %4759 = vmatpush1.bf16.msra.mxu0 %v4008
  %4760 = vmatprep.subr.bf16.mxu0 0
  %4761 = vmatpush1.bf16.msra.mxu0 %v4007
  %4762 = vmatprep.subr.bf16.mxu0 0
  %4763 = vmatpush1.bf16.msra.mxu0 %v4006
  %4764 = vmatprep.subr.bf16.mxu0 0
  %4765 = vmatpush2.bf16.msra.mxu0 %v4021
  %4766 = vmatprep.subr.bf16.mxu0 0
  %4767 = vmatpush2.bf16.msra.mxu0 %v4020
  %4768 = vmatprep.subr.bf16.mxu0 0
  %4769 = vmatpush2.bf16.msra.mxu0 %v4019
  %4770 = vmatprep.subr.bf16.mxu0 0
  %4771 = vmatpush2.bf16.msra.mxu0 %v4018
  %4772 = vmatprep.subr.bf16.mxu0 0
  %4773 = vmatpush2.bf16.msra.mxu0 %v4017
  %4774 = vmatprep.subr.bf16.mxu0 0
  %4775 = vmatpush2.bf16.msra.mxu0 %v4016
  %4776 = vmatprep.subr.bf16.mxu0 0
  %4777 = vmatpush2.bf16.msra.mxu0 %v4015
  %4778 = vmatprep.subr.bf16.mxu0 0
  %4779 = vmatpush2.bf16.msra.mxu0 %v4014
  %4780 = vmatprep.mubr.bf16.mxu0 %v4590
  %4781 = vmatmul.mubr.bf16.gmra.mxu0 %v4589
  %v4782 = vpop.f32.mrf.mxu0
  %v4783 = vadd.f32 %v4686, %v4782
  %v4784 = vpop.f32.mrf.mxu0
  %v4785 = vpop.f32.mrf.mxu0
  %v4786 = vadd.f32 %v4689, %v4785
  %v4787 = vpop.f32.mrf.mxu0
  %4788 = vmatprep.mubr.bf16.mxu0 %v4594
  %4789 = vmatmul.mubr.bf16.gmra.mxu0 %v4593
  %v4790 = vpop.f32.mrf.mxu0
  %v4791 = vadd.f32 %v4694, %v4790
  %v4792 = vpop.f32.mrf.mxu0
  %v4793 = vpop.f32.mrf.mxu0
  %v4794 = vadd.f32 %v4697, %v4793
  %v4795 = vpop.f32.mrf.mxu0
  %4796 = vmatprep.mubr.bf16.mxu0 %v4598
  %4797 = vmatmul.mubr.bf16.gmra.mxu0 %v4597
  %v4798 = vpop.f32.mrf.mxu0
  %v4799 = vadd.f32 %v4702, %v4798
  %v4800 = vpop.f32.mrf.mxu0
  %v4801 = vpop.f32.mrf.mxu0
  %v4802 = vadd.f32 %v4705, %v4801
  %v4803 = vpop.f32.mrf.mxu0
  %4804 = vmatprep.mubr.bf16.mxu0 %v4602
  %4805 = vmatmul.mubr.bf16.gmra.mxu0 %v4601
  %v4806 = vpop.f32.mrf.mxu0
  %v4807 = vadd.f32 %v4710, %v4806
  %v4808 = vpop.f32.mrf.mxu0
  %v4809 = vpop.f32.mrf.mxu0
  %v4810 = vadd.f32 %v4713, %v4809
  %v4811 = vpop.f32.mrf.mxu0
  %4812 = vmatprep.mubr.bf16.mxu0 %v4606
  %4813 = vmatmul.mubr.bf16.gmra.mxu0 %v4605
  %v4814 = vpop.f32.mrf.mxu0
  %v4815 = vadd.f32 %v4718, %v4814
  %v4816 = vpop.f32.mrf.mxu0
  %v4817 = vpop.f32.mrf.mxu0
  %v4818 = vadd.f32 %v4721, %v4817
  %v4819 = vpop.f32.mrf.mxu0
  %4820 = vmatprep.mubr.bf16.mxu0 %v4610
  %4821 = vmatmul.mubr.bf16.gmra.mxu0 %v4609
  %v4822 = vpop.f32.mrf.mxu0
  %v4823 = vadd.f32 %v4726, %v4822
  %v4824 = vpop.f32.mrf.mxu0
  %v4825 = vpop.f32.mrf.mxu0
  %v4826 = vadd.f32 %v4729, %v4825
  %v4827 = vpop.f32.mrf.mxu0
  %4828 = vmatprep.mubr.bf16.mxu0 %v4614
  %4829 = vmatmul.mubr.bf16.gmra.mxu0 %v4613
  %v4830 = vpop.f32.mrf.mxu0
  %v4831 = vadd.f32 %v4734, %v4830
  %v4832 = vpop.f32.mrf.mxu0
  %v4833 = vpop.f32.mrf.mxu0
  %v4834 = vadd.f32 %v4737, %v4833
  %v4835 = vpop.f32.mrf.mxu0
  %4836 = vmatprep.mubr.bf16.mxu0 %v4618
  %4837 = vmatmul.mubr.bf16.gmra.mxu0 %v4617
  %v4838 = vpop.f32.mrf.mxu0
  %v4839 = vadd.f32 %v4742, %v4838
  %v4840 = vpop.f32.mrf.mxu0
  %v4841 = vpop.f32.mrf.mxu0
  %v4842 = vadd.f32 %v4745, %v4841
  %v4843 = vpop.f32.mrf.mxu0
  %4844 = vdwg.mxu0
  %v4845 = vmax.f32 %v4783, 0.0
  %v4846 = vmax.f32 %v4786, 0.0
  %v4847 = vmax.f32 %v4791, 0.0
  %v4848 = vmax.f32 %v4794, 0.0
  %v4849 = vmax.f32 %v4799, 0.0
  %v4850 = vmax.f32 %v4802, 0.0
  %v4851 = vmax.f32 %v4807, 0.0
  %v4852 = vmax.f32 %v4810, 0.0
  %v4853 = vmax.f32 %v4815, 0.0
  %v4854 = vmax.f32 %v4818, 0.0
  %v4855 = vmax.f32 %v4823, 0.0
  %v4856 = vmax.f32 %v4826, 0.0
  %v4857 = vmax.f32 %v4831, 0.0
  %v4858 = vmax.f32 %v4834, 0.0
  %v4859 = vmax.f32 %v4839, 0.0
  %v4860 = vmax.f32 %v4842, 0.0
  %v4861 = vpack.c.bf16 %v4846, %v4845
  %v4862 = vpack.c.bf16 %v4848, %v4847
  %v4863 = vpack.c.bf16 %v4850, %v4849
  %v4864 = vpack.c.bf16 %v4852, %v4851
  %v4865 = vpack.c.bf16 %v4854, %v4853
  %v4866 = vpack.c.bf16 %v4856, %v4855
  %v4867 = vpack.c.bf16 %v4858, %v4857
  %v4868 = vpack.c.bf16 %v4860, %v4859
  %v4870 = vsel %vm4302, %v4861, 0
  %v4873 = vsel %vm4302, %v4862, 0
  %v4876 = vsel %vm4302, %v4863, 0
  %v4879 = vsel %vm4302, %v4864, 0
  %v4882 = vsel %vm4302, %v4865, 0
  %v4885 = vsel %vm4302, %v4866, 0
  %v4888 = vsel %vm4302, %v4867, 0
  %v4891 = vsel %vm4302, %v4868, 0
  %4893 = vmatprep.subr.bf16.mxu0 0
  %4894 = vmatpush1.bf16.msra.mxu0 0
  %4895 = vmatprep.subr.bf16.mxu0 0
  %4896 = vmatpush1.bf16.msra.mxu0 0
  %4897 = vmatprep.subr.bf16.mxu0 0
  %4898 = vmatpush1.bf16.msra.mxu0 0
  %4899 = vmatprep.subr.bf16.mxu0 0
  %4900 = vmatpush1.bf16.msra.mxu0 0
  %4901 = vmatprep.subr.bf16.mxu0 0
  %4902 = vmatpush1.bf16.msra.mxu0 %v4297
  %4903 = vmatprep.subr.bf16.mxu0 0
  %4904 = vmatpush1.bf16.msra.mxu0 %v4296
  %4905 = vmatprep.subr.bf16.mxu0 0
  %4906 = vmatpush1.bf16.msra.mxu0 %v4295
  %4907 = vmatprep.subr.bf16.mxu0 0
  %4908 = vmatpush1.bf16.msra.mxu0 %v4294
  %4909 = vmatprep.subr.bf16.mxu0 0
  %4910 = vmatpush2.bf16.msra.mxu0 0
  %4911 = vmatprep.subr.bf16.mxu0 0
  %4912 = vmatpush2.bf16.msra.mxu0 0
  %4913 = vmatprep.subr.bf16.mxu0 0
  %4914 = vmatpush2.bf16.msra.mxu0 0
  %4915 = vmatprep.subr.bf16.mxu0 0
  %4916 = vmatpush2.bf16.msra.mxu0 0
  %4917 = vmatprep.subr.bf16.mxu0 0
  %4918 = vmatpush2.bf16.msra.mxu0 0
  %4919 = vmatprep.subr.bf16.mxu0 0
  %4920 = vmatpush2.bf16.msra.mxu0 0
  %4921 = vmatprep.subr.bf16.mxu0 0
  %4922 = vmatpush2.bf16.msra.mxu0 0
  %4923 = vmatprep.subr.bf16.mxu0 0
  %4924 = vmatpush2.bf16.msra.mxu0 0
  %4925 = vmatprep.mubr.bf16.mxu0 0
  %4926 = vmatmul.mubr.bf16.gmra.mxu0 %v4870
  %v4927 = vpop.f32.mrf.mxu0
  %v4928 = vadd.f32 %v4276, %v4927
  %v4929 = vpop.f32.mrf.mxu0
  %v4930 = vpop.f32.mrf.mxu0
  %v4931 = vadd.f32 %v4276, %v4930
  %v4932 = vpop.f32.mrf.mxu0
  %4933 = vmatprep.mubr.bf16.mxu0 0
  %4934 = vmatmul.mubr.bf16.gmra.mxu0 %v4873
  %v4935 = vpop.f32.mrf.mxu0
  %v4936 = vadd.f32 %v4276, %v4935
  %v4937 = vpop.f32.mrf.mxu0
  %v4938 = vpop.f32.mrf.mxu0
  %v4939 = vadd.f32 %v4276, %v4938
  %v4940 = vpop.f32.mrf.mxu0
  %4941 = vmatprep.mubr.bf16.mxu0 0
  %4942 = vmatmul.mubr.bf16.gmra.mxu0 %v4876
  %v4943 = vpop.f32.mrf.mxu0
  %v4944 = vadd.f32 %v4276, %v4943
  %v4945 = vpop.f32.mrf.mxu0
  %v4946 = vpop.f32.mrf.mxu0
  %v4947 = vadd.f32 %v4276, %v4946
  %v4948 = vpop.f32.mrf.mxu0
  %4949 = vmatprep.mubr.bf16.mxu0 0
  %4950 = vmatmul.mubr.bf16.gmra.mxu0 %v4879
  %v4951 = vpop.f32.mrf.mxu0
  %v4952 = vadd.f32 %v4276, %v4951
  %v4953 = vpop.f32.mrf.mxu0
  %v4954 = vpop.f32.mrf.mxu0
  %v4955 = vadd.f32 %v4276, %v4954
  %v4956 = vpop.f32.mrf.mxu0
  %4957 = vmatprep.mubr.bf16.mxu0 0
  %4958 = vmatmul.mubr.bf16.gmra.mxu0 %v4882
  %v4959 = vpop.f32.mrf.mxu0
  %v4960 = vadd.f32 %v4276, %v4959
  %v4961 = vpop.f32.mrf.mxu0
  %v4962 = vpop.f32.mrf.mxu0
  %v4963 = vadd.f32 %v4276, %v4962
  %v4964 = vpop.f32.mrf.mxu0
  %4965 = vmatprep.mubr.bf16.mxu0 0
  %4966 = vmatmul.mubr.bf16.gmra.mxu0 %v4885
  %v4967 = vpop.f32.mrf.mxu0
  %v4968 = vadd.f32 %v4276, %v4967
  %v4969 = vpop.f32.mrf.mxu0
  %v4970 = vpop.f32.mrf.mxu0
  %v4971 = vadd.f32 %v4276, %v4970
  %v4972 = vpop.f32.mrf.mxu0
  %4973 = vmatprep.mubr.bf16.mxu0 0
  %4974 = vmatmul.mubr.bf16.gmra.mxu0 %v4888
  %v4975 = vpop.f32.mrf.mxu0
  %v4976 = vadd.f32 %v4276, %v4975
  %v4977 = vpop.f32.mrf.mxu0
  %v4978 = vpop.f32.mrf.mxu0
  %v4979 = vadd.f32 %v4276, %v4978
  %v4980 = vpop.f32.mrf.mxu0
  %4981 = vmatprep.mubr.bf16.mxu0 0
  %4982 = vmatmul.mubr.bf16.gmra.mxu0 %v4891
  %v4983 = vpop.f32.mrf.mxu0
  %v4984 = vadd.f32 %v4276, %v4983
  %v4985 = vpop.f32.mrf.mxu0
  %v4986 = vpop.f32.mrf.mxu0
  %v4987 = vadd.f32 %v4276, %v4986
  %v4988 = vpop.f32.mrf.mxu0
  %4989 = vdwg.mxu0
  %4990 = vxpose.xlu0.b32.start [1/16] %v4928, 128
  %4991 = vxpose.xlu0.b32.cont [2/16] %v4931, 128
  %4992 = vxpose.xlu0.b32.cont [3/16] %v4936, 128
  %4993 = vxpose.xlu0.b32.cont [4/16] %v4939, 128
  %4994 = vxpose.xlu0.b32.cont [5/16] %v4944, 128
  %4995 = vxpose.xlu0.b32.cont [6/16] %v4947, 128
  %4996 = vxpose.xlu0.b32.cont [7/16] %v4952, 128
  %4997 = vxpose.xlu0.b32.cont [8/16] %v4955, 128
  %4998 = vxpose.xlu0.b32.cont [9/16] %v4960, 128
  %4999 = vxpose.xlu0.b32.cont [10/16] %v4963, 128
  %5000 = vxpose.xlu0.b32.cont [11/16] %v4968, 128
  %5001 = vxpose.xlu0.b32.cont [12/16] %v4971, 128
  %5002 = vxpose.xlu0.b32.cont [13/16] %v4976, 128
  %5003 = vxpose.xlu0.b32.cont [14/16] %v4979, 128
  %5004 = vxpose.xlu0.b32.cont [15/16] %v4984, 128
  %5005 = vxpose.xlu0.b32.end [16/16] %v4987, 128
  %v5006 = vpop.trf.xlu0
  %v5007 = vpop.trf.xlu0
  %v5008 = vpop.trf.xlu0
  %v5009 = vpop.trf.xlu0
  %v5010 = vpop.trf.xlu0
  %v5011 = vpop.trf.xlu0
  %v5012 = vpop.trf.xlu0
  %v5013 = vpop.trf.xlu0
  %v5014 = vpop.trf.xlu0
  %v5015 = vpop.trf.xlu0
  %v5016 = vpop.trf.xlu0
  %v5017 = vpop.trf.xlu0
  %v5018 = vpop.trf.xlu0
  %v5019 = vpop.trf.xlu0
  %v5020 = vpop.trf.xlu0
  %v5021 = vpop.trf.xlu0
  %s5022 = scalar_lea.vmem %s7, 24
  %5023 = vst [vmem:[%s5022] sm:$0xff] %v5006
  %5024 = vst [vmem:[%s5022 + $0x8] sm:$0xff] %v5007
  %5025 = vst [vmem:[%s5022 + $0x10] sm:$0x1] %v5008
  %v5026 = vld [vmem:[#allocation2 + $0x200] sm:$0xff]
  %v5027 = vld [vmem:[#allocation2 + $0x208] sm:$0xff]
  %v5028 = vld [vmem:[#allocation2 + $0x210] sm:$0xff]
  %v5029 = vld [vmem:[#allocation2 + $0x218] sm:$0xff]
  %v5030 = vld [vmem:[#allocation2 + $0x220] sm:$0xff]
  %v5031 = vld [vmem:[#allocation2 + $0x228] sm:$0xff]
  %v5032 = vld [vmem:[#allocation2 + $0x230] sm:$0xff]
  %v5033 = vld [vmem:[#allocation2 + $0x238] sm:$0xff]
  %v5034 = vld [vmem:[#allocation2 + $0x240] sm:$0xff]
  %v5035 = vld [vmem:[#allocation2 + $0x248] sm:$0xff]
  %v5036 = vld [vmem:[#allocation2 + $0x250] sm:$0xff]
  %v5037 = vld [vmem:[#allocation2 + $0x258] sm:$0xff]
  %v5038 = vld [vmem:[#allocation2 + $0x260] sm:$0xff]
  %v5039 = vld [vmem:[#allocation2 + $0x268] sm:$0xff]
  %v5040 = vld [vmem:[#allocation2 + $0x270] sm:$0xff]
  %v5041 = vld [vmem:[#allocation2 + $0x278] sm:$0xff]
  %v5042 = vld [vmem:[#allocation2 + $0x280] sm:$0xff]
  %v5043 = vld [vmem:[#allocation2 + $0x288] sm:$0xff]
  %v5044 = vld [vmem:[#allocation2 + $0x290] sm:$0xff]
  %v5045 = vld [vmem:[#allocation2 + $0x298] sm:$0xff]
  %v5046 = vld [vmem:[#allocation2 + $0x2a0] sm:$0xff]
  %v5047 = vld [vmem:[#allocation2 + $0x2a8] sm:$0xff]
  %v5048 = vld [vmem:[#allocation2 + $0x2b0] sm:$0xff]
  %v5049 = vld [vmem:[#allocation2 + $0x2b8] sm:$0xff]
  %v5050 = vld [vmem:[#allocation2 + $0x2c0] sm:$0xff]
  %v5051 = vld [vmem:[#allocation2 + $0x2c8] sm:$0xff]
  %v5052 = vld [vmem:[#allocation2 + $0x2d0] sm:$0xff]
  %v5053 = vld [vmem:[#allocation2 + $0x2d8] sm:$0xff]
  %v5054 = vld [vmem:[#allocation2 + $0x2e0] sm:$0xff]
  %v5055 = vld [vmem:[#allocation2 + $0x2e8] sm:$0xff]
  %v5056 = vld [vmem:[#allocation2 + $0x2f0] sm:$0xff]
  %v5057 = vld [vmem:[#allocation2 + $0x2f8] sm:$0xff]
  %v5090 = vunpack.c.l.b16 %v5026
  %v5091 = vunpack.c.h.b16 %v5026
  %v5092 = vunpack.c.l.b16 %v5027
  %v5093 = vunpack.c.h.b16 %v5027
  %v5094 = vunpack.c.l.b16 %v5028
  %v5095 = vunpack.c.h.b16 %v5028
  %v5096 = vunpack.c.l.b16 %v5029
  %v5097 = vunpack.c.h.b16 %v5029
  %v5098 = vunpack.c.l.b16 %v5030
  %v5099 = vunpack.c.h.b16 %v5030
  %v5100 = vunpack.c.l.b16 %v5031
  %v5101 = vunpack.c.h.b16 %v5031
  %v5102 = vunpack.c.l.b16 %v5032
  %v5103 = vunpack.c.h.b16 %v5032
  %v5104 = vunpack.c.l.b16 %v5033
  %v5105 = vunpack.c.h.b16 %v5033
  %v5106 = vunpack.c.l.b16 %v5034
  %v5107 = vunpack.c.h.b16 %v5034
  %v5108 = vunpack.c.l.b16 %v5035
  %v5109 = vunpack.c.h.b16 %v5035
  %v5110 = vunpack.c.l.b16 %v5036
  %v5111 = vunpack.c.h.b16 %v5036
  %v5112 = vunpack.c.l.b16 %v5037
  %v5113 = vunpack.c.h.b16 %v5037
  %v5114 = vunpack.c.l.b16 %v5038
  %v5115 = vunpack.c.h.b16 %v5038
  %v5116 = vunpack.c.l.b16 %v5039
  %v5117 = vunpack.c.h.b16 %v5039
  %v5118 = vunpack.c.l.b16 %v5040
  %v5119 = vunpack.c.h.b16 %v5040
  %v5120 = vunpack.c.l.b16 %v5041
  %v5121 = vunpack.c.h.b16 %v5041
  %v5122 = vunpack.c.l.b16 %v5042
  %v5123 = vunpack.c.h.b16 %v5042
  %v5124 = vunpack.c.l.b16 %v5043
  %v5125 = vunpack.c.h.b16 %v5043
  %v5126 = vunpack.c.l.b16 %v5044
  %v5127 = vunpack.c.h.b16 %v5044
  %v5128 = vunpack.c.l.b16 %v5045
  %v5129 = vunpack.c.h.b16 %v5045
  %v5130 = vunpack.c.l.b16 %v5046
  %v5131 = vunpack.c.h.b16 %v5046
  %v5132 = vunpack.c.l.b16 %v5047
  %v5133 = vunpack.c.h.b16 %v5047
  %v5134 = vunpack.c.l.b16 %v5048
  %v5135 = vunpack.c.h.b16 %v5048
  %v5136 = vunpack.c.l.b16 %v5049
  %v5137 = vunpack.c.h.b16 %v5049
  %v5138 = vunpack.c.l.b16 %v5050
  %v5139 = vunpack.c.h.b16 %v5050
  %v5140 = vunpack.c.l.b16 %v5051
  %v5141 = vunpack.c.h.b16 %v5051
  %v5142 = vunpack.c.l.b16 %v5052
  %v5143 = vunpack.c.h.b16 %v5052
  %v5144 = vunpack.c.l.b16 %v5053
  %v5145 = vunpack.c.h.b16 %v5053
  %v5146 = vunpack.c.l.b16 %v5054
  %v5147 = vunpack.c.h.b16 %v5054
  %v5148 = vunpack.c.l.b16 %v5055
  %v5149 = vunpack.c.h.b16 %v5055
  %v5150 = vunpack.c.l.b16 %v5056
  %v5151 = vunpack.c.h.b16 %v5056
  %v5152 = vunpack.c.l.b16 %v5057
  %v5153 = vunpack.c.h.b16 %v5057
  %v5154 = vpack.c.b16 %v5094, %v5090
  %v5155 = vpack.c.b16 %v5095, %v5091
  %v5156 = vpack.c.b16 %v5096, %v5092
  %v5157 = vpack.c.b16 %v5097, %v5093
  %v5158 = vpack.c.b16 %v5102, %v5098
  %v5159 = vpack.c.b16 %v5103, %v5099
  %v5160 = vpack.c.b16 %v5104, %v5100
  %v5161 = vpack.c.b16 %v5105, %v5101
  %v5162 = vpack.c.b16 %v5110, %v5106
  %v5163 = vpack.c.b16 %v5111, %v5107
  %v5164 = vpack.c.b16 %v5112, %v5108
  %v5165 = vpack.c.b16 %v5113, %v5109
  %v5166 = vpack.c.b16 %v5118, %v5114
  %v5167 = vpack.c.b16 %v5119, %v5115
  %v5168 = vpack.c.b16 %v5120, %v5116
  %v5169 = vpack.c.b16 %v5121, %v5117
  %v5170 = vpack.c.b16 %v5126, %v5122
  %v5171 = vpack.c.b16 %v5127, %v5123
  %v5172 = vpack.c.b16 %v5128, %v5124
  %v5173 = vpack.c.b16 %v5129, %v5125
  %v5174 = vpack.c.b16 %v5134, %v5130
  %v5175 = vpack.c.b16 %v5135, %v5131
  %v5176 = vpack.c.b16 %v5136, %v5132
  %v5177 = vpack.c.b16 %v5137, %v5133
  %v5178 = vpack.c.b16 %v5142, %v5138
  %v5179 = vpack.c.b16 %v5143, %v5139
  %v5180 = vpack.c.b16 %v5144, %v5140
  %v5181 = vpack.c.b16 %v5145, %v5141
  %v5182 = vpack.c.b16 %v5150, %v5146
  %v5183 = vpack.c.b16 %v5151, %v5147
  %v5184 = vpack.c.b16 %v5152, %v5148
  %v5185 = vpack.c.b16 %v5153, %v5149
  %5218 = vmatprep.subr.bf16.mxu0 0
  %5219 = vmatpush1.bf16.msra.mxu0 %v3997
  %5220 = vmatprep.subr.bf16.mxu0 0
  %5221 = vmatpush1.bf16.msra.mxu0 %v3996
  %5222 = vmatprep.subr.bf16.mxu0 0
  %5223 = vmatpush1.bf16.msra.mxu0 %v3995
  %5224 = vmatprep.subr.bf16.mxu0 0
  %5225 = vmatpush1.bf16.msra.mxu0 %v3994
  %5226 = vmatprep.subr.bf16.mxu0 0
  %5227 = vmatpush1.bf16.msra.mxu0 %v3993
  %5228 = vmatprep.subr.bf16.mxu0 0
  %5229 = vmatpush1.bf16.msra.mxu0 %v3992
  %5230 = vmatprep.subr.bf16.mxu0 0
  %5231 = vmatpush1.bf16.msra.mxu0 %v3991
  %5232 = vmatprep.subr.bf16.mxu0 0
  %5233 = vmatpush1.bf16.msra.mxu0 %v3990
  %5234 = vmatprep.subr.bf16.mxu0 0
  %5235 = vmatpush2.bf16.msra.mxu0 %v4005
  %5236 = vmatprep.subr.bf16.mxu0 0
  %5237 = vmatpush2.bf16.msra.mxu0 %v4004
  %5238 = vmatprep.subr.bf16.mxu0 0
  %5239 = vmatpush2.bf16.msra.mxu0 %v4003
  %5240 = vmatprep.subr.bf16.mxu0 0
  %5241 = vmatpush2.bf16.msra.mxu0 %v4002
  %5242 = vmatprep.subr.bf16.mxu0 0
  %5243 = vmatpush2.bf16.msra.mxu0 %v4001
  %5244 = vmatprep.subr.bf16.mxu0 0
  %5245 = vmatpush2.bf16.msra.mxu0 %v4000
  %5246 = vmatprep.subr.bf16.mxu0 0
  %5247 = vmatpush2.bf16.msra.mxu0 %v3999
  %5248 = vmatprep.subr.bf16.mxu0 0
  %5249 = vmatpush2.bf16.msra.mxu0 %v3998
  %5250 = vmatprep.mubr.bf16.mxu0 %v5155
  %5251 = vmatmul.mubr.bf16.gmra.mxu0 %v5154
  %v5252 = vpop.f32.mrf.mxu0
  %v5253 = vadd.f32 %v3700, %v5252
  %v5254 = vpop.f32.mrf.mxu0
  %v5255 = vpop.f32.mrf.mxu0
  %v5256 = vadd.f32 %v3700, %v5255
  %v5257 = vpop.f32.mrf.mxu0
  %5258 = vmatprep.mubr.bf16.mxu0 %v5159
  %5259 = vmatmul.mubr.bf16.gmra.mxu0 %v5158
  %v5260 = vpop.f32.mrf.mxu0
  %v5261 = vadd.f32 %v3700, %v5260
  %v5262 = vpop.f32.mrf.mxu0
  %v5263 = vpop.f32.mrf.mxu0
  %v5264 = vadd.f32 %v3700, %v5263
  %v5265 = vpop.f32.mrf.mxu0
  %5266 = vmatprep.mubr.bf16.mxu0 %v5163
  %5267 = vmatmul.mubr.bf16.gmra.mxu0 %v5162
  %v5268 = vpop.f32.mrf.mxu0
  %v5269 = vadd.f32 %v3700, %v5268
  %v5270 = vpop.f32.mrf.mxu0
  %v5271 = vpop.f32.mrf.mxu0
  %v5272 = vadd.f32 %v3700, %v5271
  %v5273 = vpop.f32.mrf.mxu0
  %5274 = vmatprep.mubr.bf16.mxu0 %v5167
  %5275 = vmatmul.mubr.bf16.gmra.mxu0 %v5166
  %v5276 = vpop.f32.mrf.mxu0
  %v5277 = vadd.f32 %v3700, %v5276
  %v5278 = vpop.f32.mrf.mxu0
  %v5279 = vpop.f32.mrf.mxu0
  %v5280 = vadd.f32 %v3700, %v5279
  %v5281 = vpop.f32.mrf.mxu0
  %5282 = vmatprep.mubr.bf16.mxu0 %v5171
  %5283 = vmatmul.mubr.bf16.gmra.mxu0 %v5170
  %v5284 = vpop.f32.mrf.mxu0
  %v5285 = vadd.f32 %v3700, %v5284
  %v5286 = vpop.f32.mrf.mxu0
  %v5287 = vpop.f32.mrf.mxu0
  %v5288 = vadd.f32 %v3700, %v5287
  %v5289 = vpop.f32.mrf.mxu0
  %5290 = vmatprep.mubr.bf16.mxu0 %v5175
  %5291 = vmatmul.mubr.bf16.gmra.mxu0 %v5174
  %v5292 = vpop.f32.mrf.mxu0
  %v5293 = vadd.f32 %v3700, %v5292
  %v5294 = vpop.f32.mrf.mxu0
  %v5295 = vpop.f32.mrf.mxu0
  %v5296 = vadd.f32 %v3700, %v5295
  %v5297 = vpop.f32.mrf.mxu0
  %5298 = vmatprep.mubr.bf16.mxu0 %v5179
  %5299 = vmatmul.mubr.bf16.gmra.mxu0 %v5178
  %v5300 = vpop.f32.mrf.mxu0
  %v5301 = vadd.f32 %v3700, %v5300
  %v5302 = vpop.f32.mrf.mxu0
  %v5303 = vpop.f32.mrf.mxu0
  %v5304 = vadd.f32 %v3700, %v5303
  %v5305 = vpop.f32.mrf.mxu0
  %5306 = vmatprep.mubr.bf16.mxu0 %v5183
  %5307 = vmatmul.mubr.bf16.gmra.mxu0 %v5182
  %v5308 = vpop.f32.mrf.mxu0
  %v5309 = vadd.f32 %v3700, %v5308
  %v5310 = vpop.f32.mrf.mxu0
  %v5311 = vpop.f32.mrf.mxu0
  %v5312 = vadd.f32 %v3700, %v5311
  %v5313 = vpop.f32.mrf.mxu0
  %5314 = vdwg.mxu0
  %5315 = vmatprep.subr.bf16.mxu0 0
  %5316 = vmatpush1.bf16.msra.mxu0 %v4013
  %5317 = vmatprep.subr.bf16.mxu0 0
  %5318 = vmatpush1.bf16.msra.mxu0 %v4012
  %5319 = vmatprep.subr.bf16.mxu0 0
  %5320 = vmatpush1.bf16.msra.mxu0 %v4011
  %5321 = vmatprep.subr.bf16.mxu0 0
  %5322 = vmatpush1.bf16.msra.mxu0 %v4010
  %5323 = vmatprep.subr.bf16.mxu0 0
  %5324 = vmatpush1.bf16.msra.mxu0 %v4009
  %5325 = vmatprep.subr.bf16.mxu0 0
  %5326 = vmatpush1.bf16.msra.mxu0 %v4008
  %5327 = vmatprep.subr.bf16.mxu0 0
  %5328 = vmatpush1.bf16.msra.mxu0 %v4007
  %5329 = vmatprep.subr.bf16.mxu0 0
  %5330 = vmatpush1.bf16.msra.mxu0 %v4006
  %5331 = vmatprep.subr.bf16.mxu0 0
  %5332 = vmatpush2.bf16.msra.mxu0 %v4021
  %5333 = vmatprep.subr.bf16.mxu0 0
  %5334 = vmatpush2.bf16.msra.mxu0 %v4020
  %5335 = vmatprep.subr.bf16.mxu0 0
  %5336 = vmatpush2.bf16.msra.mxu0 %v4019
  %5337 = vmatprep.subr.bf16.mxu0 0
  %5338 = vmatpush2.bf16.msra.mxu0 %v4018
  %5339 = vmatprep.subr.bf16.mxu0 0
  %5340 = vmatpush2.bf16.msra.mxu0 %v4017
  %5341 = vmatprep.subr.bf16.mxu0 0
  %5342 = vmatpush2.bf16.msra.mxu0 %v4016
  %5343 = vmatprep.subr.bf16.mxu0 0
  %5344 = vmatpush2.bf16.msra.mxu0 %v4015
  %5345 = vmatprep.subr.bf16.mxu0 0
  %5346 = vmatpush2.bf16.msra.mxu0 %v4014
  %5347 = vmatprep.mubr.bf16.mxu0 %v5157
  %5348 = vmatmul.mubr.bf16.gmra.mxu0 %v5156
  %v5349 = vpop.f32.mrf.mxu0
  %v5350 = vadd.f32 %v5253, %v5349
  %v5351 = vpop.f32.mrf.mxu0
  %v5352 = vpop.f32.mrf.mxu0
  %v5353 = vadd.f32 %v5256, %v5352
  %v5354 = vpop.f32.mrf.mxu0
  %5355 = vmatprep.mubr.bf16.mxu0 %v5161
  %5356 = vmatmul.mubr.bf16.gmra.mxu0 %v5160
  %v5357 = vpop.f32.mrf.mxu0
  %v5358 = vadd.f32 %v5261, %v5357
  %v5359 = vpop.f32.mrf.mxu0
  %v5360 = vpop.f32.mrf.mxu0
  %v5361 = vadd.f32 %v5264, %v5360
  %v5362 = vpop.f32.mrf.mxu0
  %5363 = vmatprep.mubr.bf16.mxu0 %v5165
  %5364 = vmatmul.mubr.bf16.gmra.mxu0 %v5164
  %v5365 = vpop.f32.mrf.mxu0
  %v5366 = vadd.f32 %v5269, %v5365
  %v5367 = vpop.f32.mrf.mxu0
  %v5368 = vpop.f32.mrf.mxu0
  %v5369 = vadd.f32 %v5272, %v5368
  %v5370 = vpop.f32.mrf.mxu0
  %5371 = vmatprep.mubr.bf16.mxu0 %v5169
  %5372 = vmatmul.mubr.bf16.gmra.mxu0 %v5168
  %v5373 = vpop.f32.mrf.mxu0
  %v5374 = vadd.f32 %v5277, %v5373
  %v5375 = vpop.f32.mrf.mxu0
  %v5376 = vpop.f32.mrf.mxu0
  %v5377 = vadd.f32 %v5280, %v5376
  %v5378 = vpop.f32.mrf.mxu0
  %5379 = vmatprep.mubr.bf16.mxu0 %v5173
  %5380 = vmatmul.mubr.bf16.gmra.mxu0 %v5172
  %v5381 = vpop.f32.mrf.mxu0
  %v5382 = vadd.f32 %v5285, %v5381
  %v5383 = vpop.f32.mrf.mxu0
  %v5384 = vpop.f32.mrf.mxu0
  %v5385 = vadd.f32 %v5288, %v5384
  %v5386 = vpop.f32.mrf.mxu0
  %5387 = vmatprep.mubr.bf16.mxu0 %v5177
  %5388 = vmatmul.mubr.bf16.gmra.mxu0 %v5176
  %v5389 = vpop.f32.mrf.mxu0
  %v5390 = vadd.f32 %v5293, %v5389
  %v5391 = vpop.f32.mrf.mxu0
  %v5392 = vpop.f32.mrf.mxu0
  %v5393 = vadd.f32 %v5296, %v5392
  %v5394 = vpop.f32.mrf.mxu0
  %5395 = vmatprep.mubr.bf16.mxu0 %v5181
  %5396 = vmatmul.mubr.bf16.gmra.mxu0 %v5180
  %v5397 = vpop.f32.mrf.mxu0
  %v5398 = vadd.f32 %v5301, %v5397
  %v5399 = vpop.f32.mrf.mxu0
  %v5400 = vpop.f32.mrf.mxu0
  %v5401 = vadd.f32 %v5304, %v5400
  %v5402 = vpop.f32.mrf.mxu0
  %5403 = vmatprep.mubr.bf16.mxu0 %v5185
  %5404 = vmatmul.mubr.bf16.gmra.mxu0 %v5184
  %v5405 = vpop.f32.mrf.mxu0
  %v5406 = vadd.f32 %v5309, %v5405
  %v5407 = vpop.f32.mrf.mxu0
  %v5408 = vpop.f32.mrf.mxu0
  %v5409 = vadd.f32 %v5312, %v5408
  %v5410 = vpop.f32.mrf.mxu0
  %5411 = vdwg.mxu0
  %v5412 = vmax.f32 %v5350, 0.0
  %v5413 = vmax.f32 %v5353, 0.0
  %v5414 = vmax.f32 %v5358, 0.0
  %v5415 = vmax.f32 %v5361, 0.0
  %v5416 = vmax.f32 %v5366, 0.0
  %v5417 = vmax.f32 %v5369, 0.0
  %v5418 = vmax.f32 %v5374, 0.0
  %v5419 = vmax.f32 %v5377, 0.0
  %v5420 = vmax.f32 %v5382, 0.0
  %v5421 = vmax.f32 %v5385, 0.0
  %v5422 = vmax.f32 %v5390, 0.0
  %v5423 = vmax.f32 %v5393, 0.0
  %v5424 = vmax.f32 %v5398, 0.0
  %v5425 = vmax.f32 %v5401, 0.0
  %v5426 = vmax.f32 %v5406, 0.0
  %v5427 = vmax.f32 %v5409, 0.0
  %v5428 = vpack.c.bf16 %v5413, %v5412
  %v5429 = vpack.c.bf16 %v5415, %v5414
  %v5430 = vpack.c.bf16 %v5417, %v5416
  %v5431 = vpack.c.bf16 %v5419, %v5418
  %v5432 = vpack.c.bf16 %v5421, %v5420
  %v5433 = vpack.c.bf16 %v5423, %v5422
  %v5434 = vpack.c.bf16 %v5425, %v5424
  %v5435 = vpack.c.bf16 %v5427, %v5426
  %v5437 = vsel %vm4302, %v5428, 0
  %v5440 = vsel %vm4302, %v5429, 0
  %v5443 = vsel %vm4302, %v5430, 0
  %v5446 = vsel %vm4302, %v5431, 0
  %v5449 = vsel %vm4302, %v5432, 0
  %v5452 = vsel %vm4302, %v5433, 0
  %v5455 = vsel %vm4302, %v5434, 0
  %v5458 = vsel %vm4302, %v5435, 0
  %5460 = vmatprep.subr.bf16.mxu0 0
  %5461 = vmatpush1.bf16.msra.mxu0 0
  %5462 = vmatprep.subr.bf16.mxu0 0
  %5463 = vmatpush1.bf16.msra.mxu0 0
  %5464 = vmatprep.subr.bf16.mxu0 0
  %5465 = vmatpush1.bf16.msra.mxu0 0
  %5466 = vmatprep.subr.bf16.mxu0 0
  %5467 = vmatpush1.bf16.msra.mxu0 0
  %5468 = vmatprep.subr.bf16.mxu0 0
  %5469 = vmatpush1.bf16.msra.mxu0 %v4297
  %5470 = vmatprep.subr.bf16.mxu0 0
  %5471 = vmatpush1.bf16.msra.mxu0 %v4296
  %5472 = vmatprep.subr.bf16.mxu0 0
  %5473 = vmatpush1.bf16.msra.mxu0 %v4295
  %5474 = vmatprep.subr.bf16.mxu0 0
  %5475 = vmatpush1.bf16.msra.mxu0 %v4294
  %5476 = vmatprep.subr.bf16.mxu0 0
  %5477 = vmatpush2.bf16.msra.mxu0 0
  %5478 = vmatprep.subr.bf16.mxu0 0
  %5479 = vmatpush2.bf16.msra.mxu0 0
  %5480 = vmatprep.subr.bf16.mxu0 0
  %5481 = vmatpush2.bf16.msra.mxu0 0
  %5482 = vmatprep.subr.bf16.mxu0 0
  %5483 = vmatpush2.bf16.msra.mxu0 0
  %5484 = vmatprep.subr.bf16.mxu0 0
  %5485 = vmatpush2.bf16.msra.mxu0 0
  %5486 = vmatprep.subr.bf16.mxu0 0
  %5487 = vmatpush2.bf16.msra.mxu0 0
  %5488 = vmatprep.subr.bf16.mxu0 0
  %5489 = vmatpush2.bf16.msra.mxu0 0
  %5490 = vmatprep.subr.bf16.mxu0 0
  %5491 = vmatpush2.bf16.msra.mxu0 0
  %5492 = vmatprep.mubr.bf16.mxu0 0
  %5493 = vmatmul.mubr.bf16.gmra.mxu0 %v5437
  %v5494 = vpop.f32.mrf.mxu0
  %v5495 = vadd.f32 %v4276, %v5494
  %v5496 = vpop.f32.mrf.mxu0
  %v5497 = vpop.f32.mrf.mxu0
  %v5498 = vadd.f32 %v4276, %v5497
  %v5499 = vpop.f32.mrf.mxu0
  %5500 = vmatprep.mubr.bf16.mxu0 0
  %5501 = vmatmul.mubr.bf16.gmra.mxu0 %v5440
  %v5502 = vpop.f32.mrf.mxu0
  %v5503 = vadd.f32 %v4276, %v5502
  %v5504 = vpop.f32.mrf.mxu0
  %v5505 = vpop.f32.mrf.mxu0
  %v5506 = vadd.f32 %v4276, %v5505
  %v5507 = vpop.f32.mrf.mxu0
  %5508 = vmatprep.mubr.bf16.mxu0 0
  %5509 = vmatmul.mubr.bf16.gmra.mxu0 %v5443
  %v5510 = vpop.f32.mrf.mxu0
  %v5511 = vadd.f32 %v4276, %v5510
  %v5512 = vpop.f32.mrf.mxu0
  %v5513 = vpop.f32.mrf.mxu0
  %v5514 = vadd.f32 %v4276, %v5513
  %v5515 = vpop.f32.mrf.mxu0
  %5516 = vmatprep.mubr.bf16.mxu0 0
  %5517 = vmatmul.mubr.bf16.gmra.mxu0 %v5446
  %v5518 = vpop.f32.mrf.mxu0
  %v5519 = vadd.f32 %v4276, %v5518
  %v5520 = vpop.f32.mrf.mxu0
  %v5521 = vpop.f32.mrf.mxu0
  %v5522 = vadd.f32 %v4276, %v5521
  %v5523 = vpop.f32.mrf.mxu0
  %5524 = vmatprep.mubr.bf16.mxu0 0
  %5525 = vmatmul.mubr.bf16.gmra.mxu0 %v5449
  %v5526 = vpop.f32.mrf.mxu0
  %v5527 = vadd.f32 %v4276, %v5526
  %v5528 = vpop.f32.mrf.mxu0
  %v5529 = vpop.f32.mrf.mxu0
  %v5530 = vadd.f32 %v4276, %v5529
  %v5531 = vpop.f32.mrf.mxu0
  %5532 = vmatprep.mubr.bf16.mxu0 0
  %5533 = vmatmul.mubr.bf16.gmra.mxu0 %v5452
  %v5534 = vpop.f32.mrf.mxu0
  %v5535 = vadd.f32 %v4276, %v5534
  %v5536 = vpop.f32.mrf.mxu0
  %v5537 = vpop.f32.mrf.mxu0
  %v5538 = vadd.f32 %v4276, %v5537
  %v5539 = vpop.f32.mrf.mxu0
  %5540 = vmatprep.mubr.bf16.mxu0 0
  %5541 = vmatmul.mubr.bf16.gmra.mxu0 %v5455
  %v5542 = vpop.f32.mrf.mxu0
  %v5543 = vadd.f32 %v4276, %v5542
  %v5544 = vpop.f32.mrf.mxu0
  %v5545 = vpop.f32.mrf.mxu0
  %v5546 = vadd.f32 %v4276, %v5545
  %v5547 = vpop.f32.mrf.mxu0
  %5548 = vmatprep.mubr.bf16.mxu0 0
  %5549 = vmatmul.mubr.bf16.gmra.mxu0 %v5458
  %v5550 = vpop.f32.mrf.mxu0
  %v5551 = vadd.f32 %v4276, %v5550
  %v5552 = vpop.f32.mrf.mxu0
  %v5553 = vpop.f32.mrf.mxu0
  %v5554 = vadd.f32 %v4276, %v5553
  %v5555 = vpop.f32.mrf.mxu0
  %5556 = vdwg.mxu0
  %5557 = vxpose.xlu0.b32.start [1/16] %v5495, 128
  %5558 = vxpose.xlu0.b32.cont [2/16] %v5498, 128
  %5559 = vxpose.xlu0.b32.cont [3/16] %v5503, 128
  %5560 = vxpose.xlu0.b32.cont [4/16] %v5506, 128
  %5561 = vxpose.xlu0.b32.cont [5/16] %v5511, 128
  %5562 = vxpose.xlu0.b32.cont [6/16] %v5514, 128
  %5563 = vxpose.xlu0.b32.cont [7/16] %v5519, 128
  %5564 = vxpose.xlu0.b32.cont [8/16] %v5522, 128
  %5565 = vxpose.xlu0.b32.cont [9/16] %v5527, 128
  %5566 = vxpose.xlu0.b32.cont [10/16] %v5530, 128
  %5567 = vxpose.xlu0.b32.cont [11/16] %v5535, 128
  %5568 = vxpose.xlu0.b32.cont [12/16] %v5538, 128
  %5569 = vxpose.xlu0.b32.cont [13/16] %v5543, 128
  %5570 = vxpose.xlu0.b32.cont [14/16] %v5546, 128
  %5571 = vxpose.xlu0.b32.cont [15/16] %v5551, 128
  %5572 = vxpose.xlu0.b32.end [16/16] %v5554, 128
  %v5573 = vpop.trf.xlu0
  %v5574 = vpop.trf.xlu0
  %v5575 = vpop.trf.xlu0
  %v5576 = vpop.trf.xlu0
  %v5577 = vpop.trf.xlu0
  %v5578 = vpop.trf.xlu0
  %v5579 = vpop.trf.xlu0
  %v5580 = vpop.trf.xlu0
  %v5581 = vpop.trf.xlu0
  %v5582 = vpop.trf.xlu0
  %v5583 = vpop.trf.xlu0
  %v5584 = vpop.trf.xlu0
  %v5585 = vpop.trf.xlu0
  %v5586 = vpop.trf.xlu0
  %v5587 = vpop.trf.xlu0
  %v5588 = vpop.trf.xlu0
  %s5589 = scalar_lea.vmem %s7, 48
  %5590 = vst [vmem:[%s5589] sm:$0xff] %v5573
  %5591 = vst [vmem:[%s5589 + $0x8] sm:$0xff] %v5574
  %5592 = vst [vmem:[%s5589 + $0x10] sm:$0x1] %v5575
  %v5593 = vld [vmem:[#allocation2 + $0x300] sm:$0xff]
  %v5594 = vld [vmem:[#allocation2 + $0x308] sm:$0xff]
  %v5595 = vld [vmem:[#allocation2 + $0x310] sm:$0xff]
  %v5596 = vld [vmem:[#allocation2 + $0x318] sm:$0xff]
  %v5597 = vld [vmem:[#allocation2 + $0x320] sm:$0xff]
  %v5598 = vld [vmem:[#allocation2 + $0x328] sm:$0xff]
  %v5599 = vld [vmem:[#allocation2 + $0x330] sm:$0xff]
  %v5600 = vld [vmem:[#allocation2 + $0x338] sm:$0xff]
  %v5601 = vld [vmem:[#allocation2 + $0x340] sm:$0xff]
  %v5602 = vld [vmem:[#allocation2 + $0x348] sm:$0xff]
  %v5603 = vld [vmem:[#allocation2 + $0x350] sm:$0xff]
  %v5604 = vld [vmem:[#allocation2 + $0x358] sm:$0xff]
  %v5605 = vld [vmem:[#allocation2 + $0x360] sm:$0xff]
  %v5606 = vld [vmem:[#allocation2 + $0x368] sm:$0xff]
  %v5607 = vld [vmem:[#allocation2 + $0x370] sm:$0xff]
  %v5608 = vld [vmem:[#allocation2 + $0x378] sm:$0xff]
  %v5609 = vld [vmem:[#allocation2 + $0x380] sm:$0xff]
  %v5610 = vld [vmem:[#allocation2 + $0x388] sm:$0xff]
  %v5611 = vld [vmem:[#allocation2 + $0x390] sm:$0xff]
  %v5612 = vld [vmem:[#allocation2 + $0x398] sm:$0xff]
  %v5613 = vld [vmem:[#allocation2 + $0x3a0] sm:$0xff]
  %v5614 = vld [vmem:[#allocation2 + $0x3a8] sm:$0xff]
  %v5615 = vld [vmem:[#allocation2 + $0x3b0] sm:$0xff]
  %v5616 = vld [vmem:[#allocation2 + $0x3b8] sm:$0xff]
  %v5617 = vld [vmem:[#allocation2 + $0x3c0] sm:$0xff]
  %v5618 = vld [vmem:[#allocation2 + $0x3c8] sm:$0xff]
  %v5619 = vld [vmem:[#allocation2 + $0x3d0] sm:$0xff]
  %v5620 = vld [vmem:[#allocation2 + $0x3d8] sm:$0xff]
  %v5621 = vld [vmem:[#allocation2 + $0x3e0] sm:$0xff]
  %v5622 = vld [vmem:[#allocation2 + $0x3e8] sm:$0xff]
  %v5623 = vld [vmem:[#allocation2 + $0x3f0] sm:$0xff]
  %v5624 = vld [vmem:[#allocation2 + $0x3f8] sm:$0xff]
  %v5657 = vunpack.c.l.b16 %v5593
  %v5658 = vunpack.c.h.b16 %v5593
  %v5659 = vunpack.c.l.b16 %v5594
  %v5660 = vunpack.c.h.b16 %v5594
  %v5661 = vunpack.c.l.b16 %v5595
  %v5662 = vunpack.c.h.b16 %v5595
  %v5663 = vunpack.c.l.b16 %v5596
  %v5664 = vunpack.c.h.b16 %v5596
  %v5665 = vunpack.c.l.b16 %v5597
  %v5666 = vunpack.c.h.b16 %v5597
  %v5667 = vunpack.c.l.b16 %v5598
  %v5668 = vunpack.c.h.b16 %v5598
  %v5669 = vunpack.c.l.b16 %v5599
  %v5670 = vunpack.c.h.b16 %v5599
  %v5671 = vunpack.c.l.b16 %v5600
  %v5672 = vunpack.c.h.b16 %v5600
  %v5673 = vunpack.c.l.b16 %v5601
  %v5674 = vunpack.c.h.b16 %v5601
  %v5675 = vunpack.c.l.b16 %v5602
  %v5676 = vunpack.c.h.b16 %v5602
  %v5677 = vunpack.c.l.b16 %v5603
  %v5678 = vunpack.c.h.b16 %v5603
  %v5679 = vunpack.c.l.b16 %v5604
  %v5680 = vunpack.c.h.b16 %v5604
  %v5681 = vunpack.c.l.b16 %v5605
  %v5682 = vunpack.c.h.b16 %v5605
  %v5683 = vunpack.c.l.b16 %v5606
  %v5684 = vunpack.c.h.b16 %v5606
  %v5685 = vunpack.c.l.b16 %v5607
  %v5686 = vunpack.c.h.b16 %v5607
  %v5687 = vunpack.c.l.b16 %v5608
  %v5688 = vunpack.c.h.b16 %v5608
  %v5689 = vunpack.c.l.b16 %v5609
  %v5690 = vunpack.c.h.b16 %v5609
  %v5691 = vunpack.c.l.b16 %v5610
  %v5692 = vunpack.c.h.b16 %v5610
  %v5693 = vunpack.c.l.b16 %v5611
  %v5694 = vunpack.c.h.b16 %v5611
  %v5695 = vunpack.c.l.b16 %v5612
  %v5696 = vunpack.c.h.b16 %v5612
  %v5697 = vunpack.c.l.b16 %v5613
  %v5698 = vunpack.c.h.b16 %v5613
  %v5699 = vunpack.c.l.b16 %v5614
  %v5700 = vunpack.c.h.b16 %v5614
  %v5701 = vunpack.c.l.b16 %v5615
  %v5702 = vunpack.c.h.b16 %v5615
  %v5703 = vunpack.c.l.b16 %v5616
  %v5704 = vunpack.c.h.b16 %v5616
  %v5705 = vunpack.c.l.b16 %v5617
  %v5706 = vunpack.c.h.b16 %v5617
  %v5707 = vunpack.c.l.b16 %v5618
  %v5708 = vunpack.c.h.b16 %v5618
  %v5709 = vunpack.c.l.b16 %v5619
  %v5710 = vunpack.c.h.b16 %v5619
  %v5711 = vunpack.c.l.b16 %v5620
  %v5712 = vunpack.c.h.b16 %v5620
  %v5713 = vunpack.c.l.b16 %v5621
  %v5714 = vunpack.c.h.b16 %v5621
  %v5715 = vunpack.c.l.b16 %v5622
  %v5716 = vunpack.c.h.b16 %v5622
  %v5717 = vunpack.c.l.b16 %v5623
  %v5718 = vunpack.c.h.b16 %v5623
  %v5719 = vunpack.c.l.b16 %v5624
  %v5720 = vunpack.c.h.b16 %v5624
  %v5721 = vpack.c.b16 %v5661, %v5657
  %v5722 = vpack.c.b16 %v5662, %v5658
  %v5723 = vpack.c.b16 %v5663, %v5659
  %v5724 = vpack.c.b16 %v5664, %v5660
  %v5725 = vpack.c.b16 %v5669, %v5665
  %v5726 = vpack.c.b16 %v5670, %v5666
  %v5727 = vpack.c.b16 %v5671, %v5667
  %v5728 = vpack.c.b16 %v5672, %v5668
  %v5729 = vpack.c.b16 %v5677, %v5673
  %v5730 = vpack.c.b16 %v5678, %v5674
  %v5731 = vpack.c.b16 %v5679, %v5675
  %v5732 = vpack.c.b16 %v5680, %v5676
  %v5733 = vpack.c.b16 %v5685, %v5681
  %v5734 = vpack.c.b16 %v5686, %v5682
  %v5735 = vpack.c.b16 %v5687, %v5683
  %v5736 = vpack.c.b16 %v5688, %v5684
  %v5737 = vpack.c.b16 %v5693, %v5689
  %v5738 = vpack.c.b16 %v5694, %v5690
  %v5739 = vpack.c.b16 %v5695, %v5691
  %v5740 = vpack.c.b16 %v5696, %v5692
  %v5741 = vpack.c.b16 %v5701, %v5697
  %v5742 = vpack.c.b16 %v5702, %v5698
  %v5743 = vpack.c.b16 %v5703, %v5699
  %v5744 = vpack.c.b16 %v5704, %v5700
  %v5745 = vpack.c.b16 %v5709, %v5705
  %v5746 = vpack.c.b16 %v5710, %v5706
  %v5747 = vpack.c.b16 %v5711, %v5707
  %v5748 = vpack.c.b16 %v5712, %v5708
  %v5749 = vpack.c.b16 %v5717, %v5713
  %v5750 = vpack.c.b16 %v5718, %v5714
  %v5751 = vpack.c.b16 %v5719, %v5715
  %v5752 = vpack.c.b16 %v5720, %v5716
  %5785 = vmatprep.subr.bf16.mxu0 0
  %5786 = vmatpush1.bf16.msra.mxu0 %v3997
  %5787 = vmatprep.subr.bf16.mxu0 0
  %5788 = vmatpush1.bf16.msra.mxu0 %v3996
  %5789 = vmatprep.subr.bf16.mxu0 0
  %5790 = vmatpush1.bf16.msra.mxu0 %v3995
  %5791 = vmatprep.subr.bf16.mxu0 0
  %5792 = vmatpush1.bf16.msra.mxu0 %v3994
  %5793 = vmatprep.subr.bf16.mxu0 0
  %5794 = vmatpush1.bf16.msra.mxu0 %v3993
  %5795 = vmatprep.subr.bf16.mxu0 0
  %5796 = vmatpush1.bf16.msra.mxu0 %v3992
  %5797 = vmatprep.subr.bf16.mxu0 0
  %5798 = vmatpush1.bf16.msra.mxu0 %v3991
  %5799 = vmatprep.subr.bf16.mxu0 0
  %5800 = vmatpush1.bf16.msra.mxu0 %v3990
  %5801 = vmatprep.subr.bf16.mxu0 0
  %5802 = vmatpush2.bf16.msra.mxu0 %v4005
  %5803 = vmatprep.subr.bf16.mxu0 0
  %5804 = vmatpush2.bf16.msra.mxu0 %v4004
  %5805 = vmatprep.subr.bf16.mxu0 0
  %5806 = vmatpush2.bf16.msra.mxu0 %v4003
  %5807 = vmatprep.subr.bf16.mxu0 0
  %5808 = vmatpush2.bf16.msra.mxu0 %v4002
  %5809 = vmatprep.subr.bf16.mxu0 0
  %5810 = vmatpush2.bf16.msra.mxu0 %v4001
  %5811 = vmatprep.subr.bf16.mxu0 0
  %5812 = vmatpush2.bf16.msra.mxu0 %v4000
  %5813 = vmatprep.subr.bf16.mxu0 0
  %5814 = vmatpush2.bf16.msra.mxu0 %v3999
  %5815 = vmatprep.subr.bf16.mxu0 0
  %5816 = vmatpush2.bf16.msra.mxu0 %v3998
  %5817 = vmatprep.mubr.bf16.mxu0 %v5722
  %5818 = vmatmul.mubr.bf16.gmra.mxu0 %v5721
  %v5819 = vpop.f32.mrf.mxu0
  %v5820 = vadd.f32 %v3700, %v5819
  %v5821 = vpop.f32.mrf.mxu0
  %v5822 = vpop.f32.mrf.mxu0
  %v5823 = vadd.f32 %v3700, %v5822
  %v5824 = vpop.f32.mrf.mxu0
  %5825 = vmatprep.mubr.bf16.mxu0 %v5726
  %5826 = vmatmul.mubr.bf16.gmra.mxu0 %v5725
  %v5827 = vpop.f32.mrf.mxu0
  %v5828 = vadd.f32 %v3700, %v5827
  %v5829 = vpop.f32.mrf.mxu0
  %v5830 = vpop.f32.mrf.mxu0
  %v5831 = vadd.f32 %v3700, %v5830
  %v5832 = vpop.f32.mrf.mxu0
  %5833 = vmatprep.mubr.bf16.mxu0 %v5730
  %5834 = vmatmul.mubr.bf16.gmra.mxu0 %v5729
  %v5835 = vpop.f32.mrf.mxu0
  %v5836 = vadd.f32 %v3700, %v5835
  %v5837 = vpop.f32.mrf.mxu0
  %v5838 = vpop.f32.mrf.mxu0
  %v5839 = vadd.f32 %v3700, %v5838
  %v5840 = vpop.f32.mrf.mxu0
  %5841 = vmatprep.mubr.bf16.mxu0 %v5734
  %5842 = vmatmul.mubr.bf16.gmra.mxu0 %v5733
  %v5843 = vpop.f32.mrf.mxu0
  %v5844 = vadd.f32 %v3700, %v5843
  %v5845 = vpop.f32.mrf.mxu0
  %v5846 = vpop.f32.mrf.mxu0
  %v5847 = vadd.f32 %v3700, %v5846
  %v5848 = vpop.f32.mrf.mxu0
  %5849 = vmatprep.mubr.bf16.mxu0 %v5738
  %5850 = vmatmul.mubr.bf16.gmra.mxu0 %v5737
  %v5851 = vpop.f32.mrf.mxu0
  %v5852 = vadd.f32 %v3700, %v5851
  %v5853 = vpop.f32.mrf.mxu0
  %v5854 = vpop.f32.mrf.mxu0
  %v5855 = vadd.f32 %v3700, %v5854
  %v5856 = vpop.f32.mrf.mxu0
  %5857 = vmatprep.mubr.bf16.mxu0 %v5742
  %5858 = vmatmul.mubr.bf16.gmra.mxu0 %v5741
  %v5859 = vpop.f32.mrf.mxu0
  %v5860 = vadd.f32 %v3700, %v5859
  %v5861 = vpop.f32.mrf.mxu0
  %v5862 = vpop.f32.mrf.mxu0
  %v5863 = vadd.f32 %v3700, %v5862
  %v5864 = vpop.f32.mrf.mxu0
  %5865 = vmatprep.mubr.bf16.mxu0 %v5746
  %5866 = vmatmul.mubr.bf16.gmra.mxu0 %v5745
  %v5867 = vpop.f32.mrf.mxu0
  %v5868 = vadd.f32 %v3700, %v5867
  %v5869 = vpop.f32.mrf.mxu0
  %v5870 = vpop.f32.mrf.mxu0
  %v5871 = vadd.f32 %v3700, %v5870
  %v5872 = vpop.f32.mrf.mxu0
  %5873 = vmatprep.mubr.bf16.mxu0 %v5750
  %5874 = vmatmul.mubr.bf16.gmra.mxu0 %v5749
  %v5875 = vpop.f32.mrf.mxu0
  %v5876 = vadd.f32 %v3700, %v5875
  %v5877 = vpop.f32.mrf.mxu0
  %v5878 = vpop.f32.mrf.mxu0
  %v5879 = vadd.f32 %v3700, %v5878
  %v5880 = vpop.f32.mrf.mxu0
  %5881 = vdwg.mxu0
  %5882 = vmatprep.subr.bf16.mxu0 0
  %5883 = vmatpush1.bf16.msra.mxu0 %v4013
  %5884 = vmatprep.subr.bf16.mxu0 0
  %5885 = vmatpush1.bf16.msra.mxu0 %v4012
  %5886 = vmatprep.subr.bf16.mxu0 0
  %5887 = vmatpush1.bf16.msra.mxu0 %v4011
  %5888 = vmatprep.subr.bf16.mxu0 0
  %5889 = vmatpush1.bf16.msra.mxu0 %v4010
  %5890 = vmatprep.subr.bf16.mxu0 0
  %5891 = vmatpush1.bf16.msra.mxu0 %v4009
  %5892 = vmatprep.subr.bf16.mxu0 0
  %5893 = vmatpush1.bf16.msra.mxu0 %v4008
  %5894 = vmatprep.subr.bf16.mxu0 0
  %5895 = vmatpush1.bf16.msra.mxu0 %v4007
  %5896 = vmatprep.subr.bf16.mxu0 0
  %5897 = vmatpush1.bf16.msra.mxu0 %v4006
  %5898 = vmatprep.subr.bf16.mxu0 0
  %5899 = vmatpush2.bf16.msra.mxu0 %v4021
  %5900 = vmatprep.subr.bf16.mxu0 0
  %5901 = vmatpush2.bf16.msra.mxu0 %v4020
  %5902 = vmatprep.subr.bf16.mxu0 0
  %5903 = vmatpush2.bf16.msra.mxu0 %v4019
  %5904 = vmatprep.subr.bf16.mxu0 0
  %5905 = vmatpush2.bf16.msra.mxu0 %v4018
  %5906 = vmatprep.subr.bf16.mxu0 0
  %5907 = vmatpush2.bf16.msra.mxu0 %v4017
  %5908 = vmatprep.subr.bf16.mxu0 0
  %5909 = vmatpush2.bf16.msra.mxu0 %v4016
  %5910 = vmatprep.subr.bf16.mxu0 0
  %5911 = vmatpush2.bf16.msra.mxu0 %v4015
  %5912 = vmatprep.subr.bf16.mxu0 0
  %5913 = vmatpush2.bf16.msra.mxu0 %v4014
  %5914 = vmatprep.mubr.bf16.mxu0 %v5724
  %5915 = vmatmul.mubr.bf16.gmra.mxu0 %v5723
  %v5916 = vpop.f32.mrf.mxu0
  %v5917 = vadd.f32 %v5820, %v5916
  %v5918 = vpop.f32.mrf.mxu0
  %v5919 = vpop.f32.mrf.mxu0
  %v5920 = vadd.f32 %v5823, %v5919
  %v5921 = vpop.f32.mrf.mxu0
  %5922 = vmatprep.mubr.bf16.mxu0 %v5728
  %5923 = vmatmul.mubr.bf16.gmra.mxu0 %v5727
  %v5924 = vpop.f32.mrf.mxu0
  %v5925 = vadd.f32 %v5828, %v5924
  %v5926 = vpop.f32.mrf.mxu0
  %v5927 = vpop.f32.mrf.mxu0
  %v5928 = vadd.f32 %v5831, %v5927
  %v5929 = vpop.f32.mrf.mxu0
  %5930 = vmatprep.mubr.bf16.mxu0 %v5732
  %5931 = vmatmul.mubr.bf16.gmra.mxu0 %v5731
  %v5932 = vpop.f32.mrf.mxu0
  %v5933 = vadd.f32 %v5836, %v5932
  %v5934 = vpop.f32.mrf.mxu0
  %v5935 = vpop.f32.mrf.mxu0
  %v5936 = vadd.f32 %v5839, %v5935
  %v5937 = vpop.f32.mrf.mxu0
  %5938 = vmatprep.mubr.bf16.mxu0 %v5736
  %5939 = vmatmul.mubr.bf16.gmra.mxu0 %v5735
  %v5940 = vpop.f32.mrf.mxu0
  %v5941 = vadd.f32 %v5844, %v5940
  %v5942 = vpop.f32.mrf.mxu0
  %v5943 = vpop.f32.mrf.mxu0
  %v5944 = vadd.f32 %v5847, %v5943
  %v5945 = vpop.f32.mrf.mxu0
  %5946 = vmatprep.mubr.bf16.mxu0 %v5740
  %5947 = vmatmul.mubr.bf16.gmra.mxu0 %v5739
  %v5948 = vpop.f32.mrf.mxu0
  %v5949 = vadd.f32 %v5852, %v5948
  %v5950 = vpop.f32.mrf.mxu0
  %v5951 = vpop.f32.mrf.mxu0
  %v5952 = vadd.f32 %v5855, %v5951
  %v5953 = vpop.f32.mrf.mxu0
  %5954 = vmatprep.mubr.bf16.mxu0 %v5744
  %5955 = vmatmul.mubr.bf16.gmra.mxu0 %v5743
  %v5956 = vpop.f32.mrf.mxu0
  %v5957 = vadd.f32 %v5860, %v5956
  %v5958 = vpop.f32.mrf.mxu0
  %v5959 = vpop.f32.mrf.mxu0
  %v5960 = vadd.f32 %v5863, %v5959
  %v5961 = vpop.f32.mrf.mxu0
  %5962 = vmatprep.mubr.bf16.mxu0 %v5748
  %5963 = vmatmul.mubr.bf16.gmra.mxu0 %v5747
  %v5964 = vpop.f32.mrf.mxu0
  %v5965 = vadd.f32 %v5868, %v5964
  %v5966 = vpop.f32.mrf.mxu0
  %v5967 = vpop.f32.mrf.mxu0
  %v5968 = vadd.f32 %v5871, %v5967
  %v5969 = vpop.f32.mrf.mxu0
  %5970 = vmatprep.mubr.bf16.mxu0 %v5752
  %5971 = vmatmul.mubr.bf16.gmra.mxu0 %v5751
  %v5972 = vpop.f32.mrf.mxu0
  %v5973 = vadd.f32 %v5876, %v5972
  %v5974 = vpop.f32.mrf.mxu0
  %v5975 = vpop.f32.mrf.mxu0
  %v5976 = vadd.f32 %v5879, %v5975
  %v5977 = vpop.f32.mrf.mxu0
  %5978 = vdwg.mxu0
  %v5979 = vmax.f32 %v5917, 0.0
  %v5980 = vmax.f32 %v5920, 0.0
  %v5981 = vmax.f32 %v5925, 0.0
  %v5982 = vmax.f32 %v5928, 0.0
  %v5983 = vmax.f32 %v5933, 0.0
  %v5984 = vmax.f32 %v5936, 0.0
  %v5985 = vmax.f32 %v5941, 0.0
  %v5986 = vmax.f32 %v5944, 0.0
  %v5987 = vmax.f32 %v5949, 0.0
  %v5988 = vmax.f32 %v5952, 0.0
  %v5989 = vmax.f32 %v5957, 0.0
  %v5990 = vmax.f32 %v5960, 0.0
  %v5991 = vmax.f32 %v5965, 0.0
  %v5992 = vmax.f32 %v5968, 0.0
  %v5993 = vmax.f32 %v5973, 0.0
  %v5994 = vmax.f32 %v5976, 0.0
  %v5995 = vpack.c.bf16 %v5980, %v5979
  %v5996 = vpack.c.bf16 %v5982, %v5981
  %v5997 = vpack.c.bf16 %v5984, %v5983
  %v5998 = vpack.c.bf16 %v5986, %v5985
  %v5999 = vpack.c.bf16 %v5988, %v5987
  %v6000 = vpack.c.bf16 %v5990, %v5989
  %v6001 = vpack.c.bf16 %v5992, %v5991
  %v6002 = vpack.c.bf16 %v5994, %v5993
  %v6004 = vsel %vm4302, %v5995, 0
  %v6007 = vsel %vm4302, %v5996, 0
  %v6010 = vsel %vm4302, %v5997, 0
  %v6013 = vsel %vm4302, %v5998, 0
  %v6016 = vsel %vm4302, %v5999, 0
  %v6019 = vsel %vm4302, %v6000, 0
  %v6022 = vsel %vm4302, %v6001, 0
  %v6025 = vsel %vm4302, %v6002, 0
  %6027 = vmatprep.subr.bf16.mxu0 0
  %6028 = vmatpush1.bf16.msra.mxu0 0
  %6029 = vmatprep.subr.bf16.mxu0 0
  %6030 = vmatpush1.bf16.msra.mxu0 0
  %6031 = vmatprep.subr.bf16.mxu0 0
  %6032 = vmatpush1.bf16.msra.mxu0 0
  %6033 = vmatprep.subr.bf16.mxu0 0
  %6034 = vmatpush1.bf16.msra.mxu0 0
  %6035 = vmatprep.subr.bf16.mxu0 0
  %6036 = vmatpush1.bf16.msra.mxu0 %v4297
  %6037 = vmatprep.subr.bf16.mxu0 0
  %6038 = vmatpush1.bf16.msra.mxu0 %v4296
  %6039 = vmatprep.subr.bf16.mxu0 0
  %6040 = vmatpush1.bf16.msra.mxu0 %v4295
  %6041 = vmatprep.subr.bf16.mxu0 0
  %6042 = vmatpush1.bf16.msra.mxu0 %v4294
  %6043 = vmatprep.subr.bf16.mxu0 0
  %6044 = vmatpush2.bf16.msra.mxu0 0
  %6045 = vmatprep.subr.bf16.mxu0 0
  %6046 = vmatpush2.bf16.msra.mxu0 0
  %6047 = vmatprep.subr.bf16.mxu0 0
  %6048 = vmatpush2.bf16.msra.mxu0 0
  %6049 = vmatprep.subr.bf16.mxu0 0
  %6050 = vmatpush2.bf16.msra.mxu0 0
  %6051 = vmatprep.subr.bf16.mxu0 0
  %6052 = vmatpush2.bf16.msra.mxu0 0
  %6053 = vmatprep.subr.bf16.mxu0 0
  %6054 = vmatpush2.bf16.msra.mxu0 0
  %6055 = vmatprep.subr.bf16.mxu0 0
  %6056 = vmatpush2.bf16.msra.mxu0 0
  %6057 = vmatprep.subr.bf16.mxu0 0
  %6058 = vmatpush2.bf16.msra.mxu0 0
  %6059 = vmatprep.mubr.bf16.mxu0 0
  %6060 = vmatmul.mubr.bf16.gmra.mxu0 %v6004
  %v6061 = vpop.f32.mrf.mxu0
  %v6062 = vadd.f32 %v4276, %v6061
  %v6063 = vpop.f32.mrf.mxu0
  %v6064 = vpop.f32.mrf.mxu0
  %v6065 = vadd.f32 %v4276, %v6064
  %v6066 = vpop.f32.mrf.mxu0
  %6067 = vmatprep.mubr.bf16.mxu0 0
  %6068 = vmatmul.mubr.bf16.gmra.mxu0 %v6007
  %v6069 = vpop.f32.mrf.mxu0
  %v6070 = vadd.f32 %v4276, %v6069
  %v6071 = vpop.f32.mrf.mxu0
  %v6072 = vpop.f32.mrf.mxu0
  %v6073 = vadd.f32 %v4276, %v6072
  %v6074 = vpop.f32.mrf.mxu0
  %6075 = vmatprep.mubr.bf16.mxu0 0
  %6076 = vmatmul.mubr.bf16.gmra.mxu0 %v6010
  %v6077 = vpop.f32.mrf.mxu0
  %v6078 = vadd.f32 %v4276, %v6077
  %v6079 = vpop.f32.mrf.mxu0
  %v6080 = vpop.f32.mrf.mxu0
  %v6081 = vadd.f32 %v4276, %v6080
  %v6082 = vpop.f32.mrf.mxu0
  %6083 = vmatprep.mubr.bf16.mxu0 0
  %6084 = vmatmul.mubr.bf16.gmra.mxu0 %v6013
  %v6085 = vpop.f32.mrf.mxu0
  %v6086 = vadd.f32 %v4276, %v6085
  %v6087 = vpop.f32.mrf.mxu0
  %v6088 = vpop.f32.mrf.mxu0
  %v6089 = vadd.f32 %v4276, %v6088
  %v6090 = vpop.f32.mrf.mxu0
  %6091 = vmatprep.mubr.bf16.mxu0 0
  %6092 = vmatmul.mubr.bf16.gmra.mxu0 %v6016
  %v6093 = vpop.f32.mrf.mxu0
  %v6094 = vadd.f32 %v4276, %v6093
  %v6095 = vpop.f32.mrf.mxu0
  %v6096 = vpop.f32.mrf.mxu0
  %v6097 = vadd.f32 %v4276, %v6096
  %v6098 = vpop.f32.mrf.mxu0
  %6099 = vmatprep.mubr.bf16.mxu0 0
  %6100 = vmatmul.mubr.bf16.gmra.mxu0 %v6019
  %v6101 = vpop.f32.mrf.mxu0
  %v6102 = vadd.f32 %v4276, %v6101
  %v6103 = vpop.f32.mrf.mxu0
  %v6104 = vpop.f32.mrf.mxu0
  %v6105 = vadd.f32 %v4276, %v6104
  %v6106 = vpop.f32.mrf.mxu0
  %6107 = vmatprep.mubr.bf16.mxu0 0
  %6108 = vmatmul.mubr.bf16.gmra.mxu0 %v6022
  %v6109 = vpop.f32.mrf.mxu0
  %v6110 = vadd.f32 %v4276, %v6109
  %v6111 = vpop.f32.mrf.mxu0
  %v6112 = vpop.f32.mrf.mxu0
  %v6113 = vadd.f32 %v4276, %v6112
  %v6114 = vpop.f32.mrf.mxu0
  %6115 = vmatprep.mubr.bf16.mxu0 0
  %6116 = vmatmul.mubr.bf16.gmra.mxu0 %v6025
  %v6117 = vpop.f32.mrf.mxu0
  %v6118 = vadd.f32 %v4276, %v6117
  %v6119 = vpop.f32.mrf.mxu0
  %v6120 = vpop.f32.mrf.mxu0
  %v6121 = vadd.f32 %v4276, %v6120
  %v6122 = vpop.f32.mrf.mxu0
  %6123 = vdwg.mxu0
  %6124 = vxpose.xlu0.b32.start [1/16] %v6062, 128
  %6125 = vxpose.xlu0.b32.cont [2/16] %v6065, 128
  %6126 = vxpose.xlu0.b32.cont [3/16] %v6070, 128
  %6127 = vxpose.xlu0.b32.cont [4/16] %v6073, 128
  %6128 = vxpose.xlu0.b32.cont [5/16] %v6078, 128
  %6129 = vxpose.xlu0.b32.cont [6/16] %v6081, 128
  %6130 = vxpose.xlu0.b32.cont [7/16] %v6086, 128
  %6131 = vxpose.xlu0.b32.cont [8/16] %v6089, 128
  %6132 = vxpose.xlu0.b32.cont [9/16] %v6094, 128
  %6133 = vxpose.xlu0.b32.cont [10/16] %v6097, 128
  %6134 = vxpose.xlu0.b32.cont [11/16] %v6102, 128
  %6135 = vxpose.xlu0.b32.cont [12/16] %v6105, 128
  %6136 = vxpose.xlu0.b32.cont [13/16] %v6110, 128
  %6137 = vxpose.xlu0.b32.cont [14/16] %v6113, 128
  %6138 = vxpose.xlu0.b32.cont [15/16] %v6118, 128
  %6139 = vxpose.xlu0.b32.end [16/16] %v6121, 128
  %v6140 = vpop.trf.xlu0
  %v6141 = vpop.trf.xlu0
  %v6142 = vpop.trf.xlu0
  %v6143 = vpop.trf.xlu0
  %v6144 = vpop.trf.xlu0
  %v6145 = vpop.trf.xlu0
  %v6146 = vpop.trf.xlu0
  %v6147 = vpop.trf.xlu0
  %v6148 = vpop.trf.xlu0
  %v6149 = vpop.trf.xlu0
  %v6150 = vpop.trf.xlu0
  %v6151 = vpop.trf.xlu0
  %v6152 = vpop.trf.xlu0
  %v6153 = vpop.trf.xlu0
  %v6154 = vpop.trf.xlu0
  %v6155 = vpop.trf.xlu0
  %s6156 = scalar_lea.vmem %s7, 72
  %6157 = vst [vmem:[%s6156] sm:$0xff] %v6140
  %6158 = vst [vmem:[%s6156 + $0x8] sm:$0xff] %v6141
  %6159 = vst [vmem:[%s6156 + $0x10] sm:$0x1] %v6142
  %v6160 = vld [vmem:[#allocation2 + $0x400] sm:$0xff]
  %v6161 = vld [vmem:[#allocation2 + $0x408] sm:$0xff]
  %v6162 = vld [vmem:[#allocation2 + $0x410] sm:$0xff]
  %v6163 = vld [vmem:[#allocation2 + $0x418] sm:$0xff]
  %v6164 = vld [vmem:[#allocation2 + $0x420] sm:$0xff]
  %v6165 = vld [vmem:[#allocation2 + $0x428] sm:$0xff]
  %v6166 = vld [vmem:[#allocation2 + $0x430] sm:$0xff]
  %v6167 = vld [vmem:[#allocation2 + $0x438] sm:$0xff]
  %v6168 = vld [vmem:[#allocation2 + $0x440] sm:$0xff]
  %v6169 = vld [vmem:[#allocation2 + $0x448] sm:$0xff]
  %v6170 = vld [vmem:[#allocation2 + $0x450] sm:$0xff]
  %v6171 = vld [vmem:[#allocation2 + $0x458] sm:$0xff]
  %v6172 = vld [vmem:[#allocation2 + $0x460] sm:$0xff]
  %v6173 = vld [vmem:[#allocation2 + $0x468] sm:$0xff]
  %v6174 = vld [vmem:[#allocation2 + $0x470] sm:$0xff]
  %v6175 = vld [vmem:[#allocation2 + $0x478] sm:$0xff]
  %v6176 = vld [vmem:[#allocation2 + $0x480] sm:$0xff]
  %v6177 = vld [vmem:[#allocation2 + $0x488] sm:$0xff]
  %v6178 = vld [vmem:[#allocation2 + $0x490] sm:$0xff]
  %v6179 = vld [vmem:[#allocation2 + $0x498] sm:$0xff]
  %v6180 = vld [vmem:[#allocation2 + $0x4a0] sm:$0xff]
  %v6181 = vld [vmem:[#allocation2 + $0x4a8] sm:$0xff]
  %v6182 = vld [vmem:[#allocation2 + $0x4b0] sm:$0xff]
  %v6183 = vld [vmem:[#allocation2 + $0x4b8] sm:$0xff]
  %v6184 = vld [vmem:[#allocation2 + $0x4c0] sm:$0xff]
  %v6185 = vld [vmem:[#allocation2 + $0x4c8] sm:$0xff]
  %v6186 = vld [vmem:[#allocation2 + $0x4d0] sm:$0xff]
  %v6187 = vld [vmem:[#allocation2 + $0x4d8] sm:$0xff]
  %v6188 = vld [vmem:[#allocation2 + $0x4e0] sm:$0xff]
  %v6189 = vld [vmem:[#allocation2 + $0x4e8] sm:$0xff]
  %v6190 = vld [vmem:[#allocation2 + $0x4f0] sm:$0xff]
  %v6191 = vld [vmem:[#allocation2 + $0x4f8] sm:$0xff]
  %v6224 = vunpack.c.l.b16 %v6160
  %v6225 = vunpack.c.h.b16 %v6160
  %v6226 = vunpack.c.l.b16 %v6161
  %v6227 = vunpack.c.h.b16 %v6161
  %v6228 = vunpack.c.l.b16 %v6162
  %v6229 = vunpack.c.h.b16 %v6162
  %v6230 = vunpack.c.l.b16 %v6163
  %v6231 = vunpack.c.h.b16 %v6163
  %v6232 = vunpack.c.l.b16 %v6164
  %v6233 = vunpack.c.h.b16 %v6164
  %v6234 = vunpack.c.l.b16 %v6165
  %v6235 = vunpack.c.h.b16 %v6165
  %v6236 = vunpack.c.l.b16 %v6166
  %v6237 = vunpack.c.h.b16 %v6166
  %v6238 = vunpack.c.l.b16 %v6167
  %v6239 = vunpack.c.h.b16 %v6167
  %v6240 = vunpack.c.l.b16 %v6168
  %v6241 = vunpack.c.h.b16 %v6168
  %v6242 = vunpack.c.l.b16 %v6169
  %v6243 = vunpack.c.h.b16 %v6169
  %v6244 = vunpack.c.l.b16 %v6170
  %v6245 = vunpack.c.h.b16 %v6170
  %v6246 = vunpack.c.l.b16 %v6171
  %v6247 = vunpack.c.h.b16 %v6171
  %v6248 = vunpack.c.l.b16 %v6172
  %v6249 = vunpack.c.h.b16 %v6172
  %v6250 = vunpack.c.l.b16 %v6173
  %v6251 = vunpack.c.h.b16 %v6173
  %v6252 = vunpack.c.l.b16 %v6174
  %v6253 = vunpack.c.h.b16 %v6174
  %v6254 = vunpack.c.l.b16 %v6175
  %v6255 = vunpack.c.h.b16 %v6175
  %v6256 = vunpack.c.l.b16 %v6176
  %v6257 = vunpack.c.h.b16 %v6176
  %v6258 = vunpack.c.l.b16 %v6177
  %v6259 = vunpack.c.h.b16 %v6177
  %v6260 = vunpack.c.l.b16 %v6178
  %v6261 = vunpack.c.h.b16 %v6178
  %v6262 = vunpack.c.l.b16 %v6179
  %v6263 = vunpack.c.h.b16 %v6179
  %v6264 = vunpack.c.l.b16 %v6180
  %v6265 = vunpack.c.h.b16 %v6180
  %v6266 = vunpack.c.l.b16 %v6181
  %v6267 = vunpack.c.h.b16 %v6181
  %v6268 = vunpack.c.l.b16 %v6182
  %v6269 = vunpack.c.h.b16 %v6182
  %v6270 = vunpack.c.l.b16 %v6183
  %v6271 = vunpack.c.h.b16 %v6183
  %v6272 = vunpack.c.l.b16 %v6184
  %v6273 = vunpack.c.h.b16 %v6184
  %v6274 = vunpack.c.l.b16 %v6185
  %v6275 = vunpack.c.h.b16 %v6185
  %v6276 = vunpack.c.l.b16 %v6186
  %v6277 = vunpack.c.h.b16 %v6186
  %v6278 = vunpack.c.l.b16 %v6187
  %v6279 = vunpack.c.h.b16 %v6187
  %v6280 = vunpack.c.l.b16 %v6188
  %v6281 = vunpack.c.h.b16 %v6188
  %v6282 = vunpack.c.l.b16 %v6189
  %v6283 = vunpack.c.h.b16 %v6189
  %v6284 = vunpack.c.l.b16 %v6190
  %v6285 = vunpack.c.h.b16 %v6190
  %v6286 = vunpack.c.l.b16 %v6191
  %v6287 = vunpack.c.h.b16 %v6191
  %v6288 = vpack.c.b16 %v6228, %v6224
  %v6289 = vpack.c.b16 %v6229, %v6225
  %v6290 = vpack.c.b16 %v6230, %v6226
  %v6291 = vpack.c.b16 %v6231, %v6227
  %v6292 = vpack.c.b16 %v6236, %v6232
  %v6293 = vpack.c.b16 %v6237, %v6233
  %v6294 = vpack.c.b16 %v6238, %v6234
  %v6295 = vpack.c.b16 %v6239, %v6235
  %v6296 = vpack.c.b16 %v6244, %v6240
  %v6297 = vpack.c.b16 %v6245, %v6241
  %v6298 = vpack.c.b16 %v6246, %v6242
  %v6299 = vpack.c.b16 %v6247, %v6243
  %v6300 = vpack.c.b16 %v6252, %v6248
  %v6301 = vpack.c.b16 %v6253, %v6249
  %v6302 = vpack.c.b16 %v6254, %v6250
  %v6303 = vpack.c.b16 %v6255, %v6251
  %v6304 = vpack.c.b16 %v6260, %v6256
  %v6305 = vpack.c.b16 %v6261, %v6257
  %v6306 = vpack.c.b16 %v6262, %v6258
  %v6307 = vpack.c.b16 %v6263, %v6259
  %v6308 = vpack.c.b16 %v6268, %v6264
  %v6309 = vpack.c.b16 %v6269, %v6265
  %v6310 = vpack.c.b16 %v6270, %v6266
  %v6311 = vpack.c.b16 %v6271, %v6267
  %v6312 = vpack.c.b16 %v6276, %v6272
  %v6313 = vpack.c.b16 %v6277, %v6273
  %v6314 = vpack.c.b16 %v6278, %v6274
  %v6315 = vpack.c.b16 %v6279, %v6275
  %v6316 = vpack.c.b16 %v6284, %v6280
  %v6317 = vpack.c.b16 %v6285, %v6281
  %v6318 = vpack.c.b16 %v6286, %v6282
  %v6319 = vpack.c.b16 %v6287, %v6283
  %6352 = vmatprep.subr.bf16.mxu0 0
  %6353 = vmatpush1.bf16.msra.mxu0 %v3997
  %6354 = vmatprep.subr.bf16.mxu0 0
  %6355 = vmatpush1.bf16.msra.mxu0 %v3996
  %6356 = vmatprep.subr.bf16.mxu0 0
  %6357 = vmatpush1.bf16.msra.mxu0 %v3995
  %6358 = vmatprep.subr.bf16.mxu0 0
  %6359 = vmatpush1.bf16.msra.mxu0 %v3994
  %6360 = vmatprep.subr.bf16.mxu0 0
  %6361 = vmatpush1.bf16.msra.mxu0 %v3993
  %6362 = vmatprep.subr.bf16.mxu0 0
  %6363 = vmatpush1.bf16.msra.mxu0 %v3992
  %6364 = vmatprep.subr.bf16.mxu0 0
  %6365 = vmatpush1.bf16.msra.mxu0 %v3991
  %6366 = vmatprep.subr.bf16.mxu0 0
  %6367 = vmatpush1.bf16.msra.mxu0 %v3990
  %6368 = vmatprep.subr.bf16.mxu0 0
  %6369 = vmatpush2.bf16.msra.mxu0 %v4005
  %6370 = vmatprep.subr.bf16.mxu0 0
  %6371 = vmatpush2.bf16.msra.mxu0 %v4004
  %6372 = vmatprep.subr.bf16.mxu0 0
  %6373 = vmatpush2.bf16.msra.mxu0 %v4003
  %6374 = vmatprep.subr.bf16.mxu0 0
  %6375 = vmatpush2.bf16.msra.mxu0 %v4002
  %6376 = vmatprep.subr.bf16.mxu0 0
  %6377 = vmatpush2.bf16.msra.mxu0 %v4001
  %6378 = vmatprep.subr.bf16.mxu0 0
  %6379 = vmatpush2.bf16.msra.mxu0 %v4000
  %6380 = vmatprep.subr.bf16.mxu0 0
  %6381 = vmatpush2.bf16.msra.mxu0 %v3999
  %6382 = vmatprep.subr.bf16.mxu0 0
  %6383 = vmatpush2.bf16.msra.mxu0 %v3998
  %6384 = vmatprep.mubr.bf16.mxu0 %v6289
  %6385 = vmatmul.mubr.bf16.gmra.mxu0 %v6288
  %v6386 = vpop.f32.mrf.mxu0
  %v6387 = vadd.f32 %v3700, %v6386
  %v6388 = vpop.f32.mrf.mxu0
  %v6389 = vpop.f32.mrf.mxu0
  %v6390 = vadd.f32 %v3700, %v6389
  %v6391 = vpop.f32.mrf.mxu0
  %6392 = vmatprep.mubr.bf16.mxu0 %v6293
  %6393 = vmatmul.mubr.bf16.gmra.mxu0 %v6292
  %v6394 = vpop.f32.mrf.mxu0
  %v6395 = vadd.f32 %v3700, %v6394
  %v6396 = vpop.f32.mrf.mxu0
  %v6397 = vpop.f32.mrf.mxu0
  %v6398 = vadd.f32 %v3700, %v6397
  %v6399 = vpop.f32.mrf.mxu0
  %6400 = vmatprep.mubr.bf16.mxu0 %v6297
  %6401 = vmatmul.mubr.bf16.gmra.mxu0 %v6296
  %v6402 = vpop.f32.mrf.mxu0
  %v6403 = vadd.f32 %v3700, %v6402
  %v6404 = vpop.f32.mrf.mxu0
  %v6405 = vpop.f32.mrf.mxu0
  %v6406 = vadd.f32 %v3700, %v6405
  %v6407 = vpop.f32.mrf.mxu0
  %6408 = vmatprep.mubr.bf16.mxu0 %v6301
  %6409 = vmatmul.mubr.bf16.gmra.mxu0 %v6300
  %v6410 = vpop.f32.mrf.mxu0
  %v6411 = vadd.f32 %v3700, %v6410
  %v6412 = vpop.f32.mrf.mxu0
  %v6413 = vpop.f32.mrf.mxu0
  %v6414 = vadd.f32 %v3700, %v6413
  %v6415 = vpop.f32.mrf.mxu0
  %6416 = vmatprep.mubr.bf16.mxu0 %v6305
  %6417 = vmatmul.mubr.bf16.gmra.mxu0 %v6304
  %v6418 = vpop.f32.mrf.mxu0
  %v6419 = vadd.f32 %v3700, %v6418
  %v6420 = vpop.f32.mrf.mxu0
  %v6421 = vpop.f32.mrf.mxu0
  %v6422 = vadd.f32 %v3700, %v6421
  %v6423 = vpop.f32.mrf.mxu0
  %6424 = vmatprep.mubr.bf16.mxu0 %v6309
  %6425 = vmatmul.mubr.bf16.gmra.mxu0 %v6308
  %v6426 = vpop.f32.mrf.mxu0
  %v6427 = vadd.f32 %v3700, %v6426
  %v6428 = vpop.f32.mrf.mxu0
  %v6429 = vpop.f32.mrf.mxu0
  %v6430 = vadd.f32 %v3700, %v6429
  %v6431 = vpop.f32.mrf.mxu0
  %6432 = vmatprep.mubr.bf16.mxu0 %v6313
  %6433 = vmatmul.mubr.bf16.gmra.mxu0 %v6312
  %v6434 = vpop.f32.mrf.mxu0
  %v6435 = vadd.f32 %v3700, %v6434
  %v6436 = vpop.f32.mrf.mxu0
  %v6437 = vpop.f32.mrf.mxu0
  %v6438 = vadd.f32 %v3700, %v6437
  %v6439 = vpop.f32.mrf.mxu0
  %6440 = vmatprep.mubr.bf16.mxu0 %v6317
  %6441 = vmatmul.mubr.bf16.gmra.mxu0 %v6316
  %v6442 = vpop.f32.mrf.mxu0
  %v6443 = vadd.f32 %v3700, %v6442
  %v6444 = vpop.f32.mrf.mxu0
  %v6445 = vpop.f32.mrf.mxu0
  %v6446 = vadd.f32 %v3700, %v6445
  %v6447 = vpop.f32.mrf.mxu0
  %6448 = vdwg.mxu0
  %6449 = vmatprep.subr.bf16.mxu0 0
  %6450 = vmatpush1.bf16.msra.mxu0 %v4013
  %6451 = vmatprep.subr.bf16.mxu0 0
  %6452 = vmatpush1.bf16.msra.mxu0 %v4012
  %6453 = vmatprep.subr.bf16.mxu0 0
  %6454 = vmatpush1.bf16.msra.mxu0 %v4011
  %6455 = vmatprep.subr.bf16.mxu0 0
  %6456 = vmatpush1.bf16.msra.mxu0 %v4010
  %6457 = vmatprep.subr.bf16.mxu0 0
  %6458 = vmatpush1.bf16.msra.mxu0 %v4009
  %6459 = vmatprep.subr.bf16.mxu0 0
  %6460 = vmatpush1.bf16.msra.mxu0 %v4008
  %6461 = vmatprep.subr.bf16.mxu0 0
  %6462 = vmatpush1.bf16.msra.mxu0 %v4007
  %6463 = vmatprep.subr.bf16.mxu0 0
  %6464 = vmatpush1.bf16.msra.mxu0 %v4006
  %6465 = vmatprep.subr.bf16.mxu0 0
  %6466 = vmatpush2.bf16.msra.mxu0 %v4021
  %6467 = vmatprep.subr.bf16.mxu0 0
  %6468 = vmatpush2.bf16.msra.mxu0 %v4020
  %6469 = vmatprep.subr.bf16.mxu0 0
  %6470 = vmatpush2.bf16.msra.mxu0 %v4019
  %6471 = vmatprep.subr.bf16.mxu0 0
  %6472 = vmatpush2.bf16.msra.mxu0 %v4018
  %6473 = vmatprep.subr.bf16.mxu0 0
  %6474 = vmatpush2.bf16.msra.mxu0 %v4017
  %6475 = vmatprep.subr.bf16.mxu0 0
  %6476 = vmatpush2.bf16.msra.mxu0 %v4016
  %6477 = vmatprep.subr.bf16.mxu0 0
  %6478 = vmatpush2.bf16.msra.mxu0 %v4015
  %6479 = vmatprep.subr.bf16.mxu0 0
  %6480 = vmatpush2.bf16.msra.mxu0 %v4014
  %6481 = vmatprep.mubr.bf16.mxu0 %v6291
  %6482 = vmatmul.mubr.bf16.gmra.mxu0 %v6290
  %v6483 = vpop.f32.mrf.mxu0
  %v6484 = vadd.f32 %v6387, %v6483
  %v6485 = vpop.f32.mrf.mxu0
  %v6486 = vpop.f32.mrf.mxu0
  %v6487 = vadd.f32 %v6390, %v6486
  %v6488 = vpop.f32.mrf.mxu0
  %6489 = vmatprep.mubr.bf16.mxu0 %v6295
  %6490 = vmatmul.mubr.bf16.gmra.mxu0 %v6294
  %v6491 = vpop.f32.mrf.mxu0
  %v6492 = vadd.f32 %v6395, %v6491
  %v6493 = vpop.f32.mrf.mxu0
  %v6494 = vpop.f32.mrf.mxu0
  %v6495 = vadd.f32 %v6398, %v6494
  %v6496 = vpop.f32.mrf.mxu0
  %6497 = vmatprep.mubr.bf16.mxu0 %v6299
  %6498 = vmatmul.mubr.bf16.gmra.mxu0 %v6298
  %v6499 = vpop.f32.mrf.mxu0
  %v6500 = vadd.f32 %v6403, %v6499
  %v6501 = vpop.f32.mrf.mxu0
  %v6502 = vpop.f32.mrf.mxu0
  %v6503 = vadd.f32 %v6406, %v6502
  %v6504 = vpop.f32.mrf.mxu0
  %6505 = vmatprep.mubr.bf16.mxu0 %v6303
  %6506 = vmatmul.mubr.bf16.gmra.mxu0 %v6302
  %v6507 = vpop.f32.mrf.mxu0
  %v6508 = vadd.f32 %v6411, %v6507
  %v6509 = vpop.f32.mrf.mxu0
  %v6510 = vpop.f32.mrf.mxu0
  %v6511 = vadd.f32 %v6414, %v6510
  %v6512 = vpop.f32.mrf.mxu0
  %6513 = vmatprep.mubr.bf16.mxu0 %v6307
  %6514 = vmatmul.mubr.bf16.gmra.mxu0 %v6306
  %v6515 = vpop.f32.mrf.mxu0
  %v6516 = vadd.f32 %v6419, %v6515
  %v6517 = vpop.f32.mrf.mxu0
  %v6518 = vpop.f32.mrf.mxu0
  %v6519 = vadd.f32 %v6422, %v6518
  %v6520 = vpop.f32.mrf.mxu0
  %6521 = vmatprep.mubr.bf16.mxu0 %v6311
  %6522 = vmatmul.mubr.bf16.gmra.mxu0 %v6310
  %v6523 = vpop.f32.mrf.mxu0
  %v6524 = vadd.f32 %v6427, %v6523
  %v6525 = vpop.f32.mrf.mxu0
  %v6526 = vpop.f32.mrf.mxu0
  %v6527 = vadd.f32 %v6430, %v6526
  %v6528 = vpop.f32.mrf.mxu0
  %6529 = vmatprep.mubr.bf16.mxu0 %v6315
  %6530 = vmatmul.mubr.bf16.gmra.mxu0 %v6314
  %v6531 = vpop.f32.mrf.mxu0
  %v6532 = vadd.f32 %v6435, %v6531
  %v6533 = vpop.f32.mrf.mxu0
  %v6534 = vpop.f32.mrf.mxu0
  %v6535 = vadd.f32 %v6438, %v6534
  %v6536 = vpop.f32.mrf.mxu0
  %6537 = vmatprep.mubr.bf16.mxu0 %v6319
  %6538 = vmatmul.mubr.bf16.gmra.mxu0 %v6318
  %v6539 = vpop.f32.mrf.mxu0
  %v6540 = vadd.f32 %v6443, %v6539
  %v6541 = vpop.f32.mrf.mxu0
  %v6542 = vpop.f32.mrf.mxu0
  %v6543 = vadd.f32 %v6446, %v6542
  %v6544 = vpop.f32.mrf.mxu0
  %6545 = vdwg.mxu0
  %v6546 = vmax.f32 %v6484, 0.0
  %v6547 = vmax.f32 %v6487, 0.0
  %v6548 = vmax.f32 %v6492, 0.0
  %v6549 = vmax.f32 %v6495, 0.0
  %v6550 = vmax.f32 %v6500, 0.0
  %v6551 = vmax.f32 %v6503, 0.0
  %v6552 = vmax.f32 %v6508, 0.0
  %v6553 = vmax.f32 %v6511, 0.0
  %v6554 = vmax.f32 %v6516, 0.0
  %v6555 = vmax.f32 %v6519, 0.0
  %v6556 = vmax.f32 %v6524, 0.0
  %v6557 = vmax.f32 %v6527, 0.0
  %v6558 = vmax.f32 %v6532, 0.0
  %v6559 = vmax.f32 %v6535, 0.0
  %v6560 = vmax.f32 %v6540, 0.0
  %v6561 = vmax.f32 %v6543, 0.0
  %v6562 = vpack.c.bf16 %v6547, %v6546
  %v6563 = vpack.c.bf16 %v6549, %v6548
  %v6564 = vpack.c.bf16 %v6551, %v6550
  %v6565 = vpack.c.bf16 %v6553, %v6552
  %v6566 = vpack.c.bf16 %v6555, %v6554
  %v6567 = vpack.c.bf16 %v6557, %v6556
  %v6568 = vpack.c.bf16 %v6559, %v6558
  %v6569 = vpack.c.bf16 %v6561, %v6560
  %v6571 = vsel %vm4302, %v6562, 0
  %v6574 = vsel %vm4302, %v6563, 0
  %v6577 = vsel %vm4302, %v6564, 0
  %v6580 = vsel %vm4302, %v6565, 0
  %v6583 = vsel %vm4302, %v6566, 0
  %v6586 = vsel %vm4302, %v6567, 0
  %v6589 = vsel %vm4302, %v6568, 0
  %v6592 = vsel %vm4302, %v6569, 0
  %6594 = vmatprep.subr.bf16.mxu0 0
  %6595 = vmatpush1.bf16.msra.mxu0 0
  %6596 = vmatprep.subr.bf16.mxu0 0
  %6597 = vmatpush1.bf16.msra.mxu0 0
  %6598 = vmatprep.subr.bf16.mxu0 0
  %6599 = vmatpush1.bf16.msra.mxu0 0
  %6600 = vmatprep.subr.bf16.mxu0 0
  %6601 = vmatpush1.bf16.msra.mxu0 0
  %6602 = vmatprep.subr.bf16.mxu0 0
  %6603 = vmatpush1.bf16.msra.mxu0 %v4297
  %6604 = vmatprep.subr.bf16.mxu0 0
  %6605 = vmatpush1.bf16.msra.mxu0 %v4296
  %6606 = vmatprep.subr.bf16.mxu0 0
  %6607 = vmatpush1.bf16.msra.mxu0 %v4295
  %6608 = vmatprep.subr.bf16.mxu0 0
  %6609 = vmatpush1.bf16.msra.mxu0 %v4294
  %6610 = vmatprep.subr.bf16.mxu0 0
  %6611 = vmatpush2.bf16.msra.mxu0 0
  %6612 = vmatprep.subr.bf16.mxu0 0
  %6613 = vmatpush2.bf16.msra.mxu0 0
  %6614 = vmatprep.subr.bf16.mxu0 0
  %6615 = vmatpush2.bf16.msra.mxu0 0
  %6616 = vmatprep.subr.bf16.mxu0 0
  %6617 = vmatpush2.bf16.msra.mxu0 0
  %6618 = vmatprep.subr.bf16.mxu0 0
  %6619 = vmatpush2.bf16.msra.mxu0 0
  %6620 = vmatprep.subr.bf16.mxu0 0
  %6621 = vmatpush2.bf16.msra.mxu0 0
  %6622 = vmatprep.subr.bf16.mxu0 0
  %6623 = vmatpush2.bf16.msra.mxu0 0
  %6624 = vmatprep.subr.bf16.mxu0 0
  %6625 = vmatpush2.bf16.msra.mxu0 0
  %6626 = vmatprep.mubr.bf16.mxu0 0
  %6627 = vmatmul.mubr.bf16.gmra.mxu0 %v6571
  %v6628 = vpop.f32.mrf.mxu0
  %v6629 = vadd.f32 %v4276, %v6628
  %v6630 = vpop.f32.mrf.mxu0
  %v6631 = vpop.f32.mrf.mxu0
  %v6632 = vadd.f32 %v4276, %v6631
  %v6633 = vpop.f32.mrf.mxu0
  %6634 = vmatprep.mubr.bf16.mxu0 0
  %6635 = vmatmul.mubr.bf16.gmra.mxu0 %v6574
  %v6636 = vpop.f32.mrf.mxu0
  %v6637 = vadd.f32 %v4276, %v6636
  %v6638 = vpop.f32.mrf.mxu0
  %v6639 = vpop.f32.mrf.mxu0
  %v6640 = vadd.f32 %v4276, %v6639
  %v6641 = vpop.f32.mrf.mxu0
  %6642 = vmatprep.mubr.bf16.mxu0 0
  %6643 = vmatmul.mubr.bf16.gmra.mxu0 %v6577
  %v6644 = vpop.f32.mrf.mxu0
  %v6645 = vadd.f32 %v4276, %v6644
  %v6646 = vpop.f32.mrf.mxu0
  %v6647 = vpop.f32.mrf.mxu0
  %v6648 = vadd.f32 %v4276, %v6647
  %v6649 = vpop.f32.mrf.mxu0
  %6650 = vmatprep.mubr.bf16.mxu0 0
  %6651 = vmatmul.mubr.bf16.gmra.mxu0 %v6580
  %v6652 = vpop.f32.mrf.mxu0
  %v6653 = vadd.f32 %v4276, %v6652
  %v6654 = vpop.f32.mrf.mxu0
  %v6655 = vpop.f32.mrf.mxu0
  %v6656 = vadd.f32 %v4276, %v6655
  %v6657 = vpop.f32.mrf.mxu0
  %6658 = vmatprep.mubr.bf16.mxu0 0
  %6659 = vmatmul.mubr.bf16.gmra.mxu0 %v6583
  %v6660 = vpop.f32.mrf.mxu0
  %v6661 = vadd.f32 %v4276, %v6660
  %v6662 = vpop.f32.mrf.mxu0
  %v6663 = vpop.f32.mrf.mxu0
  %v6664 = vadd.f32 %v4276, %v6663
  %v6665 = vpop.f32.mrf.mxu0
  %6666 = vmatprep.mubr.bf16.mxu0 0
  %6667 = vmatmul.mubr.bf16.gmra.mxu0 %v6586
  %v6668 = vpop.f32.mrf.mxu0
  %v6669 = vadd.f32 %v4276, %v6668
  %v6670 = vpop.f32.mrf.mxu0
  %v6671 = vpop.f32.mrf.mxu0
  %v6672 = vadd.f32 %v4276, %v6671
  %v6673 = vpop.f32.mrf.mxu0
  %6674 = vmatprep.mubr.bf16.mxu0 0
  %6675 = vmatmul.mubr.bf16.gmra.mxu0 %v6589
  %v6676 = vpop.f32.mrf.mxu0
  %v6677 = vadd.f32 %v4276, %v6676
  %v6678 = vpop.f32.mrf.mxu0
  %v6679 = vpop.f32.mrf.mxu0
  %v6680 = vadd.f32 %v4276, %v6679
  %v6681 = vpop.f32.mrf.mxu0
  %6682 = vmatprep.mubr.bf16.mxu0 0
  %6683 = vmatmul.mubr.bf16.gmra.mxu0 %v6592
  %v6684 = vpop.f32.mrf.mxu0
  %v6685 = vadd.f32 %v4276, %v6684
  %v6686 = vpop.f32.mrf.mxu0
  %v6687 = vpop.f32.mrf.mxu0
  %v6688 = vadd.f32 %v4276, %v6687
  %v6689 = vpop.f32.mrf.mxu0
  %6690 = vdwg.mxu0
  %6691 = vxpose.xlu0.b32.start [1/16] %v6629, 128
  %6692 = vxpose.xlu0.b32.cont [2/16] %v6632, 128
  %6693 = vxpose.xlu0.b32.cont [3/16] %v6637, 128
  %6694 = vxpose.xlu0.b32.cont [4/16] %v6640, 128
  %6695 = vxpose.xlu0.b32.cont [5/16] %v6645, 128
  %6696 = vxpose.xlu0.b32.cont [6/16] %v6648, 128
  %6697 = vxpose.xlu0.b32.cont [7/16] %v6653, 128
  %6698 = vxpose.xlu0.b32.cont [8/16] %v6656, 128
  %6699 = vxpose.xlu0.b32.cont [9/16] %v6661, 128
  %6700 = vxpose.xlu0.b32.cont [10/16] %v6664, 128
  %6701 = vxpose.xlu0.b32.cont [11/16] %v6669, 128
  %6702 = vxpose.xlu0.b32.cont [12/16] %v6672, 128
  %6703 = vxpose.xlu0.b32.cont [13/16] %v6677, 128
  %6704 = vxpose.xlu0.b32.cont [14/16] %v6680, 128
  %6705 = vxpose.xlu0.b32.cont [15/16] %v6685, 128
  %6706 = vxpose.xlu0.b32.end [16/16] %v6688, 128
  %v6707 = vpop.trf.xlu0
  %v6708 = vpop.trf.xlu0
  %v6709 = vpop.trf.xlu0
  %v6710 = vpop.trf.xlu0
  %v6711 = vpop.trf.xlu0
  %v6712 = vpop.trf.xlu0
  %v6713 = vpop.trf.xlu0
  %v6714 = vpop.trf.xlu0
  %v6715 = vpop.trf.xlu0
  %v6716 = vpop.trf.xlu0
  %v6717 = vpop.trf.xlu0
  %v6718 = vpop.trf.xlu0
  %v6719 = vpop.trf.xlu0
  %v6720 = vpop.trf.xlu0
  %v6721 = vpop.trf.xlu0
  %v6722 = vpop.trf.xlu0
  %s6723 = scalar_lea.vmem %s7, 96
  %6724 = vst [vmem:[%s6723] sm:$0xff] %v6707
  %6725 = vst [vmem:[%s6723 + $0x8] sm:$0xff] %v6708
  %6726 = vst [vmem:[%s6723 + $0x10] sm:$0x1] %v6709
  %v6727 = vld [vmem:[#allocation2 + $0x500] sm:$0xff]
  %v6728 = vld [vmem:[#allocation2 + $0x508] sm:$0xff]
  %v6729 = vld [vmem:[#allocation2 + $0x510] sm:$0xff]
  %v6730 = vld [vmem:[#allocation2 + $0x518] sm:$0xff]
  %v6731 = vld [vmem:[#allocation2 + $0x520] sm:$0xff]
  %v6732 = vld [vmem:[#allocation2 + $0x528] sm:$0xff]
  %v6733 = vld [vmem:[#allocation2 + $0x530] sm:$0xff]
  %v6734 = vld [vmem:[#allocation2 + $0x538] sm:$0xff]
  %v6735 = vld [vmem:[#allocation2 + $0x540] sm:$0xff]
  %v6736 = vld [vmem:[#allocation2 + $0x548] sm:$0xff]
  %v6737 = vld [vmem:[#allocation2 + $0x550] sm:$0xff]
  %v6738 = vld [vmem:[#allocation2 + $0x558] sm:$0xff]
  %v6739 = vld [vmem:[#allocation2 + $0x560] sm:$0xff]
  %v6740 = vld [vmem:[#allocation2 + $0x568] sm:$0xff]
  %v6741 = vld [vmem:[#allocation2 + $0x570] sm:$0xff]
  %v6742 = vld [vmem:[#allocation2 + $0x578] sm:$0xff]
  %v6743 = vld [vmem:[#allocation2 + $0x580] sm:$0xff]
  %v6744 = vld [vmem:[#allocation2 + $0x588] sm:$0xff]
  %v6745 = vld [vmem:[#allocation2 + $0x590] sm:$0xff]
  %v6746 = vld [vmem:[#allocation2 + $0x598] sm:$0xff]
  %v6747 = vld [vmem:[#allocation2 + $0x5a0] sm:$0xff]
  %v6748 = vld [vmem:[#allocation2 + $0x5a8] sm:$0xff]
  %v6749 = vld [vmem:[#allocation2 + $0x5b0] sm:$0xff]
  %v6750 = vld [vmem:[#allocation2 + $0x5b8] sm:$0xff]
  %v6751 = vld [vmem:[#allocation2 + $0x5c0] sm:$0xff]
  %v6752 = vld [vmem:[#allocation2 + $0x5c8] sm:$0xff]
  %v6753 = vld [vmem:[#allocation2 + $0x5d0] sm:$0xff]
  %v6754 = vld [vmem:[#allocation2 + $0x5d8] sm:$0xff]
  %v6755 = vld [vmem:[#allocation2 + $0x5e0] sm:$0xff]
  %v6756 = vld [vmem:[#allocation2 + $0x5e8] sm:$0xff]
  %v6757 = vld [vmem:[#allocation2 + $0x5f0] sm:$0xff]
  %v6758 = vld [vmem:[#allocation2 + $0x5f8] sm:$0xff]
  %v6791 = vunpack.c.l.b16 %v6727
  %v6792 = vunpack.c.h.b16 %v6727
  %v6793 = vunpack.c.l.b16 %v6728
  %v6794 = vunpack.c.h.b16 %v6728
  %v6795 = vunpack.c.l.b16 %v6729
  %v6796 = vunpack.c.h.b16 %v6729
  %v6797 = vunpack.c.l.b16 %v6730
  %v6798 = vunpack.c.h.b16 %v6730
  %v6799 = vunpack.c.l.b16 %v6731
  %v6800 = vunpack.c.h.b16 %v6731
  %v6801 = vunpack.c.l.b16 %v6732
  %v6802 = vunpack.c.h.b16 %v6732
  %v6803 = vunpack.c.l.b16 %v6733
  %v6804 = vunpack.c.h.b16 %v6733
  %v6805 = vunpack.c.l.b16 %v6734
  %v6806 = vunpack.c.h.b16 %v6734
  %v6807 = vunpack.c.l.b16 %v6735
  %v6808 = vunpack.c.h.b16 %v6735
  %v6809 = vunpack.c.l.b16 %v6736
  %v6810 = vunpack.c.h.b16 %v6736
  %v6811 = vunpack.c.l.b16 %v6737
  %v6812 = vunpack.c.h.b16 %v6737
  %v6813 = vunpack.c.l.b16 %v6738
  %v6814 = vunpack.c.h.b16 %v6738
  %v6815 = vunpack.c.l.b16 %v6739
  %v6816 = vunpack.c.h.b16 %v6739
  %v6817 = vunpack.c.l.b16 %v6740
  %v6818 = vunpack.c.h.b16 %v6740
  %v6819 = vunpack.c.l.b16 %v6741
  %v6820 = vunpack.c.h.b16 %v6741
  %v6821 = vunpack.c.l.b16 %v6742
  %v6822 = vunpack.c.h.b16 %v6742
  %v6823 = vunpack.c.l.b16 %v6743
  %v6824 = vunpack.c.h.b16 %v6743
  %v6825 = vunpack.c.l.b16 %v6744
  %v6826 = vunpack.c.h.b16 %v6744
  %v6827 = vunpack.c.l.b16 %v6745
  %v6828 = vunpack.c.h.b16 %v6745
  %v6829 = vunpack.c.l.b16 %v6746
  %v6830 = vunpack.c.h.b16 %v6746
  %v6831 = vunpack.c.l.b16 %v6747
  %v6832 = vunpack.c.h.b16 %v6747
  %v6833 = vunpack.c.l.b16 %v6748
  %v6834 = vunpack.c.h.b16 %v6748
  %v6835 = vunpack.c.l.b16 %v6749
  %v6836 = vunpack.c.h.b16 %v6749
  %v6837 = vunpack.c.l.b16 %v6750
  %v6838 = vunpack.c.h.b16 %v6750
  %v6839 = vunpack.c.l.b16 %v6751
  %v6840 = vunpack.c.h.b16 %v6751
  %v6841 = vunpack.c.l.b16 %v6752
  %v6842 = vunpack.c.h.b16 %v6752
  %v6843 = vunpack.c.l.b16 %v6753
  %v6844 = vunpack.c.h.b16 %v6753
  %v6845 = vunpack.c.l.b16 %v6754
  %v6846 = vunpack.c.h.b16 %v6754
  %v6847 = vunpack.c.l.b16 %v6755
  %v6848 = vunpack.c.h.b16 %v6755
  %v6849 = vunpack.c.l.b16 %v6756
  %v6850 = vunpack.c.h.b16 %v6756
  %v6851 = vunpack.c.l.b16 %v6757
  %v6852 = vunpack.c.h.b16 %v6757
  %v6853 = vunpack.c.l.b16 %v6758
  %v6854 = vunpack.c.h.b16 %v6758
  %v6855 = vpack.c.b16 %v6795, %v6791
  %v6856 = vpack.c.b16 %v6796, %v6792
  %v6857 = vpack.c.b16 %v6797, %v6793
  %v6858 = vpack.c.b16 %v6798, %v6794
  %v6859 = vpack.c.b16 %v6803, %v6799
  %v6860 = vpack.c.b16 %v6804, %v6800
  %v6861 = vpack.c.b16 %v6805, %v6801
  %v6862 = vpack.c.b16 %v6806, %v6802
  %v6863 = vpack.c.b16 %v6811, %v6807
  %v6864 = vpack.c.b16 %v6812, %v6808
  %v6865 = vpack.c.b16 %v6813, %v6809
  %v6866 = vpack.c.b16 %v6814, %v6810
  %v6867 = vpack.c.b16 %v6819, %v6815
  %v6868 = vpack.c.b16 %v6820, %v6816
  %v6869 = vpack.c.b16 %v6821, %v6817
  %v6870 = vpack.c.b16 %v6822, %v6818
  %v6871 = vpack.c.b16 %v6827, %v6823
  %v6872 = vpack.c.b16 %v6828, %v6824
  %v6873 = vpack.c.b16 %v6829, %v6825
  %v6874 = vpack.c.b16 %v6830, %v6826
  %v6875 = vpack.c.b16 %v6835, %v6831
  %v6876 = vpack.c.b16 %v6836, %v6832
  %v6877 = vpack.c.b16 %v6837, %v6833
  %v6878 = vpack.c.b16 %v6838, %v6834
  %v6879 = vpack.c.b16 %v6843, %v6839
  %v6880 = vpack.c.b16 %v6844, %v6840
  %v6881 = vpack.c.b16 %v6845, %v6841
  %v6882 = vpack.c.b16 %v6846, %v6842
  %v6883 = vpack.c.b16 %v6851, %v6847
  %v6884 = vpack.c.b16 %v6852, %v6848
  %v6885 = vpack.c.b16 %v6853, %v6849
  %v6886 = vpack.c.b16 %v6854, %v6850
  %6919 = vmatprep.subr.bf16.mxu0 0
  %6920 = vmatpush1.bf16.msra.mxu0 %v3997
  %6921 = vmatprep.subr.bf16.mxu0 0
  %6922 = vmatpush1.bf16.msra.mxu0 %v3996
  %6923 = vmatprep.subr.bf16.mxu0 0
  %6924 = vmatpush1.bf16.msra.mxu0 %v3995
  %6925 = vmatprep.subr.bf16.mxu0 0
  %6926 = vmatpush1.bf16.msra.mxu0 %v3994
  %6927 = vmatprep.subr.bf16.mxu0 0
  %6928 = vmatpush1.bf16.msra.mxu0 %v3993
  %6929 = vmatprep.subr.bf16.mxu0 0
  %6930 = vmatpush1.bf16.msra.mxu0 %v3992
  %6931 = vmatprep.subr.bf16.mxu0 0
  %6932 = vmatpush1.bf16.msra.mxu0 %v3991
  %6933 = vmatprep.subr.bf16.mxu0 0
  %6934 = vmatpush1.bf16.msra.mxu0 %v3990
  %6935 = vmatprep.subr.bf16.mxu0 0
  %6936 = vmatpush2.bf16.msra.mxu0 %v4005
  %6937 = vmatprep.subr.bf16.mxu0 0
  %6938 = vmatpush2.bf16.msra.mxu0 %v4004
  %6939 = vmatprep.subr.bf16.mxu0 0
  %6940 = vmatpush2.bf16.msra.mxu0 %v4003
  %6941 = vmatprep.subr.bf16.mxu0 0
  %6942 = vmatpush2.bf16.msra.mxu0 %v4002
  %6943 = vmatprep.subr.bf16.mxu0 0
  %6944 = vmatpush2.bf16.msra.mxu0 %v4001
  %6945 = vmatprep.subr.bf16.mxu0 0
  %6946 = vmatpush2.bf16.msra.mxu0 %v4000
  %6947 = vmatprep.subr.bf16.mxu0 0
  %6948 = vmatpush2.bf16.msra.mxu0 %v3999
  %6949 = vmatprep.subr.bf16.mxu0 0
  %6950 = vmatpush2.bf16.msra.mxu0 %v3998
  %6951 = vmatprep.mubr.bf16.mxu0 %v6856
  %6952 = vmatmul.mubr.bf16.gmra.mxu0 %v6855
  %v6953 = vpop.f32.mrf.mxu0
  %v6954 = vadd.f32 %v3700, %v6953
  %v6955 = vpop.f32.mrf.mxu0
  %v6956 = vpop.f32.mrf.mxu0
  %v6957 = vadd.f32 %v3700, %v6956
  %v6958 = vpop.f32.mrf.mxu0
  %6959 = vmatprep.mubr.bf16.mxu0 %v6860
  %6960 = vmatmul.mubr.bf16.gmra.mxu0 %v6859
  %v6961 = vpop.f32.mrf.mxu0
  %v6962 = vadd.f32 %v3700, %v6961
  %v6963 = vpop.f32.mrf.mxu0
  %v6964 = vpop.f32.mrf.mxu0
  %v6965 = vadd.f32 %v3700, %v6964
  %v6966 = vpop.f32.mrf.mxu0
  %6967 = vmatprep.mubr.bf16.mxu0 %v6864
  %6968 = vmatmul.mubr.bf16.gmra.mxu0 %v6863
  %v6969 = vpop.f32.mrf.mxu0
  %v6970 = vadd.f32 %v3700, %v6969
  %v6971 = vpop.f32.mrf.mxu0
  %v6972 = vpop.f32.mrf.mxu0
  %v6973 = vadd.f32 %v3700, %v6972
  %v6974 = vpop.f32.mrf.mxu0
  %6975 = vmatprep.mubr.bf16.mxu0 %v6868
  %6976 = vmatmul.mubr.bf16.gmra.mxu0 %v6867
  %v6977 = vpop.f32.mrf.mxu0
  %v6978 = vadd.f32 %v3700, %v6977
  %v6979 = vpop.f32.mrf.mxu0
  %v6980 = vpop.f32.mrf.mxu0
  %v6981 = vadd.f32 %v3700, %v6980
  %v6982 = vpop.f32.mrf.mxu0
  %6983 = vmatprep.mubr.bf16.mxu0 %v6872
  %6984 = vmatmul.mubr.bf16.gmra.mxu0 %v6871
  %v6985 = vpop.f32.mrf.mxu0
  %v6986 = vadd.f32 %v3700, %v6985
  %v6987 = vpop.f32.mrf.mxu0
  %v6988 = vpop.f32.mrf.mxu0
  %v6989 = vadd.f32 %v3700, %v6988
  %v6990 = vpop.f32.mrf.mxu0
  %6991 = vmatprep.mubr.bf16.mxu0 %v6876
  %6992 = vmatmul.mubr.bf16.gmra.mxu0 %v6875
  %v6993 = vpop.f32.mrf.mxu0
  %v6994 = vadd.f32 %v3700, %v6993
  %v6995 = vpop.f32.mrf.mxu0
  %v6996 = vpop.f32.mrf.mxu0
  %v6997 = vadd.f32 %v3700, %v6996
  %v6998 = vpop.f32.mrf.mxu0
  %6999 = vmatprep.mubr.bf16.mxu0 %v6880
  %7000 = vmatmul.mubr.bf16.gmra.mxu0 %v6879
  %v7001 = vpop.f32.mrf.mxu0
  %v7002 = vadd.f32 %v3700, %v7001
  %v7003 = vpop.f32.mrf.mxu0
  %v7004 = vpop.f32.mrf.mxu0
  %v7005 = vadd.f32 %v3700, %v7004
  %v7006 = vpop.f32.mrf.mxu0
  %7007 = vmatprep.mubr.bf16.mxu0 %v6884
  %7008 = vmatmul.mubr.bf16.gmra.mxu0 %v6883
  %v7009 = vpop.f32.mrf.mxu0
  %v7010 = vadd.f32 %v3700, %v7009
  %v7011 = vpop.f32.mrf.mxu0
  %v7012 = vpop.f32.mrf.mxu0
  %v7013 = vadd.f32 %v3700, %v7012
  %v7014 = vpop.f32.mrf.mxu0
  %7015 = vdwg.mxu0
  %7016 = vmatprep.subr.bf16.mxu0 0
  %7017 = vmatpush1.bf16.msra.mxu0 %v4013
  %7018 = vmatprep.subr.bf16.mxu0 0
  %7019 = vmatpush1.bf16.msra.mxu0 %v4012
  %7020 = vmatprep.subr.bf16.mxu0 0
  %7021 = vmatpush1.bf16.msra.mxu0 %v4011
  %7022 = vmatprep.subr.bf16.mxu0 0
  %7023 = vmatpush1.bf16.msra.mxu0 %v4010
  %7024 = vmatprep.subr.bf16.mxu0 0
  %7025 = vmatpush1.bf16.msra.mxu0 %v4009
  %7026 = vmatprep.subr.bf16.mxu0 0
  %7027 = vmatpush1.bf16.msra.mxu0 %v4008
  %7028 = vmatprep.subr.bf16.mxu0 0
  %7029 = vmatpush1.bf16.msra.mxu0 %v4007
  %7030 = vmatprep.subr.bf16.mxu0 0
  %7031 = vmatpush1.bf16.msra.mxu0 %v4006
  %7032 = vmatprep.subr.bf16.mxu0 0
  %7033 = vmatpush2.bf16.msra.mxu0 %v4021
  %7034 = vmatprep.subr.bf16.mxu0 0
  %7035 = vmatpush2.bf16.msra.mxu0 %v4020
  %7036 = vmatprep.subr.bf16.mxu0 0
  %7037 = vmatpush2.bf16.msra.mxu0 %v4019
  %7038 = vmatprep.subr.bf16.mxu0 0
  %7039 = vmatpush2.bf16.msra.mxu0 %v4018
  %7040 = vmatprep.subr.bf16.mxu0 0
  %7041 = vmatpush2.bf16.msra.mxu0 %v4017
  %7042 = vmatprep.subr.bf16.mxu0 0
  %7043 = vmatpush2.bf16.msra.mxu0 %v4016
  %7044 = vmatprep.subr.bf16.mxu0 0
  %7045 = vmatpush2.bf16.msra.mxu0 %v4015
  %7046 = vmatprep.subr.bf16.mxu0 0
  %7047 = vmatpush2.bf16.msra.mxu0 %v4014
  %7048 = vmatprep.mubr.bf16.mxu0 %v6858
  %7049 = vmatmul.mubr.bf16.gmra.mxu0 %v6857
  %v7050 = vpop.f32.mrf.mxu0
  %v7051 = vadd.f32 %v6954, %v7050
  %v7052 = vpop.f32.mrf.mxu0
  %v7053 = vpop.f32.mrf.mxu0
  %v7054 = vadd.f32 %v6957, %v7053
  %v7055 = vpop.f32.mrf.mxu0
  %7056 = vmatprep.mubr.bf16.mxu0 %v6862
  %7057 = vmatmul.mubr.bf16.gmra.mxu0 %v6861
  %v7058 = vpop.f32.mrf.mxu0
  %v7059 = vadd.f32 %v6962, %v7058
  %v7060 = vpop.f32.mrf.mxu0
  %v7061 = vpop.f32.mrf.mxu0
  %v7062 = vadd.f32 %v6965, %v7061
  %v7063 = vpop.f32.mrf.mxu0
  %7064 = vmatprep.mubr.bf16.mxu0 %v6866
  %7065 = vmatmul.mubr.bf16.gmra.mxu0 %v6865
  %v7066 = vpop.f32.mrf.mxu0
  %v7067 = vadd.f32 %v6970, %v7066
  %v7068 = vpop.f32.mrf.mxu0
  %v7069 = vpop.f32.mrf.mxu0
  %v7070 = vadd.f32 %v6973, %v7069
  %v7071 = vpop.f32.mrf.mxu0
  %7072 = vmatprep.mubr.bf16.mxu0 %v6870
  %7073 = vmatmul.mubr.bf16.gmra.mxu0 %v6869
  %v7074 = vpop.f32.mrf.mxu0
  %v7075 = vadd.f32 %v6978, %v7074
  %v7076 = vpop.f32.mrf.mxu0
  %v7077 = vpop.f32.mrf.mxu0
  %v7078 = vadd.f32 %v6981, %v7077
  %v7079 = vpop.f32.mrf.mxu0
  %7080 = vmatprep.mubr.bf16.mxu0 %v6874
  %7081 = vmatmul.mubr.bf16.gmra.mxu0 %v6873
  %v7082 = vpop.f32.mrf.mxu0
  %v7083 = vadd.f32 %v6986, %v7082
  %v7084 = vpop.f32.mrf.mxu0
  %v7085 = vpop.f32.mrf.mxu0
  %v7086 = vadd.f32 %v6989, %v7085
  %v7087 = vpop.f32.mrf.mxu0
  %7088 = vmatprep.mubr.bf16.mxu0 %v6878
  %7089 = vmatmul.mubr.bf16.gmra.mxu0 %v6877
  %v7090 = vpop.f32.mrf.mxu0
  %v7091 = vadd.f32 %v6994, %v7090
  %v7092 = vpop.f32.mrf.mxu0
  %v7093 = vpop.f32.mrf.mxu0
  %v7094 = vadd.f32 %v6997, %v7093
  %v7095 = vpop.f32.mrf.mxu0
  %7096 = vmatprep.mubr.bf16.mxu0 %v6882
  %7097 = vmatmul.mubr.bf16.gmra.mxu0 %v6881
  %v7098 = vpop.f32.mrf.mxu0
  %v7099 = vadd.f32 %v7002, %v7098
  %v7100 = vpop.f32.mrf.mxu0
  %v7101 = vpop.f32.mrf.mxu0
  %v7102 = vadd.f32 %v7005, %v7101
  %v7103 = vpop.f32.mrf.mxu0
  %7104 = vmatprep.mubr.bf16.mxu0 %v6886
  %7105 = vmatmul.mubr.bf16.gmra.mxu0 %v6885
  %v7106 = vpop.f32.mrf.mxu0
  %v7107 = vadd.f32 %v7010, %v7106
  %v7108 = vpop.f32.mrf.mxu0
  %v7109 = vpop.f32.mrf.mxu0
  %v7110 = vadd.f32 %v7013, %v7109
  %v7111 = vpop.f32.mrf.mxu0
  %7112 = vdwg.mxu0
  %v7113 = vmax.f32 %v7051, 0.0
  %v7114 = vmax.f32 %v7054, 0.0
  %v7115 = vmax.f32 %v7059, 0.0
  %v7116 = vmax.f32 %v7062, 0.0
  %v7117 = vmax.f32 %v7067, 0.0
  %v7118 = vmax.f32 %v7070, 0.0
  %v7119 = vmax.f32 %v7075, 0.0
  %v7120 = vmax.f32 %v7078, 0.0
  %v7121 = vmax.f32 %v7083, 0.0
  %v7122 = vmax.f32 %v7086, 0.0
  %v7123 = vmax.f32 %v7091, 0.0
  %v7124 = vmax.f32 %v7094, 0.0
  %v7125 = vmax.f32 %v7099, 0.0
  %v7126 = vmax.f32 %v7102, 0.0
  %v7127 = vmax.f32 %v7107, 0.0
  %v7128 = vmax.f32 %v7110, 0.0
  %v7129 = vpack.c.bf16 %v7114, %v7113
  %v7130 = vpack.c.bf16 %v7116, %v7115
  %v7131 = vpack.c.bf16 %v7118, %v7117
  %v7132 = vpack.c.bf16 %v7120, %v7119
  %v7133 = vpack.c.bf16 %v7122, %v7121
  %v7134 = vpack.c.bf16 %v7124, %v7123
  %v7135 = vpack.c.bf16 %v7126, %v7125
  %v7136 = vpack.c.bf16 %v7128, %v7127
  %v7138 = vsel %vm4302, %v7129, 0
  %v7141 = vsel %vm4302, %v7130, 0
  %v7144 = vsel %vm4302, %v7131, 0
  %v7147 = vsel %vm4302, %v7132, 0
  %v7150 = vsel %vm4302, %v7133, 0
  %v7153 = vsel %vm4302, %v7134, 0
  %v7156 = vsel %vm4302, %v7135, 0
  %v7159 = vsel %vm4302, %v7136, 0
  %7161 = vmatprep.subr.bf16.mxu0 0
  %7162 = vmatpush1.bf16.msra.mxu0 0
  %7163 = vmatprep.subr.bf16.mxu0 0
  %7164 = vmatpush1.bf16.msra.mxu0 0
  %7165 = vmatprep.subr.bf16.mxu0 0
  %7166 = vmatpush1.bf16.msra.mxu0 0
  %7167 = vmatprep.subr.bf16.mxu0 0
  %7168 = vmatpush1.bf16.msra.mxu0 0
  %7169 = vmatprep.subr.bf16.mxu0 0
  %7170 = vmatpush1.bf16.msra.mxu0 %v4297
  %7171 = vmatprep.subr.bf16.mxu0 0
  %7172 = vmatpush1.bf16.msra.mxu0 %v4296
  %7173 = vmatprep.subr.bf16.mxu0 0
  %7174 = vmatpush1.bf16.msra.mxu0 %v4295
  %7175 = vmatprep.subr.bf16.mxu0 0
  %7176 = vmatpush1.bf16.msra.mxu0 %v4294
  %7177 = vmatprep.subr.bf16.mxu0 0
  %7178 = vmatpush2.bf16.msra.mxu0 0
  %7179 = vmatprep.subr.bf16.mxu0 0
  %7180 = vmatpush2.bf16.msra.mxu0 0
  %7181 = vmatprep.subr.bf16.mxu0 0
  %7182 = vmatpush2.bf16.msra.mxu0 0
  %7183 = vmatprep.subr.bf16.mxu0 0
  %7184 = vmatpush2.bf16.msra.mxu0 0
  %7185 = vmatprep.subr.bf16.mxu0 0
  %7186 = vmatpush2.bf16.msra.mxu0 0
  %7187 = vmatprep.subr.bf16.mxu0 0
  %7188 = vmatpush2.bf16.msra.mxu0 0
  %7189 = vmatprep.subr.bf16.mxu0 0
  %7190 = vmatpush2.bf16.msra.mxu0 0
  %7191 = vmatprep.subr.bf16.mxu0 0
  %7192 = vmatpush2.bf16.msra.mxu0 0
  %7193 = vmatprep.mubr.bf16.mxu0 0
  %7194 = vmatmul.mubr.bf16.gmra.mxu0 %v7138
  %v7195 = vpop.f32.mrf.mxu0
  %v7196 = vadd.f32 %v4276, %v7195
  %v7197 = vpop.f32.mrf.mxu0
  %v7198 = vpop.f32.mrf.mxu0
  %v7199 = vadd.f32 %v4276, %v7198
  %v7200 = vpop.f32.mrf.mxu0
  %7201 = vmatprep.mubr.bf16.mxu0 0
  %7202 = vmatmul.mubr.bf16.gmra.mxu0 %v7141
  %v7203 = vpop.f32.mrf.mxu0
  %v7204 = vadd.f32 %v4276, %v7203
  %v7205 = vpop.f32.mrf.mxu0
  %v7206 = vpop.f32.mrf.mxu0
  %v7207 = vadd.f32 %v4276, %v7206
  %v7208 = vpop.f32.mrf.mxu0
  %7209 = vmatprep.mubr.bf16.mxu0 0
  %7210 = vmatmul.mubr.bf16.gmra.mxu0 %v7144
  %v7211 = vpop.f32.mrf.mxu0
  %v7212 = vadd.f32 %v4276, %v7211
  %v7213 = vpop.f32.mrf.mxu0
  %v7214 = vpop.f32.mrf.mxu0
  %v7215 = vadd.f32 %v4276, %v7214
  %v7216 = vpop.f32.mrf.mxu0
  %7217 = vmatprep.mubr.bf16.mxu0 0
  %7218 = vmatmul.mubr.bf16.gmra.mxu0 %v7147
  %v7219 = vpop.f32.mrf.mxu0
  %v7220 = vadd.f32 %v4276, %v7219
  %v7221 = vpop.f32.mrf.mxu0
  %v7222 = vpop.f32.mrf.mxu0
  %v7223 = vadd.f32 %v4276, %v7222
  %v7224 = vpop.f32.mrf.mxu0
  %7225 = vmatprep.mubr.bf16.mxu0 0
  %7226 = vmatmul.mubr.bf16.gmra.mxu0 %v7150
  %v7227 = vpop.f32.mrf.mxu0
  %v7228 = vadd.f32 %v4276, %v7227
  %v7229 = vpop.f32.mrf.mxu0
  %v7230 = vpop.f32.mrf.mxu0
  %v7231 = vadd.f32 %v4276, %v7230
  %v7232 = vpop.f32.mrf.mxu0
  %7233 = vmatprep.mubr.bf16.mxu0 0
  %7234 = vmatmul.mubr.bf16.gmra.mxu0 %v7153
  %v7235 = vpop.f32.mrf.mxu0
  %v7236 = vadd.f32 %v4276, %v7235
  %v7237 = vpop.f32.mrf.mxu0
  %v7238 = vpop.f32.mrf.mxu0
  %v7239 = vadd.f32 %v4276, %v7238
  %v7240 = vpop.f32.mrf.mxu0
  %7241 = vmatprep.mubr.bf16.mxu0 0
  %7242 = vmatmul.mubr.bf16.gmra.mxu0 %v7156
  %v7243 = vpop.f32.mrf.mxu0
  %v7244 = vadd.f32 %v4276, %v7243
  %v7245 = vpop.f32.mrf.mxu0
  %v7246 = vpop.f32.mrf.mxu0
  %v7247 = vadd.f32 %v4276, %v7246
  %v7248 = vpop.f32.mrf.mxu0
  %7249 = vmatprep.mubr.bf16.mxu0 0
  %7250 = vmatmul.mubr.bf16.gmra.mxu0 %v7159
  %v7251 = vpop.f32.mrf.mxu0
  %v7252 = vadd.f32 %v4276, %v7251
  %v7253 = vpop.f32.mrf.mxu0
  %v7254 = vpop.f32.mrf.mxu0
  %v7255 = vadd.f32 %v4276, %v7254
  %v7256 = vpop.f32.mrf.mxu0
  %7257 = vdwg.mxu0
  %7258 = vxpose.xlu0.b32.start [1/16] %v7196, 128
  %7259 = vxpose.xlu0.b32.cont [2/16] %v7199, 128
  %7260 = vxpose.xlu0.b32.cont [3/16] %v7204, 128
  %7261 = vxpose.xlu0.b32.cont [4/16] %v7207, 128
  %7262 = vxpose.xlu0.b32.cont [5/16] %v7212, 128
  %7263 = vxpose.xlu0.b32.cont [6/16] %v7215, 128
  %7264 = vxpose.xlu0.b32.cont [7/16] %v7220, 128
  %7265 = vxpose.xlu0.b32.cont [8/16] %v7223, 128
  %7266 = vxpose.xlu0.b32.cont [9/16] %v7228, 128
  %7267 = vxpose.xlu0.b32.cont [10/16] %v7231, 128
  %7268 = vxpose.xlu0.b32.cont [11/16] %v7236, 128
  %7269 = vxpose.xlu0.b32.cont [12/16] %v7239, 128
  %7270 = vxpose.xlu0.b32.cont [13/16] %v7244, 128
  %7271 = vxpose.xlu0.b32.cont [14/16] %v7247, 128
  %7272 = vxpose.xlu0.b32.cont [15/16] %v7252, 128
  %7273 = vxpose.xlu0.b32.end [16/16] %v7255, 128
  %v7274 = vpop.trf.xlu0
  %v7275 = vpop.trf.xlu0
  %v7276 = vpop.trf.xlu0
  %v7277 = vpop.trf.xlu0
  %v7278 = vpop.trf.xlu0
  %v7279 = vpop.trf.xlu0
  %v7280 = vpop.trf.xlu0
  %v7281 = vpop.trf.xlu0
  %v7282 = vpop.trf.xlu0
  %v7283 = vpop.trf.xlu0
  %v7284 = vpop.trf.xlu0
  %v7285 = vpop.trf.xlu0
  %v7286 = vpop.trf.xlu0
  %v7287 = vpop.trf.xlu0
  %v7288 = vpop.trf.xlu0
  %v7289 = vpop.trf.xlu0
  %s7290 = scalar_lea.vmem %s7, 120
  %7291 = vst [vmem:[%s7290] sm:$0xff] %v7274
  %7292 = vst [vmem:[%s7290 + $0x8] sm:$0xff] %v7275
  %7293 = vst [vmem:[%s7290 + $0x10] sm:$0x1] %v7276
  // Predicated region
  $region30: #{multimodal_decoder.1} parent=0 // pred_check
    _
  $region31: #{multimodal_decoder.1} parent=0 // pred_check_branch
    %7295 = sbr.rel (0) target = $region33
  $region32: #{multimodal_decoder.1} parent=0 // pred_region
    _
  $region33: #{multimodal_decoder.1} parent=0 // pred_fallthru
    _
  // Predicated region
  $region34: #{multimodal_decoder.1} parent=0 // pred_check
    _
  $region35: #{multimodal_decoder.1} parent=0 // pred_check_branch
    %7297 = sbr.rel (0) target = $region37
  $region36: #{multimodal_decoder.1} parent=0 // pred_region
    _
  $region37: #{multimodal_decoder.1} parent=0 // pred_fallthru
    _

</llo_original>
